<compile_context>
chip_gen: v7x
topology: tpu7x:2x2x1
jax: 0.10.0
libtpu: 0.0.40
codegen_flags: <defaults>
</compile_context>

<pallas_src>
import jax
import jax.numpy as jnp
from jax.experimental import pallas as pl
from jax.experimental.pallas import tpu as pltpu

IN_DIM = 2048
HID_DIM = 2048
OUT_DIM = 1


def mlp_kernel(x_ref, w1t_ref, b1_ref, w2_ref, b2_ref, o_ref):
    """One hidden-dim tile of the fused Linear -> ReLU -> (Dropout=id) -> Linear.

    Grid = (n_h,): the hidden dim of layer_1 is tiled into n_h independent slices
    ("parallel" -> split across v7x TensorCores; n_h == 1 on single-TC v5e/v6e).
    The full contraction dim (2048) is resident in VMEM, so layer_1 is a single MXU
    pass with f32 accumulation.  layer_2 over this hidden slice is a lane-dense
    VPU/XLU reduce (no N=1 MXU matvec).
    """
    h = pl.program_id(0)

    pre = jnp.dot(x_ref[...], w1t_ref[...], preferred_element_type=jnp.float32)
    hidden = jnp.maximum(pre + b1_ref[...], 0.0)          # ReLU; dropout(0.1) = identity (eval)

    partial = jnp.sum(hidden * w2_ref[...], axis=-1, keepdims=True)          # (B, 1)
    bias2 = jnp.where(h == 0, b2_ref[...], jnp.zeros_like(b2_ref[...]))      # add b2 exactly once
    o_ref[...] = (partial + bias2).astype(o_ref.dtype)


def _default_hidden_split():
    """n_h = 2 only on v7x (2 TensorCores/chip); v5e / v6e are single-TC -> n_h = 1."""
    try:
        kind = jax.devices()[0].device_kind.lower()
    except Exception:
        return 1
    return 2 if "v7" in kind else 1


def prepare_params(w1, b1, w2, b2, *, stream_dtype=jnp.bfloat16):
    """One-time (init-time) layout / dtype preparation — NOT part of the forward pass.

    w1: (2048, 2048) PyTorch (out, in) -> stored transposed as (in, out) for x @ W1t.
    w2: (1, 2048)    PyTorch (out, in) -> already lane-dense, kept as-is (f32).
    Default stream_dtype=bf16 halves the HBM bytes streamed per forward (f32 accumulate);
    pass jnp.float32 for exact eval-mode validation.
    """
    w1t = jnp.asarray(w1, jnp.float32).T.astype(stream_dtype)      # (IN_DIM, HID_DIM)
    b1r = jnp.asarray(b1, jnp.float32).reshape(1, HID_DIM)
    w2r = jnp.asarray(w2, jnp.float32).reshape(1, HID_DIM)
    b2r = jnp.asarray(b2, jnp.float32).reshape(1, OUT_DIM)
    return w1t, b1r, w2r, b2r


def binary_classifier_forward(x, w1t, b1, w2, b2, *, n_h=None):
    """Forward pass.

    x:   (B, 2048) already in the streaming dtype (bf16 default / f32 for debug).
    w1t: (2048, 2048) in (in, out) layout (pre-transposed by prepare_params).
    """
    B, K = x.shape
    assert K == IN_DIM
    assert x.dtype == w1t.dtype, (
        "cast x to the streaming dtype at the caller (avoids a per-call dispatch)")

    if n_h is None:
        n_h = _default_hidden_split()
    assert HID_DIM % n_h == 0
    tn_h = HID_DIM // n_h
    assert tn_h % 128 == 0

    # Scoped-VMEM budget: double-buffered W1t + x blocks, plus slack for the small
    # operands / outputs / internal scratch.  Stays below physical VMEM on all gens.
    itemsize = jnp.dtype(w1t.dtype).itemsize
    vmem_bytes = 2 * (IN_DIM * tn_h * itemsize) + 2 * (B * IN_DIM * itemsize) + (8 << 20)

    if n_h == 1:
        # Single tile: write the (B, 1) result directly; no wrapper-side combine.
        out_shape = jax.ShapeDtypeStruct((B, OUT_DIM), jnp.float32)
        out_specs = pl.BlockSpec((B, OUT_DIM), lambda h: (0, 0))
    else:
        # Per-hidden-tile partials of layer_2; combined with a tiny sum below.
        out_shape = jax.ShapeDtypeStruct((n_h, B, OUT_DIM), jnp.float32)
        out_specs = pl.BlockSpec((pl.Squeezed(), B, OUT_DIM), lambda h: (h, 0, 0))

    out = pl.pallas_call(
        mlp_kernel,
        out_shape=out_shape,
        grid_spec=pltpu.PrefetchScalarGridSpec(
            num_scalar_prefetch=0,
            grid=(n_h,),
            in_specs=[
                pl.BlockSpec((B, IN_DIM), lambda h: (0, 0)),      # x (full K resident)
                pl.BlockSpec((IN_DIM, tn_h), lambda h: (0, h)),   # W1t tile — no transpose
                pl.BlockSpec((1, tn_h), lambda h: (0, h)),        # b1 slice
                pl.BlockSpec((1, tn_h), lambda h: (0, h)),        # w2 slice (lane-dense)
                pl.BlockSpec((1, OUT_DIM), lambda h: (0, 0)),     # b2
            ],
            out_specs=out_specs,
        ),
        compiler_params=pltpu.CompilerParams(
            dimension_semantics=("parallel",),       # hidden tiles independent (megacore on v7x)
            vmem_limit_bytes=int(vmem_bytes),
        ),
    )(x, w1t, b1, w2, b2)

    if n_h == 1:
        return out
    return jnp.sum(out, axis=0)                      # tiny (n_h, B, 1) -> (B, 1) combine


def init_params(key):
    """Deterministic init matching nn.Linear shapes (uniform ±1/sqrt(fan_in)), PyTorch layout."""
    k1, k2, k3, k4 = jax.random.split(key, 4)
    bound1 = 1.0 / (IN_DIM ** 0.5)
    bound2 = 1.0 / (HID_DIM ** 0.5)
    w1 = jax.random.uniform(k1, (HID_DIM, IN_DIM), jnp.float32, -bound1, bound1)
    b1 = jax.random.uniform(k2, (HID_DIM,), jnp.float32, -bound1, bound1)
    w2 = jax.random.uniform(k3, (OUT_DIM, HID_DIM), jnp.float32, -bound2, bound2)
    b2 = jax.random.uniform(k4, (OUT_DIM,), jnp.float32, -bound2, bound2)
    return w1, b1, w2, b2


if __name__ == "__main__":
    key = jax.random.PRNGKey(0)
    kx, kp = jax.random.split(key)

    B = 8  # model dims are fixed by the module (2048 -> 2048 -> 1); batch kept small
    x = jax.random.normal(kx, (B, IN_DIM), jnp.float32)
    w1, b1, w2, b2 = init_params(kp)

    fwd = jax.jit(binary_classifier_forward, static_argnames=("n_h",))
    n_h_auto = _default_hidden_split()

    # --- default path: bf16 streaming (f32 MXU accumulation) -------------------------
    params_bf16 = prepare_params(w1, b1, w2, b2)             # stream_dtype=bf16 by default
    x_bf16 = x.astype(jnp.bfloat16)                          # cast once, at the caller
    hidden_ref = jnp.maximum(
        jnp.dot(x_bf16, w1.T.astype(jnp.bfloat16),
                preferred_element_type=jnp.float32) + b1,
        0.0,
    )
    ref_bf16 = hidden_ref @ w2.T + b2

    out_auto = jax.block_until_ready(fwd(x_bf16, *params_bf16, n_h=n_h_auto))
    assert out_auto.shape == (B, OUT_DIM)
    assert jnp.allclose(out_auto, ref_bf16, atol=1e-2, rtol=1e-2), "bf16 (auto n_h) mismatch"

    # Exercise both grid layouts explicitly (single-tile and 2-way split).
    out_nh1 = jax.block_until_ready(fwd(x_bf16, *params_bf16, n_h=1))
    out_nh2 = jax.block_until_ready(fwd(x_bf16, *params_bf16, n_h=2))
    assert jnp.allclose(out_nh1, ref_bf16, atol=1e-2, rtol=1e-2), "bf16 (n_h=1) mismatch"
    assert jnp.allclose(out_nh2, ref_bf16, atol=1e-2, rtol=1e-2), "bf16 (n_h=2) mismatch"

    # --- f32 debug/validation path: exact eval-mode PyTorch semantics ----------------
    # n_h=2 keeps the f32 W1t blocks at 8 MiB (double-buffered 16 MiB) on every generation.
    params_f32 = prepare_params(w1, b1, w2, b2, stream_dtype=jnp.float32)
    out_f32 = jax.block_until_ready(fwd(x, *params_f32, n_h=2))
    ref_f32 = jnp.maximum(x @ w1.T + b1, 0.0) @ w2.T + b2
    assert out_f32.shape == (B, OUT_DIM)
    assert jnp.allclose(out_f32, ref_f32, atol=1e-3, rtol=1e-3), "f32 mismatch vs reference"

    print("KERNEL_OK")
</pallas_src>

<mosaic_0001>
module attributes {stable_mosaic.version = 11 : i64} {
  func.func @mlp_kernel(%arg0: i32, %arg1: memref<8x2048xbf16, #tpu.memory_space<vmem>>, %arg2: memref<2048x2048xbf16, #tpu.memory_space<vmem>>, %arg3: memref<1x2048xf32, #tpu.memory_space<vmem>>, %arg4: memref<1x2048xf32, #tpu.memory_space<vmem>>, %arg5: memref<1x1xf32, #tpu.memory_space<vmem>>, %arg6: memref<8x1xf32, #tpu.memory_space<vmem>>) attributes {dimension_semantics = [#tpu.dimension_semantics<parallel>], iteration_bounds = array<i64: 1>, scalar_prefetch = 0 : i64, scratch_operands = 0 : i64, tpu.core_type = #tpu.core_type<tc>, window_params = [{pipeline_mode = #tpu.pipeline_mode<synchronous>, transform_indices = @transform_0, window_bounds = array<i64: 8, 2048>}, {transform_indices = @transform_1, window_bounds = array<i64: 2048, 2048>}, {transform_indices = @transform_2, window_bounds = array<i64: 1, 2048>}, {transform_indices = @transform_3, window_bounds = array<i64: 1, 2048>}, {pipeline_mode = #tpu.pipeline_mode<synchronous>, transform_indices = @transform_4, window_bounds = array<i64: 1, 1>}, {pipeline_mode = #tpu.pipeline_mode<synchronous>, transform_indices = @transform_5, window_bounds = array<i64: 8, 1>}]} {
    %c0 = arith.constant 0 : index
    %c0_0 = arith.constant 0 : index
    %0 = vector.load %arg1[%c0, %c0_0] : memref<8x2048xbf16, #tpu.memory_space<vmem>>, vector<8x2048xbf16>
    %c0_1 = arith.constant 0 : index
    %c0_2 = arith.constant 0 : index
    %1 = vector.load %arg2[%c0_1, %c0_2] : memref<2048x2048xbf16, #tpu.memory_space<vmem>>, vector<2048x2048xbf16>
    %cst = arith.constant dense<0.000000e+00> : vector<8x2048xf32>
    %2 = tpu.matmul %0, %1, %cst {dimension_numbers = #tpu.dot_dimension_numbers<[1], [0], [0], [1], [0, 0, 1, 1], [], []>} : vector<8x2048xbf16>, vector<2048x2048xbf16>, vector<8x2048xf32> -> vector<8x2048xf32>
    %c0_3 = arith.constant 0 : index
    %c0_4 = arith.constant 0 : index
    %3 = vector.load %arg3[%c0_3, %c0_4] : memref<1x2048xf32, #tpu.memory_space<vmem>>, vector<1x2048xf32>
    %4 = vector.broadcast %3 : vector<1x2048xf32> to vector<8x2048xf32>
    %5 = arith.addf %2, %4 : vector<8x2048xf32>
    %cst_5 = arith.constant 0.000000e+00 : f32
    %6 = vector.broadcast %cst_5 : f32 to vector<8x2048xf32>
    %7 = arith.maximumf %5, %6 : vector<8x2048xf32>
    %c0_6 = arith.constant 0 : index
    %c0_7 = arith.constant 0 : index
    %8 = vector.load %arg4[%c0_6, %c0_7] : memref<1x2048xf32, #tpu.memory_space<vmem>>, vector<1x2048xf32>
    %9 = vector.broadcast %8 : vector<1x2048xf32> to vector<8x2048xf32>
    %10 = arith.mulf %7, %9 : vector<8x2048xf32>
    %cst_8 = arith.constant dense<0.000000e+00> : vector<8xf32>
    %11 = vector.multi_reduction <add>, %10, %cst_8 [1] : vector<8x2048xf32> to vector<8xf32>
    %12 = vector.shape_cast %11 : vector<8xf32> to vector<8x1xf32>
    %c0_i32 = arith.constant 0 : i32
    %13 = arith.cmpi eq, %arg0, %c0_i32 : i32
    %c0_9 = arith.constant 0 : index
    %c0_10 = arith.constant 0 : index
    %14 = vector.load %arg5[%c0_9, %c0_10] : memref<1x1xf32, #tpu.memory_space<vmem>>, vector<1x1xf32>
    %cst_11 = arith.constant 0.000000e+00 : f32
    %15 = vector.broadcast %cst_11 : f32 to vector<1x1xf32>
    %16 = arith.select %13, %14, %15 : vector<1x1xf32>
    %17 = vector.broadcast %16 : vector<1x1xf32> to vector<8x1xf32>
    %18 = arith.addf %12, %17 : vector<8x1xf32>
    %c0_12 = arith.constant 0 : index
    %c0_13 = arith.constant 0 : index
    %19 = vector.load %arg6[%c0_12, %c0_13] : memref<8x1xf32, #tpu.memory_space<vmem>>, vector<8x1xf32>
    tpu.vector_store %arg6[%c0_12, %c0_13], %18 {strides = array<i32>} : memref<8x1xf32, #tpu.memory_space<vmem>>, vector<8x1xf32>,
    return
  }
  func.func @transform_0(%arg0: i32) -> (i32, i32) {
    %c0_i32 = arith.constant 0 : i32
    %c0_i32_0 = arith.constant 0 : i32
    %c0_i32_1 = arith.constant 0 : i32
    return %c0_i32, %c0_i32_0 : i32, i32
  }
  func.func @transform_1(%arg0: i32) -> (i32, i32) {
    %c0_i32 = arith.constant 0 : i32
    %c0_i32_0 = arith.constant 0 : i32
    return %c0_i32, %arg0 : i32, i32
  }
  func.func @transform_2(%arg0: i32) -> (i32, i32) {
    %c0_i32 = arith.constant 0 : i32
    %c0_i32_0 = arith.constant 0 : i32
    return %c0_i32, %arg0 : i32, i32
  }
  func.func @transform_3(%arg0: i32) -> (i32, i32) {
    %c0_i32 = arith.constant 0 : i32
    %c0_i32_0 = arith.constant 0 : i32
    return %c0_i32, %arg0 : i32, i32
  }
  func.func @transform_4(%arg0: i32) -> (i32, i32) {
    %c0_i32 = arith.constant 0 : i32
    %c0_i32_0 = arith.constant 0 : i32
    %c0_i32_1 = arith.constant 0 : i32
    return %c0_i32, %c0_i32_0 : i32, i32
  }
  func.func @transform_5(%arg0: i32) -> (i32, i32) {
    %c0_i32 = arith.constant 0 : i32
    %c0_i32_0 = arith.constant 0 : i32
    %c0_i32_1 = arith.constant 0 : i32
    return %c0_i32, %c0_i32_0 : i32, i32
  }
}

</mosaic_0001>

<llo_original>
// kernel: binary_classifier_forward.1
$region0: #{binary_classifier_forward.1}
  #allocation0 [shape = 'u32[]', space=smem, size = 0x4, offset = 0x4, fixed_abs, tag = 'smem constant byte address 0x4 - core index']
  #allocation1 [shape = 'u32[144,128]{1,0:T(1,128)}', space=vmem, size = 0x12000, scoped, tag = 'internal scratch']
  #allocation2 [shape = 'f32[1,1]{1,0:T(1,128)S(1)}', space=vmem, size = 0x200, scoped, tag = 'scoped memory for binary_classifier_forward.1']
  %s0 = inlined_call_operand.hbm [shape: bf16[8,2048], index: 0, kind: input, shape index: {}]
  %s1 = inlined_call_operand.hbm [shape: bf16[2048,2048], index: 1, kind: input, shape index: {}]
  %s2 = inlined_call_operand.hbm [shape: f32[1,2048], index: 2, kind: input, shape index: {}]
  %s3 = inlined_call_operand.hbm [shape: f32[1,2048], index: 3, kind: input, shape index: {}]
  %s4 = inlined_call_operand.<no memory space> [shape: f32[1,1], index: 4, kind: input, shape index: {}]
  %s5 = inlined_call_operand.vmem [shape: f32[8,1], index: 5, kind: output, shape index: {}]
  %s6 = sld [smem:[#allocation0]]
  $region46: #{binary_classifier_forward.1} parent=0
    _
  %s8 = ssub.s32 1, %s6
  %s9 = scalar_select 0, %s8, %s6
  %v10 = vstv %s4
  %11 = vst [vmem:[#allocation2] sm:$0x1] %v10
  $region1: #{binary_classifier_forward.1} parent=0
    #allocation3 [shape = 'u8[32768]{0}', space=vmem, size = 0x8000, scoped, tag = 'input window, operand 0, single buffered']
    #allocation4 [shape = 's32[1]{0}', space=sflag, size = 0x4, scoped, tag = 'scoped memory for binary_classifier_forward.1']
    #allocation5 [shape = 'u8[8388608]{0}', space=vmem, size = 0x800000, scoped, tag = 'input window, operand 1, single buffered']
    #allocation6 [shape = 's32[1]{0}', space=sflag, size = 0x4, scoped, tag = 'scoped memory for binary_classifier_forward.1']
    #allocation7 [shape = 'u8[8192]{0}', space=vmem, size = 0x2000, scoped, tag = 'input window, operand 2, single buffered']
    #allocation8 [shape = 'u8[8192]{0}', space=vmem, size = 0x2000, scoped, tag = 'input window, operand 3, single buffered']
    #allocation9 [shape = 's32[1]{0}', space=sflag, size = 0x4, scoped, tag = 'scoped memory for binary_classifier_forward.1']
    %12 = vsyncpa [#allocation4], 0
    %13 = vsyncpa [#allocation6], 0
    %14 = vsyncpa [#allocation9], 0
    // Predicated region
    $region2: #{binary_classifier_forward.1} parent=1 // pred_check
      _
    $region3: #{binary_classifier_forward.1} parent=1 // pred_check_branch
      %16 = sbr.rel (0) target = $region5
    $region4: #{binary_classifier_forward.1} parent=1 // pred_region
      %s18 = ssub.s32 1024, 1024
      %19 = vsyncadd [#allocation4], %s18
      %s21 = sshll.u32 [#allocation3], 4
      %s22 = int_to_ptr.vmem [resolvable:$true] %s21
      %24 = dma.hbm_to_vmem [thread:$0]  %s0, 1024, %s22, [#allocation4]
    $region5: #{binary_classifier_forward.1} parent=1 // pred_fallthru
      _
    // Predicated region
    $region6: #{binary_classifier_forward.1} parent=1 // pred_check
      _
    $region7: #{binary_classifier_forward.1} parent=1 // pred_check_branch
      %26 = sbr.rel (0) target = $region9
    $region8: #{binary_classifier_forward.1} parent=1 // pred_region
      %s28 = ssub.s32 262144, 262144
      %29 = vsyncadd [#allocation6], %s28
      %s30 = sshll.u32 [#allocation5], 4
      %s31 = int_to_ptr.vmem [resolvable:$true] %s30
      %36 = dma.hbm_to_vmem [thread:$0]  %s1, 262144, %s31, [#allocation6], 1024, 1024, 64
    $region9: #{binary_classifier_forward.1} parent=1 // pred_fallthru
      _
    // Predicated region
    $region10: #{binary_classifier_forward.1} parent=1 // pred_check
      _
    $region11: #{binary_classifier_forward.1} parent=1 // pred_check_branch
      %38 = sbr.rel (0) target = $region13
    $region12: #{binary_classifier_forward.1} parent=1 // pred_region
      %s40 = ssub.s32 256, 256
      %41 = vsyncadd [#allocation6], %s40
      %s43 = sshll.u32 [#allocation7], 4
      %s44 = int_to_ptr.vmem [resolvable:$true] %s43
      %46 = dma.hbm_to_vmem [thread:$0]  %s2, 256, %s44, [#allocation6]
    $region13: #{binary_classifier_forward.1} parent=1 // pred_fallthru
      _
    // Predicated region
    $region14: #{binary_classifier_forward.1} parent=1 // pred_check
      _
    $region15: #{binary_classifier_forward.1} parent=1 // pred_check_branch
      %48 = sbr.rel (0) target = $region17
    $region16: #{binary_classifier_forward.1} parent=1 // pred_region
      %s50 = ssub.s32 256, 256
      %51 = vsyncadd [#allocation9], %s50
      %s53 = sshll.u32 [#allocation8], 4
      %s54 = int_to_ptr.vmem [resolvable:$true] %s53
      %56 = dma.hbm_to_vmem [thread:$0]  %s3, 256, %s54, [#allocation9]
    $region17: #{binary_classifier_forward.1} parent=1 // pred_fallthru
      _
    // Predicated region
    $region18: #{binary_classifier_forward.1} parent=1 // pred_check
      _
    $region19: #{binary_classifier_forward.1} parent=1 // pred_check_branch
      %58 = sbr.rel (0) target = $region21
    $region20: #{binary_classifier_forward.1} parent=1 // pred_region
      _
    $region21: #{binary_classifier_forward.1} parent=1 // pred_fallthru
      _
    // Predicated region
    $region22: #{binary_classifier_forward.1} parent=1 // pred_check
      _
    $region23: #{binary_classifier_forward.1} parent=1 // pred_check_branch
      %60 = sbr.rel (0) target = $region25
    $region24: #{binary_classifier_forward.1} parent=1 // pred_region
      %61 = dma.done [#allocation4], 1024
    $region25: #{binary_classifier_forward.1} parent=1 // pred_fallthru
      _
    // Predicated region
    $region26: #{binary_classifier_forward.1} parent=1 // pred_check
      _
    $region27: #{binary_classifier_forward.1} parent=1 // pred_check_branch
      %63 = sbr.rel (0) target = $region29
    $region28: #{binary_classifier_forward.1} parent=1 // pred_region
      %64 = dma.done [#allocation6], 262144
    $region29: #{binary_classifier_forward.1} parent=1 // pred_fallthru
      _
    // Predicated region
    $region30: #{binary_classifier_forward.1} parent=1 // pred_check
      _
    $region31: #{binary_classifier_forward.1} parent=1 // pred_check_branch
      %66 = sbr.rel (0) target = $region33
    $region32: #{binary_classifier_forward.1} parent=1 // pred_region
      %67 = dma.done [#allocation6], 256
    $region33: #{binary_classifier_forward.1} parent=1 // pred_fallthru
      _
    // Predicated region
    $region34: #{binary_classifier_forward.1} parent=1 // pred_check
      _
    $region35: #{binary_classifier_forward.1} parent=1 // pred_check_branch
      %69 = sbr.rel (0) target = $region37
    $region36: #{binary_classifier_forward.1} parent=1 // pred_region
      %70 = dma.done [#allocation9], 256
    $region37: #{binary_classifier_forward.1} parent=1 // pred_fallthru
      _
    %v71 = vld [vmem:[#allocation3] sm:$0xff]
    %v72 = vld [vmem:[#allocation3 + $0x8] sm:$0xff]
    %v73 = vld [vmem:[#allocation3 + $0x10] sm:$0xff]
    %v74 = vld [vmem:[#allocation3 + $0x18] sm:$0xff]
    %v75 = vld [vmem:[#allocation3 + $0x20] sm:$0xff]
    %v76 = vld [vmem:[#allocation3 + $0x28] sm:$0xff]
    %v77 = vld [vmem:[#allocation3 + $0x30] sm:$0xff]
    %v78 = vld [vmem:[#allocation3 + $0x38] sm:$0xff]
    %v79 = vld [vmem:[#allocation5] sm:$0xff]
    %v80 = vld [vmem:[#allocation5 + $0x8] sm:$0xff]
    %v81 = vld [vmem:[#allocation5 + $0x10] sm:$0xff]
    %v82 = vld [vmem:[#allocation5 + $0x18] sm:$0xff]
    %v83 = vld [vmem:[#allocation5 + $0x20] sm:$0xff]
    %v84 = vld [vmem:[#allocation5 + $0x28] sm:$0xff]
    %v85 = vld [vmem:[#allocation5 + $0x30] sm:$0xff]
    %v86 = vld [vmem:[#allocation5 + $0x38] sm:$0xff]
    %v87 = vld [vmem:[#allocation5 + $0x40] sm:$0xff]
    %v88 = vld [vmem:[#allocation5 + $0x48] sm:$0xff]
    %v89 = vld [vmem:[#allocation5 + $0x50] sm:$0xff]
    %v90 = vld [vmem:[#allocation5 + $0x58] sm:$0xff]
    %v91 = vld [vmem:[#allocation5 + $0x60] sm:$0xff]
    %v92 = vld [vmem:[#allocation5 + $0x68] sm:$0xff]
    %v93 = vld [vmem:[#allocation5 + $0x70] sm:$0xff]
    %v94 = vld [vmem:[#allocation5 + $0x78] sm:$0xff]
    %v95 = vld [vmem:[#allocation5 + $0x80] sm:$0xff]
    %v96 = vld [vmem:[#allocation5 + $0x88] sm:$0xff]
    %v97 = vld [vmem:[#allocation5 + $0x90] sm:$0xff]
    %v98 = vld [vmem:[#allocation5 + $0x98] sm:$0xff]
    %v99 = vld [vmem:[#allocation5 + $0xa0] sm:$0xff]
    %v100 = vld [vmem:[#allocation5 + $0xa8] sm:$0xff]
    %v101 = vld [vmem:[#allocation5 + $0xb0] sm:$0xff]
    %v102 = vld [vmem:[#allocation5 + $0xb8] sm:$0xff]
    %v103 = vld [vmem:[#allocation5 + $0xc0] sm:$0xff]
    %v104 = vld [vmem:[#allocation5 + $0xc8] sm:$0xff]
    %v105 = vld [vmem:[#allocation5 + $0xd0] sm:$0xff]
    %v106 = vld [vmem:[#allocation5 + $0xd8] sm:$0xff]
    %v107 = vld [vmem:[#allocation5 + $0xe0] sm:$0xff]
    %v108 = vld [vmem:[#allocation5 + $0xe8] sm:$0xff]
    %v109 = vld [vmem:[#allocation5 + $0xf0] sm:$0xff]
    %v110 = vld [vmem:[#allocation5 + $0xf8] sm:$0xff]
    %v111 = vld [vmem:[#allocation5 + $0x100] sm:$0xff]
    %v112 = vld [vmem:[#allocation5 + $0x108] sm:$0xff]
    %v113 = vld [vmem:[#allocation5 + $0x110] sm:$0xff]
    %v114 = vld [vmem:[#allocation5 + $0x118] sm:$0xff]
    %v115 = vld [vmem:[#allocation5 + $0x120] sm:$0xff]
    %v116 = vld [vmem:[#allocation5 + $0x128] sm:$0xff]
    %v117 = vld [vmem:[#allocation5 + $0x130] sm:$0xff]
    %v118 = vld [vmem:[#allocation5 + $0x138] sm:$0xff]
    %v119 = vld [vmem:[#allocation5 + $0x140] sm:$0xff]
    %v120 = vld [vmem:[#allocation5 + $0x148] sm:$0xff]
    %v121 = vld [vmem:[#allocation5 + $0x150] sm:$0xff]
    %v122 = vld [vmem:[#allocation5 + $0x158] sm:$0xff]
    %v123 = vld [vmem:[#allocation5 + $0x160] sm:$0xff]
    %v124 = vld [vmem:[#allocation5 + $0x168] sm:$0xff]
    %v125 = vld [vmem:[#allocation5 + $0x170] sm:$0xff]
    %v126 = vld [vmem:[#allocation5 + $0x178] sm:$0xff]
    %v127 = vld [vmem:[#allocation5 + $0x180] sm:$0xff]
    %v128 = vld [vmem:[#allocation5 + $0x188] sm:$0xff]
    %v129 = vld [vmem:[#allocation5 + $0x190] sm:$0xff]
    %v130 = vld [vmem:[#allocation5 + $0x198] sm:$0xff]
    %v131 = vld [vmem:[#allocation5 + $0x1a0] sm:$0xff]
    %v132 = vld [vmem:[#allocation5 + $0x1a8] sm:$0xff]
    %v133 = vld [vmem:[#allocation5 + $0x1b0] sm:$0xff]
    %v134 = vld [vmem:[#allocation5 + $0x1b8] sm:$0xff]
    %v135 = vld [vmem:[#allocation5 + $0x1c0] sm:$0xff]
    %v136 = vld [vmem:[#allocation5 + $0x1c8] sm:$0xff]
    %v137 = vld [vmem:[#allocation5 + $0x1d0] sm:$0xff]
    %v138 = vld [vmem:[#allocation5 + $0x1d8] sm:$0xff]
    %v139 = vld [vmem:[#allocation5 + $0x1e0] sm:$0xff]
    %v140 = vld [vmem:[#allocation5 + $0x1e8] sm:$0xff]
    %v141 = vld [vmem:[#allocation5 + $0x1f0] sm:$0xff]
    %v142 = vld [vmem:[#allocation5 + $0x1f8] sm:$0xff]
    %v143 = vld [vmem:[#allocation5 + $0x200] sm:$0xff]
    %v144 = vld [vmem:[#allocation5 + $0x208] sm:$0xff]
    %v145 = vld [vmem:[#allocation5 + $0x210] sm:$0xff]
    %v146 = vld [vmem:[#allocation5 + $0x218] sm:$0xff]
    %v147 = vld [vmem:[#allocation5 + $0x220] sm:$0xff]
    %v148 = vld [vmem:[#allocation5 + $0x228] sm:$0xff]
    %v149 = vld [vmem:[#allocation5 + $0x230] sm:$0xff]
    %v150 = vld [vmem:[#allocation5 + $0x238] sm:$0xff]
    %v151 = vld [vmem:[#allocation5 + $0x240] sm:$0xff]
    %v152 = vld [vmem:[#allocation5 + $0x248] sm:$0xff]
    %v153 = vld [vmem:[#allocation5 + $0x250] sm:$0xff]
    %v154 = vld [vmem:[#allocation5 + $0x258] sm:$0xff]
    %v155 = vld [vmem:[#allocation5 + $0x260] sm:$0xff]
    %v156 = vld [vmem:[#allocation5 + $0x268] sm:$0xff]
    %v157 = vld [vmem:[#allocation5 + $0x270] sm:$0xff]
    %v158 = vld [vmem:[#allocation5 + $0x278] sm:$0xff]
    %v159 = vld [vmem:[#allocation5 + $0x280] sm:$0xff]
    %v160 = vld [vmem:[#allocation5 + $0x288] sm:$0xff]
    %v161 = vld [vmem:[#allocation5 + $0x290] sm:$0xff]
    %v162 = vld [vmem:[#allocation5 + $0x298] sm:$0xff]
    %v163 = vld [vmem:[#allocation5 + $0x2a0] sm:$0xff]
    %v164 = vld [vmem:[#allocation5 + $0x2a8] sm:$0xff]
    %v165 = vld [vmem:[#allocation5 + $0x2b0] sm:$0xff]
    %v166 = vld [vmem:[#allocation5 + $0x2b8] sm:$0xff]
    %v167 = vld [vmem:[#allocation5 + $0x2c0] sm:$0xff]
    %v168 = vld [vmem:[#allocation5 + $0x2c8] sm:$0xff]
    %v169 = vld [vmem:[#allocation5 + $0x2d0] sm:$0xff]
    %v170 = vld [vmem:[#allocation5 + $0x2d8] sm:$0xff]
    %v171 = vld [vmem:[#allocation5 + $0x2e0] sm:$0xff]
    %v172 = vld [vmem:[#allocation5 + $0x2e8] sm:$0xff]
    %v173 = vld [vmem:[#allocation5 + $0x2f0] sm:$0xff]
    %v174 = vld [vmem:[#allocation5 + $0x2f8] sm:$0xff]
    %v175 = vld [vmem:[#allocation5 + $0x300] sm:$0xff]
    %v176 = vld [vmem:[#allocation5 + $0x308] sm:$0xff]
    %v177 = vld [vmem:[#allocation5 + $0x310] sm:$0xff]
    %v178 = vld [vmem:[#allocation5 + $0x318] sm:$0xff]
    %v179 = vld [vmem:[#allocation5 + $0x320] sm:$0xff]
    %v180 = vld [vmem:[#allocation5 + $0x328] sm:$0xff]
    %v181 = vld [vmem:[#allocation5 + $0x330] sm:$0xff]
    %v182 = vld [vmem:[#allocation5 + $0x338] sm:$0xff]
    %v183 = vld [vmem:[#allocation5 + $0x340] sm:$0xff]
    %v184 = vld [vmem:[#allocation5 + $0x348] sm:$0xff]
    %v185 = vld [vmem:[#allocation5 + $0x350] sm:$0xff]
    %v186 = vld [vmem:[#allocation5 + $0x358] sm:$0xff]
    %v187 = vld [vmem:[#allocation5 + $0x360] sm:$0xff]
    %v188 = vld [vmem:[#allocation5 + $0x368] sm:$0xff]
    %v189 = vld [vmem:[#allocation5 + $0x370] sm:$0xff]
    %v190 = vld [vmem:[#allocation5 + $0x378] sm:$0xff]
    %v191 = vld [vmem:[#allocation5 + $0x380] sm:$0xff]
    %v192 = vld [vmem:[#allocation5 + $0x388] sm:$0xff]
    %v193 = vld [vmem:[#allocation5 + $0x390] sm:$0xff]
    %v194 = vld [vmem:[#allocation5 + $0x398] sm:$0xff]
    %v195 = vld [vmem:[#allocation5 + $0x3a0] sm:$0xff]
    %v196 = vld [vmem:[#allocation5 + $0x3a8] sm:$0xff]
    %v197 = vld [vmem:[#allocation5 + $0x3b0] sm:$0xff]
    %v198 = vld [vmem:[#allocation5 + $0x3b8] sm:$0xff]
    %v199 = vld [vmem:[#allocation5 + $0x3c0] sm:$0xff]
    %v200 = vld [vmem:[#allocation5 + $0x3c8] sm:$0xff]
    %v201 = vld [vmem:[#allocation5 + $0x3d0] sm:$0xff]
    %v202 = vld [vmem:[#allocation5 + $0x3d8] sm:$0xff]
    %v203 = vld [vmem:[#allocation5 + $0x3e0] sm:$0xff]
    %v204 = vld [vmem:[#allocation5 + $0x3e8] sm:$0xff]
    %v205 = vld [vmem:[#allocation5 + $0x3f0] sm:$0xff]
    %v206 = vld [vmem:[#allocation5 + $0x3f8] sm:$0xff]
    %v207 = vld [vmem:[#allocation5 + $0x400] sm:$0xff]
    %v208 = vld [vmem:[#allocation5 + $0x408] sm:$0xff]
    %v209 = vld [vmem:[#allocation5 + $0x410] sm:$0xff]
    %v210 = vld [vmem:[#allocation5 + $0x418] sm:$0xff]
    %v211 = vld [vmem:[#allocation5 + $0x420] sm:$0xff]
    %v212 = vld [vmem:[#allocation5 + $0x428] sm:$0xff]
    %v213 = vld [vmem:[#allocation5 + $0x430] sm:$0xff]
    %v214 = vld [vmem:[#allocation5 + $0x438] sm:$0xff]
    %v215 = vld [vmem:[#allocation5 + $0x440] sm:$0xff]
    %v216 = vld [vmem:[#allocation5 + $0x448] sm:$0xff]
    %v217 = vld [vmem:[#allocation5 + $0x450] sm:$0xff]
    %v218 = vld [vmem:[#allocation5 + $0x458] sm:$0xff]
    %v219 = vld [vmem:[#allocation5 + $0x460] sm:$0xff]
    %v220 = vld [vmem:[#allocation5 + $0x468] sm:$0xff]
    %v221 = vld [vmem:[#allocation5 + $0x470] sm:$0xff]
    %v222 = vld [vmem:[#allocation5 + $0x478] sm:$0xff]
    %v223 = vld [vmem:[#allocation5 + $0x480] sm:$0xff]
    %v224 = vld [vmem:[#allocation5 + $0x488] sm:$0xff]
    %v225 = vld [vmem:[#allocation5 + $0x490] sm:$0xff]
    %v226 = vld [vmem:[#allocation5 + $0x498] sm:$0xff]
    %v227 = vld [vmem:[#allocation5 + $0x4a0] sm:$0xff]
    %v228 = vld [vmem:[#allocation5 + $0x4a8] sm:$0xff]
    %v229 = vld [vmem:[#allocation5 + $0x4b0] sm:$0xff]
    %v230 = vld [vmem:[#allocation5 + $0x4b8] sm:$0xff]
    %v231 = vld [vmem:[#allocation5 + $0x4c0] sm:$0xff]
    %v232 = vld [vmem:[#allocation5 + $0x4c8] sm:$0xff]
    %v233 = vld [vmem:[#allocation5 + $0x4d0] sm:$0xff]
    %v234 = vld [vmem:[#allocation5 + $0x4d8] sm:$0xff]
    %v235 = vld [vmem:[#allocation5 + $0x4e0] sm:$0xff]
    %v236 = vld [vmem:[#allocation5 + $0x4e8] sm:$0xff]
    %v237 = vld [vmem:[#allocation5 + $0x4f0] sm:$0xff]
    %v238 = vld [vmem:[#allocation5 + $0x4f8] sm:$0xff]
    %v239 = vld [vmem:[#allocation5 + $0x500] sm:$0xff]
    %v240 = vld [vmem:[#allocation5 + $0x508] sm:$0xff]
    %v241 = vld [vmem:[#allocation5 + $0x510] sm:$0xff]
    %v242 = vld [vmem:[#allocation5 + $0x518] sm:$0xff]
    %v243 = vld [vmem:[#allocation5 + $0x520] sm:$0xff]
    %v244 = vld [vmem:[#allocation5 + $0x528] sm:$0xff]
    %v245 = vld [vmem:[#allocation5 + $0x530] sm:$0xff]
    %v246 = vld [vmem:[#allocation5 + $0x538] sm:$0xff]
    %v247 = vld [vmem:[#allocation5 + $0x540] sm:$0xff]
    %v248 = vld [vmem:[#allocation5 + $0x548] sm:$0xff]
    %v249 = vld [vmem:[#allocation5 + $0x550] sm:$0xff]
    %v250 = vld [vmem:[#allocation5 + $0x558] sm:$0xff]
    %v251 = vld [vmem:[#allocation5 + $0x560] sm:$0xff]
    %v252 = vld [vmem:[#allocation5 + $0x568] sm:$0xff]
    %v253 = vld [vmem:[#allocation5 + $0x570] sm:$0xff]
    %v254 = vld [vmem:[#allocation5 + $0x578] sm:$0xff]
    %v255 = vld [vmem:[#allocation5 + $0x580] sm:$0xff]
    %v256 = vld [vmem:[#allocation5 + $0x588] sm:$0xff]
    %v257 = vld [vmem:[#allocation5 + $0x590] sm:$0xff]
    %v258 = vld [vmem:[#allocation5 + $0x598] sm:$0xff]
    %v259 = vld [vmem:[#allocation5 + $0x5a0] sm:$0xff]
    %v260 = vld [vmem:[#allocation5 + $0x5a8] sm:$0xff]
    %v261 = vld [vmem:[#allocation5 + $0x5b0] sm:$0xff]
    %v262 = vld [vmem:[#allocation5 + $0x5b8] sm:$0xff]
    %v263 = vld [vmem:[#allocation5 + $0x5c0] sm:$0xff]
    %v264 = vld [vmem:[#allocation5 + $0x5c8] sm:$0xff]
    %v265 = vld [vmem:[#allocation5 + $0x5d0] sm:$0xff]
    %v266 = vld [vmem:[#allocation5 + $0x5d8] sm:$0xff]
    %v267 = vld [vmem:[#allocation5 + $0x5e0] sm:$0xff]
    %v268 = vld [vmem:[#allocation5 + $0x5e8] sm:$0xff]
    %v269 = vld [vmem:[#allocation5 + $0x5f0] sm:$0xff]
    %v270 = vld [vmem:[#allocation5 + $0x5f8] sm:$0xff]
    %v271 = vld [vmem:[#allocation5 + $0x600] sm:$0xff]
    %v272 = vld [vmem:[#allocation5 + $0x608] sm:$0xff]
    %v273 = vld [vmem:[#allocation5 + $0x610] sm:$0xff]
    %v274 = vld [vmem:[#allocation5 + $0x618] sm:$0xff]
    %v275 = vld [vmem:[#allocation5 + $0x620] sm:$0xff]
    %v276 = vld [vmem:[#allocation5 + $0x628] sm:$0xff]
    %v277 = vld [vmem:[#allocation5 + $0x630] sm:$0xff]
    %v278 = vld [vmem:[#allocation5 + $0x638] sm:$0xff]
    %v279 = vld [vmem:[#allocation5 + $0x640] sm:$0xff]
    %v280 = vld [vmem:[#allocation5 + $0x648] sm:$0xff]
    %v281 = vld [vmem:[#allocation5 + $0x650] sm:$0xff]
    %v282 = vld [vmem:[#allocation5 + $0x658] sm:$0xff]
    %v283 = vld [vmem:[#allocation5 + $0x660] sm:$0xff]
    %v284 = vld [vmem:[#allocation5 + $0x668] sm:$0xff]
    %v285 = vld [vmem:[#allocation5 + $0x670] sm:$0xff]
    %v286 = vld [vmem:[#allocation5 + $0x678] sm:$0xff]
    %v287 = vld [vmem:[#allocation5 + $0x680] sm:$0xff]
    %v288 = vld [vmem:[#allocation5 + $0x688] sm:$0xff]
    %v289 = vld [vmem:[#allocation5 + $0x690] sm:$0xff]
    %v290 = vld [vmem:[#allocation5 + $0x698] sm:$0xff]
    %v291 = vld [vmem:[#allocation5 + $0x6a0] sm:$0xff]
    %v292 = vld [vmem:[#allocation5 + $0x6a8] sm:$0xff]
    %v293 = vld [vmem:[#allocation5 + $0x6b0] sm:$0xff]
    %v294 = vld [vmem:[#allocation5 + $0x6b8] sm:$0xff]
    %v295 = vld [vmem:[#allocation5 + $0x6c0] sm:$0xff]
    %v296 = vld [vmem:[#allocation5 + $0x6c8] sm:$0xff]
    %v297 = vld [vmem:[#allocation5 + $0x6d0] sm:$0xff]
    %v298 = vld [vmem:[#allocation5 + $0x6d8] sm:$0xff]
    %v299 = vld [vmem:[#allocation5 + $0x6e0] sm:$0xff]
    %v300 = vld [vmem:[#allocation5 + $0x6e8] sm:$0xff]
    %v301 = vld [vmem:[#allocation5 + $0x6f0] sm:$0xff]
    %v302 = vld [vmem:[#allocation5 + $0x6f8] sm:$0xff]
    %v303 = vld [vmem:[#allocation5 + $0x700] sm:$0xff]
    %v304 = vld [vmem:[#allocation5 + $0x708] sm:$0xff]
    %v305 = vld [vmem:[#allocation5 + $0x710] sm:$0xff]
    %v306 = vld [vmem:[#allocation5 + $0x718] sm:$0xff]
    %v307 = vld [vmem:[#allocation5 + $0x720] sm:$0xff]
    %v308 = vld [vmem:[#allocation5 + $0x728] sm:$0xff]
    %v309 = vld [vmem:[#allocation5 + $0x730] sm:$0xff]
    %v310 = vld [vmem:[#allocation5 + $0x738] sm:$0xff]
    %v311 = vld [vmem:[#allocation5 + $0x740] sm:$0xff]
    %v312 = vld [vmem:[#allocation5 + $0x748] sm:$0xff]
    %v313 = vld [vmem:[#allocation5 + $0x750] sm:$0xff]
    %v314 = vld [vmem:[#allocation5 + $0x758] sm:$0xff]
    %v315 = vld [vmem:[#allocation5 + $0x760] sm:$0xff]
    %v316 = vld [vmem:[#allocation5 + $0x768] sm:$0xff]
    %v317 = vld [vmem:[#allocation5 + $0x770] sm:$0xff]
    %v318 = vld [vmem:[#allocation5 + $0x778] sm:$0xff]
    %v319 = vld [vmem:[#allocation5 + $0x780] sm:$0xff]
    %v320 = vld [vmem:[#allocation5 + $0x788] sm:$0xff]
    %v321 = vld [vmem:[#allocation5 + $0x790] sm:$0xff]
    %v322 = vld [vmem:[#allocation5 + $0x798] sm:$0xff]
    %v323 = vld [vmem:[#allocation5 + $0x7a0] sm:$0xff]
    %v324 = vld [vmem:[#allocation5 + $0x7a8] sm:$0xff]
    %v325 = vld [vmem:[#allocation5 + $0x7b0] sm:$0xff]
    %v326 = vld [vmem:[#allocation5 + $0x7b8] sm:$0xff]
    %v327 = vld [vmem:[#allocation5 + $0x7c0] sm:$0xff]
    %v328 = vld [vmem:[#allocation5 + $0x7c8] sm:$0xff]
    %v329 = vld [vmem:[#allocation5 + $0x7d0] sm:$0xff]
    %v330 = vld [vmem:[#allocation5 + $0x7d8] sm:$0xff]
    %v331 = vld [vmem:[#allocation5 + $0x7e0] sm:$0xff]
    %v332 = vld [vmem:[#allocation5 + $0x7e8] sm:$0xff]
    %v333 = vld [vmem:[#allocation5 + $0x7f0] sm:$0xff]
    %v334 = vld [vmem:[#allocation5 + $0x7f8] sm:$0xff]
    %v335 = vld [vmem:[#allocation5 + $0x800] sm:$0xff]
    %v336 = vld [vmem:[#allocation5 + $0x808] sm:$0xff]
    %v337 = vld [vmem:[#allocation5 + $0x810] sm:$0xff]
    %v338 = vld [vmem:[#allocation5 + $0x818] sm:$0xff]
    %v339 = vld [vmem:[#allocation5 + $0x820] sm:$0xff]
    %v340 = vld [vmem:[#allocation5 + $0x828] sm:$0xff]
    %v341 = vld [vmem:[#allocation5 + $0x830] sm:$0xff]
    %v342 = vld [vmem:[#allocation5 + $0x838] sm:$0xff]
    %v343 = vld [vmem:[#allocation5 + $0x840] sm:$0xff]
    %v344 = vld [vmem:[#allocation5 + $0x848] sm:$0xff]
    %v345 = vld [vmem:[#allocation5 + $0x850] sm:$0xff]
    %v346 = vld [vmem:[#allocation5 + $0x858] sm:$0xff]
    %v347 = vld [vmem:[#allocation5 + $0x860] sm:$0xff]
    %v348 = vld [vmem:[#allocation5 + $0x868] sm:$0xff]
    %v349 = vld [vmem:[#allocation5 + $0x870] sm:$0xff]
    %v350 = vld [vmem:[#allocation5 + $0x878] sm:$0xff]
    %v351 = vld [vmem:[#allocation5 + $0x880] sm:$0xff]
    %v352 = vld [vmem:[#allocation5 + $0x888] sm:$0xff]
    %v353 = vld [vmem:[#allocation5 + $0x890] sm:$0xff]
    %v354 = vld [vmem:[#allocation5 + $0x898] sm:$0xff]
    %v355 = vld [vmem:[#allocation5 + $0x8a0] sm:$0xff]
    %v356 = vld [vmem:[#allocation5 + $0x8a8] sm:$0xff]
    %v357 = vld [vmem:[#allocation5 + $0x8b0] sm:$0xff]
    %v358 = vld [vmem:[#allocation5 + $0x8b8] sm:$0xff]
    %v359 = vld [vmem:[#allocation5 + $0x8c0] sm:$0xff]
    %v360 = vld [vmem:[#allocation5 + $0x8c8] sm:$0xff]
    %v361 = vld [vmem:[#allocation5 + $0x8d0] sm:$0xff]
    %v362 = vld [vmem:[#allocation5 + $0x8d8] sm:$0xff]
    %v363 = vld [vmem:[#allocation5 + $0x8e0] sm:$0xff]
    %v364 = vld [vmem:[#allocation5 + $0x8e8] sm:$0xff]
    %v365 = vld [vmem:[#allocation5 + $0x8f0] sm:$0xff]
    %v366 = vld [vmem:[#allocation5 + $0x8f8] sm:$0xff]
    %v367 = vld [vmem:[#allocation5 + $0x900] sm:$0xff]
    %v368 = vld [vmem:[#allocation5 + $0x908] sm:$0xff]
    %v369 = vld [vmem:[#allocation5 + $0x910] sm:$0xff]
    %v370 = vld [vmem:[#allocation5 + $0x918] sm:$0xff]
    %v371 = vld [vmem:[#allocation5 + $0x920] sm:$0xff]
    %v372 = vld [vmem:[#allocation5 + $0x928] sm:$0xff]
    %v373 = vld [vmem:[#allocation5 + $0x930] sm:$0xff]
    %v374 = vld [vmem:[#allocation5 + $0x938] sm:$0xff]
    %v375 = vld [vmem:[#allocation5 + $0x940] sm:$0xff]
    %v376 = vld [vmem:[#allocation5 + $0x948] sm:$0xff]
    %v377 = vld [vmem:[#allocation5 + $0x950] sm:$0xff]
    %v378 = vld [vmem:[#allocation5 + $0x958] sm:$0xff]
    %v379 = vld [vmem:[#allocation5 + $0x960] sm:$0xff]
    %v380 = vld [vmem:[#allocation5 + $0x968] sm:$0xff]
    %v381 = vld [vmem:[#allocation5 + $0x970] sm:$0xff]
    %v382 = vld [vmem:[#allocation5 + $0x978] sm:$0xff]
    %v383 = vld [vmem:[#allocation5 + $0x980] sm:$0xff]
    %v384 = vld [vmem:[#allocation5 + $0x988] sm:$0xff]
    %v385 = vld [vmem:[#allocation5 + $0x990] sm:$0xff]
    %v386 = vld [vmem:[#allocation5 + $0x998] sm:$0xff]
    %v387 = vld [vmem:[#allocation5 + $0x9a0] sm:$0xff]
    %v388 = vld [vmem:[#allocation5 + $0x9a8] sm:$0xff]
    %v389 = vld [vmem:[#allocation5 + $0x9b0] sm:$0xff]
    %v390 = vld [vmem:[#allocation5 + $0x9b8] sm:$0xff]
    %v391 = vld [vmem:[#allocation5 + $0x9c0] sm:$0xff]
    %v392 = vld [vmem:[#allocation5 + $0x9c8] sm:$0xff]
    %v393 = vld [vmem:[#allocation5 + $0x9d0] sm:$0xff]
    %v394 = vld [vmem:[#allocation5 + $0x9d8] sm:$0xff]
    %v395 = vld [vmem:[#allocation5 + $0x9e0] sm:$0xff]
    %v396 = vld [vmem:[#allocation5 + $0x9e8] sm:$0xff]
    %v397 = vld [vmem:[#allocation5 + $0x9f0] sm:$0xff]
    %v398 = vld [vmem:[#allocation5 + $0x9f8] sm:$0xff]
    %v399 = vld [vmem:[#allocation5 + $0xa00] sm:$0xff]
    %v400 = vld [vmem:[#allocation5 + $0xa08] sm:$0xff]
    %v401 = vld [vmem:[#allocation5 + $0xa10] sm:$0xff]
    %v402 = vld [vmem:[#allocation5 + $0xa18] sm:$0xff]
    %v403 = vld [vmem:[#allocation5 + $0xa20] sm:$0xff]
    %v404 = vld [vmem:[#allocation5 + $0xa28] sm:$0xff]
    %v405 = vld [vmem:[#allocation5 + $0xa30] sm:$0xff]
    %v406 = vld [vmem:[#allocation5 + $0xa38] sm:$0xff]
    %v407 = vld [vmem:[#allocation5 + $0xa40] sm:$0xff]
    %v408 = vld [vmem:[#allocation5 + $0xa48] sm:$0xff]
    %v409 = vld [vmem:[#allocation5 + $0xa50] sm:$0xff]
    %v410 = vld [vmem:[#allocation5 + $0xa58] sm:$0xff]
    %v411 = vld [vmem:[#allocation5 + $0xa60] sm:$0xff]
    %v412 = vld [vmem:[#allocation5 + $0xa68] sm:$0xff]
    %v413 = vld [vmem:[#allocation5 + $0xa70] sm:$0xff]
    %v414 = vld [vmem:[#allocation5 + $0xa78] sm:$0xff]
    %v415 = vld [vmem:[#allocation5 + $0xa80] sm:$0xff]
    %v416 = vld [vmem:[#allocation5 + $0xa88] sm:$0xff]
    %v417 = vld [vmem:[#allocation5 + $0xa90] sm:$0xff]
    %v418 = vld [vmem:[#allocation5 + $0xa98] sm:$0xff]
    %v419 = vld [vmem:[#allocation5 + $0xaa0] sm:$0xff]
    %v420 = vld [vmem:[#allocation5 + $0xaa8] sm:$0xff]
    %v421 = vld [vmem:[#allocation5 + $0xab0] sm:$0xff]
    %v422 = vld [vmem:[#allocation5 + $0xab8] sm:$0xff]
    %v423 = vld [vmem:[#allocation5 + $0xac0] sm:$0xff]
    %v424 = vld [vmem:[#allocation5 + $0xac8] sm:$0xff]
    %v425 = vld [vmem:[#allocation5 + $0xad0] sm:$0xff]
    %v426 = vld [vmem:[#allocation5 + $0xad8] sm:$0xff]
    %v427 = vld [vmem:[#allocation5 + $0xae0] sm:$0xff]
    %v428 = vld [vmem:[#allocation5 + $0xae8] sm:$0xff]
    %v429 = vld [vmem:[#allocation5 + $0xaf0] sm:$0xff]
    %v430 = vld [vmem:[#allocation5 + $0xaf8] sm:$0xff]
    %v431 = vld [vmem:[#allocation5 + $0xb00] sm:$0xff]
    %v432 = vld [vmem:[#allocation5 + $0xb08] sm:$0xff]
    %v433 = vld [vmem:[#allocation5 + $0xb10] sm:$0xff]
    %v434 = vld [vmem:[#allocation5 + $0xb18] sm:$0xff]
    %v435 = vld [vmem:[#allocation5 + $0xb20] sm:$0xff]
    %v436 = vld [vmem:[#allocation5 + $0xb28] sm:$0xff]
    %v437 = vld [vmem:[#allocation5 + $0xb30] sm:$0xff]
    %v438 = vld [vmem:[#allocation5 + $0xb38] sm:$0xff]
    %v439 = vld [vmem:[#allocation5 + $0xb40] sm:$0xff]
    %v440 = vld [vmem:[#allocation5 + $0xb48] sm:$0xff]
    %v441 = vld [vmem:[#allocation5 + $0xb50] sm:$0xff]
    %v442 = vld [vmem:[#allocation5 + $0xb58] sm:$0xff]
    %v443 = vld [vmem:[#allocation5 + $0xb60] sm:$0xff]
    %v444 = vld [vmem:[#allocation5 + $0xb68] sm:$0xff]
    %v445 = vld [vmem:[#allocation5 + $0xb70] sm:$0xff]
    %v446 = vld [vmem:[#allocation5 + $0xb78] sm:$0xff]
    %v447 = vld [vmem:[#allocation5 + $0xb80] sm:$0xff]
    %v448 = vld [vmem:[#allocation5 + $0xb88] sm:$0xff]
    %v449 = vld [vmem:[#allocation5 + $0xb90] sm:$0xff]
    %v450 = vld [vmem:[#allocation5 + $0xb98] sm:$0xff]
    %v451 = vld [vmem:[#allocation5 + $0xba0] sm:$0xff]
    %v452 = vld [vmem:[#allocation5 + $0xba8] sm:$0xff]
    %v453 = vld [vmem:[#allocation5 + $0xbb0] sm:$0xff]
    %v454 = vld [vmem:[#allocation5 + $0xbb8] sm:$0xff]
    %v455 = vld [vmem:[#allocation5 + $0xbc0] sm:$0xff]
    %v456 = vld [vmem:[#allocation5 + $0xbc8] sm:$0xff]
    %v457 = vld [vmem:[#allocation5 + $0xbd0] sm:$0xff]
    %v458 = vld [vmem:[#allocation5 + $0xbd8] sm:$0xff]
    %v459 = vld [vmem:[#allocation5 + $0xbe0] sm:$0xff]
    %v460 = vld [vmem:[#allocation5 + $0xbe8] sm:$0xff]
    %v461 = vld [vmem:[#allocation5 + $0xbf0] sm:$0xff]
    %v462 = vld [vmem:[#allocation5 + $0xbf8] sm:$0xff]
    %v463 = vld [vmem:[#allocation5 + $0xc00] sm:$0xff]
    %v464 = vld [vmem:[#allocation5 + $0xc08] sm:$0xff]
    %v465 = vld [vmem:[#allocation5 + $0xc10] sm:$0xff]
    %v466 = vld [vmem:[#allocation5 + $0xc18] sm:$0xff]
    %v467 = vld [vmem:[#allocation5 + $0xc20] sm:$0xff]
    %v468 = vld [vmem:[#allocation5 + $0xc28] sm:$0xff]
    %v469 = vld [vmem:[#allocation5 + $0xc30] sm:$0xff]
    %v470 = vld [vmem:[#allocation5 + $0xc38] sm:$0xff]
    %v471 = vld [vmem:[#allocation5 + $0xc40] sm:$0xff]
    %v472 = vld [vmem:[#allocation5 + $0xc48] sm:$0xff]
    %v473 = vld [vmem:[#allocation5 + $0xc50] sm:$0xff]
    %v474 = vld [vmem:[#allocation5 + $0xc58] sm:$0xff]
    %v475 = vld [vmem:[#allocation5 + $0xc60] sm:$0xff]
    %v476 = vld [vmem:[#allocation5 + $0xc68] sm:$0xff]
    %v477 = vld [vmem:[#allocation5 + $0xc70] sm:$0xff]
    %v478 = vld [vmem:[#allocation5 + $0xc78] sm:$0xff]
    %v479 = vld [vmem:[#allocation5 + $0xc80] sm:$0xff]
    %v480 = vld [vmem:[#allocation5 + $0xc88] sm:$0xff]
    %v481 = vld [vmem:[#allocation5 + $0xc90] sm:$0xff]
    %v482 = vld [vmem:[#allocation5 + $0xc98] sm:$0xff]
    %v483 = vld [vmem:[#allocation5 + $0xca0] sm:$0xff]
    %v484 = vld [vmem:[#allocation5 + $0xca8] sm:$0xff]
    %v485 = vld [vmem:[#allocation5 + $0xcb0] sm:$0xff]
    %v486 = vld [vmem:[#allocation5 + $0xcb8] sm:$0xff]
    %v487 = vld [vmem:[#allocation5 + $0xcc0] sm:$0xff]
    %v488 = vld [vmem:[#allocation5 + $0xcc8] sm:$0xff]
    %v489 = vld [vmem:[#allocation5 + $0xcd0] sm:$0xff]
    %v490 = vld [vmem:[#allocation5 + $0xcd8] sm:$0xff]
    %v491 = vld [vmem:[#allocation5 + $0xce0] sm:$0xff]
    %v492 = vld [vmem:[#allocation5 + $0xce8] sm:$0xff]
    %v493 = vld [vmem:[#allocation5 + $0xcf0] sm:$0xff]
    %v494 = vld [vmem:[#allocation5 + $0xcf8] sm:$0xff]
    %v495 = vld [vmem:[#allocation5 + $0xd00] sm:$0xff]
    %v496 = vld [vmem:[#allocation5 + $0xd08] sm:$0xff]
    %v497 = vld [vmem:[#allocation5 + $0xd10] sm:$0xff]
    %v498 = vld [vmem:[#allocation5 + $0xd18] sm:$0xff]
    %v499 = vld [vmem:[#allocation5 + $0xd20] sm:$0xff]
    %v500 = vld [vmem:[#allocation5 + $0xd28] sm:$0xff]
    %v501 = vld [vmem:[#allocation5 + $0xd30] sm:$0xff]
    %v502 = vld [vmem:[#allocation5 + $0xd38] sm:$0xff]
    %v503 = vld [vmem:[#allocation5 + $0xd40] sm:$0xff]
    %v504 = vld [vmem:[#allocation5 + $0xd48] sm:$0xff]
    %v505 = vld [vmem:[#allocation5 + $0xd50] sm:$0xff]
    %v506 = vld [vmem:[#allocation5 + $0xd58] sm:$0xff]
    %v507 = vld [vmem:[#allocation5 + $0xd60] sm:$0xff]
    %v508 = vld [vmem:[#allocation5 + $0xd68] sm:$0xff]
    %v509 = vld [vmem:[#allocation5 + $0xd70] sm:$0xff]
    %v510 = vld [vmem:[#allocation5 + $0xd78] sm:$0xff]
    %v511 = vld [vmem:[#allocation5 + $0xd80] sm:$0xff]
    %v512 = vld [vmem:[#allocation5 + $0xd88] sm:$0xff]
    %v513 = vld [vmem:[#allocation5 + $0xd90] sm:$0xff]
    %v514 = vld [vmem:[#allocation5 + $0xd98] sm:$0xff]
    %v515 = vld [vmem:[#allocation5 + $0xda0] sm:$0xff]
    %v516 = vld [vmem:[#allocation5 + $0xda8] sm:$0xff]
    %v517 = vld [vmem:[#allocation5 + $0xdb0] sm:$0xff]
    %v518 = vld [vmem:[#allocation5 + $0xdb8] sm:$0xff]
    %v519 = vld [vmem:[#allocation5 + $0xdc0] sm:$0xff]
    %v520 = vld [vmem:[#allocation5 + $0xdc8] sm:$0xff]
    %v521 = vld [vmem:[#allocation5 + $0xdd0] sm:$0xff]
    %v522 = vld [vmem:[#allocation5 + $0xdd8] sm:$0xff]
    %v523 = vld [vmem:[#allocation5 + $0xde0] sm:$0xff]
    %v524 = vld [vmem:[#allocation5 + $0xde8] sm:$0xff]
    %v525 = vld [vmem:[#allocation5 + $0xdf0] sm:$0xff]
    %v526 = vld [vmem:[#allocation5 + $0xdf8] sm:$0xff]
    %v527 = vld [vmem:[#allocation5 + $0xe00] sm:$0xff]
    %v528 = vld [vmem:[#allocation5 + $0xe08] sm:$0xff]
    %v529 = vld [vmem:[#allocation5 + $0xe10] sm:$0xff]
    %v530 = vld [vmem:[#allocation5 + $0xe18] sm:$0xff]
    %v531 = vld [vmem:[#allocation5 + $0xe20] sm:$0xff]
    %v532 = vld [vmem:[#allocation5 + $0xe28] sm:$0xff]
    %v533 = vld [vmem:[#allocation5 + $0xe30] sm:$0xff]
    %v534 = vld [vmem:[#allocation5 + $0xe38] sm:$0xff]
    %v535 = vld [vmem:[#allocation5 + $0xe40] sm:$0xff]
    %v536 = vld [vmem:[#allocation5 + $0xe48] sm:$0xff]
    %v537 = vld [vmem:[#allocation5 + $0xe50] sm:$0xff]
    %v538 = vld [vmem:[#allocation5 + $0xe58] sm:$0xff]
    %v539 = vld [vmem:[#allocation5 + $0xe60] sm:$0xff]
    %v540 = vld [vmem:[#allocation5 + $0xe68] sm:$0xff]
    %v541 = vld [vmem:[#allocation5 + $0xe70] sm:$0xff]
    %v542 = vld [vmem:[#allocation5 + $0xe78] sm:$0xff]
    %v543 = vld [vmem:[#allocation5 + $0xe80] sm:$0xff]
    %v544 = vld [vmem:[#allocation5 + $0xe88] sm:$0xff]
    %v545 = vld [vmem:[#allocation5 + $0xe90] sm:$0xff]
    %v546 = vld [vmem:[#allocation5 + $0xe98] sm:$0xff]
    %v547 = vld [vmem:[#allocation5 + $0xea0] sm:$0xff]
    %v548 = vld [vmem:[#allocation5 + $0xea8] sm:$0xff]
    %v549 = vld [vmem:[#allocation5 + $0xeb0] sm:$0xff]
    %v550 = vld [vmem:[#allocation5 + $0xeb8] sm:$0xff]
    %v551 = vld [vmem:[#allocation5 + $0xec0] sm:$0xff]
    %v552 = vld [vmem:[#allocation5 + $0xec8] sm:$0xff]
    %v553 = vld [vmem:[#allocation5 + $0xed0] sm:$0xff]
    %v554 = vld [vmem:[#allocation5 + $0xed8] sm:$0xff]
    %v555 = vld [vmem:[#allocation5 + $0xee0] sm:$0xff]
    %v556 = vld [vmem:[#allocation5 + $0xee8] sm:$0xff]
    %v557 = vld [vmem:[#allocation5 + $0xef0] sm:$0xff]
    %v558 = vld [vmem:[#allocation5 + $0xef8] sm:$0xff]
    %v559 = vld [vmem:[#allocation5 + $0xf00] sm:$0xff]
    %v560 = vld [vmem:[#allocation5 + $0xf08] sm:$0xff]
    %v561 = vld [vmem:[#allocation5 + $0xf10] sm:$0xff]
    %v562 = vld [vmem:[#allocation5 + $0xf18] sm:$0xff]
    %v563 = vld [vmem:[#allocation5 + $0xf20] sm:$0xff]
    %v564 = vld [vmem:[#allocation5 + $0xf28] sm:$0xff]
    %v565 = vld [vmem:[#allocation5 + $0xf30] sm:$0xff]
    %v566 = vld [vmem:[#allocation5 + $0xf38] sm:$0xff]
    %v567 = vld [vmem:[#allocation5 + $0xf40] sm:$0xff]
    %v568 = vld [vmem:[#allocation5 + $0xf48] sm:$0xff]
    %v569 = vld [vmem:[#allocation5 + $0xf50] sm:$0xff]
    %v570 = vld [vmem:[#allocation5 + $0xf58] sm:$0xff]
    %v571 = vld [vmem:[#allocation5 + $0xf60] sm:$0xff]
    %v572 = vld [vmem:[#allocation5 + $0xf68] sm:$0xff]
    %v573 = vld [vmem:[#allocation5 + $0xf70] sm:$0xff]
    %v574 = vld [vmem:[#allocation5 + $0xf78] sm:$0xff]
    %v575 = vld [vmem:[#allocation5 + $0xf80] sm:$0xff]
    %v576 = vld [vmem:[#allocation5 + $0xf88] sm:$0xff]
    %v577 = vld [vmem:[#allocation5 + $0xf90] sm:$0xff]
    %v578 = vld [vmem:[#allocation5 + $0xf98] sm:$0xff]
    %v579 = vld [vmem:[#allocation5 + $0xfa0] sm:$0xff]
    %v580 = vld [vmem:[#allocation5 + $0xfa8] sm:$0xff]
    %v581 = vld [vmem:[#allocation5 + $0xfb0] sm:$0xff]
    %v582 = vld [vmem:[#allocation5 + $0xfb8] sm:$0xff]
    %v583 = vld [vmem:[#allocation5 + $0xfc0] sm:$0xff]
    %v584 = vld [vmem:[#allocation5 + $0xfc8] sm:$0xff]
    %v585 = vld [vmem:[#allocation5 + $0xfd0] sm:$0xff]
    %v586 = vld [vmem:[#allocation5 + $0xfd8] sm:$0xff]
    %v587 = vld [vmem:[#allocation5 + $0xfe0] sm:$0xff]
    %v588 = vld [vmem:[#allocation5 + $0xfe8] sm:$0xff]
    %v589 = vld [vmem:[#allocation5 + $0xff0] sm:$0xff]
    %v590 = vld [vmem:[#allocation5 + $0xff8] sm:$0xff]
    %v591 = vld [vmem:[#allocation5 + $0x1000] sm:$0xff]
    %v592 = vld [vmem:[#allocation5 + $0x1008] sm:$0xff]
    %v593 = vld [vmem:[#allocation5 + $0x1010] sm:$0xff]
    %v594 = vld [vmem:[#allocation5 + $0x1018] sm:$0xff]
    %v595 = vld [vmem:[#allocation5 + $0x1020] sm:$0xff]
    %v596 = vld [vmem:[#allocation5 + $0x1028] sm:$0xff]
    %v597 = vld [vmem:[#allocation5 + $0x1030] sm:$0xff]
    %v598 = vld [vmem:[#allocation5 + $0x1038] sm:$0xff]
    %v599 = vld [vmem:[#allocation5 + $0x1040] sm:$0xff]
    %v600 = vld [vmem:[#allocation5 + $0x1048] sm:$0xff]
    %v601 = vld [vmem:[#allocation5 + $0x1050] sm:$0xff]
    %v602 = vld [vmem:[#allocation5 + $0x1058] sm:$0xff]
    %v603 = vld [vmem:[#allocation5 + $0x1060] sm:$0xff]
    %v604 = vld [vmem:[#allocation5 + $0x1068] sm:$0xff]
    %v605 = vld [vmem:[#allocation5 + $0x1070] sm:$0xff]
    %v606 = vld [vmem:[#allocation5 + $0x1078] sm:$0xff]
    %v607 = vld [vmem:[#allocation5 + $0x1080] sm:$0xff]
    %v608 = vld [vmem:[#allocation5 + $0x1088] sm:$0xff]
    %v609 = vld [vmem:[#allocation5 + $0x1090] sm:$0xff]
    %v610 = vld [vmem:[#allocation5 + $0x1098] sm:$0xff]
    %v611 = vld [vmem:[#allocation5 + $0x10a0] sm:$0xff]
    %v612 = vld [vmem:[#allocation5 + $0x10a8] sm:$0xff]
    %v613 = vld [vmem:[#allocation5 + $0x10b0] sm:$0xff]
    %v614 = vld [vmem:[#allocation5 + $0x10b8] sm:$0xff]
    %v615 = vld [vmem:[#allocation5 + $0x10c0] sm:$0xff]
    %v616 = vld [vmem:[#allocation5 + $0x10c8] sm:$0xff]
    %v617 = vld [vmem:[#allocation5 + $0x10d0] sm:$0xff]
    %v618 = vld [vmem:[#allocation5 + $0x10d8] sm:$0xff]
    %v619 = vld [vmem:[#allocation5 + $0x10e0] sm:$0xff]
    %v620 = vld [vmem:[#allocation5 + $0x10e8] sm:$0xff]
    %v621 = vld [vmem:[#allocation5 + $0x10f0] sm:$0xff]
    %v622 = vld [vmem:[#allocation5 + $0x10f8] sm:$0xff]
    %v623 = vld [vmem:[#allocation5 + $0x1100] sm:$0xff]
    %v624 = vld [vmem:[#allocation5 + $0x1108] sm:$0xff]
    %v625 = vld [vmem:[#allocation5 + $0x1110] sm:$0xff]
    %v626 = vld [vmem:[#allocation5 + $0x1118] sm:$0xff]
    %v627 = vld [vmem:[#allocation5 + $0x1120] sm:$0xff]
    %v628 = vld [vmem:[#allocation5 + $0x1128] sm:$0xff]
    %v629 = vld [vmem:[#allocation5 + $0x1130] sm:$0xff]
    %v630 = vld [vmem:[#allocation5 + $0x1138] sm:$0xff]
    %v631 = vld [vmem:[#allocation5 + $0x1140] sm:$0xff]
    %v632 = vld [vmem:[#allocation5 + $0x1148] sm:$0xff]
    %v633 = vld [vmem:[#allocation5 + $0x1150] sm:$0xff]
    %v634 = vld [vmem:[#allocation5 + $0x1158] sm:$0xff]
    %v635 = vld [vmem:[#allocation5 + $0x1160] sm:$0xff]
    %v636 = vld [vmem:[#allocation5 + $0x1168] sm:$0xff]
    %v637 = vld [vmem:[#allocation5 + $0x1170] sm:$0xff]
    %v638 = vld [vmem:[#allocation5 + $0x1178] sm:$0xff]
    %v639 = vld [vmem:[#allocation5 + $0x1180] sm:$0xff]
    %v640 = vld [vmem:[#allocation5 + $0x1188] sm:$0xff]
    %v641 = vld [vmem:[#allocation5 + $0x1190] sm:$0xff]
    %v642 = vld [vmem:[#allocation5 + $0x1198] sm:$0xff]
    %v643 = vld [vmem:[#allocation5 + $0x11a0] sm:$0xff]
    %v644 = vld [vmem:[#allocation5 + $0x11a8] sm:$0xff]
    %v645 = vld [vmem:[#allocation5 + $0x11b0] sm:$0xff]
    %v646 = vld [vmem:[#allocation5 + $0x11b8] sm:$0xff]
    %v647 = vld [vmem:[#allocation5 + $0x11c0] sm:$0xff]
    %v648 = vld [vmem:[#allocation5 + $0x11c8] sm:$0xff]
    %v649 = vld [vmem:[#allocation5 + $0x11d0] sm:$0xff]
    %v650 = vld [vmem:[#allocation5 + $0x11d8] sm:$0xff]
    %v651 = vld [vmem:[#allocation5 + $0x11e0] sm:$0xff]
    %v652 = vld [vmem:[#allocation5 + $0x11e8] sm:$0xff]
    %v653 = vld [vmem:[#allocation5 + $0x11f0] sm:$0xff]
    %v654 = vld [vmem:[#allocation5 + $0x11f8] sm:$0xff]
    %v655 = vld [vmem:[#allocation5 + $0x1200] sm:$0xff]
    %v656 = vld [vmem:[#allocation5 + $0x1208] sm:$0xff]
    %v657 = vld [vmem:[#allocation5 + $0x1210] sm:$0xff]
    %v658 = vld [vmem:[#allocation5 + $0x1218] sm:$0xff]
    %v659 = vld [vmem:[#allocation5 + $0x1220] sm:$0xff]
    %v660 = vld [vmem:[#allocation5 + $0x1228] sm:$0xff]
    %v661 = vld [vmem:[#allocation5 + $0x1230] sm:$0xff]
    %v662 = vld [vmem:[#allocation5 + $0x1238] sm:$0xff]
    %v663 = vld [vmem:[#allocation5 + $0x1240] sm:$0xff]
    %v664 = vld [vmem:[#allocation5 + $0x1248] sm:$0xff]
    %v665 = vld [vmem:[#allocation5 + $0x1250] sm:$0xff]
    %v666 = vld [vmem:[#allocation5 + $0x1258] sm:$0xff]
    %v667 = vld [vmem:[#allocation5 + $0x1260] sm:$0xff]
    %v668 = vld [vmem:[#allocation5 + $0x1268] sm:$0xff]
    %v669 = vld [vmem:[#allocation5 + $0x1270] sm:$0xff]
    %v670 = vld [vmem:[#allocation5 + $0x1278] sm:$0xff]
    %v671 = vld [vmem:[#allocation5 + $0x1280] sm:$0xff]
    %v672 = vld [vmem:[#allocation5 + $0x1288] sm:$0xff]
    %v673 = vld [vmem:[#allocation5 + $0x1290] sm:$0xff]
    %v674 = vld [vmem:[#allocation5 + $0x1298] sm:$0xff]
    %v675 = vld [vmem:[#allocation5 + $0x12a0] sm:$0xff]
    %v676 = vld [vmem:[#allocation5 + $0x12a8] sm:$0xff]
    %v677 = vld [vmem:[#allocation5 + $0x12b0] sm:$0xff]
    %v678 = vld [vmem:[#allocation5 + $0x12b8] sm:$0xff]
    %v679 = vld [vmem:[#allocation5 + $0x12c0] sm:$0xff]
    %v680 = vld [vmem:[#allocation5 + $0x12c8] sm:$0xff]
    %v681 = vld [vmem:[#allocation5 + $0x12d0] sm:$0xff]
    %v682 = vld [vmem:[#allocation5 + $0x12d8] sm:$0xff]
    %v683 = vld [vmem:[#allocation5 + $0x12e0] sm:$0xff]
    %v684 = vld [vmem:[#allocation5 + $0x12e8] sm:$0xff]
    %v685 = vld [vmem:[#allocation5 + $0x12f0] sm:$0xff]
    %v686 = vld [vmem:[#allocation5 + $0x12f8] sm:$0xff]
    %v687 = vld [vmem:[#allocation5 + $0x1300] sm:$0xff]
    %v688 = vld [vmem:[#allocation5 + $0x1308] sm:$0xff]
    %v689 = vld [vmem:[#allocation5 + $0x1310] sm:$0xff]
    %v690 = vld [vmem:[#allocation5 + $0x1318] sm:$0xff]
    %v691 = vld [vmem:[#allocation5 + $0x1320] sm:$0xff]
    %v692 = vld [vmem:[#allocation5 + $0x1328] sm:$0xff]
    %v693 = vld [vmem:[#allocation5 + $0x1330] sm:$0xff]
    %v694 = vld [vmem:[#allocation5 + $0x1338] sm:$0xff]
    %v695 = vld [vmem:[#allocation5 + $0x1340] sm:$0xff]
    %v696 = vld [vmem:[#allocation5 + $0x1348] sm:$0xff]
    %v697 = vld [vmem:[#allocation5 + $0x1350] sm:$0xff]
    %v698 = vld [vmem:[#allocation5 + $0x1358] sm:$0xff]
    %v699 = vld [vmem:[#allocation5 + $0x1360] sm:$0xff]
    %v700 = vld [vmem:[#allocation5 + $0x1368] sm:$0xff]
    %v701 = vld [vmem:[#allocation5 + $0x1370] sm:$0xff]
    %v702 = vld [vmem:[#allocation5 + $0x1378] sm:$0xff]
    %v703 = vld [vmem:[#allocation5 + $0x1380] sm:$0xff]
    %v704 = vld [vmem:[#allocation5 + $0x1388] sm:$0xff]
    %v705 = vld [vmem:[#allocation5 + $0x1390] sm:$0xff]
    %v706 = vld [vmem:[#allocation5 + $0x1398] sm:$0xff]
    %v707 = vld [vmem:[#allocation5 + $0x13a0] sm:$0xff]
    %v708 = vld [vmem:[#allocation5 + $0x13a8] sm:$0xff]
    %v709 = vld [vmem:[#allocation5 + $0x13b0] sm:$0xff]
    %v710 = vld [vmem:[#allocation5 + $0x13b8] sm:$0xff]
    %v711 = vld [vmem:[#allocation5 + $0x13c0] sm:$0xff]
    %v712 = vld [vmem:[#allocation5 + $0x13c8] sm:$0xff]
    %v713 = vld [vmem:[#allocation5 + $0x13d0] sm:$0xff]
    %v714 = vld [vmem:[#allocation5 + $0x13d8] sm:$0xff]
    %v715 = vld [vmem:[#allocation5 + $0x13e0] sm:$0xff]
    %v716 = vld [vmem:[#allocation5 + $0x13e8] sm:$0xff]
    %v717 = vld [vmem:[#allocation5 + $0x13f0] sm:$0xff]
    %v718 = vld [vmem:[#allocation5 + $0x13f8] sm:$0xff]
    %v719 = vld [vmem:[#allocation5 + $0x1400] sm:$0xff]
    %v720 = vld [vmem:[#allocation5 + $0x1408] sm:$0xff]
    %v721 = vld [vmem:[#allocation5 + $0x1410] sm:$0xff]
    %v722 = vld [vmem:[#allocation5 + $0x1418] sm:$0xff]
    %v723 = vld [vmem:[#allocation5 + $0x1420] sm:$0xff]
    %v724 = vld [vmem:[#allocation5 + $0x1428] sm:$0xff]
    %v725 = vld [vmem:[#allocation5 + $0x1430] sm:$0xff]
    %v726 = vld [vmem:[#allocation5 + $0x1438] sm:$0xff]
    %v727 = vld [vmem:[#allocation5 + $0x1440] sm:$0xff]
    %v728 = vld [vmem:[#allocation5 + $0x1448] sm:$0xff]
    %v729 = vld [vmem:[#allocation5 + $0x1450] sm:$0xff]
    %v730 = vld [vmem:[#allocation5 + $0x1458] sm:$0xff]
    %v731 = vld [vmem:[#allocation5 + $0x1460] sm:$0xff]
    %v732 = vld [vmem:[#allocation5 + $0x1468] sm:$0xff]
    %v733 = vld [vmem:[#allocation5 + $0x1470] sm:$0xff]
    %v734 = vld [vmem:[#allocation5 + $0x1478] sm:$0xff]
    %v735 = vld [vmem:[#allocation5 + $0x1480] sm:$0xff]
    %v736 = vld [vmem:[#allocation5 + $0x1488] sm:$0xff]
    %v737 = vld [vmem:[#allocation5 + $0x1490] sm:$0xff]
    %v738 = vld [vmem:[#allocation5 + $0x1498] sm:$0xff]
    %v739 = vld [vmem:[#allocation5 + $0x14a0] sm:$0xff]
    %v740 = vld [vmem:[#allocation5 + $0x14a8] sm:$0xff]
    %v741 = vld [vmem:[#allocation5 + $0x14b0] sm:$0xff]
    %v742 = vld [vmem:[#allocation5 + $0x14b8] sm:$0xff]
    %v743 = vld [vmem:[#allocation5 + $0x14c0] sm:$0xff]
    %v744 = vld [vmem:[#allocation5 + $0x14c8] sm:$0xff]
    %v745 = vld [vmem:[#allocation5 + $0x14d0] sm:$0xff]
    %v746 = vld [vmem:[#allocation5 + $0x14d8] sm:$0xff]
    %v747 = vld [vmem:[#allocation5 + $0x14e0] sm:$0xff]
    %v748 = vld [vmem:[#allocation5 + $0x14e8] sm:$0xff]
    %v749 = vld [vmem:[#allocation5 + $0x14f0] sm:$0xff]
    %v750 = vld [vmem:[#allocation5 + $0x14f8] sm:$0xff]
    %v751 = vld [vmem:[#allocation5 + $0x1500] sm:$0xff]
    %v752 = vld [vmem:[#allocation5 + $0x1508] sm:$0xff]
    %v753 = vld [vmem:[#allocation5 + $0x1510] sm:$0xff]
    %v754 = vld [vmem:[#allocation5 + $0x1518] sm:$0xff]
    %v755 = vld [vmem:[#allocation5 + $0x1520] sm:$0xff]
    %v756 = vld [vmem:[#allocation5 + $0x1528] sm:$0xff]
    %v757 = vld [vmem:[#allocation5 + $0x1530] sm:$0xff]
    %v758 = vld [vmem:[#allocation5 + $0x1538] sm:$0xff]
    %v759 = vld [vmem:[#allocation5 + $0x1540] sm:$0xff]
    %v760 = vld [vmem:[#allocation5 + $0x1548] sm:$0xff]
    %v761 = vld [vmem:[#allocation5 + $0x1550] sm:$0xff]
    %v762 = vld [vmem:[#allocation5 + $0x1558] sm:$0xff]
    %v763 = vld [vmem:[#allocation5 + $0x1560] sm:$0xff]
    %v764 = vld [vmem:[#allocation5 + $0x1568] sm:$0xff]
    %v765 = vld [vmem:[#allocation5 + $0x1570] sm:$0xff]
    %v766 = vld [vmem:[#allocation5 + $0x1578] sm:$0xff]
    %v767 = vld [vmem:[#allocation5 + $0x1580] sm:$0xff]
    %v768 = vld [vmem:[#allocation5 + $0x1588] sm:$0xff]
    %v769 = vld [vmem:[#allocation5 + $0x1590] sm:$0xff]
    %v770 = vld [vmem:[#allocation5 + $0x1598] sm:$0xff]
    %v771 = vld [vmem:[#allocation5 + $0x15a0] sm:$0xff]
    %v772 = vld [vmem:[#allocation5 + $0x15a8] sm:$0xff]
    %v773 = vld [vmem:[#allocation5 + $0x15b0] sm:$0xff]
    %v774 = vld [vmem:[#allocation5 + $0x15b8] sm:$0xff]
    %v775 = vld [vmem:[#allocation5 + $0x15c0] sm:$0xff]
    %v776 = vld [vmem:[#allocation5 + $0x15c8] sm:$0xff]
    %v777 = vld [vmem:[#allocation5 + $0x15d0] sm:$0xff]
    %v778 = vld [vmem:[#allocation5 + $0x15d8] sm:$0xff]
    %v779 = vld [vmem:[#allocation5 + $0x15e0] sm:$0xff]
    %v780 = vld [vmem:[#allocation5 + $0x15e8] sm:$0xff]
    %v781 = vld [vmem:[#allocation5 + $0x15f0] sm:$0xff]
    %v782 = vld [vmem:[#allocation5 + $0x15f8] sm:$0xff]
    %v783 = vld [vmem:[#allocation5 + $0x1600] sm:$0xff]
    %v784 = vld [vmem:[#allocation5 + $0x1608] sm:$0xff]
    %v785 = vld [vmem:[#allocation5 + $0x1610] sm:$0xff]
    %v786 = vld [vmem:[#allocation5 + $0x1618] sm:$0xff]
    %v787 = vld [vmem:[#allocation5 + $0x1620] sm:$0xff]
    %v788 = vld [vmem:[#allocation5 + $0x1628] sm:$0xff]
    %v789 = vld [vmem:[#allocation5 + $0x1630] sm:$0xff]
    %v790 = vld [vmem:[#allocation5 + $0x1638] sm:$0xff]
    %v791 = vld [vmem:[#allocation5 + $0x1640] sm:$0xff]
    %v792 = vld [vmem:[#allocation5 + $0x1648] sm:$0xff]
    %v793 = vld [vmem:[#allocation5 + $0x1650] sm:$0xff]
    %v794 = vld [vmem:[#allocation5 + $0x1658] sm:$0xff]
    %v795 = vld [vmem:[#allocation5 + $0x1660] sm:$0xff]
    %v796 = vld [vmem:[#allocation5 + $0x1668] sm:$0xff]
    %v797 = vld [vmem:[#allocation5 + $0x1670] sm:$0xff]
    %v798 = vld [vmem:[#allocation5 + $0x1678] sm:$0xff]
    %v799 = vld [vmem:[#allocation5 + $0x1680] sm:$0xff]
    %v800 = vld [vmem:[#allocation5 + $0x1688] sm:$0xff]
    %v801 = vld [vmem:[#allocation5 + $0x1690] sm:$0xff]
    %v802 = vld [vmem:[#allocation5 + $0x1698] sm:$0xff]
    %v803 = vld [vmem:[#allocation5 + $0x16a0] sm:$0xff]
    %v804 = vld [vmem:[#allocation5 + $0x16a8] sm:$0xff]
    %v805 = vld [vmem:[#allocation5 + $0x16b0] sm:$0xff]
    %v806 = vld [vmem:[#allocation5 + $0x16b8] sm:$0xff]
    %v807 = vld [vmem:[#allocation5 + $0x16c0] sm:$0xff]
    %v808 = vld [vmem:[#allocation5 + $0x16c8] sm:$0xff]
    %v809 = vld [vmem:[#allocation5 + $0x16d0] sm:$0xff]
    %v810 = vld [vmem:[#allocation5 + $0x16d8] sm:$0xff]
    %v811 = vld [vmem:[#allocation5 + $0x16e0] sm:$0xff]
    %v812 = vld [vmem:[#allocation5 + $0x16e8] sm:$0xff]
    %v813 = vld [vmem:[#allocation5 + $0x16f0] sm:$0xff]
    %v814 = vld [vmem:[#allocation5 + $0x16f8] sm:$0xff]
    %v815 = vld [vmem:[#allocation5 + $0x1700] sm:$0xff]
    %v816 = vld [vmem:[#allocation5 + $0x1708] sm:$0xff]
    %v817 = vld [vmem:[#allocation5 + $0x1710] sm:$0xff]
    %v818 = vld [vmem:[#allocation5 + $0x1718] sm:$0xff]
    %v819 = vld [vmem:[#allocation5 + $0x1720] sm:$0xff]
    %v820 = vld [vmem:[#allocation5 + $0x1728] sm:$0xff]
    %v821 = vld [vmem:[#allocation5 + $0x1730] sm:$0xff]
    %v822 = vld [vmem:[#allocation5 + $0x1738] sm:$0xff]
    %v823 = vld [vmem:[#allocation5 + $0x1740] sm:$0xff]
    %v824 = vld [vmem:[#allocation5 + $0x1748] sm:$0xff]
    %v825 = vld [vmem:[#allocation5 + $0x1750] sm:$0xff]
    %v826 = vld [vmem:[#allocation5 + $0x1758] sm:$0xff]
    %v827 = vld [vmem:[#allocation5 + $0x1760] sm:$0xff]
    %v828 = vld [vmem:[#allocation5 + $0x1768] sm:$0xff]
    %v829 = vld [vmem:[#allocation5 + $0x1770] sm:$0xff]
    %v830 = vld [vmem:[#allocation5 + $0x1778] sm:$0xff]
    %v831 = vld [vmem:[#allocation5 + $0x1780] sm:$0xff]
    %v832 = vld [vmem:[#allocation5 + $0x1788] sm:$0xff]
    %v833 = vld [vmem:[#allocation5 + $0x1790] sm:$0xff]
    %v834 = vld [vmem:[#allocation5 + $0x1798] sm:$0xff]
    %v835 = vld [vmem:[#allocation5 + $0x17a0] sm:$0xff]
    %v836 = vld [vmem:[#allocation5 + $0x17a8] sm:$0xff]
    %v837 = vld [vmem:[#allocation5 + $0x17b0] sm:$0xff]
    %v838 = vld [vmem:[#allocation5 + $0x17b8] sm:$0xff]
    %v839 = vld [vmem:[#allocation5 + $0x17c0] sm:$0xff]
    %v840 = vld [vmem:[#allocation5 + $0x17c8] sm:$0xff]
    %v841 = vld [vmem:[#allocation5 + $0x17d0] sm:$0xff]
    %v842 = vld [vmem:[#allocation5 + $0x17d8] sm:$0xff]
    %v843 = vld [vmem:[#allocation5 + $0x17e0] sm:$0xff]
    %v844 = vld [vmem:[#allocation5 + $0x17e8] sm:$0xff]
    %v845 = vld [vmem:[#allocation5 + $0x17f0] sm:$0xff]
    %v846 = vld [vmem:[#allocation5 + $0x17f8] sm:$0xff]
    %v847 = vld [vmem:[#allocation5 + $0x1800] sm:$0xff]
    %v848 = vld [vmem:[#allocation5 + $0x1808] sm:$0xff]
    %v849 = vld [vmem:[#allocation5 + $0x1810] sm:$0xff]
    %v850 = vld [vmem:[#allocation5 + $0x1818] sm:$0xff]
    %v851 = vld [vmem:[#allocation5 + $0x1820] sm:$0xff]
    %v852 = vld [vmem:[#allocation5 + $0x1828] sm:$0xff]
    %v853 = vld [vmem:[#allocation5 + $0x1830] sm:$0xff]
    %v854 = vld [vmem:[#allocation5 + $0x1838] sm:$0xff]
    %v855 = vld [vmem:[#allocation5 + $0x1840] sm:$0xff]
    %v856 = vld [vmem:[#allocation5 + $0x1848] sm:$0xff]
    %v857 = vld [vmem:[#allocation5 + $0x1850] sm:$0xff]
    %v858 = vld [vmem:[#allocation5 + $0x1858] sm:$0xff]
    %v859 = vld [vmem:[#allocation5 + $0x1860] sm:$0xff]
    %v860 = vld [vmem:[#allocation5 + $0x1868] sm:$0xff]
    %v861 = vld [vmem:[#allocation5 + $0x1870] sm:$0xff]
    %v862 = vld [vmem:[#allocation5 + $0x1878] sm:$0xff]
    %v863 = vld [vmem:[#allocation5 + $0x1880] sm:$0xff]
    %v864 = vld [vmem:[#allocation5 + $0x1888] sm:$0xff]
    %v865 = vld [vmem:[#allocation5 + $0x1890] sm:$0xff]
    %v866 = vld [vmem:[#allocation5 + $0x1898] sm:$0xff]
    %v867 = vld [vmem:[#allocation5 + $0x18a0] sm:$0xff]
    %v868 = vld [vmem:[#allocation5 + $0x18a8] sm:$0xff]
    %v869 = vld [vmem:[#allocation5 + $0x18b0] sm:$0xff]
    %v870 = vld [vmem:[#allocation5 + $0x18b8] sm:$0xff]
    %v871 = vld [vmem:[#allocation5 + $0x18c0] sm:$0xff]
    %v872 = vld [vmem:[#allocation5 + $0x18c8] sm:$0xff]
    %v873 = vld [vmem:[#allocation5 + $0x18d0] sm:$0xff]
    %v874 = vld [vmem:[#allocation5 + $0x18d8] sm:$0xff]
    %v875 = vld [vmem:[#allocation5 + $0x18e0] sm:$0xff]
    %v876 = vld [vmem:[#allocation5 + $0x18e8] sm:$0xff]
    %v877 = vld [vmem:[#allocation5 + $0x18f0] sm:$0xff]
    %v878 = vld [vmem:[#allocation5 + $0x18f8] sm:$0xff]
    %v879 = vld [vmem:[#allocation5 + $0x1900] sm:$0xff]
    %v880 = vld [vmem:[#allocation5 + $0x1908] sm:$0xff]
    %v881 = vld [vmem:[#allocation5 + $0x1910] sm:$0xff]
    %v882 = vld [vmem:[#allocation5 + $0x1918] sm:$0xff]
    %v883 = vld [vmem:[#allocation5 + $0x1920] sm:$0xff]
    %v884 = vld [vmem:[#allocation5 + $0x1928] sm:$0xff]
    %v885 = vld [vmem:[#allocation5 + $0x1930] sm:$0xff]
    %v886 = vld [vmem:[#allocation5 + $0x1938] sm:$0xff]
    %v887 = vld [vmem:[#allocation5 + $0x1940] sm:$0xff]
    %v888 = vld [vmem:[#allocation5 + $0x1948] sm:$0xff]
    %v889 = vld [vmem:[#allocation5 + $0x1950] sm:$0xff]
    %v890 = vld [vmem:[#allocation5 + $0x1958] sm:$0xff]
    %v891 = vld [vmem:[#allocation5 + $0x1960] sm:$0xff]
    %v892 = vld [vmem:[#allocation5 + $0x1968] sm:$0xff]
    %v893 = vld [vmem:[#allocation5 + $0x1970] sm:$0xff]
    %v894 = vld [vmem:[#allocation5 + $0x1978] sm:$0xff]
    %v895 = vld [vmem:[#allocation5 + $0x1980] sm:$0xff]
    %v896 = vld [vmem:[#allocation5 + $0x1988] sm:$0xff]
    %v897 = vld [vmem:[#allocation5 + $0x1990] sm:$0xff]
    %v898 = vld [vmem:[#allocation5 + $0x1998] sm:$0xff]
    %v899 = vld [vmem:[#allocation5 + $0x19a0] sm:$0xff]
    %v900 = vld [vmem:[#allocation5 + $0x19a8] sm:$0xff]
    %v901 = vld [vmem:[#allocation5 + $0x19b0] sm:$0xff]
    %v902 = vld [vmem:[#allocation5 + $0x19b8] sm:$0xff]
    %v903 = vld [vmem:[#allocation5 + $0x19c0] sm:$0xff]
    %v904 = vld [vmem:[#allocation5 + $0x19c8] sm:$0xff]
    %v905 = vld [vmem:[#allocation5 + $0x19d0] sm:$0xff]
    %v906 = vld [vmem:[#allocation5 + $0x19d8] sm:$0xff]
    %v907 = vld [vmem:[#allocation5 + $0x19e0] sm:$0xff]
    %v908 = vld [vmem:[#allocation5 + $0x19e8] sm:$0xff]
    %v909 = vld [vmem:[#allocation5 + $0x19f0] sm:$0xff]
    %v910 = vld [vmem:[#allocation5 + $0x19f8] sm:$0xff]
    %v911 = vld [vmem:[#allocation5 + $0x1a00] sm:$0xff]
    %v912 = vld [vmem:[#allocation5 + $0x1a08] sm:$0xff]
    %v913 = vld [vmem:[#allocation5 + $0x1a10] sm:$0xff]
    %v914 = vld [vmem:[#allocation5 + $0x1a18] sm:$0xff]
    %v915 = vld [vmem:[#allocation5 + $0x1a20] sm:$0xff]
    %v916 = vld [vmem:[#allocation5 + $0x1a28] sm:$0xff]
    %v917 = vld [vmem:[#allocation5 + $0x1a30] sm:$0xff]
    %v918 = vld [vmem:[#allocation5 + $0x1a38] sm:$0xff]
    %v919 = vld [vmem:[#allocation5 + $0x1a40] sm:$0xff]
    %v920 = vld [vmem:[#allocation5 + $0x1a48] sm:$0xff]
    %v921 = vld [vmem:[#allocation5 + $0x1a50] sm:$0xff]
    %v922 = vld [vmem:[#allocation5 + $0x1a58] sm:$0xff]
    %v923 = vld [vmem:[#allocation5 + $0x1a60] sm:$0xff]
    %v924 = vld [vmem:[#allocation5 + $0x1a68] sm:$0xff]
    %v925 = vld [vmem:[#allocation5 + $0x1a70] sm:$0xff]
    %v926 = vld [vmem:[#allocation5 + $0x1a78] sm:$0xff]
    %v927 = vld [vmem:[#allocation5 + $0x1a80] sm:$0xff]
    %v928 = vld [vmem:[#allocation5 + $0x1a88] sm:$0xff]
    %v929 = vld [vmem:[#allocation5 + $0x1a90] sm:$0xff]
    %v930 = vld [vmem:[#allocation5 + $0x1a98] sm:$0xff]
    %v931 = vld [vmem:[#allocation5 + $0x1aa0] sm:$0xff]
    %v932 = vld [vmem:[#allocation5 + $0x1aa8] sm:$0xff]
    %v933 = vld [vmem:[#allocation5 + $0x1ab0] sm:$0xff]
    %v934 = vld [vmem:[#allocation5 + $0x1ab8] sm:$0xff]
    %v935 = vld [vmem:[#allocation5 + $0x1ac0] sm:$0xff]
    %v936 = vld [vmem:[#allocation5 + $0x1ac8] sm:$0xff]
    %v937 = vld [vmem:[#allocation5 + $0x1ad0] sm:$0xff]
    %v938 = vld [vmem:[#allocation5 + $0x1ad8] sm:$0xff]
    %v939 = vld [vmem:[#allocation5 + $0x1ae0] sm:$0xff]
    %v940 = vld [vmem:[#allocation5 + $0x1ae8] sm:$0xff]
    %v941 = vld [vmem:[#allocation5 + $0x1af0] sm:$0xff]
    %v942 = vld [vmem:[#allocation5 + $0x1af8] sm:$0xff]
    %v943 = vld [vmem:[#allocation5 + $0x1b00] sm:$0xff]
    %v944 = vld [vmem:[#allocation5 + $0x1b08] sm:$0xff]
    %v945 = vld [vmem:[#allocation5 + $0x1b10] sm:$0xff]
    %v946 = vld [vmem:[#allocation5 + $0x1b18] sm:$0xff]
    %v947 = vld [vmem:[#allocation5 + $0x1b20] sm:$0xff]
    %v948 = vld [vmem:[#allocation5 + $0x1b28] sm:$0xff]
    %v949 = vld [vmem:[#allocation5 + $0x1b30] sm:$0xff]
    %v950 = vld [vmem:[#allocation5 + $0x1b38] sm:$0xff]
    %v951 = vld [vmem:[#allocation5 + $0x1b40] sm:$0xff]
    %v952 = vld [vmem:[#allocation5 + $0x1b48] sm:$0xff]
    %v953 = vld [vmem:[#allocation5 + $0x1b50] sm:$0xff]
    %v954 = vld [vmem:[#allocation5 + $0x1b58] sm:$0xff]
    %v955 = vld [vmem:[#allocation5 + $0x1b60] sm:$0xff]
    %v956 = vld [vmem:[#allocation5 + $0x1b68] sm:$0xff]
    %v957 = vld [vmem:[#allocation5 + $0x1b70] sm:$0xff]
    %v958 = vld [vmem:[#allocation5 + $0x1b78] sm:$0xff]
    %v959 = vld [vmem:[#allocation5 + $0x1b80] sm:$0xff]
    %v960 = vld [vmem:[#allocation5 + $0x1b88] sm:$0xff]
    %v961 = vld [vmem:[#allocation5 + $0x1b90] sm:$0xff]
    %v962 = vld [vmem:[#allocation5 + $0x1b98] sm:$0xff]
    %v963 = vld [vmem:[#allocation5 + $0x1ba0] sm:$0xff]
    %v964 = vld [vmem:[#allocation5 + $0x1ba8] sm:$0xff]
    %v965 = vld [vmem:[#allocation5 + $0x1bb0] sm:$0xff]
    %v966 = vld [vmem:[#allocation5 + $0x1bb8] sm:$0xff]
    %v967 = vld [vmem:[#allocation5 + $0x1bc0] sm:$0xff]
    %v968 = vld [vmem:[#allocation5 + $0x1bc8] sm:$0xff]
    %v969 = vld [vmem:[#allocation5 + $0x1bd0] sm:$0xff]
    %v970 = vld [vmem:[#allocation5 + $0x1bd8] sm:$0xff]
    %v971 = vld [vmem:[#allocation5 + $0x1be0] sm:$0xff]
    %v972 = vld [vmem:[#allocation5 + $0x1be8] sm:$0xff]
    %v973 = vld [vmem:[#allocation5 + $0x1bf0] sm:$0xff]
    %v974 = vld [vmem:[#allocation5 + $0x1bf8] sm:$0xff]
    %v975 = vld [vmem:[#allocation5 + $0x1c00] sm:$0xff]
    %v976 = vld [vmem:[#allocation5 + $0x1c08] sm:$0xff]
    %v977 = vld [vmem:[#allocation5 + $0x1c10] sm:$0xff]
    %v978 = vld [vmem:[#allocation5 + $0x1c18] sm:$0xff]
    %v979 = vld [vmem:[#allocation5 + $0x1c20] sm:$0xff]
    %v980 = vld [vmem:[#allocation5 + $0x1c28] sm:$0xff]
    %v981 = vld [vmem:[#allocation5 + $0x1c30] sm:$0xff]
    %v982 = vld [vmem:[#allocation5 + $0x1c38] sm:$0xff]
    %v983 = vld [vmem:[#allocation5 + $0x1c40] sm:$0xff]
    %v984 = vld [vmem:[#allocation5 + $0x1c48] sm:$0xff]
    %v985 = vld [vmem:[#allocation5 + $0x1c50] sm:$0xff]
    %v986 = vld [vmem:[#allocation5 + $0x1c58] sm:$0xff]
    %v987 = vld [vmem:[#allocation5 + $0x1c60] sm:$0xff]
    %v988 = vld [vmem:[#allocation5 + $0x1c68] sm:$0xff]
    %v989 = vld [vmem:[#allocation5 + $0x1c70] sm:$0xff]
    %v990 = vld [vmem:[#allocation5 + $0x1c78] sm:$0xff]
    %v991 = vld [vmem:[#allocation5 + $0x1c80] sm:$0xff]
    %v992 = vld [vmem:[#allocation5 + $0x1c88] sm:$0xff]
    %v993 = vld [vmem:[#allocation5 + $0x1c90] sm:$0xff]
    %v994 = vld [vmem:[#allocation5 + $0x1c98] sm:$0xff]
    %v995 = vld [vmem:[#allocation5 + $0x1ca0] sm:$0xff]
    %v996 = vld [vmem:[#allocation5 + $0x1ca8] sm:$0xff]
    %v997 = vld [vmem:[#allocation5 + $0x1cb0] sm:$0xff]
    %v998 = vld [vmem:[#allocation5 + $0x1cb8] sm:$0xff]
    %v999 = vld [vmem:[#allocation5 + $0x1cc0] sm:$0xff]
    %v1000 = vld [vmem:[#allocation5 + $0x1cc8] sm:$0xff]
    %v1001 = vld [vmem:[#allocation5 + $0x1cd0] sm:$0xff]
    %v1002 = vld [vmem:[#allocation5 + $0x1cd8] sm:$0xff]
    %v1003 = vld [vmem:[#allocation5 + $0x1ce0] sm:$0xff]
    %v1004 = vld [vmem:[#allocation5 + $0x1ce8] sm:$0xff]
    %v1005 = vld [vmem:[#allocation5 + $0x1cf0] sm:$0xff]
    %v1006 = vld [vmem:[#allocation5 + $0x1cf8] sm:$0xff]
    %v1007 = vld [vmem:[#allocation5 + $0x1d00] sm:$0xff]
    %v1008 = vld [vmem:[#allocation5 + $0x1d08] sm:$0xff]
    %v1009 = vld [vmem:[#allocation5 + $0x1d10] sm:$0xff]
    %v1010 = vld [vmem:[#allocation5 + $0x1d18] sm:$0xff]
    %v1011 = vld [vmem:[#allocation5 + $0x1d20] sm:$0xff]
    %v1012 = vld [vmem:[#allocation5 + $0x1d28] sm:$0xff]
    %v1013 = vld [vmem:[#allocation5 + $0x1d30] sm:$0xff]
    %v1014 = vld [vmem:[#allocation5 + $0x1d38] sm:$0xff]
    %v1015 = vld [vmem:[#allocation5 + $0x1d40] sm:$0xff]
    %v1016 = vld [vmem:[#allocation5 + $0x1d48] sm:$0xff]
    %v1017 = vld [vmem:[#allocation5 + $0x1d50] sm:$0xff]
    %v1018 = vld [vmem:[#allocation5 + $0x1d58] sm:$0xff]
    %v1019 = vld [vmem:[#allocation5 + $0x1d60] sm:$0xff]
    %v1020 = vld [vmem:[#allocation5 + $0x1d68] sm:$0xff]
    %v1021 = vld [vmem:[#allocation5 + $0x1d70] sm:$0xff]
    %v1022 = vld [vmem:[#allocation5 + $0x1d78] sm:$0xff]
    %v1023 = vld [vmem:[#allocation5 + $0x1d80] sm:$0xff]
    %v1024 = vld [vmem:[#allocation5 + $0x1d88] sm:$0xff]
    %v1025 = vld [vmem:[#allocation5 + $0x1d90] sm:$0xff]
    %v1026 = vld [vmem:[#allocation5 + $0x1d98] sm:$0xff]
    %v1027 = vld [vmem:[#allocation5 + $0x1da0] sm:$0xff]
    %v1028 = vld [vmem:[#allocation5 + $0x1da8] sm:$0xff]
    %v1029 = vld [vmem:[#allocation5 + $0x1db0] sm:$0xff]
    %v1030 = vld [vmem:[#allocation5 + $0x1db8] sm:$0xff]
    %v1031 = vld [vmem:[#allocation5 + $0x1dc0] sm:$0xff]
    %v1032 = vld [vmem:[#allocation5 + $0x1dc8] sm:$0xff]
    %v1033 = vld [vmem:[#allocation5 + $0x1dd0] sm:$0xff]
    %v1034 = vld [vmem:[#allocation5 + $0x1dd8] sm:$0xff]
    %v1035 = vld [vmem:[#allocation5 + $0x1de0] sm:$0xff]
    %v1036 = vld [vmem:[#allocation5 + $0x1de8] sm:$0xff]
    %v1037 = vld [vmem:[#allocation5 + $0x1df0] sm:$0xff]
    %v1038 = vld [vmem:[#allocation5 + $0x1df8] sm:$0xff]
    %v1039 = vld [vmem:[#allocation5 + $0x1e00] sm:$0xff]
    %v1040 = vld [vmem:[#allocation5 + $0x1e08] sm:$0xff]
    %v1041 = vld [vmem:[#allocation5 + $0x1e10] sm:$0xff]
    %v1042 = vld [vmem:[#allocation5 + $0x1e18] sm:$0xff]
    %v1043 = vld [vmem:[#allocation5 + $0x1e20] sm:$0xff]
    %v1044 = vld [vmem:[#allocation5 + $0x1e28] sm:$0xff]
    %v1045 = vld [vmem:[#allocation5 + $0x1e30] sm:$0xff]
    %v1046 = vld [vmem:[#allocation5 + $0x1e38] sm:$0xff]
    %v1047 = vld [vmem:[#allocation5 + $0x1e40] sm:$0xff]
    %v1048 = vld [vmem:[#allocation5 + $0x1e48] sm:$0xff]
    %v1049 = vld [vmem:[#allocation5 + $0x1e50] sm:$0xff]
    %v1050 = vld [vmem:[#allocation5 + $0x1e58] sm:$0xff]
    %v1051 = vld [vmem:[#allocation5 + $0x1e60] sm:$0xff]
    %v1052 = vld [vmem:[#allocation5 + $0x1e68] sm:$0xff]
    %v1053 = vld [vmem:[#allocation5 + $0x1e70] sm:$0xff]
    %v1054 = vld [vmem:[#allocation5 + $0x1e78] sm:$0xff]
    %v1055 = vld [vmem:[#allocation5 + $0x1e80] sm:$0xff]
    %v1056 = vld [vmem:[#allocation5 + $0x1e88] sm:$0xff]
    %v1057 = vld [vmem:[#allocation5 + $0x1e90] sm:$0xff]
    %v1058 = vld [vmem:[#allocation5 + $0x1e98] sm:$0xff]
    %v1059 = vld [vmem:[#allocation5 + $0x1ea0] sm:$0xff]
    %v1060 = vld [vmem:[#allocation5 + $0x1ea8] sm:$0xff]
    %v1061 = vld [vmem:[#allocation5 + $0x1eb0] sm:$0xff]
    %v1062 = vld [vmem:[#allocation5 + $0x1eb8] sm:$0xff]
    %v1063 = vld [vmem:[#allocation5 + $0x1ec0] sm:$0xff]
    %v1064 = vld [vmem:[#allocation5 + $0x1ec8] sm:$0xff]
    %v1065 = vld [vmem:[#allocation5 + $0x1ed0] sm:$0xff]
    %v1066 = vld [vmem:[#allocation5 + $0x1ed8] sm:$0xff]
    %v1067 = vld [vmem:[#allocation5 + $0x1ee0] sm:$0xff]
    %v1068 = vld [vmem:[#allocation5 + $0x1ee8] sm:$0xff]
    %v1069 = vld [vmem:[#allocation5 + $0x1ef0] sm:$0xff]
    %v1070 = vld [vmem:[#allocation5 + $0x1ef8] sm:$0xff]
    %v1071 = vld [vmem:[#allocation5 + $0x1f00] sm:$0xff]
    %v1072 = vld [vmem:[#allocation5 + $0x1f08] sm:$0xff]
    %v1073 = vld [vmem:[#allocation5 + $0x1f10] sm:$0xff]
    %v1074 = vld [vmem:[#allocation5 + $0x1f18] sm:$0xff]
    %v1075 = vld [vmem:[#allocation5 + $0x1f20] sm:$0xff]
    %v1076 = vld [vmem:[#allocation5 + $0x1f28] sm:$0xff]
    %v1077 = vld [vmem:[#allocation5 + $0x1f30] sm:$0xff]
    %v1078 = vld [vmem:[#allocation5 + $0x1f38] sm:$0xff]
    %v1079 = vld [vmem:[#allocation5 + $0x1f40] sm:$0xff]
    %v1080 = vld [vmem:[#allocation5 + $0x1f48] sm:$0xff]
    %v1081 = vld [vmem:[#allocation5 + $0x1f50] sm:$0xff]
    %v1082 = vld [vmem:[#allocation5 + $0x1f58] sm:$0xff]
    %v1083 = vld [vmem:[#allocation5 + $0x1f60] sm:$0xff]
    %v1084 = vld [vmem:[#allocation5 + $0x1f68] sm:$0xff]
    %v1085 = vld [vmem:[#allocation5 + $0x1f70] sm:$0xff]
    %v1086 = vld [vmem:[#allocation5 + $0x1f78] sm:$0xff]
    %v1087 = vld [vmem:[#allocation5 + $0x1f80] sm:$0xff]
    %v1088 = vld [vmem:[#allocation5 + $0x1f88] sm:$0xff]
    %v1089 = vld [vmem:[#allocation5 + $0x1f90] sm:$0xff]
    %v1090 = vld [vmem:[#allocation5 + $0x1f98] sm:$0xff]
    %v1091 = vld [vmem:[#allocation5 + $0x1fa0] sm:$0xff]
    %v1092 = vld [vmem:[#allocation5 + $0x1fa8] sm:$0xff]
    %v1093 = vld [vmem:[#allocation5 + $0x1fb0] sm:$0xff]
    %v1094 = vld [vmem:[#allocation5 + $0x1fb8] sm:$0xff]
    %v1095 = vld [vmem:[#allocation5 + $0x1fc0] sm:$0xff]
    %v1096 = vld [vmem:[#allocation5 + $0x1fc8] sm:$0xff]
    %v1097 = vld [vmem:[#allocation5 + $0x1fd0] sm:$0xff]
    %v1098 = vld [vmem:[#allocation5 + $0x1fd8] sm:$0xff]
    %v1099 = vld [vmem:[#allocation5 + $0x1fe0] sm:$0xff]
    %v1100 = vld [vmem:[#allocation5 + $0x1fe8] sm:$0xff]
    %v1101 = vld [vmem:[#allocation5 + $0x1ff0] sm:$0xff]
    %v1102 = vld [vmem:[#allocation5 + $0x1ff8] sm:$0xff]
    %v1103 = vld [vmem:[#allocation5 + $0x2000] sm:$0xff]
    %v1104 = vld [vmem:[#allocation5 + $0x2008] sm:$0xff]
    %v1105 = vld [vmem:[#allocation5 + $0x2010] sm:$0xff]
    %v1106 = vld [vmem:[#allocation5 + $0x2018] sm:$0xff]
    %v1107 = vld [vmem:[#allocation5 + $0x2020] sm:$0xff]
    %v1108 = vld [vmem:[#allocation5 + $0x2028] sm:$0xff]
    %v1109 = vld [vmem:[#allocation5 + $0x2030] sm:$0xff]
    %v1110 = vld [vmem:[#allocation5 + $0x2038] sm:$0xff]
    %v1111 = vld [vmem:[#allocation5 + $0x2040] sm:$0xff]
    %v1112 = vld [vmem:[#allocation5 + $0x2048] sm:$0xff]
    %v1113 = vld [vmem:[#allocation5 + $0x2050] sm:$0xff]
    %v1114 = vld [vmem:[#allocation5 + $0x2058] sm:$0xff]
    %v1115 = vld [vmem:[#allocation5 + $0x2060] sm:$0xff]
    %v1116 = vld [vmem:[#allocation5 + $0x2068] sm:$0xff]
    %v1117 = vld [vmem:[#allocation5 + $0x2070] sm:$0xff]
    %v1118 = vld [vmem:[#allocation5 + $0x2078] sm:$0xff]
    %v1119 = vld [vmem:[#allocation5 + $0x2080] sm:$0xff]
    %v1120 = vld [vmem:[#allocation5 + $0x2088] sm:$0xff]
    %v1121 = vld [vmem:[#allocation5 + $0x2090] sm:$0xff]
    %v1122 = vld [vmem:[#allocation5 + $0x2098] sm:$0xff]
    %v1123 = vld [vmem:[#allocation5 + $0x20a0] sm:$0xff]
    %v1124 = vld [vmem:[#allocation5 + $0x20a8] sm:$0xff]
    %v1125 = vld [vmem:[#allocation5 + $0x20b0] sm:$0xff]
    %v1126 = vld [vmem:[#allocation5 + $0x20b8] sm:$0xff]
    %v1127 = vld [vmem:[#allocation5 + $0x20c0] sm:$0xff]
    %v1128 = vld [vmem:[#allocation5 + $0x20c8] sm:$0xff]
    %v1129 = vld [vmem:[#allocation5 + $0x20d0] sm:$0xff]
    %v1130 = vld [vmem:[#allocation5 + $0x20d8] sm:$0xff]
    %v1131 = vld [vmem:[#allocation5 + $0x20e0] sm:$0xff]
    %v1132 = vld [vmem:[#allocation5 + $0x20e8] sm:$0xff]
    %v1133 = vld [vmem:[#allocation5 + $0x20f0] sm:$0xff]
    %v1134 = vld [vmem:[#allocation5 + $0x20f8] sm:$0xff]
    %v1135 = vld [vmem:[#allocation5 + $0x2100] sm:$0xff]
    %v1136 = vld [vmem:[#allocation5 + $0x2108] sm:$0xff]
    %v1137 = vld [vmem:[#allocation5 + $0x2110] sm:$0xff]
    %v1138 = vld [vmem:[#allocation5 + $0x2118] sm:$0xff]
    %v1139 = vld [vmem:[#allocation5 + $0x2120] sm:$0xff]
    %v1140 = vld [vmem:[#allocation5 + $0x2128] sm:$0xff]
    %v1141 = vld [vmem:[#allocation5 + $0x2130] sm:$0xff]
    %v1142 = vld [vmem:[#allocation5 + $0x2138] sm:$0xff]
    %v1143 = vld [vmem:[#allocation5 + $0x2140] sm:$0xff]
    %v1144 = vld [vmem:[#allocation5 + $0x2148] sm:$0xff]
    %v1145 = vld [vmem:[#allocation5 + $0x2150] sm:$0xff]
    %v1146 = vld [vmem:[#allocation5 + $0x2158] sm:$0xff]
    %v1147 = vld [vmem:[#allocation5 + $0x2160] sm:$0xff]
    %v1148 = vld [vmem:[#allocation5 + $0x2168] sm:$0xff]
    %v1149 = vld [vmem:[#allocation5 + $0x2170] sm:$0xff]
    %v1150 = vld [vmem:[#allocation5 + $0x2178] sm:$0xff]
    %v1151 = vld [vmem:[#allocation5 + $0x2180] sm:$0xff]
    %v1152 = vld [vmem:[#allocation5 + $0x2188] sm:$0xff]
    %v1153 = vld [vmem:[#allocation5 + $0x2190] sm:$0xff]
    %v1154 = vld [vmem:[#allocation5 + $0x2198] sm:$0xff]
    %v1155 = vld [vmem:[#allocation5 + $0x21a0] sm:$0xff]
    %v1156 = vld [vmem:[#allocation5 + $0x21a8] sm:$0xff]
    %v1157 = vld [vmem:[#allocation5 + $0x21b0] sm:$0xff]
    %v1158 = vld [vmem:[#allocation5 + $0x21b8] sm:$0xff]
    %v1159 = vld [vmem:[#allocation5 + $0x21c0] sm:$0xff]
    %v1160 = vld [vmem:[#allocation5 + $0x21c8] sm:$0xff]
    %v1161 = vld [vmem:[#allocation5 + $0x21d0] sm:$0xff]
    %v1162 = vld [vmem:[#allocation5 + $0x21d8] sm:$0xff]
    %v1163 = vld [vmem:[#allocation5 + $0x21e0] sm:$0xff]
    %v1164 = vld [vmem:[#allocation5 + $0x21e8] sm:$0xff]
    %v1165 = vld [vmem:[#allocation5 + $0x21f0] sm:$0xff]
    %v1166 = vld [vmem:[#allocation5 + $0x21f8] sm:$0xff]
    %v1167 = vld [vmem:[#allocation5 + $0x2200] sm:$0xff]
    %v1168 = vld [vmem:[#allocation5 + $0x2208] sm:$0xff]
    %v1169 = vld [vmem:[#allocation5 + $0x2210] sm:$0xff]
    %v1170 = vld [vmem:[#allocation5 + $0x2218] sm:$0xff]
    %v1171 = vld [vmem:[#allocation5 + $0x2220] sm:$0xff]
    %v1172 = vld [vmem:[#allocation5 + $0x2228] sm:$0xff]
    %v1173 = vld [vmem:[#allocation5 + $0x2230] sm:$0xff]
    %v1174 = vld [vmem:[#allocation5 + $0x2238] sm:$0xff]
    %v1175 = vld [vmem:[#allocation5 + $0x2240] sm:$0xff]
    %v1176 = vld [vmem:[#allocation5 + $0x2248] sm:$0xff]
    %v1177 = vld [vmem:[#allocation5 + $0x2250] sm:$0xff]
    %v1178 = vld [vmem:[#allocation5 + $0x2258] sm:$0xff]
    %v1179 = vld [vmem:[#allocation5 + $0x2260] sm:$0xff]
    %v1180 = vld [vmem:[#allocation5 + $0x2268] sm:$0xff]
    %v1181 = vld [vmem:[#allocation5 + $0x2270] sm:$0xff]
    %v1182 = vld [vmem:[#allocation5 + $0x2278] sm:$0xff]
    %v1183 = vld [vmem:[#allocation5 + $0x2280] sm:$0xff]
    %v1184 = vld [vmem:[#allocation5 + $0x2288] sm:$0xff]
    %v1185 = vld [vmem:[#allocation5 + $0x2290] sm:$0xff]
    %v1186 = vld [vmem:[#allocation5 + $0x2298] sm:$0xff]
    %v1187 = vld [vmem:[#allocation5 + $0x22a0] sm:$0xff]
    %v1188 = vld [vmem:[#allocation5 + $0x22a8] sm:$0xff]
    %v1189 = vld [vmem:[#allocation5 + $0x22b0] sm:$0xff]
    %v1190 = vld [vmem:[#allocation5 + $0x22b8] sm:$0xff]
    %v1191 = vld [vmem:[#allocation5 + $0x22c0] sm:$0xff]
    %v1192 = vld [vmem:[#allocation5 + $0x22c8] sm:$0xff]
    %v1193 = vld [vmem:[#allocation5 + $0x22d0] sm:$0xff]
    %v1194 = vld [vmem:[#allocation5 + $0x22d8] sm:$0xff]
    %v1195 = vld [vmem:[#allocation5 + $0x22e0] sm:$0xff]
    %v1196 = vld [vmem:[#allocation5 + $0x22e8] sm:$0xff]
    %v1197 = vld [vmem:[#allocation5 + $0x22f0] sm:$0xff]
    %v1198 = vld [vmem:[#allocation5 + $0x22f8] sm:$0xff]
    %v1199 = vld [vmem:[#allocation5 + $0x2300] sm:$0xff]
    %v1200 = vld [vmem:[#allocation5 + $0x2308] sm:$0xff]
    %v1201 = vld [vmem:[#allocation5 + $0x2310] sm:$0xff]
    %v1202 = vld [vmem:[#allocation5 + $0x2318] sm:$0xff]
    %v1203 = vld [vmem:[#allocation5 + $0x2320] sm:$0xff]
    %v1204 = vld [vmem:[#allocation5 + $0x2328] sm:$0xff]
    %v1205 = vld [vmem:[#allocation5 + $0x2330] sm:$0xff]
    %v1206 = vld [vmem:[#allocation5 + $0x2338] sm:$0xff]
    %v1207 = vld [vmem:[#allocation5 + $0x2340] sm:$0xff]
    %v1208 = vld [vmem:[#allocation5 + $0x2348] sm:$0xff]
    %v1209 = vld [vmem:[#allocation5 + $0x2350] sm:$0xff]
    %v1210 = vld [vmem:[#allocation5 + $0x2358] sm:$0xff]
    %v1211 = vld [vmem:[#allocation5 + $0x2360] sm:$0xff]
    %v1212 = vld [vmem:[#allocation5 + $0x2368] sm:$0xff]
    %v1213 = vld [vmem:[#allocation5 + $0x2370] sm:$0xff]
    %v1214 = vld [vmem:[#allocation5 + $0x2378] sm:$0xff]
    %v1215 = vld [vmem:[#allocation5 + $0x2380] sm:$0xff]
    %v1216 = vld [vmem:[#allocation5 + $0x2388] sm:$0xff]
    %v1217 = vld [vmem:[#allocation5 + $0x2390] sm:$0xff]
    %v1218 = vld [vmem:[#allocation5 + $0x2398] sm:$0xff]
    %v1219 = vld [vmem:[#allocation5 + $0x23a0] sm:$0xff]
    %v1220 = vld [vmem:[#allocation5 + $0x23a8] sm:$0xff]
    %v1221 = vld [vmem:[#allocation5 + $0x23b0] sm:$0xff]
    %v1222 = vld [vmem:[#allocation5 + $0x23b8] sm:$0xff]
    %v1223 = vld [vmem:[#allocation5 + $0x23c0] sm:$0xff]
    %v1224 = vld [vmem:[#allocation5 + $0x23c8] sm:$0xff]
    %v1225 = vld [vmem:[#allocation5 + $0x23d0] sm:$0xff]
    %v1226 = vld [vmem:[#allocation5 + $0x23d8] sm:$0xff]
    %v1227 = vld [vmem:[#allocation5 + $0x23e0] sm:$0xff]
    %v1228 = vld [vmem:[#allocation5 + $0x23e8] sm:$0xff]
    %v1229 = vld [vmem:[#allocation5 + $0x23f0] sm:$0xff]
    %v1230 = vld [vmem:[#allocation5 + $0x23f8] sm:$0xff]
    %v1231 = vld [vmem:[#allocation5 + $0x2400] sm:$0xff]
    %v1232 = vld [vmem:[#allocation5 + $0x2408] sm:$0xff]
    %v1233 = vld [vmem:[#allocation5 + $0x2410] sm:$0xff]
    %v1234 = vld [vmem:[#allocation5 + $0x2418] sm:$0xff]
    %v1235 = vld [vmem:[#allocation5 + $0x2420] sm:$0xff]
    %v1236 = vld [vmem:[#allocation5 + $0x2428] sm:$0xff]
    %v1237 = vld [vmem:[#allocation5 + $0x2430] sm:$0xff]
    %v1238 = vld [vmem:[#allocation5 + $0x2438] sm:$0xff]
    %v1239 = vld [vmem:[#allocation5 + $0x2440] sm:$0xff]
    %v1240 = vld [vmem:[#allocation5 + $0x2448] sm:$0xff]
    %v1241 = vld [vmem:[#allocation5 + $0x2450] sm:$0xff]
    %v1242 = vld [vmem:[#allocation5 + $0x2458] sm:$0xff]
    %v1243 = vld [vmem:[#allocation5 + $0x2460] sm:$0xff]
    %v1244 = vld [vmem:[#allocation5 + $0x2468] sm:$0xff]
    %v1245 = vld [vmem:[#allocation5 + $0x2470] sm:$0xff]
    %v1246 = vld [vmem:[#allocation5 + $0x2478] sm:$0xff]
    %v1247 = vld [vmem:[#allocation5 + $0x2480] sm:$0xff]
    %v1248 = vld [vmem:[#allocation5 + $0x2488] sm:$0xff]
    %v1249 = vld [vmem:[#allocation5 + $0x2490] sm:$0xff]
    %v1250 = vld [vmem:[#allocation5 + $0x2498] sm:$0xff]
    %v1251 = vld [vmem:[#allocation5 + $0x24a0] sm:$0xff]
    %v1252 = vld [vmem:[#allocation5 + $0x24a8] sm:$0xff]
    %v1253 = vld [vmem:[#allocation5 + $0x24b0] sm:$0xff]
    %v1254 = vld [vmem:[#allocation5 + $0x24b8] sm:$0xff]
    %v1255 = vld [vmem:[#allocation5 + $0x24c0] sm:$0xff]
    %v1256 = vld [vmem:[#allocation5 + $0x24c8] sm:$0xff]
    %v1257 = vld [vmem:[#allocation5 + $0x24d0] sm:$0xff]
    %v1258 = vld [vmem:[#allocation5 + $0x24d8] sm:$0xff]
    %v1259 = vld [vmem:[#allocation5 + $0x24e0] sm:$0xff]
    %v1260 = vld [vmem:[#allocation5 + $0x24e8] sm:$0xff]
    %v1261 = vld [vmem:[#allocation5 + $0x24f0] sm:$0xff]
    %v1262 = vld [vmem:[#allocation5 + $0x24f8] sm:$0xff]
    %v1263 = vld [vmem:[#allocation5 + $0x2500] sm:$0xff]
    %v1264 = vld [vmem:[#allocation5 + $0x2508] sm:$0xff]
    %v1265 = vld [vmem:[#allocation5 + $0x2510] sm:$0xff]
    %v1266 = vld [vmem:[#allocation5 + $0x2518] sm:$0xff]
    %v1267 = vld [vmem:[#allocation5 + $0x2520] sm:$0xff]
    %v1268 = vld [vmem:[#allocation5 + $0x2528] sm:$0xff]
    %v1269 = vld [vmem:[#allocation5 + $0x2530] sm:$0xff]
    %v1270 = vld [vmem:[#allocation5 + $0x2538] sm:$0xff]
    %v1271 = vld [vmem:[#allocation5 + $0x2540] sm:$0xff]
    %v1272 = vld [vmem:[#allocation5 + $0x2548] sm:$0xff]
    %v1273 = vld [vmem:[#allocation5 + $0x2550] sm:$0xff]
    %v1274 = vld [vmem:[#allocation5 + $0x2558] sm:$0xff]
    %v1275 = vld [vmem:[#allocation5 + $0x2560] sm:$0xff]
    %v1276 = vld [vmem:[#allocation5 + $0x2568] sm:$0xff]
    %v1277 = vld [vmem:[#allocation5 + $0x2570] sm:$0xff]
    %v1278 = vld [vmem:[#allocation5 + $0x2578] sm:$0xff]
    %v1279 = vld [vmem:[#allocation5 + $0x2580] sm:$0xff]
    %v1280 = vld [vmem:[#allocation5 + $0x2588] sm:$0xff]
    %v1281 = vld [vmem:[#allocation5 + $0x2590] sm:$0xff]
    %v1282 = vld [vmem:[#allocation5 + $0x2598] sm:$0xff]
    %v1283 = vld [vmem:[#allocation5 + $0x25a0] sm:$0xff]
    %v1284 = vld [vmem:[#allocation5 + $0x25a8] sm:$0xff]
    %v1285 = vld [vmem:[#allocation5 + $0x25b0] sm:$0xff]
    %v1286 = vld [vmem:[#allocation5 + $0x25b8] sm:$0xff]
    %v1287 = vld [vmem:[#allocation5 + $0x25c0] sm:$0xff]
    %v1288 = vld [vmem:[#allocation5 + $0x25c8] sm:$0xff]
    %v1289 = vld [vmem:[#allocation5 + $0x25d0] sm:$0xff]
    %v1290 = vld [vmem:[#allocation5 + $0x25d8] sm:$0xff]
    %v1291 = vld [vmem:[#allocation5 + $0x25e0] sm:$0xff]
    %v1292 = vld [vmem:[#allocation5 + $0x25e8] sm:$0xff]
    %v1293 = vld [vmem:[#allocation5 + $0x25f0] sm:$0xff]
    %v1294 = vld [vmem:[#allocation5 + $0x25f8] sm:$0xff]
    %v1295 = vld [vmem:[#allocation5 + $0x2600] sm:$0xff]
    %v1296 = vld [vmem:[#allocation5 + $0x2608] sm:$0xff]
    %v1297 = vld [vmem:[#allocation5 + $0x2610] sm:$0xff]
    %v1298 = vld [vmem:[#allocation5 + $0x2618] sm:$0xff]
    %v1299 = vld [vmem:[#allocation5 + $0x2620] sm:$0xff]
    %v1300 = vld [vmem:[#allocation5 + $0x2628] sm:$0xff]
    %v1301 = vld [vmem:[#allocation5 + $0x2630] sm:$0xff]
    %v1302 = vld [vmem:[#allocation5 + $0x2638] sm:$0xff]
    %v1303 = vld [vmem:[#allocation5 + $0x2640] sm:$0xff]
    %v1304 = vld [vmem:[#allocation5 + $0x2648] sm:$0xff]
    %v1305 = vld [vmem:[#allocation5 + $0x2650] sm:$0xff]
    %v1306 = vld [vmem:[#allocation5 + $0x2658] sm:$0xff]
    %v1307 = vld [vmem:[#allocation5 + $0x2660] sm:$0xff]
    %v1308 = vld [vmem:[#allocation5 + $0x2668] sm:$0xff]
    %v1309 = vld [vmem:[#allocation5 + $0x2670] sm:$0xff]
    %v1310 = vld [vmem:[#allocation5 + $0x2678] sm:$0xff]
    %v1311 = vld [vmem:[#allocation5 + $0x2680] sm:$0xff]
    %v1312 = vld [vmem:[#allocation5 + $0x2688] sm:$0xff]
    %v1313 = vld [vmem:[#allocation5 + $0x2690] sm:$0xff]
    %v1314 = vld [vmem:[#allocation5 + $0x2698] sm:$0xff]
    %v1315 = vld [vmem:[#allocation5 + $0x26a0] sm:$0xff]
    %v1316 = vld [vmem:[#allocation5 + $0x26a8] sm:$0xff]
    %v1317 = vld [vmem:[#allocation5 + $0x26b0] sm:$0xff]
    %v1318 = vld [vmem:[#allocation5 + $0x26b8] sm:$0xff]
    %v1319 = vld [vmem:[#allocation5 + $0x26c0] sm:$0xff]
    %v1320 = vld [vmem:[#allocation5 + $0x26c8] sm:$0xff]
    %v1321 = vld [vmem:[#allocation5 + $0x26d0] sm:$0xff]
    %v1322 = vld [vmem:[#allocation5 + $0x26d8] sm:$0xff]
    %v1323 = vld [vmem:[#allocation5 + $0x26e0] sm:$0xff]
    %v1324 = vld [vmem:[#allocation5 + $0x26e8] sm:$0xff]
    %v1325 = vld [vmem:[#allocation5 + $0x26f0] sm:$0xff]
    %v1326 = vld [vmem:[#allocation5 + $0x26f8] sm:$0xff]
    %v1327 = vld [vmem:[#allocation5 + $0x2700] sm:$0xff]
    %v1328 = vld [vmem:[#allocation5 + $0x2708] sm:$0xff]
    %v1329 = vld [vmem:[#allocation5 + $0x2710] sm:$0xff]
    %v1330 = vld [vmem:[#allocation5 + $0x2718] sm:$0xff]
    %v1331 = vld [vmem:[#allocation5 + $0x2720] sm:$0xff]
    %v1332 = vld [vmem:[#allocation5 + $0x2728] sm:$0xff]
    %v1333 = vld [vmem:[#allocation5 + $0x2730] sm:$0xff]
    %v1334 = vld [vmem:[#allocation5 + $0x2738] sm:$0xff]
    %v1335 = vld [vmem:[#allocation5 + $0x2740] sm:$0xff]
    %v1336 = vld [vmem:[#allocation5 + $0x2748] sm:$0xff]
    %v1337 = vld [vmem:[#allocation5 + $0x2750] sm:$0xff]
    %v1338 = vld [vmem:[#allocation5 + $0x2758] sm:$0xff]
    %v1339 = vld [vmem:[#allocation5 + $0x2760] sm:$0xff]
    %v1340 = vld [vmem:[#allocation5 + $0x2768] sm:$0xff]
    %v1341 = vld [vmem:[#allocation5 + $0x2770] sm:$0xff]
    %v1342 = vld [vmem:[#allocation5 + $0x2778] sm:$0xff]
    %v1343 = vld [vmem:[#allocation5 + $0x2780] sm:$0xff]
    %v1344 = vld [vmem:[#allocation5 + $0x2788] sm:$0xff]
    %v1345 = vld [vmem:[#allocation5 + $0x2790] sm:$0xff]
    %v1346 = vld [vmem:[#allocation5 + $0x2798] sm:$0xff]
    %v1347 = vld [vmem:[#allocation5 + $0x27a0] sm:$0xff]
    %v1348 = vld [vmem:[#allocation5 + $0x27a8] sm:$0xff]
    %v1349 = vld [vmem:[#allocation5 + $0x27b0] sm:$0xff]
    %v1350 = vld [vmem:[#allocation5 + $0x27b8] sm:$0xff]
    %v1351 = vld [vmem:[#allocation5 + $0x27c0] sm:$0xff]
    %v1352 = vld [vmem:[#allocation5 + $0x27c8] sm:$0xff]
    %v1353 = vld [vmem:[#allocation5 + $0x27d0] sm:$0xff]
    %v1354 = vld [vmem:[#allocation5 + $0x27d8] sm:$0xff]
    %v1355 = vld [vmem:[#allocation5 + $0x27e0] sm:$0xff]
    %v1356 = vld [vmem:[#allocation5 + $0x27e8] sm:$0xff]
    %v1357 = vld [vmem:[#allocation5 + $0x27f0] sm:$0xff]
    %v1358 = vld [vmem:[#allocation5 + $0x27f8] sm:$0xff]
    %v1359 = vld [vmem:[#allocation5 + $0x2800] sm:$0xff]
    %v1360 = vld [vmem:[#allocation5 + $0x2808] sm:$0xff]
    %v1361 = vld [vmem:[#allocation5 + $0x2810] sm:$0xff]
    %v1362 = vld [vmem:[#allocation5 + $0x2818] sm:$0xff]
    %v1363 = vld [vmem:[#allocation5 + $0x2820] sm:$0xff]
    %v1364 = vld [vmem:[#allocation5 + $0x2828] sm:$0xff]
    %v1365 = vld [vmem:[#allocation5 + $0x2830] sm:$0xff]
    %v1366 = vld [vmem:[#allocation5 + $0x2838] sm:$0xff]
    %v1367 = vld [vmem:[#allocation5 + $0x2840] sm:$0xff]
    %v1368 = vld [vmem:[#allocation5 + $0x2848] sm:$0xff]
    %v1369 = vld [vmem:[#allocation5 + $0x2850] sm:$0xff]
    %v1370 = vld [vmem:[#allocation5 + $0x2858] sm:$0xff]
    %v1371 = vld [vmem:[#allocation5 + $0x2860] sm:$0xff]
    %v1372 = vld [vmem:[#allocation5 + $0x2868] sm:$0xff]
    %v1373 = vld [vmem:[#allocation5 + $0x2870] sm:$0xff]
    %v1374 = vld [vmem:[#allocation5 + $0x2878] sm:$0xff]
    %v1375 = vld [vmem:[#allocation5 + $0x2880] sm:$0xff]
    %v1376 = vld [vmem:[#allocation5 + $0x2888] sm:$0xff]
    %v1377 = vld [vmem:[#allocation5 + $0x2890] sm:$0xff]
    %v1378 = vld [vmem:[#allocation5 + $0x2898] sm:$0xff]
    %v1379 = vld [vmem:[#allocation5 + $0x28a0] sm:$0xff]
    %v1380 = vld [vmem:[#allocation5 + $0x28a8] sm:$0xff]
    %v1381 = vld [vmem:[#allocation5 + $0x28b0] sm:$0xff]
    %v1382 = vld [vmem:[#allocation5 + $0x28b8] sm:$0xff]
    %v1383 = vld [vmem:[#allocation5 + $0x28c0] sm:$0xff]
    %v1384 = vld [vmem:[#allocation5 + $0x28c8] sm:$0xff]
    %v1385 = vld [vmem:[#allocation5 + $0x28d0] sm:$0xff]
    %v1386 = vld [vmem:[#allocation5 + $0x28d8] sm:$0xff]
    %v1387 = vld [vmem:[#allocation5 + $0x28e0] sm:$0xff]
    %v1388 = vld [vmem:[#allocation5 + $0x28e8] sm:$0xff]
    %v1389 = vld [vmem:[#allocation5 + $0x28f0] sm:$0xff]
    %v1390 = vld [vmem:[#allocation5 + $0x28f8] sm:$0xff]
    %v1391 = vld [vmem:[#allocation5 + $0x2900] sm:$0xff]
    %v1392 = vld [vmem:[#allocation5 + $0x2908] sm:$0xff]
    %v1393 = vld [vmem:[#allocation5 + $0x2910] sm:$0xff]
    %v1394 = vld [vmem:[#allocation5 + $0x2918] sm:$0xff]
    %v1395 = vld [vmem:[#allocation5 + $0x2920] sm:$0xff]
    %v1396 = vld [vmem:[#allocation5 + $0x2928] sm:$0xff]
    %v1397 = vld [vmem:[#allocation5 + $0x2930] sm:$0xff]
    %v1398 = vld [vmem:[#allocation5 + $0x2938] sm:$0xff]
    %v1399 = vld [vmem:[#allocation5 + $0x2940] sm:$0xff]
    %v1400 = vld [vmem:[#allocation5 + $0x2948] sm:$0xff]
    %v1401 = vld [vmem:[#allocation5 + $0x2950] sm:$0xff]
    %v1402 = vld [vmem:[#allocation5 + $0x2958] sm:$0xff]
    %v1403 = vld [vmem:[#allocation5 + $0x2960] sm:$0xff]
    %v1404 = vld [vmem:[#allocation5 + $0x2968] sm:$0xff]
    %v1405 = vld [vmem:[#allocation5 + $0x2970] sm:$0xff]
    %v1406 = vld [vmem:[#allocation5 + $0x2978] sm:$0xff]
    %v1407 = vld [vmem:[#allocation5 + $0x2980] sm:$0xff]
    %v1408 = vld [vmem:[#allocation5 + $0x2988] sm:$0xff]
    %v1409 = vld [vmem:[#allocation5 + $0x2990] sm:$0xff]
    %v1410 = vld [vmem:[#allocation5 + $0x2998] sm:$0xff]
    %v1411 = vld [vmem:[#allocation5 + $0x29a0] sm:$0xff]
    %v1412 = vld [vmem:[#allocation5 + $0x29a8] sm:$0xff]
    %v1413 = vld [vmem:[#allocation5 + $0x29b0] sm:$0xff]
    %v1414 = vld [vmem:[#allocation5 + $0x29b8] sm:$0xff]
    %v1415 = vld [vmem:[#allocation5 + $0x29c0] sm:$0xff]
    %v1416 = vld [vmem:[#allocation5 + $0x29c8] sm:$0xff]
    %v1417 = vld [vmem:[#allocation5 + $0x29d0] sm:$0xff]
    %v1418 = vld [vmem:[#allocation5 + $0x29d8] sm:$0xff]
    %v1419 = vld [vmem:[#allocation5 + $0x29e0] sm:$0xff]
    %v1420 = vld [vmem:[#allocation5 + $0x29e8] sm:$0xff]
    %v1421 = vld [vmem:[#allocation5 + $0x29f0] sm:$0xff]
    %v1422 = vld [vmem:[#allocation5 + $0x29f8] sm:$0xff]
    %v1423 = vld [vmem:[#allocation5 + $0x2a00] sm:$0xff]
    %v1424 = vld [vmem:[#allocation5 + $0x2a08] sm:$0xff]
    %v1425 = vld [vmem:[#allocation5 + $0x2a10] sm:$0xff]
    %v1426 = vld [vmem:[#allocation5 + $0x2a18] sm:$0xff]
    %v1427 = vld [vmem:[#allocation5 + $0x2a20] sm:$0xff]
    %v1428 = vld [vmem:[#allocation5 + $0x2a28] sm:$0xff]
    %v1429 = vld [vmem:[#allocation5 + $0x2a30] sm:$0xff]
    %v1430 = vld [vmem:[#allocation5 + $0x2a38] sm:$0xff]
    %v1431 = vld [vmem:[#allocation5 + $0x2a40] sm:$0xff]
    %v1432 = vld [vmem:[#allocation5 + $0x2a48] sm:$0xff]
    %v1433 = vld [vmem:[#allocation5 + $0x2a50] sm:$0xff]
    %v1434 = vld [vmem:[#allocation5 + $0x2a58] sm:$0xff]
    %v1435 = vld [vmem:[#allocation5 + $0x2a60] sm:$0xff]
    %v1436 = vld [vmem:[#allocation5 + $0x2a68] sm:$0xff]
    %v1437 = vld [vmem:[#allocation5 + $0x2a70] sm:$0xff]
    %v1438 = vld [vmem:[#allocation5 + $0x2a78] sm:$0xff]
    %v1439 = vld [vmem:[#allocation5 + $0x2a80] sm:$0xff]
    %v1440 = vld [vmem:[#allocation5 + $0x2a88] sm:$0xff]
    %v1441 = vld [vmem:[#allocation5 + $0x2a90] sm:$0xff]
    %v1442 = vld [vmem:[#allocation5 + $0x2a98] sm:$0xff]
    %v1443 = vld [vmem:[#allocation5 + $0x2aa0] sm:$0xff]
    %v1444 = vld [vmem:[#allocation5 + $0x2aa8] sm:$0xff]
    %v1445 = vld [vmem:[#allocation5 + $0x2ab0] sm:$0xff]
    %v1446 = vld [vmem:[#allocation5 + $0x2ab8] sm:$0xff]
    %v1447 = vld [vmem:[#allocation5 + $0x2ac0] sm:$0xff]
    %v1448 = vld [vmem:[#allocation5 + $0x2ac8] sm:$0xff]
    %v1449 = vld [vmem:[#allocation5 + $0x2ad0] sm:$0xff]
    %v1450 = vld [vmem:[#allocation5 + $0x2ad8] sm:$0xff]
    %v1451 = vld [vmem:[#allocation5 + $0x2ae0] sm:$0xff]
    %v1452 = vld [vmem:[#allocation5 + $0x2ae8] sm:$0xff]
    %v1453 = vld [vmem:[#allocation5 + $0x2af0] sm:$0xff]
    %v1454 = vld [vmem:[#allocation5 + $0x2af8] sm:$0xff]
    %v1455 = vld [vmem:[#allocation5 + $0x2b00] sm:$0xff]
    %v1456 = vld [vmem:[#allocation5 + $0x2b08] sm:$0xff]
    %v1457 = vld [vmem:[#allocation5 + $0x2b10] sm:$0xff]
    %v1458 = vld [vmem:[#allocation5 + $0x2b18] sm:$0xff]
    %v1459 = vld [vmem:[#allocation5 + $0x2b20] sm:$0xff]
    %v1460 = vld [vmem:[#allocation5 + $0x2b28] sm:$0xff]
    %v1461 = vld [vmem:[#allocation5 + $0x2b30] sm:$0xff]
    %v1462 = vld [vmem:[#allocation5 + $0x2b38] sm:$0xff]
    %v1463 = vld [vmem:[#allocation5 + $0x2b40] sm:$0xff]
    %v1464 = vld [vmem:[#allocation5 + $0x2b48] sm:$0xff]
    %v1465 = vld [vmem:[#allocation5 + $0x2b50] sm:$0xff]
    %v1466 = vld [vmem:[#allocation5 + $0x2b58] sm:$0xff]
    %v1467 = vld [vmem:[#allocation5 + $0x2b60] sm:$0xff]
    %v1468 = vld [vmem:[#allocation5 + $0x2b68] sm:$0xff]
    %v1469 = vld [vmem:[#allocation5 + $0x2b70] sm:$0xff]
    %v1470 = vld [vmem:[#allocation5 + $0x2b78] sm:$0xff]
    %v1471 = vld [vmem:[#allocation5 + $0x2b80] sm:$0xff]
    %v1472 = vld [vmem:[#allocation5 + $0x2b88] sm:$0xff]
    %v1473 = vld [vmem:[#allocation5 + $0x2b90] sm:$0xff]
    %v1474 = vld [vmem:[#allocation5 + $0x2b98] sm:$0xff]
    %v1475 = vld [vmem:[#allocation5 + $0x2ba0] sm:$0xff]
    %v1476 = vld [vmem:[#allocation5 + $0x2ba8] sm:$0xff]
    %v1477 = vld [vmem:[#allocation5 + $0x2bb0] sm:$0xff]
    %v1478 = vld [vmem:[#allocation5 + $0x2bb8] sm:$0xff]
    %v1479 = vld [vmem:[#allocation5 + $0x2bc0] sm:$0xff]
    %v1480 = vld [vmem:[#allocation5 + $0x2bc8] sm:$0xff]
    %v1481 = vld [vmem:[#allocation5 + $0x2bd0] sm:$0xff]
    %v1482 = vld [vmem:[#allocation5 + $0x2bd8] sm:$0xff]
    %v1483 = vld [vmem:[#allocation5 + $0x2be0] sm:$0xff]
    %v1484 = vld [vmem:[#allocation5 + $0x2be8] sm:$0xff]
    %v1485 = vld [vmem:[#allocation5 + $0x2bf0] sm:$0xff]
    %v1486 = vld [vmem:[#allocation5 + $0x2bf8] sm:$0xff]
    %v1487 = vld [vmem:[#allocation5 + $0x2c00] sm:$0xff]
    %v1488 = vld [vmem:[#allocation5 + $0x2c08] sm:$0xff]
    %v1489 = vld [vmem:[#allocation5 + $0x2c10] sm:$0xff]
    %v1490 = vld [vmem:[#allocation5 + $0x2c18] sm:$0xff]
    %v1491 = vld [vmem:[#allocation5 + $0x2c20] sm:$0xff]
    %v1492 = vld [vmem:[#allocation5 + $0x2c28] sm:$0xff]
    %v1493 = vld [vmem:[#allocation5 + $0x2c30] sm:$0xff]
    %v1494 = vld [vmem:[#allocation5 + $0x2c38] sm:$0xff]
    %v1495 = vld [vmem:[#allocation5 + $0x2c40] sm:$0xff]
    %v1496 = vld [vmem:[#allocation5 + $0x2c48] sm:$0xff]
    %v1497 = vld [vmem:[#allocation5 + $0x2c50] sm:$0xff]
    %v1498 = vld [vmem:[#allocation5 + $0x2c58] sm:$0xff]
    %v1499 = vld [vmem:[#allocation5 + $0x2c60] sm:$0xff]
    %v1500 = vld [vmem:[#allocation5 + $0x2c68] sm:$0xff]
    %v1501 = vld [vmem:[#allocation5 + $0x2c70] sm:$0xff]
    %v1502 = vld [vmem:[#allocation5 + $0x2c78] sm:$0xff]
    %v1503 = vld [vmem:[#allocation5 + $0x2c80] sm:$0xff]
    %v1504 = vld [vmem:[#allocation5 + $0x2c88] sm:$0xff]
    %v1505 = vld [vmem:[#allocation5 + $0x2c90] sm:$0xff]
    %v1506 = vld [vmem:[#allocation5 + $0x2c98] sm:$0xff]
    %v1507 = vld [vmem:[#allocation5 + $0x2ca0] sm:$0xff]
    %v1508 = vld [vmem:[#allocation5 + $0x2ca8] sm:$0xff]
    %v1509 = vld [vmem:[#allocation5 + $0x2cb0] sm:$0xff]
    %v1510 = vld [vmem:[#allocation5 + $0x2cb8] sm:$0xff]
    %v1511 = vld [vmem:[#allocation5 + $0x2cc0] sm:$0xff]
    %v1512 = vld [vmem:[#allocation5 + $0x2cc8] sm:$0xff]
    %v1513 = vld [vmem:[#allocation5 + $0x2cd0] sm:$0xff]
    %v1514 = vld [vmem:[#allocation5 + $0x2cd8] sm:$0xff]
    %v1515 = vld [vmem:[#allocation5 + $0x2ce0] sm:$0xff]
    %v1516 = vld [vmem:[#allocation5 + $0x2ce8] sm:$0xff]
    %v1517 = vld [vmem:[#allocation5 + $0x2cf0] sm:$0xff]
    %v1518 = vld [vmem:[#allocation5 + $0x2cf8] sm:$0xff]
    %v1519 = vld [vmem:[#allocation5 + $0x2d00] sm:$0xff]
    %v1520 = vld [vmem:[#allocation5 + $0x2d08] sm:$0xff]
    %v1521 = vld [vmem:[#allocation5 + $0x2d10] sm:$0xff]
    %v1522 = vld [vmem:[#allocation5 + $0x2d18] sm:$0xff]
    %v1523 = vld [vmem:[#allocation5 + $0x2d20] sm:$0xff]
    %v1524 = vld [vmem:[#allocation5 + $0x2d28] sm:$0xff]
    %v1525 = vld [vmem:[#allocation5 + $0x2d30] sm:$0xff]
    %v1526 = vld [vmem:[#allocation5 + $0x2d38] sm:$0xff]
    %v1527 = vld [vmem:[#allocation5 + $0x2d40] sm:$0xff]
    %v1528 = vld [vmem:[#allocation5 + $0x2d48] sm:$0xff]
    %v1529 = vld [vmem:[#allocation5 + $0x2d50] sm:$0xff]
    %v1530 = vld [vmem:[#allocation5 + $0x2d58] sm:$0xff]
    %v1531 = vld [vmem:[#allocation5 + $0x2d60] sm:$0xff]
    %v1532 = vld [vmem:[#allocation5 + $0x2d68] sm:$0xff]
    %v1533 = vld [vmem:[#allocation5 + $0x2d70] sm:$0xff]
    %v1534 = vld [vmem:[#allocation5 + $0x2d78] sm:$0xff]
    %v1535 = vld [vmem:[#allocation5 + $0x2d80] sm:$0xff]
    %v1536 = vld [vmem:[#allocation5 + $0x2d88] sm:$0xff]
    %v1537 = vld [vmem:[#allocation5 + $0x2d90] sm:$0xff]
    %v1538 = vld [vmem:[#allocation5 + $0x2d98] sm:$0xff]
    %v1539 = vld [vmem:[#allocation5 + $0x2da0] sm:$0xff]
    %v1540 = vld [vmem:[#allocation5 + $0x2da8] sm:$0xff]
    %v1541 = vld [vmem:[#allocation5 + $0x2db0] sm:$0xff]
    %v1542 = vld [vmem:[#allocation5 + $0x2db8] sm:$0xff]
    %v1543 = vld [vmem:[#allocation5 + $0x2dc0] sm:$0xff]
    %v1544 = vld [vmem:[#allocation5 + $0x2dc8] sm:$0xff]
    %v1545 = vld [vmem:[#allocation5 + $0x2dd0] sm:$0xff]
    %v1546 = vld [vmem:[#allocation5 + $0x2dd8] sm:$0xff]
    %v1547 = vld [vmem:[#allocation5 + $0x2de0] sm:$0xff]
    %v1548 = vld [vmem:[#allocation5 + $0x2de8] sm:$0xff]
    %v1549 = vld [vmem:[#allocation5 + $0x2df0] sm:$0xff]
    %v1550 = vld [vmem:[#allocation5 + $0x2df8] sm:$0xff]
    %v1551 = vld [vmem:[#allocation5 + $0x2e00] sm:$0xff]
    %v1552 = vld [vmem:[#allocation5 + $0x2e08] sm:$0xff]
    %v1553 = vld [vmem:[#allocation5 + $0x2e10] sm:$0xff]
    %v1554 = vld [vmem:[#allocation5 + $0x2e18] sm:$0xff]
    %v1555 = vld [vmem:[#allocation5 + $0x2e20] sm:$0xff]
    %v1556 = vld [vmem:[#allocation5 + $0x2e28] sm:$0xff]
    %v1557 = vld [vmem:[#allocation5 + $0x2e30] sm:$0xff]
    %v1558 = vld [vmem:[#allocation5 + $0x2e38] sm:$0xff]
    %v1559 = vld [vmem:[#allocation5 + $0x2e40] sm:$0xff]
    %v1560 = vld [vmem:[#allocation5 + $0x2e48] sm:$0xff]
    %v1561 = vld [vmem:[#allocation5 + $0x2e50] sm:$0xff]
    %v1562 = vld [vmem:[#allocation5 + $0x2e58] sm:$0xff]
    %v1563 = vld [vmem:[#allocation5 + $0x2e60] sm:$0xff]
    %v1564 = vld [vmem:[#allocation5 + $0x2e68] sm:$0xff]
    %v1565 = vld [vmem:[#allocation5 + $0x2e70] sm:$0xff]
    %v1566 = vld [vmem:[#allocation5 + $0x2e78] sm:$0xff]
    %v1567 = vld [vmem:[#allocation5 + $0x2e80] sm:$0xff]
    %v1568 = vld [vmem:[#allocation5 + $0x2e88] sm:$0xff]
    %v1569 = vld [vmem:[#allocation5 + $0x2e90] sm:$0xff]
    %v1570 = vld [vmem:[#allocation5 + $0x2e98] sm:$0xff]
    %v1571 = vld [vmem:[#allocation5 + $0x2ea0] sm:$0xff]
    %v1572 = vld [vmem:[#allocation5 + $0x2ea8] sm:$0xff]
    %v1573 = vld [vmem:[#allocation5 + $0x2eb0] sm:$0xff]
    %v1574 = vld [vmem:[#allocation5 + $0x2eb8] sm:$0xff]
    %v1575 = vld [vmem:[#allocation5 + $0x2ec0] sm:$0xff]
    %v1576 = vld [vmem:[#allocation5 + $0x2ec8] sm:$0xff]
    %v1577 = vld [vmem:[#allocation5 + $0x2ed0] sm:$0xff]
    %v1578 = vld [vmem:[#allocation5 + $0x2ed8] sm:$0xff]
    %v1579 = vld [vmem:[#allocation5 + $0x2ee0] sm:$0xff]
    %v1580 = vld [vmem:[#allocation5 + $0x2ee8] sm:$0xff]
    %v1581 = vld [vmem:[#allocation5 + $0x2ef0] sm:$0xff]
    %v1582 = vld [vmem:[#allocation5 + $0x2ef8] sm:$0xff]
    %v1583 = vld [vmem:[#allocation5 + $0x2f00] sm:$0xff]
    %v1584 = vld [vmem:[#allocation5 + $0x2f08] sm:$0xff]
    %v1585 = vld [vmem:[#allocation5 + $0x2f10] sm:$0xff]
    %v1586 = vld [vmem:[#allocation5 + $0x2f18] sm:$0xff]
    %v1587 = vld [vmem:[#allocation5 + $0x2f20] sm:$0xff]
    %v1588 = vld [vmem:[#allocation5 + $0x2f28] sm:$0xff]
    %v1589 = vld [vmem:[#allocation5 + $0x2f30] sm:$0xff]
    %v1590 = vld [vmem:[#allocation5 + $0x2f38] sm:$0xff]
    %v1591 = vld [vmem:[#allocation5 + $0x2f40] sm:$0xff]
    %v1592 = vld [vmem:[#allocation5 + $0x2f48] sm:$0xff]
    %v1593 = vld [vmem:[#allocation5 + $0x2f50] sm:$0xff]
    %v1594 = vld [vmem:[#allocation5 + $0x2f58] sm:$0xff]
    %v1595 = vld [vmem:[#allocation5 + $0x2f60] sm:$0xff]
    %v1596 = vld [vmem:[#allocation5 + $0x2f68] sm:$0xff]
    %v1597 = vld [vmem:[#allocation5 + $0x2f70] sm:$0xff]
    %v1598 = vld [vmem:[#allocation5 + $0x2f78] sm:$0xff]
    %v1599 = vld [vmem:[#allocation5 + $0x2f80] sm:$0xff]
    %v1600 = vld [vmem:[#allocation5 + $0x2f88] sm:$0xff]
    %v1601 = vld [vmem:[#allocation5 + $0x2f90] sm:$0xff]
    %v1602 = vld [vmem:[#allocation5 + $0x2f98] sm:$0xff]
    %v1603 = vld [vmem:[#allocation5 + $0x2fa0] sm:$0xff]
    %v1604 = vld [vmem:[#allocation5 + $0x2fa8] sm:$0xff]
    %v1605 = vld [vmem:[#allocation5 + $0x2fb0] sm:$0xff]
    %v1606 = vld [vmem:[#allocation5 + $0x2fb8] sm:$0xff]
    %v1607 = vld [vmem:[#allocation5 + $0x2fc0] sm:$0xff]
    %v1608 = vld [vmem:[#allocation5 + $0x2fc8] sm:$0xff]
    %v1609 = vld [vmem:[#allocation5 + $0x2fd0] sm:$0xff]
    %v1610 = vld [vmem:[#allocation5 + $0x2fd8] sm:$0xff]
    %v1611 = vld [vmem:[#allocation5 + $0x2fe0] sm:$0xff]
    %v1612 = vld [vmem:[#allocation5 + $0x2fe8] sm:$0xff]
    %v1613 = vld [vmem:[#allocation5 + $0x2ff0] sm:$0xff]
    %v1614 = vld [vmem:[#allocation5 + $0x2ff8] sm:$0xff]
    %v1615 = vld [vmem:[#allocation5 + $0x3000] sm:$0xff]
    %v1616 = vld [vmem:[#allocation5 + $0x3008] sm:$0xff]
    %v1617 = vld [vmem:[#allocation5 + $0x3010] sm:$0xff]
    %v1618 = vld [vmem:[#allocation5 + $0x3018] sm:$0xff]
    %v1619 = vld [vmem:[#allocation5 + $0x3020] sm:$0xff]
    %v1620 = vld [vmem:[#allocation5 + $0x3028] sm:$0xff]
    %v1621 = vld [vmem:[#allocation5 + $0x3030] sm:$0xff]
    %v1622 = vld [vmem:[#allocation5 + $0x3038] sm:$0xff]
    %v1623 = vld [vmem:[#allocation5 + $0x3040] sm:$0xff]
    %v1624 = vld [vmem:[#allocation5 + $0x3048] sm:$0xff]
    %v1625 = vld [vmem:[#allocation5 + $0x3050] sm:$0xff]
    %v1626 = vld [vmem:[#allocation5 + $0x3058] sm:$0xff]
    %v1627 = vld [vmem:[#allocation5 + $0x3060] sm:$0xff]
    %v1628 = vld [vmem:[#allocation5 + $0x3068] sm:$0xff]
    %v1629 = vld [vmem:[#allocation5 + $0x3070] sm:$0xff]
    %v1630 = vld [vmem:[#allocation5 + $0x3078] sm:$0xff]
    %v1631 = vld [vmem:[#allocation5 + $0x3080] sm:$0xff]
    %v1632 = vld [vmem:[#allocation5 + $0x3088] sm:$0xff]
    %v1633 = vld [vmem:[#allocation5 + $0x3090] sm:$0xff]
    %v1634 = vld [vmem:[#allocation5 + $0x3098] sm:$0xff]
    %v1635 = vld [vmem:[#allocation5 + $0x30a0] sm:$0xff]
    %v1636 = vld [vmem:[#allocation5 + $0x30a8] sm:$0xff]
    %v1637 = vld [vmem:[#allocation5 + $0x30b0] sm:$0xff]
    %v1638 = vld [vmem:[#allocation5 + $0x30b8] sm:$0xff]
    %v1639 = vld [vmem:[#allocation5 + $0x30c0] sm:$0xff]
    %v1640 = vld [vmem:[#allocation5 + $0x30c8] sm:$0xff]
    %v1641 = vld [vmem:[#allocation5 + $0x30d0] sm:$0xff]
    %v1642 = vld [vmem:[#allocation5 + $0x30d8] sm:$0xff]
    %v1643 = vld [vmem:[#allocation5 + $0x30e0] sm:$0xff]
    %v1644 = vld [vmem:[#allocation5 + $0x30e8] sm:$0xff]
    %v1645 = vld [vmem:[#allocation5 + $0x30f0] sm:$0xff]
    %v1646 = vld [vmem:[#allocation5 + $0x30f8] sm:$0xff]
    %v1647 = vld [vmem:[#allocation5 + $0x3100] sm:$0xff]
    %v1648 = vld [vmem:[#allocation5 + $0x3108] sm:$0xff]
    %v1649 = vld [vmem:[#allocation5 + $0x3110] sm:$0xff]
    %v1650 = vld [vmem:[#allocation5 + $0x3118] sm:$0xff]
    %v1651 = vld [vmem:[#allocation5 + $0x3120] sm:$0xff]
    %v1652 = vld [vmem:[#allocation5 + $0x3128] sm:$0xff]
    %v1653 = vld [vmem:[#allocation5 + $0x3130] sm:$0xff]
    %v1654 = vld [vmem:[#allocation5 + $0x3138] sm:$0xff]
    %v1655 = vld [vmem:[#allocation5 + $0x3140] sm:$0xff]
    %v1656 = vld [vmem:[#allocation5 + $0x3148] sm:$0xff]
    %v1657 = vld [vmem:[#allocation5 + $0x3150] sm:$0xff]
    %v1658 = vld [vmem:[#allocation5 + $0x3158] sm:$0xff]
    %v1659 = vld [vmem:[#allocation5 + $0x3160] sm:$0xff]
    %v1660 = vld [vmem:[#allocation5 + $0x3168] sm:$0xff]
    %v1661 = vld [vmem:[#allocation5 + $0x3170] sm:$0xff]
    %v1662 = vld [vmem:[#allocation5 + $0x3178] sm:$0xff]
    %v1663 = vld [vmem:[#allocation5 + $0x3180] sm:$0xff]
    %v1664 = vld [vmem:[#allocation5 + $0x3188] sm:$0xff]
    %v1665 = vld [vmem:[#allocation5 + $0x3190] sm:$0xff]
    %v1666 = vld [vmem:[#allocation5 + $0x3198] sm:$0xff]
    %v1667 = vld [vmem:[#allocation5 + $0x31a0] sm:$0xff]
    %v1668 = vld [vmem:[#allocation5 + $0x31a8] sm:$0xff]
    %v1669 = vld [vmem:[#allocation5 + $0x31b0] sm:$0xff]
    %v1670 = vld [vmem:[#allocation5 + $0x31b8] sm:$0xff]
    %v1671 = vld [vmem:[#allocation5 + $0x31c0] sm:$0xff]
    %v1672 = vld [vmem:[#allocation5 + $0x31c8] sm:$0xff]
    %v1673 = vld [vmem:[#allocation5 + $0x31d0] sm:$0xff]
    %v1674 = vld [vmem:[#allocation5 + $0x31d8] sm:$0xff]
    %v1675 = vld [vmem:[#allocation5 + $0x31e0] sm:$0xff]
    %v1676 = vld [vmem:[#allocation5 + $0x31e8] sm:$0xff]
    %v1677 = vld [vmem:[#allocation5 + $0x31f0] sm:$0xff]
    %v1678 = vld [vmem:[#allocation5 + $0x31f8] sm:$0xff]
    %v1679 = vld [vmem:[#allocation5 + $0x3200] sm:$0xff]
    %v1680 = vld [vmem:[#allocation5 + $0x3208] sm:$0xff]
    %v1681 = vld [vmem:[#allocation5 + $0x3210] sm:$0xff]
    %v1682 = vld [vmem:[#allocation5 + $0x3218] sm:$0xff]
    %v1683 = vld [vmem:[#allocation5 + $0x3220] sm:$0xff]
    %v1684 = vld [vmem:[#allocation5 + $0x3228] sm:$0xff]
    %v1685 = vld [vmem:[#allocation5 + $0x3230] sm:$0xff]
    %v1686 = vld [vmem:[#allocation5 + $0x3238] sm:$0xff]
    %v1687 = vld [vmem:[#allocation5 + $0x3240] sm:$0xff]
    %v1688 = vld [vmem:[#allocation5 + $0x3248] sm:$0xff]
    %v1689 = vld [vmem:[#allocation5 + $0x3250] sm:$0xff]
    %v1690 = vld [vmem:[#allocation5 + $0x3258] sm:$0xff]
    %v1691 = vld [vmem:[#allocation5 + $0x3260] sm:$0xff]
    %v1692 = vld [vmem:[#allocation5 + $0x3268] sm:$0xff]
    %v1693 = vld [vmem:[#allocation5 + $0x3270] sm:$0xff]
    %v1694 = vld [vmem:[#allocation5 + $0x3278] sm:$0xff]
    %v1695 = vld [vmem:[#allocation5 + $0x3280] sm:$0xff]
    %v1696 = vld [vmem:[#allocation5 + $0x3288] sm:$0xff]
    %v1697 = vld [vmem:[#allocation5 + $0x3290] sm:$0xff]
    %v1698 = vld [vmem:[#allocation5 + $0x3298] sm:$0xff]
    %v1699 = vld [vmem:[#allocation5 + $0x32a0] sm:$0xff]
    %v1700 = vld [vmem:[#allocation5 + $0x32a8] sm:$0xff]
    %v1701 = vld [vmem:[#allocation5 + $0x32b0] sm:$0xff]
    %v1702 = vld [vmem:[#allocation5 + $0x32b8] sm:$0xff]
    %v1703 = vld [vmem:[#allocation5 + $0x32c0] sm:$0xff]
    %v1704 = vld [vmem:[#allocation5 + $0x32c8] sm:$0xff]
    %v1705 = vld [vmem:[#allocation5 + $0x32d0] sm:$0xff]
    %v1706 = vld [vmem:[#allocation5 + $0x32d8] sm:$0xff]
    %v1707 = vld [vmem:[#allocation5 + $0x32e0] sm:$0xff]
    %v1708 = vld [vmem:[#allocation5 + $0x32e8] sm:$0xff]
    %v1709 = vld [vmem:[#allocation5 + $0x32f0] sm:$0xff]
    %v1710 = vld [vmem:[#allocation5 + $0x32f8] sm:$0xff]
    %v1711 = vld [vmem:[#allocation5 + $0x3300] sm:$0xff]
    %v1712 = vld [vmem:[#allocation5 + $0x3308] sm:$0xff]
    %v1713 = vld [vmem:[#allocation5 + $0x3310] sm:$0xff]
    %v1714 = vld [vmem:[#allocation5 + $0x3318] sm:$0xff]
    %v1715 = vld [vmem:[#allocation5 + $0x3320] sm:$0xff]
    %v1716 = vld [vmem:[#allocation5 + $0x3328] sm:$0xff]
    %v1717 = vld [vmem:[#allocation5 + $0x3330] sm:$0xff]
    %v1718 = vld [vmem:[#allocation5 + $0x3338] sm:$0xff]
    %v1719 = vld [vmem:[#allocation5 + $0x3340] sm:$0xff]
    %v1720 = vld [vmem:[#allocation5 + $0x3348] sm:$0xff]
    %v1721 = vld [vmem:[#allocation5 + $0x3350] sm:$0xff]
    %v1722 = vld [vmem:[#allocation5 + $0x3358] sm:$0xff]
    %v1723 = vld [vmem:[#allocation5 + $0x3360] sm:$0xff]
    %v1724 = vld [vmem:[#allocation5 + $0x3368] sm:$0xff]
    %v1725 = vld [vmem:[#allocation5 + $0x3370] sm:$0xff]
    %v1726 = vld [vmem:[#allocation5 + $0x3378] sm:$0xff]
    %v1727 = vld [vmem:[#allocation5 + $0x3380] sm:$0xff]
    %v1728 = vld [vmem:[#allocation5 + $0x3388] sm:$0xff]
    %v1729 = vld [vmem:[#allocation5 + $0x3390] sm:$0xff]
    %v1730 = vld [vmem:[#allocation5 + $0x3398] sm:$0xff]
    %v1731 = vld [vmem:[#allocation5 + $0x33a0] sm:$0xff]
    %v1732 = vld [vmem:[#allocation5 + $0x33a8] sm:$0xff]
    %v1733 = vld [vmem:[#allocation5 + $0x33b0] sm:$0xff]
    %v1734 = vld [vmem:[#allocation5 + $0x33b8] sm:$0xff]
    %v1735 = vld [vmem:[#allocation5 + $0x33c0] sm:$0xff]
    %v1736 = vld [vmem:[#allocation5 + $0x33c8] sm:$0xff]
    %v1737 = vld [vmem:[#allocation5 + $0x33d0] sm:$0xff]
    %v1738 = vld [vmem:[#allocation5 + $0x33d8] sm:$0xff]
    %v1739 = vld [vmem:[#allocation5 + $0x33e0] sm:$0xff]
    %v1740 = vld [vmem:[#allocation5 + $0x33e8] sm:$0xff]
    %v1741 = vld [vmem:[#allocation5 + $0x33f0] sm:$0xff]
    %v1742 = vld [vmem:[#allocation5 + $0x33f8] sm:$0xff]
    %v1743 = vld [vmem:[#allocation5 + $0x3400] sm:$0xff]
    %v1744 = vld [vmem:[#allocation5 + $0x3408] sm:$0xff]
    %v1745 = vld [vmem:[#allocation5 + $0x3410] sm:$0xff]
    %v1746 = vld [vmem:[#allocation5 + $0x3418] sm:$0xff]
    %v1747 = vld [vmem:[#allocation5 + $0x3420] sm:$0xff]
    %v1748 = vld [vmem:[#allocation5 + $0x3428] sm:$0xff]
    %v1749 = vld [vmem:[#allocation5 + $0x3430] sm:$0xff]
    %v1750 = vld [vmem:[#allocation5 + $0x3438] sm:$0xff]
    %v1751 = vld [vmem:[#allocation5 + $0x3440] sm:$0xff]
    %v1752 = vld [vmem:[#allocation5 + $0x3448] sm:$0xff]
    %v1753 = vld [vmem:[#allocation5 + $0x3450] sm:$0xff]
    %v1754 = vld [vmem:[#allocation5 + $0x3458] sm:$0xff]
    %v1755 = vld [vmem:[#allocation5 + $0x3460] sm:$0xff]
    %v1756 = vld [vmem:[#allocation5 + $0x3468] sm:$0xff]
    %v1757 = vld [vmem:[#allocation5 + $0x3470] sm:$0xff]
    %v1758 = vld [vmem:[#allocation5 + $0x3478] sm:$0xff]
    %v1759 = vld [vmem:[#allocation5 + $0x3480] sm:$0xff]
    %v1760 = vld [vmem:[#allocation5 + $0x3488] sm:$0xff]
    %v1761 = vld [vmem:[#allocation5 + $0x3490] sm:$0xff]
    %v1762 = vld [vmem:[#allocation5 + $0x3498] sm:$0xff]
    %v1763 = vld [vmem:[#allocation5 + $0x34a0] sm:$0xff]
    %v1764 = vld [vmem:[#allocation5 + $0x34a8] sm:$0xff]
    %v1765 = vld [vmem:[#allocation5 + $0x34b0] sm:$0xff]
    %v1766 = vld [vmem:[#allocation5 + $0x34b8] sm:$0xff]
    %v1767 = vld [vmem:[#allocation5 + $0x34c0] sm:$0xff]
    %v1768 = vld [vmem:[#allocation5 + $0x34c8] sm:$0xff]
    %v1769 = vld [vmem:[#allocation5 + $0x34d0] sm:$0xff]
    %v1770 = vld [vmem:[#allocation5 + $0x34d8] sm:$0xff]
    %v1771 = vld [vmem:[#allocation5 + $0x34e0] sm:$0xff]
    %v1772 = vld [vmem:[#allocation5 + $0x34e8] sm:$0xff]
    %v1773 = vld [vmem:[#allocation5 + $0x34f0] sm:$0xff]
    %v1774 = vld [vmem:[#allocation5 + $0x34f8] sm:$0xff]
    %v1775 = vld [vmem:[#allocation5 + $0x3500] sm:$0xff]
    %v1776 = vld [vmem:[#allocation5 + $0x3508] sm:$0xff]
    %v1777 = vld [vmem:[#allocation5 + $0x3510] sm:$0xff]
    %v1778 = vld [vmem:[#allocation5 + $0x3518] sm:$0xff]
    %v1779 = vld [vmem:[#allocation5 + $0x3520] sm:$0xff]
    %v1780 = vld [vmem:[#allocation5 + $0x3528] sm:$0xff]
    %v1781 = vld [vmem:[#allocation5 + $0x3530] sm:$0xff]
    %v1782 = vld [vmem:[#allocation5 + $0x3538] sm:$0xff]
    %v1783 = vld [vmem:[#allocation5 + $0x3540] sm:$0xff]
    %v1784 = vld [vmem:[#allocation5 + $0x3548] sm:$0xff]
    %v1785 = vld [vmem:[#allocation5 + $0x3550] sm:$0xff]
    %v1786 = vld [vmem:[#allocation5 + $0x3558] sm:$0xff]
    %v1787 = vld [vmem:[#allocation5 + $0x3560] sm:$0xff]
    %v1788 = vld [vmem:[#allocation5 + $0x3568] sm:$0xff]
    %v1789 = vld [vmem:[#allocation5 + $0x3570] sm:$0xff]
    %v1790 = vld [vmem:[#allocation5 + $0x3578] sm:$0xff]
    %v1791 = vld [vmem:[#allocation5 + $0x3580] sm:$0xff]
    %v1792 = vld [vmem:[#allocation5 + $0x3588] sm:$0xff]
    %v1793 = vld [vmem:[#allocation5 + $0x3590] sm:$0xff]
    %v1794 = vld [vmem:[#allocation5 + $0x3598] sm:$0xff]
    %v1795 = vld [vmem:[#allocation5 + $0x35a0] sm:$0xff]
    %v1796 = vld [vmem:[#allocation5 + $0x35a8] sm:$0xff]
    %v1797 = vld [vmem:[#allocation5 + $0x35b0] sm:$0xff]
    %v1798 = vld [vmem:[#allocation5 + $0x35b8] sm:$0xff]
    %v1799 = vld [vmem:[#allocation5 + $0x35c0] sm:$0xff]
    %v1800 = vld [vmem:[#allocation5 + $0x35c8] sm:$0xff]
    %v1801 = vld [vmem:[#allocation5 + $0x35d0] sm:$0xff]
    %v1802 = vld [vmem:[#allocation5 + $0x35d8] sm:$0xff]
    %v1803 = vld [vmem:[#allocation5 + $0x35e0] sm:$0xff]
    %v1804 = vld [vmem:[#allocation5 + $0x35e8] sm:$0xff]
    %v1805 = vld [vmem:[#allocation5 + $0x35f0] sm:$0xff]
    %v1806 = vld [vmem:[#allocation5 + $0x35f8] sm:$0xff]
    %v1807 = vld [vmem:[#allocation5 + $0x3600] sm:$0xff]
    %v1808 = vld [vmem:[#allocation5 + $0x3608] sm:$0xff]
    %v1809 = vld [vmem:[#allocation5 + $0x3610] sm:$0xff]
    %v1810 = vld [vmem:[#allocation5 + $0x3618] sm:$0xff]
    %v1811 = vld [vmem:[#allocation5 + $0x3620] sm:$0xff]
    %v1812 = vld [vmem:[#allocation5 + $0x3628] sm:$0xff]
    %v1813 = vld [vmem:[#allocation5 + $0x3630] sm:$0xff]
    %v1814 = vld [vmem:[#allocation5 + $0x3638] sm:$0xff]
    %v1815 = vld [vmem:[#allocation5 + $0x3640] sm:$0xff]
    %v1816 = vld [vmem:[#allocation5 + $0x3648] sm:$0xff]
    %v1817 = vld [vmem:[#allocation5 + $0x3650] sm:$0xff]
    %v1818 = vld [vmem:[#allocation5 + $0x3658] sm:$0xff]
    %v1819 = vld [vmem:[#allocation5 + $0x3660] sm:$0xff]
    %v1820 = vld [vmem:[#allocation5 + $0x3668] sm:$0xff]
    %v1821 = vld [vmem:[#allocation5 + $0x3670] sm:$0xff]
    %v1822 = vld [vmem:[#allocation5 + $0x3678] sm:$0xff]
    %v1823 = vld [vmem:[#allocation5 + $0x3680] sm:$0xff]
    %v1824 = vld [vmem:[#allocation5 + $0x3688] sm:$0xff]
    %v1825 = vld [vmem:[#allocation5 + $0x3690] sm:$0xff]
    %v1826 = vld [vmem:[#allocation5 + $0x3698] sm:$0xff]
    %v1827 = vld [vmem:[#allocation5 + $0x36a0] sm:$0xff]
    %v1828 = vld [vmem:[#allocation5 + $0x36a8] sm:$0xff]
    %v1829 = vld [vmem:[#allocation5 + $0x36b0] sm:$0xff]
    %v1830 = vld [vmem:[#allocation5 + $0x36b8] sm:$0xff]
    %v1831 = vld [vmem:[#allocation5 + $0x36c0] sm:$0xff]
    %v1832 = vld [vmem:[#allocation5 + $0x36c8] sm:$0xff]
    %v1833 = vld [vmem:[#allocation5 + $0x36d0] sm:$0xff]
    %v1834 = vld [vmem:[#allocation5 + $0x36d8] sm:$0xff]
    %v1835 = vld [vmem:[#allocation5 + $0x36e0] sm:$0xff]
    %v1836 = vld [vmem:[#allocation5 + $0x36e8] sm:$0xff]
    %v1837 = vld [vmem:[#allocation5 + $0x36f0] sm:$0xff]
    %v1838 = vld [vmem:[#allocation5 + $0x36f8] sm:$0xff]
    %v1839 = vld [vmem:[#allocation5 + $0x3700] sm:$0xff]
    %v1840 = vld [vmem:[#allocation5 + $0x3708] sm:$0xff]
    %v1841 = vld [vmem:[#allocation5 + $0x3710] sm:$0xff]
    %v1842 = vld [vmem:[#allocation5 + $0x3718] sm:$0xff]
    %v1843 = vld [vmem:[#allocation5 + $0x3720] sm:$0xff]
    %v1844 = vld [vmem:[#allocation5 + $0x3728] sm:$0xff]
    %v1845 = vld [vmem:[#allocation5 + $0x3730] sm:$0xff]
    %v1846 = vld [vmem:[#allocation5 + $0x3738] sm:$0xff]
    %v1847 = vld [vmem:[#allocation5 + $0x3740] sm:$0xff]
    %v1848 = vld [vmem:[#allocation5 + $0x3748] sm:$0xff]
    %v1849 = vld [vmem:[#allocation5 + $0x3750] sm:$0xff]
    %v1850 = vld [vmem:[#allocation5 + $0x3758] sm:$0xff]
    %v1851 = vld [vmem:[#allocation5 + $0x3760] sm:$0xff]
    %v1852 = vld [vmem:[#allocation5 + $0x3768] sm:$0xff]
    %v1853 = vld [vmem:[#allocation5 + $0x3770] sm:$0xff]
    %v1854 = vld [vmem:[#allocation5 + $0x3778] sm:$0xff]
    %v1855 = vld [vmem:[#allocation5 + $0x3780] sm:$0xff]
    %v1856 = vld [vmem:[#allocation5 + $0x3788] sm:$0xff]
    %v1857 = vld [vmem:[#allocation5 + $0x3790] sm:$0xff]
    %v1858 = vld [vmem:[#allocation5 + $0x3798] sm:$0xff]
    %v1859 = vld [vmem:[#allocation5 + $0x37a0] sm:$0xff]
    %v1860 = vld [vmem:[#allocation5 + $0x37a8] sm:$0xff]
    %v1861 = vld [vmem:[#allocation5 + $0x37b0] sm:$0xff]
    %v1862 = vld [vmem:[#allocation5 + $0x37b8] sm:$0xff]
    %v1863 = vld [vmem:[#allocation5 + $0x37c0] sm:$0xff]
    %v1864 = vld [vmem:[#allocation5 + $0x37c8] sm:$0xff]
    %v1865 = vld [vmem:[#allocation5 + $0x37d0] sm:$0xff]
    %v1866 = vld [vmem:[#allocation5 + $0x37d8] sm:$0xff]
    %v1867 = vld [vmem:[#allocation5 + $0x37e0] sm:$0xff]
    %v1868 = vld [vmem:[#allocation5 + $0x37e8] sm:$0xff]
    %v1869 = vld [vmem:[#allocation5 + $0x37f0] sm:$0xff]
    %v1870 = vld [vmem:[#allocation5 + $0x37f8] sm:$0xff]
    %v1871 = vld [vmem:[#allocation5 + $0x3800] sm:$0xff]
    %v1872 = vld [vmem:[#allocation5 + $0x3808] sm:$0xff]
    %v1873 = vld [vmem:[#allocation5 + $0x3810] sm:$0xff]
    %v1874 = vld [vmem:[#allocation5 + $0x3818] sm:$0xff]
    %v1875 = vld [vmem:[#allocation5 + $0x3820] sm:$0xff]
    %v1876 = vld [vmem:[#allocation5 + $0x3828] sm:$0xff]
    %v1877 = vld [vmem:[#allocation5 + $0x3830] sm:$0xff]
    %v1878 = vld [vmem:[#allocation5 + $0x3838] sm:$0xff]
    %v1879 = vld [vmem:[#allocation5 + $0x3840] sm:$0xff]
    %v1880 = vld [vmem:[#allocation5 + $0x3848] sm:$0xff]
    %v1881 = vld [vmem:[#allocation5 + $0x3850] sm:$0xff]
    %v1882 = vld [vmem:[#allocation5 + $0x3858] sm:$0xff]
    %v1883 = vld [vmem:[#allocation5 + $0x3860] sm:$0xff]
    %v1884 = vld [vmem:[#allocation5 + $0x3868] sm:$0xff]
    %v1885 = vld [vmem:[#allocation5 + $0x3870] sm:$0xff]
    %v1886 = vld [vmem:[#allocation5 + $0x3878] sm:$0xff]
    %v1887 = vld [vmem:[#allocation5 + $0x3880] sm:$0xff]
    %v1888 = vld [vmem:[#allocation5 + $0x3888] sm:$0xff]
    %v1889 = vld [vmem:[#allocation5 + $0x3890] sm:$0xff]
    %v1890 = vld [vmem:[#allocation5 + $0x3898] sm:$0xff]
    %v1891 = vld [vmem:[#allocation5 + $0x38a0] sm:$0xff]
    %v1892 = vld [vmem:[#allocation5 + $0x38a8] sm:$0xff]
    %v1893 = vld [vmem:[#allocation5 + $0x38b0] sm:$0xff]
    %v1894 = vld [vmem:[#allocation5 + $0x38b8] sm:$0xff]
    %v1895 = vld [vmem:[#allocation5 + $0x38c0] sm:$0xff]
    %v1896 = vld [vmem:[#allocation5 + $0x38c8] sm:$0xff]
    %v1897 = vld [vmem:[#allocation5 + $0x38d0] sm:$0xff]
    %v1898 = vld [vmem:[#allocation5 + $0x38d8] sm:$0xff]
    %v1899 = vld [vmem:[#allocation5 + $0x38e0] sm:$0xff]
    %v1900 = vld [vmem:[#allocation5 + $0x38e8] sm:$0xff]
    %v1901 = vld [vmem:[#allocation5 + $0x38f0] sm:$0xff]
    %v1902 = vld [vmem:[#allocation5 + $0x38f8] sm:$0xff]
    %v1903 = vld [vmem:[#allocation5 + $0x3900] sm:$0xff]
    %v1904 = vld [vmem:[#allocation5 + $0x3908] sm:$0xff]
    %v1905 = vld [vmem:[#allocation5 + $0x3910] sm:$0xff]
    %v1906 = vld [vmem:[#allocation5 + $0x3918] sm:$0xff]
    %v1907 = vld [vmem:[#allocation5 + $0x3920] sm:$0xff]
    %v1908 = vld [vmem:[#allocation5 + $0x3928] sm:$0xff]
    %v1909 = vld [vmem:[#allocation5 + $0x3930] sm:$0xff]
    %v1910 = vld [vmem:[#allocation5 + $0x3938] sm:$0xff]
    %v1911 = vld [vmem:[#allocation5 + $0x3940] sm:$0xff]
    %v1912 = vld [vmem:[#allocation5 + $0x3948] sm:$0xff]
    %v1913 = vld [vmem:[#allocation5 + $0x3950] sm:$0xff]
    %v1914 = vld [vmem:[#allocation5 + $0x3958] sm:$0xff]
    %v1915 = vld [vmem:[#allocation5 + $0x3960] sm:$0xff]
    %v1916 = vld [vmem:[#allocation5 + $0x3968] sm:$0xff]
    %v1917 = vld [vmem:[#allocation5 + $0x3970] sm:$0xff]
    %v1918 = vld [vmem:[#allocation5 + $0x3978] sm:$0xff]
    %v1919 = vld [vmem:[#allocation5 + $0x3980] sm:$0xff]
    %v1920 = vld [vmem:[#allocation5 + $0x3988] sm:$0xff]
    %v1921 = vld [vmem:[#allocation5 + $0x3990] sm:$0xff]
    %v1922 = vld [vmem:[#allocation5 + $0x3998] sm:$0xff]
    %v1923 = vld [vmem:[#allocation5 + $0x39a0] sm:$0xff]
    %v1924 = vld [vmem:[#allocation5 + $0x39a8] sm:$0xff]
    %v1925 = vld [vmem:[#allocation5 + $0x39b0] sm:$0xff]
    %v1926 = vld [vmem:[#allocation5 + $0x39b8] sm:$0xff]
    %v1927 = vld [vmem:[#allocation5 + $0x39c0] sm:$0xff]
    %v1928 = vld [vmem:[#allocation5 + $0x39c8] sm:$0xff]
    %v1929 = vld [vmem:[#allocation5 + $0x39d0] sm:$0xff]
    %v1930 = vld [vmem:[#allocation5 + $0x39d8] sm:$0xff]
    %v1931 = vld [vmem:[#allocation5 + $0x39e0] sm:$0xff]
    %v1932 = vld [vmem:[#allocation5 + $0x39e8] sm:$0xff]
    %v1933 = vld [vmem:[#allocation5 + $0x39f0] sm:$0xff]
    %v1934 = vld [vmem:[#allocation5 + $0x39f8] sm:$0xff]
    %v1935 = vld [vmem:[#allocation5 + $0x3a00] sm:$0xff]
    %v1936 = vld [vmem:[#allocation5 + $0x3a08] sm:$0xff]
    %v1937 = vld [vmem:[#allocation5 + $0x3a10] sm:$0xff]
    %v1938 = vld [vmem:[#allocation5 + $0x3a18] sm:$0xff]
    %v1939 = vld [vmem:[#allocation5 + $0x3a20] sm:$0xff]
    %v1940 = vld [vmem:[#allocation5 + $0x3a28] sm:$0xff]
    %v1941 = vld [vmem:[#allocation5 + $0x3a30] sm:$0xff]
    %v1942 = vld [vmem:[#allocation5 + $0x3a38] sm:$0xff]
    %v1943 = vld [vmem:[#allocation5 + $0x3a40] sm:$0xff]
    %v1944 = vld [vmem:[#allocation5 + $0x3a48] sm:$0xff]
    %v1945 = vld [vmem:[#allocation5 + $0x3a50] sm:$0xff]
    %v1946 = vld [vmem:[#allocation5 + $0x3a58] sm:$0xff]
    %v1947 = vld [vmem:[#allocation5 + $0x3a60] sm:$0xff]
    %v1948 = vld [vmem:[#allocation5 + $0x3a68] sm:$0xff]
    %v1949 = vld [vmem:[#allocation5 + $0x3a70] sm:$0xff]
    %v1950 = vld [vmem:[#allocation5 + $0x3a78] sm:$0xff]
    %v1951 = vld [vmem:[#allocation5 + $0x3a80] sm:$0xff]
    %v1952 = vld [vmem:[#allocation5 + $0x3a88] sm:$0xff]
    %v1953 = vld [vmem:[#allocation5 + $0x3a90] sm:$0xff]
    %v1954 = vld [vmem:[#allocation5 + $0x3a98] sm:$0xff]
    %v1955 = vld [vmem:[#allocation5 + $0x3aa0] sm:$0xff]
    %v1956 = vld [vmem:[#allocation5 + $0x3aa8] sm:$0xff]
    %v1957 = vld [vmem:[#allocation5 + $0x3ab0] sm:$0xff]
    %v1958 = vld [vmem:[#allocation5 + $0x3ab8] sm:$0xff]
    %v1959 = vld [vmem:[#allocation5 + $0x3ac0] sm:$0xff]
    %v1960 = vld [vmem:[#allocation5 + $0x3ac8] sm:$0xff]
    %v1961 = vld [vmem:[#allocation5 + $0x3ad0] sm:$0xff]
    %v1962 = vld [vmem:[#allocation5 + $0x3ad8] sm:$0xff]
    %v1963 = vld [vmem:[#allocation5 + $0x3ae0] sm:$0xff]
    %v1964 = vld [vmem:[#allocation5 + $0x3ae8] sm:$0xff]
    %v1965 = vld [vmem:[#allocation5 + $0x3af0] sm:$0xff]
    %v1966 = vld [vmem:[#allocation5 + $0x3af8] sm:$0xff]
    %v1967 = vld [vmem:[#allocation5 + $0x3b00] sm:$0xff]
    %v1968 = vld [vmem:[#allocation5 + $0x3b08] sm:$0xff]
    %v1969 = vld [vmem:[#allocation5 + $0x3b10] sm:$0xff]
    %v1970 = vld [vmem:[#allocation5 + $0x3b18] sm:$0xff]
    %v1971 = vld [vmem:[#allocation5 + $0x3b20] sm:$0xff]
    %v1972 = vld [vmem:[#allocation5 + $0x3b28] sm:$0xff]
    %v1973 = vld [vmem:[#allocation5 + $0x3b30] sm:$0xff]
    %v1974 = vld [vmem:[#allocation5 + $0x3b38] sm:$0xff]
    %v1975 = vld [vmem:[#allocation5 + $0x3b40] sm:$0xff]
    %v1976 = vld [vmem:[#allocation5 + $0x3b48] sm:$0xff]
    %v1977 = vld [vmem:[#allocation5 + $0x3b50] sm:$0xff]
    %v1978 = vld [vmem:[#allocation5 + $0x3b58] sm:$0xff]
    %v1979 = vld [vmem:[#allocation5 + $0x3b60] sm:$0xff]
    %v1980 = vld [vmem:[#allocation5 + $0x3b68] sm:$0xff]
    %v1981 = vld [vmem:[#allocation5 + $0x3b70] sm:$0xff]
    %v1982 = vld [vmem:[#allocation5 + $0x3b78] sm:$0xff]
    %v1983 = vld [vmem:[#allocation5 + $0x3b80] sm:$0xff]
    %v1984 = vld [vmem:[#allocation5 + $0x3b88] sm:$0xff]
    %v1985 = vld [vmem:[#allocation5 + $0x3b90] sm:$0xff]
    %v1986 = vld [vmem:[#allocation5 + $0x3b98] sm:$0xff]
    %v1987 = vld [vmem:[#allocation5 + $0x3ba0] sm:$0xff]
    %v1988 = vld [vmem:[#allocation5 + $0x3ba8] sm:$0xff]
    %v1989 = vld [vmem:[#allocation5 + $0x3bb0] sm:$0xff]
    %v1990 = vld [vmem:[#allocation5 + $0x3bb8] sm:$0xff]
    %v1991 = vld [vmem:[#allocation5 + $0x3bc0] sm:$0xff]
    %v1992 = vld [vmem:[#allocation5 + $0x3bc8] sm:$0xff]
    %v1993 = vld [vmem:[#allocation5 + $0x3bd0] sm:$0xff]
    %v1994 = vld [vmem:[#allocation5 + $0x3bd8] sm:$0xff]
    %v1995 = vld [vmem:[#allocation5 + $0x3be0] sm:$0xff]
    %v1996 = vld [vmem:[#allocation5 + $0x3be8] sm:$0xff]
    %v1997 = vld [vmem:[#allocation5 + $0x3bf0] sm:$0xff]
    %v1998 = vld [vmem:[#allocation5 + $0x3bf8] sm:$0xff]
    %v1999 = vld [vmem:[#allocation5 + $0x3c00] sm:$0xff]
    %v2000 = vld [vmem:[#allocation5 + $0x3c08] sm:$0xff]
    %v2001 = vld [vmem:[#allocation5 + $0x3c10] sm:$0xff]
    %v2002 = vld [vmem:[#allocation5 + $0x3c18] sm:$0xff]
    %v2003 = vld [vmem:[#allocation5 + $0x3c20] sm:$0xff]
    %v2004 = vld [vmem:[#allocation5 + $0x3c28] sm:$0xff]
    %v2005 = vld [vmem:[#allocation5 + $0x3c30] sm:$0xff]
    %v2006 = vld [vmem:[#allocation5 + $0x3c38] sm:$0xff]
    %v2007 = vld [vmem:[#allocation5 + $0x3c40] sm:$0xff]
    %v2008 = vld [vmem:[#allocation5 + $0x3c48] sm:$0xff]
    %v2009 = vld [vmem:[#allocation5 + $0x3c50] sm:$0xff]
    %v2010 = vld [vmem:[#allocation5 + $0x3c58] sm:$0xff]
    %v2011 = vld [vmem:[#allocation5 + $0x3c60] sm:$0xff]
    %v2012 = vld [vmem:[#allocation5 + $0x3c68] sm:$0xff]
    %v2013 = vld [vmem:[#allocation5 + $0x3c70] sm:$0xff]
    %v2014 = vld [vmem:[#allocation5 + $0x3c78] sm:$0xff]
    %v2015 = vld [vmem:[#allocation5 + $0x3c80] sm:$0xff]
    %v2016 = vld [vmem:[#allocation5 + $0x3c88] sm:$0xff]
    %v2017 = vld [vmem:[#allocation5 + $0x3c90] sm:$0xff]
    %v2018 = vld [vmem:[#allocation5 + $0x3c98] sm:$0xff]
    %v2019 = vld [vmem:[#allocation5 + $0x3ca0] sm:$0xff]
    %v2020 = vld [vmem:[#allocation5 + $0x3ca8] sm:$0xff]
    %v2021 = vld [vmem:[#allocation5 + $0x3cb0] sm:$0xff]
    %v2022 = vld [vmem:[#allocation5 + $0x3cb8] sm:$0xff]
    %v2023 = vld [vmem:[#allocation5 + $0x3cc0] sm:$0xff]
    %v2024 = vld [vmem:[#allocation5 + $0x3cc8] sm:$0xff]
    %v2025 = vld [vmem:[#allocation5 + $0x3cd0] sm:$0xff]
    %v2026 = vld [vmem:[#allocation5 + $0x3cd8] sm:$0xff]
    %v2027 = vld [vmem:[#allocation5 + $0x3ce0] sm:$0xff]
    %v2028 = vld [vmem:[#allocation5 + $0x3ce8] sm:$0xff]
    %v2029 = vld [vmem:[#allocation5 + $0x3cf0] sm:$0xff]
    %v2030 = vld [vmem:[#allocation5 + $0x3cf8] sm:$0xff]
    %v2031 = vld [vmem:[#allocation5 + $0x3d00] sm:$0xff]
    %v2032 = vld [vmem:[#allocation5 + $0x3d08] sm:$0xff]
    %v2033 = vld [vmem:[#allocation5 + $0x3d10] sm:$0xff]
    %v2034 = vld [vmem:[#allocation5 + $0x3d18] sm:$0xff]
    %v2035 = vld [vmem:[#allocation5 + $0x3d20] sm:$0xff]
    %v2036 = vld [vmem:[#allocation5 + $0x3d28] sm:$0xff]
    %v2037 = vld [vmem:[#allocation5 + $0x3d30] sm:$0xff]
    %v2038 = vld [vmem:[#allocation5 + $0x3d38] sm:$0xff]
    %v2039 = vld [vmem:[#allocation5 + $0x3d40] sm:$0xff]
    %v2040 = vld [vmem:[#allocation5 + $0x3d48] sm:$0xff]
    %v2041 = vld [vmem:[#allocation5 + $0x3d50] sm:$0xff]
    %v2042 = vld [vmem:[#allocation5 + $0x3d58] sm:$0xff]
    %v2043 = vld [vmem:[#allocation5 + $0x3d60] sm:$0xff]
    %v2044 = vld [vmem:[#allocation5 + $0x3d68] sm:$0xff]
    %v2045 = vld [vmem:[#allocation5 + $0x3d70] sm:$0xff]
    %v2046 = vld [vmem:[#allocation5 + $0x3d78] sm:$0xff]
    %v2047 = vld [vmem:[#allocation5 + $0x3d80] sm:$0xff]
    %v2048 = vld [vmem:[#allocation5 + $0x3d88] sm:$0xff]
    %v2049 = vld [vmem:[#allocation5 + $0x3d90] sm:$0xff]
    %v2050 = vld [vmem:[#allocation5 + $0x3d98] sm:$0xff]
    %v2051 = vld [vmem:[#allocation5 + $0x3da0] sm:$0xff]
    %v2052 = vld [vmem:[#allocation5 + $0x3da8] sm:$0xff]
    %v2053 = vld [vmem:[#allocation5 + $0x3db0] sm:$0xff]
    %v2054 = vld [vmem:[#allocation5 + $0x3db8] sm:$0xff]
    %v2055 = vld [vmem:[#allocation5 + $0x3dc0] sm:$0xff]
    %v2056 = vld [vmem:[#allocation5 + $0x3dc8] sm:$0xff]
    %v2057 = vld [vmem:[#allocation5 + $0x3dd0] sm:$0xff]
    %v2058 = vld [vmem:[#allocation5 + $0x3dd8] sm:$0xff]
    %v2059 = vld [vmem:[#allocation5 + $0x3de0] sm:$0xff]
    %v2060 = vld [vmem:[#allocation5 + $0x3de8] sm:$0xff]
    %v2061 = vld [vmem:[#allocation5 + $0x3df0] sm:$0xff]
    %v2062 = vld [vmem:[#allocation5 + $0x3df8] sm:$0xff]
    %v2063 = vld [vmem:[#allocation5 + $0x3e00] sm:$0xff]
    %v2064 = vld [vmem:[#allocation5 + $0x3e08] sm:$0xff]
    %v2065 = vld [vmem:[#allocation5 + $0x3e10] sm:$0xff]
    %v2066 = vld [vmem:[#allocation5 + $0x3e18] sm:$0xff]
    %v2067 = vld [vmem:[#allocation5 + $0x3e20] sm:$0xff]
    %v2068 = vld [vmem:[#allocation5 + $0x3e28] sm:$0xff]
    %v2069 = vld [vmem:[#allocation5 + $0x3e30] sm:$0xff]
    %v2070 = vld [vmem:[#allocation5 + $0x3e38] sm:$0xff]
    %v2071 = vld [vmem:[#allocation5 + $0x3e40] sm:$0xff]
    %v2072 = vld [vmem:[#allocation5 + $0x3e48] sm:$0xff]
    %v2073 = vld [vmem:[#allocation5 + $0x3e50] sm:$0xff]
    %v2074 = vld [vmem:[#allocation5 + $0x3e58] sm:$0xff]
    %v2075 = vld [vmem:[#allocation5 + $0x3e60] sm:$0xff]
    %v2076 = vld [vmem:[#allocation5 + $0x3e68] sm:$0xff]
    %v2077 = vld [vmem:[#allocation5 + $0x3e70] sm:$0xff]
    %v2078 = vld [vmem:[#allocation5 + $0x3e78] sm:$0xff]
    %v2079 = vld [vmem:[#allocation5 + $0x3e80] sm:$0xff]
    %v2080 = vld [vmem:[#allocation5 + $0x3e88] sm:$0xff]
    %v2081 = vld [vmem:[#allocation5 + $0x3e90] sm:$0xff]
    %v2082 = vld [vmem:[#allocation5 + $0x3e98] sm:$0xff]
    %v2083 = vld [vmem:[#allocation5 + $0x3ea0] sm:$0xff]
    %v2084 = vld [vmem:[#allocation5 + $0x3ea8] sm:$0xff]
    %v2085 = vld [vmem:[#allocation5 + $0x3eb0] sm:$0xff]
    %v2086 = vld [vmem:[#allocation5 + $0x3eb8] sm:$0xff]
    %v2087 = vld [vmem:[#allocation5 + $0x3ec0] sm:$0xff]
    %v2088 = vld [vmem:[#allocation5 + $0x3ec8] sm:$0xff]
    %v2089 = vld [vmem:[#allocation5 + $0x3ed0] sm:$0xff]
    %v2090 = vld [vmem:[#allocation5 + $0x3ed8] sm:$0xff]
    %v2091 = vld [vmem:[#allocation5 + $0x3ee0] sm:$0xff]
    %v2092 = vld [vmem:[#allocation5 + $0x3ee8] sm:$0xff]
    %v2093 = vld [vmem:[#allocation5 + $0x3ef0] sm:$0xff]
    %v2094 = vld [vmem:[#allocation5 + $0x3ef8] sm:$0xff]
    %v2095 = vld [vmem:[#allocation5 + $0x3f00] sm:$0xff]
    %v2096 = vld [vmem:[#allocation5 + $0x3f08] sm:$0xff]
    %v2097 = vld [vmem:[#allocation5 + $0x3f10] sm:$0xff]
    %v2098 = vld [vmem:[#allocation5 + $0x3f18] sm:$0xff]
    %v2099 = vld [vmem:[#allocation5 + $0x3f20] sm:$0xff]
    %v2100 = vld [vmem:[#allocation5 + $0x3f28] sm:$0xff]
    %v2101 = vld [vmem:[#allocation5 + $0x3f30] sm:$0xff]
    %v2102 = vld [vmem:[#allocation5 + $0x3f38] sm:$0xff]
    %v2103 = vld [vmem:[#allocation5 + $0x3f40] sm:$0xff]
    %v2104 = vld [vmem:[#allocation5 + $0x3f48] sm:$0xff]
    %v2105 = vld [vmem:[#allocation5 + $0x3f50] sm:$0xff]
    %v2106 = vld [vmem:[#allocation5 + $0x3f58] sm:$0xff]
    %v2107 = vld [vmem:[#allocation5 + $0x3f60] sm:$0xff]
    %v2108 = vld [vmem:[#allocation5 + $0x3f68] sm:$0xff]
    %v2109 = vld [vmem:[#allocation5 + $0x3f70] sm:$0xff]
    %v2110 = vld [vmem:[#allocation5 + $0x3f78] sm:$0xff]
    %v2111 = vld [vmem:[#allocation5 + $0x3f80] sm:$0xff]
    %v2112 = vld [vmem:[#allocation5 + $0x3f88] sm:$0xff]
    %v2113 = vld [vmem:[#allocation5 + $0x3f90] sm:$0xff]
    %v2114 = vld [vmem:[#allocation5 + $0x3f98] sm:$0xff]
    %v2115 = vld [vmem:[#allocation5 + $0x3fa0] sm:$0xff]
    %v2116 = vld [vmem:[#allocation5 + $0x3fa8] sm:$0xff]
    %v2117 = vld [vmem:[#allocation5 + $0x3fb0] sm:$0xff]
    %v2118 = vld [vmem:[#allocation5 + $0x3fb8] sm:$0xff]
    %v2119 = vld [vmem:[#allocation5 + $0x3fc0] sm:$0xff]
    %v2120 = vld [vmem:[#allocation5 + $0x3fc8] sm:$0xff]
    %v2121 = vld [vmem:[#allocation5 + $0x3fd0] sm:$0xff]
    %v2122 = vld [vmem:[#allocation5 + $0x3fd8] sm:$0xff]
    %v2123 = vld [vmem:[#allocation5 + $0x3fe0] sm:$0xff]
    %v2124 = vld [vmem:[#allocation5 + $0x3fe8] sm:$0xff]
    %v2125 = vld [vmem:[#allocation5 + $0x3ff0] sm:$0xff]
    %v2126 = vld [vmem:[#allocation5 + $0x3ff8] sm:$0xff]
    %v2127 = vld [vmem:[#allocation7] sm:$0xff]
    %v2128 = vld [vmem:[#allocation7 + $0x8] sm:$0xff]
    %v2131 = vlaneseq
    %v2132 = vshrl.u32 %v2131, 7
    %v2133 = vsub.s32 0, %v2132
    %v2134 = vrot.slane %v2127, %v2133
    %v2135 = vlaneseq
    %v2136 = vshrl.u32 %v2135, 7
    %v2137 = vsub.s32 1, %v2136
    %v2138 = vrot.slane %v2127, %v2137
    %v2139 = vlaneseq
    %v2140 = vshrl.u32 %v2139, 7
    %v2141 = vsub.s32 2, %v2140
    %v2142 = vrot.slane %v2127, %v2141
    %v2143 = vlaneseq
    %v2144 = vshrl.u32 %v2143, 7
    %v2145 = vsub.s32 3, %v2144
    %v2146 = vrot.slane %v2127, %v2145
    %v2147 = vlaneseq
    %v2148 = vshrl.u32 %v2147, 7
    %v2149 = vsub.s32 4, %v2148
    %v2150 = vrot.slane %v2127, %v2149
    %v2151 = vlaneseq
    %v2152 = vshrl.u32 %v2151, 7
    %v2153 = vsub.s32 5, %v2152
    %v2154 = vrot.slane %v2127, %v2153
    %v2155 = vlaneseq
    %v2156 = vshrl.u32 %v2155, 7
    %v2157 = vsub.s32 6, %v2156
    %v2158 = vrot.slane %v2127, %v2157
    %v2159 = vlaneseq
    %v2160 = vshrl.u32 %v2159, 7
    %v2161 = vsub.s32 7, %v2160
    %v2162 = vrot.slane %v2127, %v2161
    %v2163 = vlaneseq
    %v2164 = vshrl.u32 %v2163, 7
    %v2165 = vsub.s32 0, %v2164
    %v2166 = vrot.slane %v2128, %v2165
    %v2167 = vlaneseq
    %v2168 = vshrl.u32 %v2167, 7
    %v2169 = vsub.s32 1, %v2168
    %v2170 = vrot.slane %v2128, %v2169
    %v2171 = vlaneseq
    %v2172 = vshrl.u32 %v2171, 7
    %v2173 = vsub.s32 2, %v2172
    %v2174 = vrot.slane %v2128, %v2173
    %v2175 = vlaneseq
    %v2176 = vshrl.u32 %v2175, 7
    %v2177 = vsub.s32 3, %v2176
    %v2178 = vrot.slane %v2128, %v2177
    %v2179 = vlaneseq
    %v2180 = vshrl.u32 %v2179, 7
    %v2181 = vsub.s32 4, %v2180
    %v2182 = vrot.slane %v2128, %v2181
    %v2183 = vlaneseq
    %v2184 = vshrl.u32 %v2183, 7
    %v2185 = vsub.s32 5, %v2184
    %v2186 = vrot.slane %v2128, %v2185
    %v2187 = vlaneseq
    %v2188 = vshrl.u32 %v2187, 7
    %v2189 = vsub.s32 6, %v2188
    %v2190 = vrot.slane %v2128, %v2189
    %v2191 = vlaneseq
    %v2192 = vshrl.u32 %v2191, 7
    %v2193 = vsub.s32 7, %v2192
    %v2194 = vrot.slane %v2128, %v2193
    %v2219 = vunpack.c.l.b16 %v71
    %v2220 = vunpack.c.h.b16 %v71
    %v2221 = vunpack.c.l.b16 %v72
    %v2222 = vunpack.c.h.b16 %v72
    %v2223 = vunpack.c.l.b16 %v73
    %v2224 = vunpack.c.h.b16 %v73
    %v2225 = vunpack.c.l.b16 %v74
    %v2226 = vunpack.c.h.b16 %v74
    %v2227 = vunpack.c.l.b16 %v75
    %v2228 = vunpack.c.h.b16 %v75
    %v2229 = vunpack.c.l.b16 %v76
    %v2230 = vunpack.c.h.b16 %v76
    %v2231 = vunpack.c.l.b16 %v77
    %v2232 = vunpack.c.h.b16 %v77
    %v2233 = vunpack.c.l.b16 %v78
    %v2234 = vunpack.c.h.b16 %v78
    %v2235 = vpack.c.b16 %v2219, %v2219
    %v2236 = vpack.c.b16 %v2220, %v2220
    %v2237 = vpack.c.b16 %v2221, %v2221
    %v2238 = vpack.c.b16 %v2222, %v2222
    %v2239 = vpack.c.b16 %v2223, %v2223
    %v2240 = vpack.c.b16 %v2224, %v2224
    %v2241 = vpack.c.b16 %v2225, %v2225
    %v2242 = vpack.c.b16 %v2226, %v2226
    %v2243 = vpack.c.b16 %v2227, %v2227
    %v2244 = vpack.c.b16 %v2228, %v2228
    %v2245 = vpack.c.b16 %v2229, %v2229
    %v2246 = vpack.c.b16 %v2230, %v2230
    %v2247 = vpack.c.b16 %v2231, %v2231
    %v2248 = vpack.c.b16 %v2232, %v2232
    %v2249 = vpack.c.b16 %v2233, %v2233
    %v2250 = vpack.c.b16 %v2234, %v2234
    %v4315 = vunpack.c.l.b16 %v79
    %v4316 = vunpack.c.h.b16 %v79
    %v4317 = vunpack.c.l.b16 %v80
    %v4318 = vunpack.c.h.b16 %v80
    %v4319 = vunpack.c.l.b16 %v81
    %v4320 = vunpack.c.h.b16 %v81
    %v4321 = vunpack.c.l.b16 %v82
    %v4322 = vunpack.c.h.b16 %v82
    %v4323 = vunpack.c.l.b16 %v83
    %v4324 = vunpack.c.h.b16 %v83
    %v4325 = vunpack.c.l.b16 %v84
    %v4326 = vunpack.c.h.b16 %v84
    %v4327 = vunpack.c.l.b16 %v85
    %v4328 = vunpack.c.h.b16 %v85
    %v4329 = vunpack.c.l.b16 %v86
    %v4330 = vunpack.c.h.b16 %v86
    %v4331 = vunpack.c.l.b16 %v87
    %v4332 = vunpack.c.h.b16 %v87
    %v4333 = vunpack.c.l.b16 %v88
    %v4334 = vunpack.c.h.b16 %v88
    %v4335 = vunpack.c.l.b16 %v89
    %v4336 = vunpack.c.h.b16 %v89
    %v4337 = vunpack.c.l.b16 %v90
    %v4338 = vunpack.c.h.b16 %v90
    %v4339 = vunpack.c.l.b16 %v91
    %v4340 = vunpack.c.h.b16 %v91
    %v4341 = vunpack.c.l.b16 %v92
    %v4342 = vunpack.c.h.b16 %v92
    %v4343 = vunpack.c.l.b16 %v93
    %v4344 = vunpack.c.h.b16 %v93
    %v4345 = vunpack.c.l.b16 %v94
    %v4346 = vunpack.c.h.b16 %v94
    %v4347 = vunpack.c.l.b16 %v95
    %v4348 = vunpack.c.h.b16 %v95
    %v4349 = vunpack.c.l.b16 %v96
    %v4350 = vunpack.c.h.b16 %v96
    %v4351 = vunpack.c.l.b16 %v97
    %v4352 = vunpack.c.h.b16 %v97
    %v4353 = vunpack.c.l.b16 %v98
    %v4354 = vunpack.c.h.b16 %v98
    %v4355 = vunpack.c.l.b16 %v99
    %v4356 = vunpack.c.h.b16 %v99
    %v4357 = vunpack.c.l.b16 %v100
    %v4358 = vunpack.c.h.b16 %v100
    %v4359 = vunpack.c.l.b16 %v101
    %v4360 = vunpack.c.h.b16 %v101
    %v4361 = vunpack.c.l.b16 %v102
    %v4362 = vunpack.c.h.b16 %v102
    %v4363 = vunpack.c.l.b16 %v103
    %v4364 = vunpack.c.h.b16 %v103
    %v4365 = vunpack.c.l.b16 %v104
    %v4366 = vunpack.c.h.b16 %v104
    %v4367 = vunpack.c.l.b16 %v105
    %v4368 = vunpack.c.h.b16 %v105
    %v4369 = vunpack.c.l.b16 %v106
    %v4370 = vunpack.c.h.b16 %v106
    %v4371 = vunpack.c.l.b16 %v107
    %v4372 = vunpack.c.h.b16 %v107
    %v4373 = vunpack.c.l.b16 %v108
    %v4374 = vunpack.c.h.b16 %v108
    %v4375 = vunpack.c.l.b16 %v109
    %v4376 = vunpack.c.h.b16 %v109
    %v4377 = vunpack.c.l.b16 %v110
    %v4378 = vunpack.c.h.b16 %v110
    %v4379 = vunpack.c.l.b16 %v111
    %v4380 = vunpack.c.h.b16 %v111
    %v4381 = vunpack.c.l.b16 %v112
    %v4382 = vunpack.c.h.b16 %v112
    %v4383 = vunpack.c.l.b16 %v113
    %v4384 = vunpack.c.h.b16 %v113
    %v4385 = vunpack.c.l.b16 %v114
    %v4386 = vunpack.c.h.b16 %v114
    %v4387 = vunpack.c.l.b16 %v115
    %v4388 = vunpack.c.h.b16 %v115
    %v4389 = vunpack.c.l.b16 %v116
    %v4390 = vunpack.c.h.b16 %v116
    %v4391 = vunpack.c.l.b16 %v117
    %v4392 = vunpack.c.h.b16 %v117
    %v4393 = vunpack.c.l.b16 %v118
    %v4394 = vunpack.c.h.b16 %v118
    %v4395 = vunpack.c.l.b16 %v119
    %v4396 = vunpack.c.h.b16 %v119
    %v4397 = vunpack.c.l.b16 %v120
    %v4398 = vunpack.c.h.b16 %v120
    %v4399 = vunpack.c.l.b16 %v121
    %v4400 = vunpack.c.h.b16 %v121
    %v4401 = vunpack.c.l.b16 %v122
    %v4402 = vunpack.c.h.b16 %v122
    %v4403 = vunpack.c.l.b16 %v123
    %v4404 = vunpack.c.h.b16 %v123
    %v4405 = vunpack.c.l.b16 %v124
    %v4406 = vunpack.c.h.b16 %v124
    %v4407 = vunpack.c.l.b16 %v125
    %v4408 = vunpack.c.h.b16 %v125
    %v4409 = vunpack.c.l.b16 %v126
    %v4410 = vunpack.c.h.b16 %v126
    %v4411 = vunpack.c.l.b16 %v127
    %v4412 = vunpack.c.h.b16 %v127
    %v4413 = vunpack.c.l.b16 %v128
    %v4414 = vunpack.c.h.b16 %v128
    %v4415 = vunpack.c.l.b16 %v129
    %v4416 = vunpack.c.h.b16 %v129
    %v4417 = vunpack.c.l.b16 %v130
    %v4418 = vunpack.c.h.b16 %v130
    %v4419 = vunpack.c.l.b16 %v131
    %v4420 = vunpack.c.h.b16 %v131
    %v4421 = vunpack.c.l.b16 %v132
    %v4422 = vunpack.c.h.b16 %v132
    %v4423 = vunpack.c.l.b16 %v133
    %v4424 = vunpack.c.h.b16 %v133
    %v4425 = vunpack.c.l.b16 %v134
    %v4426 = vunpack.c.h.b16 %v134
    %v4427 = vunpack.c.l.b16 %v135
    %v4428 = vunpack.c.h.b16 %v135
    %v4429 = vunpack.c.l.b16 %v136
    %v4430 = vunpack.c.h.b16 %v136
    %v4431 = vunpack.c.l.b16 %v137
    %v4432 = vunpack.c.h.b16 %v137
    %v4433 = vunpack.c.l.b16 %v138
    %v4434 = vunpack.c.h.b16 %v138
    %v4435 = vunpack.c.l.b16 %v139
    %v4436 = vunpack.c.h.b16 %v139
    %v4437 = vunpack.c.l.b16 %v140
    %v4438 = vunpack.c.h.b16 %v140
    %v4439 = vunpack.c.l.b16 %v141
    %v4440 = vunpack.c.h.b16 %v141
    %v4441 = vunpack.c.l.b16 %v142
    %v4442 = vunpack.c.h.b16 %v142
    %v4443 = vunpack.c.l.b16 %v143
    %v4444 = vunpack.c.h.b16 %v143
    %v4445 = vunpack.c.l.b16 %v144
    %v4446 = vunpack.c.h.b16 %v144
    %v4447 = vunpack.c.l.b16 %v145
    %v4448 = vunpack.c.h.b16 %v145
    %v4449 = vunpack.c.l.b16 %v146
    %v4450 = vunpack.c.h.b16 %v146
    %v4451 = vunpack.c.l.b16 %v147
    %v4452 = vunpack.c.h.b16 %v147
    %v4453 = vunpack.c.l.b16 %v148
    %v4454 = vunpack.c.h.b16 %v148
    %v4455 = vunpack.c.l.b16 %v149
    %v4456 = vunpack.c.h.b16 %v149
    %v4457 = vunpack.c.l.b16 %v150
    %v4458 = vunpack.c.h.b16 %v150
    %v4459 = vunpack.c.l.b16 %v151
    %v4460 = vunpack.c.h.b16 %v151
    %v4461 = vunpack.c.l.b16 %v152
    %v4462 = vunpack.c.h.b16 %v152
    %v4463 = vunpack.c.l.b16 %v153
    %v4464 = vunpack.c.h.b16 %v153
    %v4465 = vunpack.c.l.b16 %v154
    %v4466 = vunpack.c.h.b16 %v154
    %v4467 = vunpack.c.l.b16 %v155
    %v4468 = vunpack.c.h.b16 %v155
    %v4469 = vunpack.c.l.b16 %v156
    %v4470 = vunpack.c.h.b16 %v156
    %v4471 = vunpack.c.l.b16 %v157
    %v4472 = vunpack.c.h.b16 %v157
    %v4473 = vunpack.c.l.b16 %v158
    %v4474 = vunpack.c.h.b16 %v158
    %v4475 = vunpack.c.l.b16 %v159
    %v4476 = vunpack.c.h.b16 %v159
    %v4477 = vunpack.c.l.b16 %v160
    %v4478 = vunpack.c.h.b16 %v160
    %v4479 = vunpack.c.l.b16 %v161
    %v4480 = vunpack.c.h.b16 %v161
    %v4481 = vunpack.c.l.b16 %v162
    %v4482 = vunpack.c.h.b16 %v162
    %v4483 = vunpack.c.l.b16 %v163
    %v4484 = vunpack.c.h.b16 %v163
    %v4485 = vunpack.c.l.b16 %v164
    %v4486 = vunpack.c.h.b16 %v164
    %v4487 = vunpack.c.l.b16 %v165
    %v4488 = vunpack.c.h.b16 %v165
    %v4489 = vunpack.c.l.b16 %v166
    %v4490 = vunpack.c.h.b16 %v166
    %v4491 = vunpack.c.l.b16 %v167
    %v4492 = vunpack.c.h.b16 %v167
    %v4493 = vunpack.c.l.b16 %v168
    %v4494 = vunpack.c.h.b16 %v168
    %v4495 = vunpack.c.l.b16 %v169
    %v4496 = vunpack.c.h.b16 %v169
    %v4497 = vunpack.c.l.b16 %v170
    %v4498 = vunpack.c.h.b16 %v170
    %v4499 = vunpack.c.l.b16 %v171
    %v4500 = vunpack.c.h.b16 %v171
    %v4501 = vunpack.c.l.b16 %v172
    %v4502 = vunpack.c.h.b16 %v172
    %v4503 = vunpack.c.l.b16 %v173
    %v4504 = vunpack.c.h.b16 %v173
    %v4505 = vunpack.c.l.b16 %v174
    %v4506 = vunpack.c.h.b16 %v174
    %v4507 = vunpack.c.l.b16 %v175
    %v4508 = vunpack.c.h.b16 %v175
    %v4509 = vunpack.c.l.b16 %v176
    %v4510 = vunpack.c.h.b16 %v176
    %v4511 = vunpack.c.l.b16 %v177
    %v4512 = vunpack.c.h.b16 %v177
    %v4513 = vunpack.c.l.b16 %v178
    %v4514 = vunpack.c.h.b16 %v178
    %v4515 = vunpack.c.l.b16 %v179
    %v4516 = vunpack.c.h.b16 %v179
    %v4517 = vunpack.c.l.b16 %v180
    %v4518 = vunpack.c.h.b16 %v180
    %v4519 = vunpack.c.l.b16 %v181
    %v4520 = vunpack.c.h.b16 %v181
    %v4521 = vunpack.c.l.b16 %v182
    %v4522 = vunpack.c.h.b16 %v182
    %v4523 = vunpack.c.l.b16 %v183
    %v4524 = vunpack.c.h.b16 %v183
    %v4525 = vunpack.c.l.b16 %v184
    %v4526 = vunpack.c.h.b16 %v184
    %v4527 = vunpack.c.l.b16 %v185
    %v4528 = vunpack.c.h.b16 %v185
    %v4529 = vunpack.c.l.b16 %v186
    %v4530 = vunpack.c.h.b16 %v186
    %v4531 = vunpack.c.l.b16 %v187
    %v4532 = vunpack.c.h.b16 %v187
    %v4533 = vunpack.c.l.b16 %v188
    %v4534 = vunpack.c.h.b16 %v188
    %v4535 = vunpack.c.l.b16 %v189
    %v4536 = vunpack.c.h.b16 %v189
    %v4537 = vunpack.c.l.b16 %v190
    %v4538 = vunpack.c.h.b16 %v190
    %v4539 = vunpack.c.l.b16 %v191
    %v4540 = vunpack.c.h.b16 %v191
    %v4541 = vunpack.c.l.b16 %v192
    %v4542 = vunpack.c.h.b16 %v192
    %v4543 = vunpack.c.l.b16 %v193
    %v4544 = vunpack.c.h.b16 %v193
    %v4545 = vunpack.c.l.b16 %v194
    %v4546 = vunpack.c.h.b16 %v194
    %v4547 = vunpack.c.l.b16 %v195
    %v4548 = vunpack.c.h.b16 %v195
    %v4549 = vunpack.c.l.b16 %v196
    %v4550 = vunpack.c.h.b16 %v196
    %v4551 = vunpack.c.l.b16 %v197
    %v4552 = vunpack.c.h.b16 %v197
    %v4553 = vunpack.c.l.b16 %v198
    %v4554 = vunpack.c.h.b16 %v198
    %v4555 = vunpack.c.l.b16 %v199
    %v4556 = vunpack.c.h.b16 %v199
    %v4557 = vunpack.c.l.b16 %v200
    %v4558 = vunpack.c.h.b16 %v200
    %v4559 = vunpack.c.l.b16 %v201
    %v4560 = vunpack.c.h.b16 %v201
    %v4561 = vunpack.c.l.b16 %v202
    %v4562 = vunpack.c.h.b16 %v202
    %v4563 = vunpack.c.l.b16 %v203
    %v4564 = vunpack.c.h.b16 %v203
    %v4565 = vunpack.c.l.b16 %v204
    %v4566 = vunpack.c.h.b16 %v204
    %v4567 = vunpack.c.l.b16 %v205
    %v4568 = vunpack.c.h.b16 %v205
    %v4569 = vunpack.c.l.b16 %v206
    %v4570 = vunpack.c.h.b16 %v206
    %v4571 = vunpack.c.l.b16 %v207
    %v4572 = vunpack.c.h.b16 %v207
    %v4573 = vunpack.c.l.b16 %v208
    %v4574 = vunpack.c.h.b16 %v208
    %v4575 = vunpack.c.l.b16 %v209
    %v4576 = vunpack.c.h.b16 %v209
    %v4577 = vunpack.c.l.b16 %v210
    %v4578 = vunpack.c.h.b16 %v210
    %v4579 = vunpack.c.l.b16 %v211
    %v4580 = vunpack.c.h.b16 %v211
    %v4581 = vunpack.c.l.b16 %v212
    %v4582 = vunpack.c.h.b16 %v212
    %v4583 = vunpack.c.l.b16 %v213
    %v4584 = vunpack.c.h.b16 %v213
    %v4585 = vunpack.c.l.b16 %v214
    %v4586 = vunpack.c.h.b16 %v214
    %v4587 = vunpack.c.l.b16 %v215
    %v4588 = vunpack.c.h.b16 %v215
    %v4589 = vunpack.c.l.b16 %v216
    %v4590 = vunpack.c.h.b16 %v216
    %v4591 = vunpack.c.l.b16 %v217
    %v4592 = vunpack.c.h.b16 %v217
    %v4593 = vunpack.c.l.b16 %v218
    %v4594 = vunpack.c.h.b16 %v218
    %v4595 = vunpack.c.l.b16 %v219
    %v4596 = vunpack.c.h.b16 %v219
    %v4597 = vunpack.c.l.b16 %v220
    %v4598 = vunpack.c.h.b16 %v220
    %v4599 = vunpack.c.l.b16 %v221
    %v4600 = vunpack.c.h.b16 %v221
    %v4601 = vunpack.c.l.b16 %v222
    %v4602 = vunpack.c.h.b16 %v222
    %v4603 = vunpack.c.l.b16 %v223
    %v4604 = vunpack.c.h.b16 %v223
    %v4605 = vunpack.c.l.b16 %v224
    %v4606 = vunpack.c.h.b16 %v224
    %v4607 = vunpack.c.l.b16 %v225
    %v4608 = vunpack.c.h.b16 %v225
    %v4609 = vunpack.c.l.b16 %v226
    %v4610 = vunpack.c.h.b16 %v226
    %v4611 = vunpack.c.l.b16 %v227
    %v4612 = vunpack.c.h.b16 %v227
    %v4613 = vunpack.c.l.b16 %v228
    %v4614 = vunpack.c.h.b16 %v228
    %v4615 = vunpack.c.l.b16 %v229
    %v4616 = vunpack.c.h.b16 %v229
    %v4617 = vunpack.c.l.b16 %v230
    %v4618 = vunpack.c.h.b16 %v230
    %v4619 = vunpack.c.l.b16 %v231
    %v4620 = vunpack.c.h.b16 %v231
    %v4621 = vunpack.c.l.b16 %v232
    %v4622 = vunpack.c.h.b16 %v232
    %v4623 = vunpack.c.l.b16 %v233
    %v4624 = vunpack.c.h.b16 %v233
    %v4625 = vunpack.c.l.b16 %v234
    %v4626 = vunpack.c.h.b16 %v234
    %v4627 = vunpack.c.l.b16 %v235
    %v4628 = vunpack.c.h.b16 %v235
    %v4629 = vunpack.c.l.b16 %v236
    %v4630 = vunpack.c.h.b16 %v236
    %v4631 = vunpack.c.l.b16 %v237
    %v4632 = vunpack.c.h.b16 %v237
    %v4633 = vunpack.c.l.b16 %v238
    %v4634 = vunpack.c.h.b16 %v238
    %v4635 = vunpack.c.l.b16 %v239
    %v4636 = vunpack.c.h.b16 %v239
    %v4637 = vunpack.c.l.b16 %v240
    %v4638 = vunpack.c.h.b16 %v240
    %v4639 = vunpack.c.l.b16 %v241
    %v4640 = vunpack.c.h.b16 %v241
    %v4641 = vunpack.c.l.b16 %v242
    %v4642 = vunpack.c.h.b16 %v242
    %v4643 = vunpack.c.l.b16 %v243
    %v4644 = vunpack.c.h.b16 %v243
    %v4645 = vunpack.c.l.b16 %v244
    %v4646 = vunpack.c.h.b16 %v244
    %v4647 = vunpack.c.l.b16 %v245
    %v4648 = vunpack.c.h.b16 %v245
    %v4649 = vunpack.c.l.b16 %v246
    %v4650 = vunpack.c.h.b16 %v246
    %v4651 = vunpack.c.l.b16 %v247
    %v4652 = vunpack.c.h.b16 %v247
    %v4653 = vunpack.c.l.b16 %v248
    %v4654 = vunpack.c.h.b16 %v248
    %v4655 = vunpack.c.l.b16 %v249
    %v4656 = vunpack.c.h.b16 %v249
    %v4657 = vunpack.c.l.b16 %v250
    %v4658 = vunpack.c.h.b16 %v250
    %v4659 = vunpack.c.l.b16 %v251
    %v4660 = vunpack.c.h.b16 %v251
    %v4661 = vunpack.c.l.b16 %v252
    %v4662 = vunpack.c.h.b16 %v252
    %v4663 = vunpack.c.l.b16 %v253
    %v4664 = vunpack.c.h.b16 %v253
    %v4665 = vunpack.c.l.b16 %v254
    %v4666 = vunpack.c.h.b16 %v254
    %v4667 = vunpack.c.l.b16 %v255
    %v4668 = vunpack.c.h.b16 %v255
    %v4669 = vunpack.c.l.b16 %v256
    %v4670 = vunpack.c.h.b16 %v256
    %v4671 = vunpack.c.l.b16 %v257
    %v4672 = vunpack.c.h.b16 %v257
    %v4673 = vunpack.c.l.b16 %v258
    %v4674 = vunpack.c.h.b16 %v258
    %v4675 = vunpack.c.l.b16 %v259
    %v4676 = vunpack.c.h.b16 %v259
    %v4677 = vunpack.c.l.b16 %v260
    %v4678 = vunpack.c.h.b16 %v260
    %v4679 = vunpack.c.l.b16 %v261
    %v4680 = vunpack.c.h.b16 %v261
    %v4681 = vunpack.c.l.b16 %v262
    %v4682 = vunpack.c.h.b16 %v262
    %v4683 = vunpack.c.l.b16 %v263
    %v4684 = vunpack.c.h.b16 %v263
    %v4685 = vunpack.c.l.b16 %v264
    %v4686 = vunpack.c.h.b16 %v264
    %v4687 = vunpack.c.l.b16 %v265
    %v4688 = vunpack.c.h.b16 %v265
    %v4689 = vunpack.c.l.b16 %v266
    %v4690 = vunpack.c.h.b16 %v266
    %v4691 = vunpack.c.l.b16 %v267
    %v4692 = vunpack.c.h.b16 %v267
    %v4693 = vunpack.c.l.b16 %v268
    %v4694 = vunpack.c.h.b16 %v268
    %v4695 = vunpack.c.l.b16 %v269
    %v4696 = vunpack.c.h.b16 %v269
    %v4697 = vunpack.c.l.b16 %v270
    %v4698 = vunpack.c.h.b16 %v270
    %v4699 = vunpack.c.l.b16 %v271
    %v4700 = vunpack.c.h.b16 %v271
    %v4701 = vunpack.c.l.b16 %v272
    %v4702 = vunpack.c.h.b16 %v272
    %v4703 = vunpack.c.l.b16 %v273
    %v4704 = vunpack.c.h.b16 %v273
    %v4705 = vunpack.c.l.b16 %v274
    %v4706 = vunpack.c.h.b16 %v274
    %v4707 = vunpack.c.l.b16 %v275
    %v4708 = vunpack.c.h.b16 %v275
    %v4709 = vunpack.c.l.b16 %v276
    %v4710 = vunpack.c.h.b16 %v276
    %v4711 = vunpack.c.l.b16 %v277
    %v4712 = vunpack.c.h.b16 %v277
    %v4713 = vunpack.c.l.b16 %v278
    %v4714 = vunpack.c.h.b16 %v278
    %v4715 = vunpack.c.l.b16 %v279
    %v4716 = vunpack.c.h.b16 %v279
    %v4717 = vunpack.c.l.b16 %v280
    %v4718 = vunpack.c.h.b16 %v280
    %v4719 = vunpack.c.l.b16 %v281
    %v4720 = vunpack.c.h.b16 %v281
    %v4721 = vunpack.c.l.b16 %v282
    %v4722 = vunpack.c.h.b16 %v282
    %v4723 = vunpack.c.l.b16 %v283
    %v4724 = vunpack.c.h.b16 %v283
    %v4725 = vunpack.c.l.b16 %v284
    %v4726 = vunpack.c.h.b16 %v284
    %v4727 = vunpack.c.l.b16 %v285
    %v4728 = vunpack.c.h.b16 %v285
    %v4729 = vunpack.c.l.b16 %v286
    %v4730 = vunpack.c.h.b16 %v286
    %v4731 = vunpack.c.l.b16 %v287
    %v4732 = vunpack.c.h.b16 %v287
    %v4733 = vunpack.c.l.b16 %v288
    %v4734 = vunpack.c.h.b16 %v288
    %v4735 = vunpack.c.l.b16 %v289
    %v4736 = vunpack.c.h.b16 %v289
    %v4737 = vunpack.c.l.b16 %v290
    %v4738 = vunpack.c.h.b16 %v290
    %v4739 = vunpack.c.l.b16 %v291
    %v4740 = vunpack.c.h.b16 %v291
    %v4741 = vunpack.c.l.b16 %v292
    %v4742 = vunpack.c.h.b16 %v292
    %v4743 = vunpack.c.l.b16 %v293
    %v4744 = vunpack.c.h.b16 %v293
    %v4745 = vunpack.c.l.b16 %v294
    %v4746 = vunpack.c.h.b16 %v294
    %v4747 = vunpack.c.l.b16 %v295
    %v4748 = vunpack.c.h.b16 %v295
    %v4749 = vunpack.c.l.b16 %v296
    %v4750 = vunpack.c.h.b16 %v296
    %v4751 = vunpack.c.l.b16 %v297
    %v4752 = vunpack.c.h.b16 %v297
    %v4753 = vunpack.c.l.b16 %v298
    %v4754 = vunpack.c.h.b16 %v298
    %v4755 = vunpack.c.l.b16 %v299
    %v4756 = vunpack.c.h.b16 %v299
    %v4757 = vunpack.c.l.b16 %v300
    %v4758 = vunpack.c.h.b16 %v300
    %v4759 = vunpack.c.l.b16 %v301
    %v4760 = vunpack.c.h.b16 %v301
    %v4761 = vunpack.c.l.b16 %v302
    %v4762 = vunpack.c.h.b16 %v302
    %v4763 = vunpack.c.l.b16 %v303
    %v4764 = vunpack.c.h.b16 %v303
    %v4765 = vunpack.c.l.b16 %v304
    %v4766 = vunpack.c.h.b16 %v304
    %v4767 = vunpack.c.l.b16 %v305
    %v4768 = vunpack.c.h.b16 %v305
    %v4769 = vunpack.c.l.b16 %v306
    %v4770 = vunpack.c.h.b16 %v306
    %v4771 = vunpack.c.l.b16 %v307
    %v4772 = vunpack.c.h.b16 %v307
    %v4773 = vunpack.c.l.b16 %v308
    %v4774 = vunpack.c.h.b16 %v308
    %v4775 = vunpack.c.l.b16 %v309
    %v4776 = vunpack.c.h.b16 %v309
    %v4777 = vunpack.c.l.b16 %v310
    %v4778 = vunpack.c.h.b16 %v310
    %v4779 = vunpack.c.l.b16 %v311
    %v4780 = vunpack.c.h.b16 %v311
    %v4781 = vunpack.c.l.b16 %v312
    %v4782 = vunpack.c.h.b16 %v312
    %v4783 = vunpack.c.l.b16 %v313
    %v4784 = vunpack.c.h.b16 %v313
    %v4785 = vunpack.c.l.b16 %v314
    %v4786 = vunpack.c.h.b16 %v314
    %v4787 = vunpack.c.l.b16 %v315
    %v4788 = vunpack.c.h.b16 %v315
    %v4789 = vunpack.c.l.b16 %v316
    %v4790 = vunpack.c.h.b16 %v316
    %v4791 = vunpack.c.l.b16 %v317
    %v4792 = vunpack.c.h.b16 %v317
    %v4793 = vunpack.c.l.b16 %v318
    %v4794 = vunpack.c.h.b16 %v318
    %v4795 = vunpack.c.l.b16 %v319
    %v4796 = vunpack.c.h.b16 %v319
    %v4797 = vunpack.c.l.b16 %v320
    %v4798 = vunpack.c.h.b16 %v320
    %v4799 = vunpack.c.l.b16 %v321
    %v4800 = vunpack.c.h.b16 %v321
    %v4801 = vunpack.c.l.b16 %v322
    %v4802 = vunpack.c.h.b16 %v322
    %v4803 = vunpack.c.l.b16 %v323
    %v4804 = vunpack.c.h.b16 %v323
    %v4805 = vunpack.c.l.b16 %v324
    %v4806 = vunpack.c.h.b16 %v324
    %v4807 = vunpack.c.l.b16 %v325
    %v4808 = vunpack.c.h.b16 %v325
    %v4809 = vunpack.c.l.b16 %v326
    %v4810 = vunpack.c.h.b16 %v326
    %v4811 = vunpack.c.l.b16 %v327
    %v4812 = vunpack.c.h.b16 %v327
    %v4813 = vunpack.c.l.b16 %v328
    %v4814 = vunpack.c.h.b16 %v328
    %v4815 = vunpack.c.l.b16 %v329
    %v4816 = vunpack.c.h.b16 %v329
    %v4817 = vunpack.c.l.b16 %v330
    %v4818 = vunpack.c.h.b16 %v330
    %v4819 = vunpack.c.l.b16 %v331
    %v4820 = vunpack.c.h.b16 %v331
    %v4821 = vunpack.c.l.b16 %v332
    %v4822 = vunpack.c.h.b16 %v332
    %v4823 = vunpack.c.l.b16 %v333
    %v4824 = vunpack.c.h.b16 %v333
    %v4825 = vunpack.c.l.b16 %v334
    %v4826 = vunpack.c.h.b16 %v334
    %v4827 = vunpack.c.l.b16 %v335
    %v4828 = vunpack.c.h.b16 %v335
    %v4829 = vunpack.c.l.b16 %v336
    %v4830 = vunpack.c.h.b16 %v336
    %v4831 = vunpack.c.l.b16 %v337
    %v4832 = vunpack.c.h.b16 %v337
    %v4833 = vunpack.c.l.b16 %v338
    %v4834 = vunpack.c.h.b16 %v338
    %v4835 = vunpack.c.l.b16 %v339
    %v4836 = vunpack.c.h.b16 %v339
    %v4837 = vunpack.c.l.b16 %v340
    %v4838 = vunpack.c.h.b16 %v340
    %v4839 = vunpack.c.l.b16 %v341
    %v4840 = vunpack.c.h.b16 %v341
    %v4841 = vunpack.c.l.b16 %v342
    %v4842 = vunpack.c.h.b16 %v342
    %v4843 = vunpack.c.l.b16 %v343
    %v4844 = vunpack.c.h.b16 %v343
    %v4845 = vunpack.c.l.b16 %v344
    %v4846 = vunpack.c.h.b16 %v344
    %v4847 = vunpack.c.l.b16 %v345
    %v4848 = vunpack.c.h.b16 %v345
    %v4849 = vunpack.c.l.b16 %v346
    %v4850 = vunpack.c.h.b16 %v346
    %v4851 = vunpack.c.l.b16 %v347
    %v4852 = vunpack.c.h.b16 %v347
    %v4853 = vunpack.c.l.b16 %v348
    %v4854 = vunpack.c.h.b16 %v348
    %v4855 = vunpack.c.l.b16 %v349
    %v4856 = vunpack.c.h.b16 %v349
    %v4857 = vunpack.c.l.b16 %v350
    %v4858 = vunpack.c.h.b16 %v350
    %v4859 = vunpack.c.l.b16 %v351
    %v4860 = vunpack.c.h.b16 %v351
    %v4861 = vunpack.c.l.b16 %v352
    %v4862 = vunpack.c.h.b16 %v352
    %v4863 = vunpack.c.l.b16 %v353
    %v4864 = vunpack.c.h.b16 %v353
    %v4865 = vunpack.c.l.b16 %v354
    %v4866 = vunpack.c.h.b16 %v354
    %v4867 = vunpack.c.l.b16 %v355
    %v4868 = vunpack.c.h.b16 %v355
    %v4869 = vunpack.c.l.b16 %v356
    %v4870 = vunpack.c.h.b16 %v356
    %v4871 = vunpack.c.l.b16 %v357
    %v4872 = vunpack.c.h.b16 %v357
    %v4873 = vunpack.c.l.b16 %v358
    %v4874 = vunpack.c.h.b16 %v358
    %v4875 = vunpack.c.l.b16 %v359
    %v4876 = vunpack.c.h.b16 %v359
    %v4877 = vunpack.c.l.b16 %v360
    %v4878 = vunpack.c.h.b16 %v360
    %v4879 = vunpack.c.l.b16 %v361
    %v4880 = vunpack.c.h.b16 %v361
    %v4881 = vunpack.c.l.b16 %v362
    %v4882 = vunpack.c.h.b16 %v362
    %v4883 = vunpack.c.l.b16 %v363
    %v4884 = vunpack.c.h.b16 %v363
    %v4885 = vunpack.c.l.b16 %v364
    %v4886 = vunpack.c.h.b16 %v364
    %v4887 = vunpack.c.l.b16 %v365
    %v4888 = vunpack.c.h.b16 %v365
    %v4889 = vunpack.c.l.b16 %v366
    %v4890 = vunpack.c.h.b16 %v366
    %v4891 = vunpack.c.l.b16 %v367
    %v4892 = vunpack.c.h.b16 %v367
    %v4893 = vunpack.c.l.b16 %v368
    %v4894 = vunpack.c.h.b16 %v368
    %v4895 = vunpack.c.l.b16 %v369
    %v4896 = vunpack.c.h.b16 %v369
    %v4897 = vunpack.c.l.b16 %v370
    %v4898 = vunpack.c.h.b16 %v370
    %v4899 = vunpack.c.l.b16 %v371
    %v4900 = vunpack.c.h.b16 %v371
    %v4901 = vunpack.c.l.b16 %v372
    %v4902 = vunpack.c.h.b16 %v372
    %v4903 = vunpack.c.l.b16 %v373
    %v4904 = vunpack.c.h.b16 %v373
    %v4905 = vunpack.c.l.b16 %v374
    %v4906 = vunpack.c.h.b16 %v374
    %v4907 = vunpack.c.l.b16 %v375
    %v4908 = vunpack.c.h.b16 %v375
    %v4909 = vunpack.c.l.b16 %v376
    %v4910 = vunpack.c.h.b16 %v376
    %v4911 = vunpack.c.l.b16 %v377
    %v4912 = vunpack.c.h.b16 %v377
    %v4913 = vunpack.c.l.b16 %v378
    %v4914 = vunpack.c.h.b16 %v378
    %v4915 = vunpack.c.l.b16 %v379
    %v4916 = vunpack.c.h.b16 %v379
    %v4917 = vunpack.c.l.b16 %v380
    %v4918 = vunpack.c.h.b16 %v380
    %v4919 = vunpack.c.l.b16 %v381
    %v4920 = vunpack.c.h.b16 %v381
    %v4921 = vunpack.c.l.b16 %v382
    %v4922 = vunpack.c.h.b16 %v382
    %v4923 = vunpack.c.l.b16 %v383
    %v4924 = vunpack.c.h.b16 %v383
    %v4925 = vunpack.c.l.b16 %v384
    %v4926 = vunpack.c.h.b16 %v384
    %v4927 = vunpack.c.l.b16 %v385
    %v4928 = vunpack.c.h.b16 %v385
    %v4929 = vunpack.c.l.b16 %v386
    %v4930 = vunpack.c.h.b16 %v386
    %v4931 = vunpack.c.l.b16 %v387
    %v4932 = vunpack.c.h.b16 %v387
    %v4933 = vunpack.c.l.b16 %v388
    %v4934 = vunpack.c.h.b16 %v388
    %v4935 = vunpack.c.l.b16 %v389
    %v4936 = vunpack.c.h.b16 %v389
    %v4937 = vunpack.c.l.b16 %v390
    %v4938 = vunpack.c.h.b16 %v390
    %v4939 = vunpack.c.l.b16 %v391
    %v4940 = vunpack.c.h.b16 %v391
    %v4941 = vunpack.c.l.b16 %v392
    %v4942 = vunpack.c.h.b16 %v392
    %v4943 = vunpack.c.l.b16 %v393
    %v4944 = vunpack.c.h.b16 %v393
    %v4945 = vunpack.c.l.b16 %v394
    %v4946 = vunpack.c.h.b16 %v394
    %v4947 = vunpack.c.l.b16 %v395
    %v4948 = vunpack.c.h.b16 %v395
    %v4949 = vunpack.c.l.b16 %v396
    %v4950 = vunpack.c.h.b16 %v396
    %v4951 = vunpack.c.l.b16 %v397
    %v4952 = vunpack.c.h.b16 %v397
    %v4953 = vunpack.c.l.b16 %v398
    %v4954 = vunpack.c.h.b16 %v398
    %v4955 = vunpack.c.l.b16 %v399
    %v4956 = vunpack.c.h.b16 %v399
    %v4957 = vunpack.c.l.b16 %v400
    %v4958 = vunpack.c.h.b16 %v400
    %v4959 = vunpack.c.l.b16 %v401
    %v4960 = vunpack.c.h.b16 %v401
    %v4961 = vunpack.c.l.b16 %v402
    %v4962 = vunpack.c.h.b16 %v402
    %v4963 = vunpack.c.l.b16 %v403
    %v4964 = vunpack.c.h.b16 %v403
    %v4965 = vunpack.c.l.b16 %v404
    %v4966 = vunpack.c.h.b16 %v404
    %v4967 = vunpack.c.l.b16 %v405
    %v4968 = vunpack.c.h.b16 %v405
    %v4969 = vunpack.c.l.b16 %v406
    %v4970 = vunpack.c.h.b16 %v406
    %v4971 = vunpack.c.l.b16 %v407
    %v4972 = vunpack.c.h.b16 %v407
    %v4973 = vunpack.c.l.b16 %v408
    %v4974 = vunpack.c.h.b16 %v408
    %v4975 = vunpack.c.l.b16 %v409
    %v4976 = vunpack.c.h.b16 %v409
    %v4977 = vunpack.c.l.b16 %v410
    %v4978 = vunpack.c.h.b16 %v410
    %v4979 = vunpack.c.l.b16 %v411
    %v4980 = vunpack.c.h.b16 %v411
    %v4981 = vunpack.c.l.b16 %v412
    %v4982 = vunpack.c.h.b16 %v412
    %v4983 = vunpack.c.l.b16 %v413
    %v4984 = vunpack.c.h.b16 %v413
    %v4985 = vunpack.c.l.b16 %v414
    %v4986 = vunpack.c.h.b16 %v414
    %v4987 = vunpack.c.l.b16 %v415
    %v4988 = vunpack.c.h.b16 %v415
    %v4989 = vunpack.c.l.b16 %v416
    %v4990 = vunpack.c.h.b16 %v416
    %v4991 = vunpack.c.l.b16 %v417
    %v4992 = vunpack.c.h.b16 %v417
    %v4993 = vunpack.c.l.b16 %v418
    %v4994 = vunpack.c.h.b16 %v418
    %v4995 = vunpack.c.l.b16 %v419
    %v4996 = vunpack.c.h.b16 %v419
    %v4997 = vunpack.c.l.b16 %v420
    %v4998 = vunpack.c.h.b16 %v420
    %v4999 = vunpack.c.l.b16 %v421
    %v5000 = vunpack.c.h.b16 %v421
    %v5001 = vunpack.c.l.b16 %v422
    %v5002 = vunpack.c.h.b16 %v422
    %v5003 = vunpack.c.l.b16 %v423
    %v5004 = vunpack.c.h.b16 %v423
    %v5005 = vunpack.c.l.b16 %v424
    %v5006 = vunpack.c.h.b16 %v424
    %v5007 = vunpack.c.l.b16 %v425
    %v5008 = vunpack.c.h.b16 %v425
    %v5009 = vunpack.c.l.b16 %v426
    %v5010 = vunpack.c.h.b16 %v426
    %v5011 = vunpack.c.l.b16 %v427
    %v5012 = vunpack.c.h.b16 %v427
    %v5013 = vunpack.c.l.b16 %v428
    %v5014 = vunpack.c.h.b16 %v428
    %v5015 = vunpack.c.l.b16 %v429
    %v5016 = vunpack.c.h.b16 %v429
    %v5017 = vunpack.c.l.b16 %v430
    %v5018 = vunpack.c.h.b16 %v430
    %v5019 = vunpack.c.l.b16 %v431
    %v5020 = vunpack.c.h.b16 %v431
    %v5021 = vunpack.c.l.b16 %v432
    %v5022 = vunpack.c.h.b16 %v432
    %v5023 = vunpack.c.l.b16 %v433
    %v5024 = vunpack.c.h.b16 %v433
    %v5025 = vunpack.c.l.b16 %v434
    %v5026 = vunpack.c.h.b16 %v434
    %v5027 = vunpack.c.l.b16 %v435
    %v5028 = vunpack.c.h.b16 %v435
    %v5029 = vunpack.c.l.b16 %v436
    %v5030 = vunpack.c.h.b16 %v436
    %v5031 = vunpack.c.l.b16 %v437
    %v5032 = vunpack.c.h.b16 %v437
    %v5033 = vunpack.c.l.b16 %v438
    %v5034 = vunpack.c.h.b16 %v438
    %v5035 = vunpack.c.l.b16 %v439
    %v5036 = vunpack.c.h.b16 %v439
    %v5037 = vunpack.c.l.b16 %v440
    %v5038 = vunpack.c.h.b16 %v440
    %v5039 = vunpack.c.l.b16 %v441
    %v5040 = vunpack.c.h.b16 %v441
    %v5041 = vunpack.c.l.b16 %v442
    %v5042 = vunpack.c.h.b16 %v442
    %v5043 = vunpack.c.l.b16 %v443
    %v5044 = vunpack.c.h.b16 %v443
    %v5045 = vunpack.c.l.b16 %v444
    %v5046 = vunpack.c.h.b16 %v444
    %v5047 = vunpack.c.l.b16 %v445
    %v5048 = vunpack.c.h.b16 %v445
    %v5049 = vunpack.c.l.b16 %v446
    %v5050 = vunpack.c.h.b16 %v446
    %v5051 = vunpack.c.l.b16 %v447
    %v5052 = vunpack.c.h.b16 %v447
    %v5053 = vunpack.c.l.b16 %v448
    %v5054 = vunpack.c.h.b16 %v448
    %v5055 = vunpack.c.l.b16 %v449
    %v5056 = vunpack.c.h.b16 %v449
    %v5057 = vunpack.c.l.b16 %v450
    %v5058 = vunpack.c.h.b16 %v450
    %v5059 = vunpack.c.l.b16 %v451
    %v5060 = vunpack.c.h.b16 %v451
    %v5061 = vunpack.c.l.b16 %v452
    %v5062 = vunpack.c.h.b16 %v452
    %v5063 = vunpack.c.l.b16 %v453
    %v5064 = vunpack.c.h.b16 %v453
    %v5065 = vunpack.c.l.b16 %v454
    %v5066 = vunpack.c.h.b16 %v454
    %v5067 = vunpack.c.l.b16 %v455
    %v5068 = vunpack.c.h.b16 %v455
    %v5069 = vunpack.c.l.b16 %v456
    %v5070 = vunpack.c.h.b16 %v456
    %v5071 = vunpack.c.l.b16 %v457
    %v5072 = vunpack.c.h.b16 %v457
    %v5073 = vunpack.c.l.b16 %v458
    %v5074 = vunpack.c.h.b16 %v458
    %v5075 = vunpack.c.l.b16 %v459
    %v5076 = vunpack.c.h.b16 %v459
    %v5077 = vunpack.c.l.b16 %v460
    %v5078 = vunpack.c.h.b16 %v460
    %v5079 = vunpack.c.l.b16 %v461
    %v5080 = vunpack.c.h.b16 %v461
    %v5081 = vunpack.c.l.b16 %v462
    %v5082 = vunpack.c.h.b16 %v462
    %v5083 = vunpack.c.l.b16 %v463
    %v5084 = vunpack.c.h.b16 %v463
    %v5085 = vunpack.c.l.b16 %v464
    %v5086 = vunpack.c.h.b16 %v464
    %v5087 = vunpack.c.l.b16 %v465
    %v5088 = vunpack.c.h.b16 %v465
    %v5089 = vunpack.c.l.b16 %v466
    %v5090 = vunpack.c.h.b16 %v466
    %v5091 = vunpack.c.l.b16 %v467
    %v5092 = vunpack.c.h.b16 %v467
    %v5093 = vunpack.c.l.b16 %v468
    %v5094 = vunpack.c.h.b16 %v468
    %v5095 = vunpack.c.l.b16 %v469
    %v5096 = vunpack.c.h.b16 %v469
    %v5097 = vunpack.c.l.b16 %v470
    %v5098 = vunpack.c.h.b16 %v470
    %v5099 = vunpack.c.l.b16 %v471
    %v5100 = vunpack.c.h.b16 %v471
    %v5101 = vunpack.c.l.b16 %v472
    %v5102 = vunpack.c.h.b16 %v472
    %v5103 = vunpack.c.l.b16 %v473
    %v5104 = vunpack.c.h.b16 %v473
    %v5105 = vunpack.c.l.b16 %v474
    %v5106 = vunpack.c.h.b16 %v474
    %v5107 = vunpack.c.l.b16 %v475
    %v5108 = vunpack.c.h.b16 %v475
    %v5109 = vunpack.c.l.b16 %v476
    %v5110 = vunpack.c.h.b16 %v476
    %v5111 = vunpack.c.l.b16 %v477
    %v5112 = vunpack.c.h.b16 %v477
    %v5113 = vunpack.c.l.b16 %v478
    %v5114 = vunpack.c.h.b16 %v478
    %v5115 = vunpack.c.l.b16 %v479
    %v5116 = vunpack.c.h.b16 %v479
    %v5117 = vunpack.c.l.b16 %v480
    %v5118 = vunpack.c.h.b16 %v480
    %v5119 = vunpack.c.l.b16 %v481
    %v5120 = vunpack.c.h.b16 %v481
    %v5121 = vunpack.c.l.b16 %v482
    %v5122 = vunpack.c.h.b16 %v482
    %v5123 = vunpack.c.l.b16 %v483
    %v5124 = vunpack.c.h.b16 %v483
    %v5125 = vunpack.c.l.b16 %v484
    %v5126 = vunpack.c.h.b16 %v484
    %v5127 = vunpack.c.l.b16 %v485
    %v5128 = vunpack.c.h.b16 %v485
    %v5129 = vunpack.c.l.b16 %v486
    %v5130 = vunpack.c.h.b16 %v486
    %v5131 = vunpack.c.l.b16 %v487
    %v5132 = vunpack.c.h.b16 %v487
    %v5133 = vunpack.c.l.b16 %v488
    %v5134 = vunpack.c.h.b16 %v488
    %v5135 = vunpack.c.l.b16 %v489
    %v5136 = vunpack.c.h.b16 %v489
    %v5137 = vunpack.c.l.b16 %v490
    %v5138 = vunpack.c.h.b16 %v490
    %v5139 = vunpack.c.l.b16 %v491
    %v5140 = vunpack.c.h.b16 %v491
    %v5141 = vunpack.c.l.b16 %v492
    %v5142 = vunpack.c.h.b16 %v492
    %v5143 = vunpack.c.l.b16 %v493
    %v5144 = vunpack.c.h.b16 %v493
    %v5145 = vunpack.c.l.b16 %v494
    %v5146 = vunpack.c.h.b16 %v494
    %v5147 = vunpack.c.l.b16 %v495
    %v5148 = vunpack.c.h.b16 %v495
    %v5149 = vunpack.c.l.b16 %v496
    %v5150 = vunpack.c.h.b16 %v496
    %v5151 = vunpack.c.l.b16 %v497
    %v5152 = vunpack.c.h.b16 %v497
    %v5153 = vunpack.c.l.b16 %v498
    %v5154 = vunpack.c.h.b16 %v498
    %v5155 = vunpack.c.l.b16 %v499
    %v5156 = vunpack.c.h.b16 %v499
    %v5157 = vunpack.c.l.b16 %v500
    %v5158 = vunpack.c.h.b16 %v500
    %v5159 = vunpack.c.l.b16 %v501
    %v5160 = vunpack.c.h.b16 %v501
    %v5161 = vunpack.c.l.b16 %v502
    %v5162 = vunpack.c.h.b16 %v502
    %v5163 = vunpack.c.l.b16 %v503
    %v5164 = vunpack.c.h.b16 %v503
    %v5165 = vunpack.c.l.b16 %v504
    %v5166 = vunpack.c.h.b16 %v504
    %v5167 = vunpack.c.l.b16 %v505
    %v5168 = vunpack.c.h.b16 %v505
    %v5169 = vunpack.c.l.b16 %v506
    %v5170 = vunpack.c.h.b16 %v506
    %v5171 = vunpack.c.l.b16 %v507
    %v5172 = vunpack.c.h.b16 %v507
    %v5173 = vunpack.c.l.b16 %v508
    %v5174 = vunpack.c.h.b16 %v508
    %v5175 = vunpack.c.l.b16 %v509
    %v5176 = vunpack.c.h.b16 %v509
    %v5177 = vunpack.c.l.b16 %v510
    %v5178 = vunpack.c.h.b16 %v510
    %v5179 = vunpack.c.l.b16 %v511
    %v5180 = vunpack.c.h.b16 %v511
    %v5181 = vunpack.c.l.b16 %v512
    %v5182 = vunpack.c.h.b16 %v512
    %v5183 = vunpack.c.l.b16 %v513
    %v5184 = vunpack.c.h.b16 %v513
    %v5185 = vunpack.c.l.b16 %v514
    %v5186 = vunpack.c.h.b16 %v514
    %v5187 = vunpack.c.l.b16 %v515
    %v5188 = vunpack.c.h.b16 %v515
    %v5189 = vunpack.c.l.b16 %v516
    %v5190 = vunpack.c.h.b16 %v516
    %v5191 = vunpack.c.l.b16 %v517
    %v5192 = vunpack.c.h.b16 %v517
    %v5193 = vunpack.c.l.b16 %v518
    %v5194 = vunpack.c.h.b16 %v518
    %v5195 = vunpack.c.l.b16 %v519
    %v5196 = vunpack.c.h.b16 %v519
    %v5197 = vunpack.c.l.b16 %v520
    %v5198 = vunpack.c.h.b16 %v520
    %v5199 = vunpack.c.l.b16 %v521
    %v5200 = vunpack.c.h.b16 %v521
    %v5201 = vunpack.c.l.b16 %v522
    %v5202 = vunpack.c.h.b16 %v522
    %v5203 = vunpack.c.l.b16 %v523
    %v5204 = vunpack.c.h.b16 %v523
    %v5205 = vunpack.c.l.b16 %v524
    %v5206 = vunpack.c.h.b16 %v524
    %v5207 = vunpack.c.l.b16 %v525
    %v5208 = vunpack.c.h.b16 %v525
    %v5209 = vunpack.c.l.b16 %v526
    %v5210 = vunpack.c.h.b16 %v526
    %v5211 = vunpack.c.l.b16 %v527
    %v5212 = vunpack.c.h.b16 %v527
    %v5213 = vunpack.c.l.b16 %v528
    %v5214 = vunpack.c.h.b16 %v528
    %v5215 = vunpack.c.l.b16 %v529
    %v5216 = vunpack.c.h.b16 %v529
    %v5217 = vunpack.c.l.b16 %v530
    %v5218 = vunpack.c.h.b16 %v530
    %v5219 = vunpack.c.l.b16 %v531
    %v5220 = vunpack.c.h.b16 %v531
    %v5221 = vunpack.c.l.b16 %v532
    %v5222 = vunpack.c.h.b16 %v532
    %v5223 = vunpack.c.l.b16 %v533
    %v5224 = vunpack.c.h.b16 %v533
    %v5225 = vunpack.c.l.b16 %v534
    %v5226 = vunpack.c.h.b16 %v534
    %v5227 = vunpack.c.l.b16 %v535
    %v5228 = vunpack.c.h.b16 %v535
    %v5229 = vunpack.c.l.b16 %v536
    %v5230 = vunpack.c.h.b16 %v536
    %v5231 = vunpack.c.l.b16 %v537
    %v5232 = vunpack.c.h.b16 %v537
    %v5233 = vunpack.c.l.b16 %v538
    %v5234 = vunpack.c.h.b16 %v538
    %v5235 = vunpack.c.l.b16 %v539
    %v5236 = vunpack.c.h.b16 %v539
    %v5237 = vunpack.c.l.b16 %v540
    %v5238 = vunpack.c.h.b16 %v540
    %v5239 = vunpack.c.l.b16 %v541
    %v5240 = vunpack.c.h.b16 %v541
    %v5241 = vunpack.c.l.b16 %v542
    %v5242 = vunpack.c.h.b16 %v542
    %v5243 = vunpack.c.l.b16 %v543
    %v5244 = vunpack.c.h.b16 %v543
    %v5245 = vunpack.c.l.b16 %v544
    %v5246 = vunpack.c.h.b16 %v544
    %v5247 = vunpack.c.l.b16 %v545
    %v5248 = vunpack.c.h.b16 %v545
    %v5249 = vunpack.c.l.b16 %v546
    %v5250 = vunpack.c.h.b16 %v546
    %v5251 = vunpack.c.l.b16 %v547
    %v5252 = vunpack.c.h.b16 %v547
    %v5253 = vunpack.c.l.b16 %v548
    %v5254 = vunpack.c.h.b16 %v548
    %v5255 = vunpack.c.l.b16 %v549
    %v5256 = vunpack.c.h.b16 %v549
    %v5257 = vunpack.c.l.b16 %v550
    %v5258 = vunpack.c.h.b16 %v550
    %v5259 = vunpack.c.l.b16 %v551
    %v5260 = vunpack.c.h.b16 %v551
    %v5261 = vunpack.c.l.b16 %v552
    %v5262 = vunpack.c.h.b16 %v552
    %v5263 = vunpack.c.l.b16 %v553
    %v5264 = vunpack.c.h.b16 %v553
    %v5265 = vunpack.c.l.b16 %v554
    %v5266 = vunpack.c.h.b16 %v554
    %v5267 = vunpack.c.l.b16 %v555
    %v5268 = vunpack.c.h.b16 %v555
    %v5269 = vunpack.c.l.b16 %v556
    %v5270 = vunpack.c.h.b16 %v556
    %v5271 = vunpack.c.l.b16 %v557
    %v5272 = vunpack.c.h.b16 %v557
    %v5273 = vunpack.c.l.b16 %v558
    %v5274 = vunpack.c.h.b16 %v558
    %v5275 = vunpack.c.l.b16 %v559
    %v5276 = vunpack.c.h.b16 %v559
    %v5277 = vunpack.c.l.b16 %v560
    %v5278 = vunpack.c.h.b16 %v560
    %v5279 = vunpack.c.l.b16 %v561
    %v5280 = vunpack.c.h.b16 %v561
    %v5281 = vunpack.c.l.b16 %v562
    %v5282 = vunpack.c.h.b16 %v562
    %v5283 = vunpack.c.l.b16 %v563
    %v5284 = vunpack.c.h.b16 %v563
    %v5285 = vunpack.c.l.b16 %v564
    %v5286 = vunpack.c.h.b16 %v564
    %v5287 = vunpack.c.l.b16 %v565
    %v5288 = vunpack.c.h.b16 %v565
    %v5289 = vunpack.c.l.b16 %v566
    %v5290 = vunpack.c.h.b16 %v566
    %v5291 = vunpack.c.l.b16 %v567
    %v5292 = vunpack.c.h.b16 %v567
    %v5293 = vunpack.c.l.b16 %v568
    %v5294 = vunpack.c.h.b16 %v568
    %v5295 = vunpack.c.l.b16 %v569
    %v5296 = vunpack.c.h.b16 %v569
    %v5297 = vunpack.c.l.b16 %v570
    %v5298 = vunpack.c.h.b16 %v570
    %v5299 = vunpack.c.l.b16 %v571
    %v5300 = vunpack.c.h.b16 %v571
    %v5301 = vunpack.c.l.b16 %v572
    %v5302 = vunpack.c.h.b16 %v572
    %v5303 = vunpack.c.l.b16 %v573
    %v5304 = vunpack.c.h.b16 %v573
    %v5305 = vunpack.c.l.b16 %v574
    %v5306 = vunpack.c.h.b16 %v574
    %v5307 = vunpack.c.l.b16 %v575
    %v5308 = vunpack.c.h.b16 %v575
    %v5309 = vunpack.c.l.b16 %v576
    %v5310 = vunpack.c.h.b16 %v576
    %v5311 = vunpack.c.l.b16 %v577
    %v5312 = vunpack.c.h.b16 %v577
    %v5313 = vunpack.c.l.b16 %v578
    %v5314 = vunpack.c.h.b16 %v578
    %v5315 = vunpack.c.l.b16 %v579
    %v5316 = vunpack.c.h.b16 %v579
    %v5317 = vunpack.c.l.b16 %v580
    %v5318 = vunpack.c.h.b16 %v580
    %v5319 = vunpack.c.l.b16 %v581
    %v5320 = vunpack.c.h.b16 %v581
    %v5321 = vunpack.c.l.b16 %v582
    %v5322 = vunpack.c.h.b16 %v582
    %v5323 = vunpack.c.l.b16 %v583
    %v5324 = vunpack.c.h.b16 %v583
    %v5325 = vunpack.c.l.b16 %v584
    %v5326 = vunpack.c.h.b16 %v584
    %v5327 = vunpack.c.l.b16 %v585
    %v5328 = vunpack.c.h.b16 %v585
    %v5329 = vunpack.c.l.b16 %v586
    %v5330 = vunpack.c.h.b16 %v586
    %v5331 = vunpack.c.l.b16 %v587
    %v5332 = vunpack.c.h.b16 %v587
    %v5333 = vunpack.c.l.b16 %v588
    %v5334 = vunpack.c.h.b16 %v588
    %v5335 = vunpack.c.l.b16 %v589
    %v5336 = vunpack.c.h.b16 %v589
    %v5337 = vunpack.c.l.b16 %v590
    %v5338 = vunpack.c.h.b16 %v590
    %v5339 = vunpack.c.l.b16 %v591
    %v5340 = vunpack.c.h.b16 %v591
    %v5341 = vunpack.c.l.b16 %v592
    %v5342 = vunpack.c.h.b16 %v592
    %v5343 = vunpack.c.l.b16 %v593
    %v5344 = vunpack.c.h.b16 %v593
    %v5345 = vunpack.c.l.b16 %v594
    %v5346 = vunpack.c.h.b16 %v594
    %v5347 = vunpack.c.l.b16 %v595
    %v5348 = vunpack.c.h.b16 %v595
    %v5349 = vunpack.c.l.b16 %v596
    %v5350 = vunpack.c.h.b16 %v596
    %v5351 = vunpack.c.l.b16 %v597
    %v5352 = vunpack.c.h.b16 %v597
    %v5353 = vunpack.c.l.b16 %v598
    %v5354 = vunpack.c.h.b16 %v598
    %v5355 = vunpack.c.l.b16 %v599
    %v5356 = vunpack.c.h.b16 %v599
    %v5357 = vunpack.c.l.b16 %v600
    %v5358 = vunpack.c.h.b16 %v600
    %v5359 = vunpack.c.l.b16 %v601
    %v5360 = vunpack.c.h.b16 %v601
    %v5361 = vunpack.c.l.b16 %v602
    %v5362 = vunpack.c.h.b16 %v602
    %v5363 = vunpack.c.l.b16 %v603
    %v5364 = vunpack.c.h.b16 %v603
    %v5365 = vunpack.c.l.b16 %v604
    %v5366 = vunpack.c.h.b16 %v604
    %v5367 = vunpack.c.l.b16 %v605
    %v5368 = vunpack.c.h.b16 %v605
    %v5369 = vunpack.c.l.b16 %v606
    %v5370 = vunpack.c.h.b16 %v606
    %v5371 = vunpack.c.l.b16 %v607
    %v5372 = vunpack.c.h.b16 %v607
    %v5373 = vunpack.c.l.b16 %v608
    %v5374 = vunpack.c.h.b16 %v608
    %v5375 = vunpack.c.l.b16 %v609
    %v5376 = vunpack.c.h.b16 %v609
    %v5377 = vunpack.c.l.b16 %v610
    %v5378 = vunpack.c.h.b16 %v610
    %v5379 = vunpack.c.l.b16 %v611
    %v5380 = vunpack.c.h.b16 %v611
    %v5381 = vunpack.c.l.b16 %v612
    %v5382 = vunpack.c.h.b16 %v612
    %v5383 = vunpack.c.l.b16 %v613
    %v5384 = vunpack.c.h.b16 %v613
    %v5385 = vunpack.c.l.b16 %v614
    %v5386 = vunpack.c.h.b16 %v614
    %v5387 = vunpack.c.l.b16 %v615
    %v5388 = vunpack.c.h.b16 %v615
    %v5389 = vunpack.c.l.b16 %v616
    %v5390 = vunpack.c.h.b16 %v616
    %v5391 = vunpack.c.l.b16 %v617
    %v5392 = vunpack.c.h.b16 %v617
    %v5393 = vunpack.c.l.b16 %v618
    %v5394 = vunpack.c.h.b16 %v618
    %v5395 = vunpack.c.l.b16 %v619
    %v5396 = vunpack.c.h.b16 %v619
    %v5397 = vunpack.c.l.b16 %v620
    %v5398 = vunpack.c.h.b16 %v620
    %v5399 = vunpack.c.l.b16 %v621
    %v5400 = vunpack.c.h.b16 %v621
    %v5401 = vunpack.c.l.b16 %v622
    %v5402 = vunpack.c.h.b16 %v622
    %v5403 = vunpack.c.l.b16 %v623
    %v5404 = vunpack.c.h.b16 %v623
    %v5405 = vunpack.c.l.b16 %v624
    %v5406 = vunpack.c.h.b16 %v624
    %v5407 = vunpack.c.l.b16 %v625
    %v5408 = vunpack.c.h.b16 %v625
    %v5409 = vunpack.c.l.b16 %v626
    %v5410 = vunpack.c.h.b16 %v626
    %v5411 = vunpack.c.l.b16 %v627
    %v5412 = vunpack.c.h.b16 %v627
    %v5413 = vunpack.c.l.b16 %v628
    %v5414 = vunpack.c.h.b16 %v628
    %v5415 = vunpack.c.l.b16 %v629
    %v5416 = vunpack.c.h.b16 %v629
    %v5417 = vunpack.c.l.b16 %v630
    %v5418 = vunpack.c.h.b16 %v630
    %v5419 = vunpack.c.l.b16 %v631
    %v5420 = vunpack.c.h.b16 %v631
    %v5421 = vunpack.c.l.b16 %v632
    %v5422 = vunpack.c.h.b16 %v632
    %v5423 = vunpack.c.l.b16 %v633
    %v5424 = vunpack.c.h.b16 %v633
    %v5425 = vunpack.c.l.b16 %v634
    %v5426 = vunpack.c.h.b16 %v634
    %v5427 = vunpack.c.l.b16 %v635
    %v5428 = vunpack.c.h.b16 %v635
    %v5429 = vunpack.c.l.b16 %v636
    %v5430 = vunpack.c.h.b16 %v636
    %v5431 = vunpack.c.l.b16 %v637
    %v5432 = vunpack.c.h.b16 %v637
    %v5433 = vunpack.c.l.b16 %v638
    %v5434 = vunpack.c.h.b16 %v638
    %v5435 = vunpack.c.l.b16 %v639
    %v5436 = vunpack.c.h.b16 %v639
    %v5437 = vunpack.c.l.b16 %v640
    %v5438 = vunpack.c.h.b16 %v640
    %v5439 = vunpack.c.l.b16 %v641
    %v5440 = vunpack.c.h.b16 %v641
    %v5441 = vunpack.c.l.b16 %v642
    %v5442 = vunpack.c.h.b16 %v642
    %v5443 = vunpack.c.l.b16 %v643
    %v5444 = vunpack.c.h.b16 %v643
    %v5445 = vunpack.c.l.b16 %v644
    %v5446 = vunpack.c.h.b16 %v644
    %v5447 = vunpack.c.l.b16 %v645
    %v5448 = vunpack.c.h.b16 %v645
    %v5449 = vunpack.c.l.b16 %v646
    %v5450 = vunpack.c.h.b16 %v646
    %v5451 = vunpack.c.l.b16 %v647
    %v5452 = vunpack.c.h.b16 %v647
    %v5453 = vunpack.c.l.b16 %v648
    %v5454 = vunpack.c.h.b16 %v648
    %v5455 = vunpack.c.l.b16 %v649
    %v5456 = vunpack.c.h.b16 %v649
    %v5457 = vunpack.c.l.b16 %v650
    %v5458 = vunpack.c.h.b16 %v650
    %v5459 = vunpack.c.l.b16 %v651
    %v5460 = vunpack.c.h.b16 %v651
    %v5461 = vunpack.c.l.b16 %v652
    %v5462 = vunpack.c.h.b16 %v652
    %v5463 = vunpack.c.l.b16 %v653
    %v5464 = vunpack.c.h.b16 %v653
    %v5465 = vunpack.c.l.b16 %v654
    %v5466 = vunpack.c.h.b16 %v654
    %v5467 = vunpack.c.l.b16 %v655
    %v5468 = vunpack.c.h.b16 %v655
    %v5469 = vunpack.c.l.b16 %v656
    %v5470 = vunpack.c.h.b16 %v656
    %v5471 = vunpack.c.l.b16 %v657
    %v5472 = vunpack.c.h.b16 %v657
    %v5473 = vunpack.c.l.b16 %v658
    %v5474 = vunpack.c.h.b16 %v658
    %v5475 = vunpack.c.l.b16 %v659
    %v5476 = vunpack.c.h.b16 %v659
    %v5477 = vunpack.c.l.b16 %v660
    %v5478 = vunpack.c.h.b16 %v660
    %v5479 = vunpack.c.l.b16 %v661
    %v5480 = vunpack.c.h.b16 %v661
    %v5481 = vunpack.c.l.b16 %v662
    %v5482 = vunpack.c.h.b16 %v662
    %v5483 = vunpack.c.l.b16 %v663
    %v5484 = vunpack.c.h.b16 %v663
    %v5485 = vunpack.c.l.b16 %v664
    %v5486 = vunpack.c.h.b16 %v664
    %v5487 = vunpack.c.l.b16 %v665
    %v5488 = vunpack.c.h.b16 %v665
    %v5489 = vunpack.c.l.b16 %v666
    %v5490 = vunpack.c.h.b16 %v666
    %v5491 = vunpack.c.l.b16 %v667
    %v5492 = vunpack.c.h.b16 %v667
    %v5493 = vunpack.c.l.b16 %v668
    %v5494 = vunpack.c.h.b16 %v668
    %v5495 = vunpack.c.l.b16 %v669
    %v5496 = vunpack.c.h.b16 %v669
    %v5497 = vunpack.c.l.b16 %v670
    %v5498 = vunpack.c.h.b16 %v670
    %v5499 = vunpack.c.l.b16 %v671
    %v5500 = vunpack.c.h.b16 %v671
    %v5501 = vunpack.c.l.b16 %v672
    %v5502 = vunpack.c.h.b16 %v672
    %v5503 = vunpack.c.l.b16 %v673
    %v5504 = vunpack.c.h.b16 %v673
    %v5505 = vunpack.c.l.b16 %v674
    %v5506 = vunpack.c.h.b16 %v674
    %v5507 = vunpack.c.l.b16 %v675
    %v5508 = vunpack.c.h.b16 %v675
    %v5509 = vunpack.c.l.b16 %v676
    %v5510 = vunpack.c.h.b16 %v676
    %v5511 = vunpack.c.l.b16 %v677
    %v5512 = vunpack.c.h.b16 %v677
    %v5513 = vunpack.c.l.b16 %v678
    %v5514 = vunpack.c.h.b16 %v678
    %v5515 = vunpack.c.l.b16 %v679
    %v5516 = vunpack.c.h.b16 %v679
    %v5517 = vunpack.c.l.b16 %v680
    %v5518 = vunpack.c.h.b16 %v680
    %v5519 = vunpack.c.l.b16 %v681
    %v5520 = vunpack.c.h.b16 %v681
    %v5521 = vunpack.c.l.b16 %v682
    %v5522 = vunpack.c.h.b16 %v682
    %v5523 = vunpack.c.l.b16 %v683
    %v5524 = vunpack.c.h.b16 %v683
    %v5525 = vunpack.c.l.b16 %v684
    %v5526 = vunpack.c.h.b16 %v684
    %v5527 = vunpack.c.l.b16 %v685
    %v5528 = vunpack.c.h.b16 %v685
    %v5529 = vunpack.c.l.b16 %v686
    %v5530 = vunpack.c.h.b16 %v686
    %v5531 = vunpack.c.l.b16 %v687
    %v5532 = vunpack.c.h.b16 %v687
    %v5533 = vunpack.c.l.b16 %v688
    %v5534 = vunpack.c.h.b16 %v688
    %v5535 = vunpack.c.l.b16 %v689
    %v5536 = vunpack.c.h.b16 %v689
    %v5537 = vunpack.c.l.b16 %v690
    %v5538 = vunpack.c.h.b16 %v690
    %v5539 = vunpack.c.l.b16 %v691
    %v5540 = vunpack.c.h.b16 %v691
    %v5541 = vunpack.c.l.b16 %v692
    %v5542 = vunpack.c.h.b16 %v692
    %v5543 = vunpack.c.l.b16 %v693
    %v5544 = vunpack.c.h.b16 %v693
    %v5545 = vunpack.c.l.b16 %v694
    %v5546 = vunpack.c.h.b16 %v694
    %v5547 = vunpack.c.l.b16 %v695
    %v5548 = vunpack.c.h.b16 %v695
    %v5549 = vunpack.c.l.b16 %v696
    %v5550 = vunpack.c.h.b16 %v696
    %v5551 = vunpack.c.l.b16 %v697
    %v5552 = vunpack.c.h.b16 %v697
    %v5553 = vunpack.c.l.b16 %v698
    %v5554 = vunpack.c.h.b16 %v698
    %v5555 = vunpack.c.l.b16 %v699
    %v5556 = vunpack.c.h.b16 %v699
    %v5557 = vunpack.c.l.b16 %v700
    %v5558 = vunpack.c.h.b16 %v700
    %v5559 = vunpack.c.l.b16 %v701
    %v5560 = vunpack.c.h.b16 %v701
    %v5561 = vunpack.c.l.b16 %v702
    %v5562 = vunpack.c.h.b16 %v702
    %v5563 = vunpack.c.l.b16 %v703
    %v5564 = vunpack.c.h.b16 %v703
    %v5565 = vunpack.c.l.b16 %v704
    %v5566 = vunpack.c.h.b16 %v704
    %v5567 = vunpack.c.l.b16 %v705
    %v5568 = vunpack.c.h.b16 %v705
    %v5569 = vunpack.c.l.b16 %v706
    %v5570 = vunpack.c.h.b16 %v706
    %v5571 = vunpack.c.l.b16 %v707
    %v5572 = vunpack.c.h.b16 %v707
    %v5573 = vunpack.c.l.b16 %v708
    %v5574 = vunpack.c.h.b16 %v708
    %v5575 = vunpack.c.l.b16 %v709
    %v5576 = vunpack.c.h.b16 %v709
    %v5577 = vunpack.c.l.b16 %v710
    %v5578 = vunpack.c.h.b16 %v710
    %v5579 = vunpack.c.l.b16 %v711
    %v5580 = vunpack.c.h.b16 %v711
    %v5581 = vunpack.c.l.b16 %v712
    %v5582 = vunpack.c.h.b16 %v712
    %v5583 = vunpack.c.l.b16 %v713
    %v5584 = vunpack.c.h.b16 %v713
    %v5585 = vunpack.c.l.b16 %v714
    %v5586 = vunpack.c.h.b16 %v714
    %v5587 = vunpack.c.l.b16 %v715
    %v5588 = vunpack.c.h.b16 %v715
    %v5589 = vunpack.c.l.b16 %v716
    %v5590 = vunpack.c.h.b16 %v716
    %v5591 = vunpack.c.l.b16 %v717
    %v5592 = vunpack.c.h.b16 %v717
    %v5593 = vunpack.c.l.b16 %v718
    %v5594 = vunpack.c.h.b16 %v718
    %v5595 = vunpack.c.l.b16 %v719
    %v5596 = vunpack.c.h.b16 %v719
    %v5597 = vunpack.c.l.b16 %v720
    %v5598 = vunpack.c.h.b16 %v720
    %v5599 = vunpack.c.l.b16 %v721
    %v5600 = vunpack.c.h.b16 %v721
    %v5601 = vunpack.c.l.b16 %v722
    %v5602 = vunpack.c.h.b16 %v722
    %v5603 = vunpack.c.l.b16 %v723
    %v5604 = vunpack.c.h.b16 %v723
    %v5605 = vunpack.c.l.b16 %v724
    %v5606 = vunpack.c.h.b16 %v724
    %v5607 = vunpack.c.l.b16 %v725
    %v5608 = vunpack.c.h.b16 %v725
    %v5609 = vunpack.c.l.b16 %v726
    %v5610 = vunpack.c.h.b16 %v726
    %v5611 = vunpack.c.l.b16 %v727
    %v5612 = vunpack.c.h.b16 %v727
    %v5613 = vunpack.c.l.b16 %v728
    %v5614 = vunpack.c.h.b16 %v728
    %v5615 = vunpack.c.l.b16 %v729
    %v5616 = vunpack.c.h.b16 %v729
    %v5617 = vunpack.c.l.b16 %v730
    %v5618 = vunpack.c.h.b16 %v730
    %v5619 = vunpack.c.l.b16 %v731
    %v5620 = vunpack.c.h.b16 %v731
    %v5621 = vunpack.c.l.b16 %v732
    %v5622 = vunpack.c.h.b16 %v732
    %v5623 = vunpack.c.l.b16 %v733
    %v5624 = vunpack.c.h.b16 %v733
    %v5625 = vunpack.c.l.b16 %v734
    %v5626 = vunpack.c.h.b16 %v734
    %v5627 = vunpack.c.l.b16 %v735
    %v5628 = vunpack.c.h.b16 %v735
    %v5629 = vunpack.c.l.b16 %v736
    %v5630 = vunpack.c.h.b16 %v736
    %v5631 = vunpack.c.l.b16 %v737
    %v5632 = vunpack.c.h.b16 %v737
    %v5633 = vunpack.c.l.b16 %v738
    %v5634 = vunpack.c.h.b16 %v738
    %v5635 = vunpack.c.l.b16 %v739
    %v5636 = vunpack.c.h.b16 %v739
    %v5637 = vunpack.c.l.b16 %v740
    %v5638 = vunpack.c.h.b16 %v740
    %v5639 = vunpack.c.l.b16 %v741
    %v5640 = vunpack.c.h.b16 %v741
    %v5641 = vunpack.c.l.b16 %v742
    %v5642 = vunpack.c.h.b16 %v742
    %v5643 = vunpack.c.l.b16 %v743
    %v5644 = vunpack.c.h.b16 %v743
    %v5645 = vunpack.c.l.b16 %v744
    %v5646 = vunpack.c.h.b16 %v744
    %v5647 = vunpack.c.l.b16 %v745
    %v5648 = vunpack.c.h.b16 %v745
    %v5649 = vunpack.c.l.b16 %v746
    %v5650 = vunpack.c.h.b16 %v746
    %v5651 = vunpack.c.l.b16 %v747
    %v5652 = vunpack.c.h.b16 %v747
    %v5653 = vunpack.c.l.b16 %v748
    %v5654 = vunpack.c.h.b16 %v748
    %v5655 = vunpack.c.l.b16 %v749
    %v5656 = vunpack.c.h.b16 %v749
    %v5657 = vunpack.c.l.b16 %v750
    %v5658 = vunpack.c.h.b16 %v750
    %v5659 = vunpack.c.l.b16 %v751
    %v5660 = vunpack.c.h.b16 %v751
    %v5661 = vunpack.c.l.b16 %v752
    %v5662 = vunpack.c.h.b16 %v752
    %v5663 = vunpack.c.l.b16 %v753
    %v5664 = vunpack.c.h.b16 %v753
    %v5665 = vunpack.c.l.b16 %v754
    %v5666 = vunpack.c.h.b16 %v754
    %v5667 = vunpack.c.l.b16 %v755
    %v5668 = vunpack.c.h.b16 %v755
    %v5669 = vunpack.c.l.b16 %v756
    %v5670 = vunpack.c.h.b16 %v756
    %v5671 = vunpack.c.l.b16 %v757
    %v5672 = vunpack.c.h.b16 %v757
    %v5673 = vunpack.c.l.b16 %v758
    %v5674 = vunpack.c.h.b16 %v758
    %v5675 = vunpack.c.l.b16 %v759
    %v5676 = vunpack.c.h.b16 %v759
    %v5677 = vunpack.c.l.b16 %v760
    %v5678 = vunpack.c.h.b16 %v760
    %v5679 = vunpack.c.l.b16 %v761
    %v5680 = vunpack.c.h.b16 %v761
    %v5681 = vunpack.c.l.b16 %v762
    %v5682 = vunpack.c.h.b16 %v762
    %v5683 = vunpack.c.l.b16 %v763
    %v5684 = vunpack.c.h.b16 %v763
    %v5685 = vunpack.c.l.b16 %v764
    %v5686 = vunpack.c.h.b16 %v764
    %v5687 = vunpack.c.l.b16 %v765
    %v5688 = vunpack.c.h.b16 %v765
    %v5689 = vunpack.c.l.b16 %v766
    %v5690 = vunpack.c.h.b16 %v766
    %v5691 = vunpack.c.l.b16 %v767
    %v5692 = vunpack.c.h.b16 %v767
    %v5693 = vunpack.c.l.b16 %v768
    %v5694 = vunpack.c.h.b16 %v768
    %v5695 = vunpack.c.l.b16 %v769
    %v5696 = vunpack.c.h.b16 %v769
    %v5697 = vunpack.c.l.b16 %v770
    %v5698 = vunpack.c.h.b16 %v770
    %v5699 = vunpack.c.l.b16 %v771
    %v5700 = vunpack.c.h.b16 %v771
    %v5701 = vunpack.c.l.b16 %v772
    %v5702 = vunpack.c.h.b16 %v772
    %v5703 = vunpack.c.l.b16 %v773
    %v5704 = vunpack.c.h.b16 %v773
    %v5705 = vunpack.c.l.b16 %v774
    %v5706 = vunpack.c.h.b16 %v774
    %v5707 = vunpack.c.l.b16 %v775
    %v5708 = vunpack.c.h.b16 %v775
    %v5709 = vunpack.c.l.b16 %v776
    %v5710 = vunpack.c.h.b16 %v776
    %v5711 = vunpack.c.l.b16 %v777
    %v5712 = vunpack.c.h.b16 %v777
    %v5713 = vunpack.c.l.b16 %v778
    %v5714 = vunpack.c.h.b16 %v778
    %v5715 = vunpack.c.l.b16 %v779
    %v5716 = vunpack.c.h.b16 %v779
    %v5717 = vunpack.c.l.b16 %v780
    %v5718 = vunpack.c.h.b16 %v780
    %v5719 = vunpack.c.l.b16 %v781
    %v5720 = vunpack.c.h.b16 %v781
    %v5721 = vunpack.c.l.b16 %v782
    %v5722 = vunpack.c.h.b16 %v782
    %v5723 = vunpack.c.l.b16 %v783
    %v5724 = vunpack.c.h.b16 %v783
    %v5725 = vunpack.c.l.b16 %v784
    %v5726 = vunpack.c.h.b16 %v784
    %v5727 = vunpack.c.l.b16 %v785
    %v5728 = vunpack.c.h.b16 %v785
    %v5729 = vunpack.c.l.b16 %v786
    %v5730 = vunpack.c.h.b16 %v786
    %v5731 = vunpack.c.l.b16 %v787
    %v5732 = vunpack.c.h.b16 %v787
    %v5733 = vunpack.c.l.b16 %v788
    %v5734 = vunpack.c.h.b16 %v788
    %v5735 = vunpack.c.l.b16 %v789
    %v5736 = vunpack.c.h.b16 %v789
    %v5737 = vunpack.c.l.b16 %v790
    %v5738 = vunpack.c.h.b16 %v790
    %v5739 = vunpack.c.l.b16 %v791
    %v5740 = vunpack.c.h.b16 %v791
    %v5741 = vunpack.c.l.b16 %v792
    %v5742 = vunpack.c.h.b16 %v792
    %v5743 = vunpack.c.l.b16 %v793
    %v5744 = vunpack.c.h.b16 %v793
    %v5745 = vunpack.c.l.b16 %v794
    %v5746 = vunpack.c.h.b16 %v794
    %v5747 = vunpack.c.l.b16 %v795
    %v5748 = vunpack.c.h.b16 %v795
    %v5749 = vunpack.c.l.b16 %v796
    %v5750 = vunpack.c.h.b16 %v796
    %v5751 = vunpack.c.l.b16 %v797
    %v5752 = vunpack.c.h.b16 %v797
    %v5753 = vunpack.c.l.b16 %v798
    %v5754 = vunpack.c.h.b16 %v798
    %v5755 = vunpack.c.l.b16 %v799
    %v5756 = vunpack.c.h.b16 %v799
    %v5757 = vunpack.c.l.b16 %v800
    %v5758 = vunpack.c.h.b16 %v800
    %v5759 = vunpack.c.l.b16 %v801
    %v5760 = vunpack.c.h.b16 %v801
    %v5761 = vunpack.c.l.b16 %v802
    %v5762 = vunpack.c.h.b16 %v802
    %v5763 = vunpack.c.l.b16 %v803
    %v5764 = vunpack.c.h.b16 %v803
    %v5765 = vunpack.c.l.b16 %v804
    %v5766 = vunpack.c.h.b16 %v804
    %v5767 = vunpack.c.l.b16 %v805
    %v5768 = vunpack.c.h.b16 %v805
    %v5769 = vunpack.c.l.b16 %v806
    %v5770 = vunpack.c.h.b16 %v806
    %v5771 = vunpack.c.l.b16 %v807
    %v5772 = vunpack.c.h.b16 %v807
    %v5773 = vunpack.c.l.b16 %v808
    %v5774 = vunpack.c.h.b16 %v808
    %v5775 = vunpack.c.l.b16 %v809
    %v5776 = vunpack.c.h.b16 %v809
    %v5777 = vunpack.c.l.b16 %v810
    %v5778 = vunpack.c.h.b16 %v810
    %v5779 = vunpack.c.l.b16 %v811
    %v5780 = vunpack.c.h.b16 %v811
    %v5781 = vunpack.c.l.b16 %v812
    %v5782 = vunpack.c.h.b16 %v812
    %v5783 = vunpack.c.l.b16 %v813
    %v5784 = vunpack.c.h.b16 %v813
    %v5785 = vunpack.c.l.b16 %v814
    %v5786 = vunpack.c.h.b16 %v814
    %v5787 = vunpack.c.l.b16 %v815
    %v5788 = vunpack.c.h.b16 %v815
    %v5789 = vunpack.c.l.b16 %v816
    %v5790 = vunpack.c.h.b16 %v816
    %v5791 = vunpack.c.l.b16 %v817
    %v5792 = vunpack.c.h.b16 %v817
    %v5793 = vunpack.c.l.b16 %v818
    %v5794 = vunpack.c.h.b16 %v818
    %v5795 = vunpack.c.l.b16 %v819
    %v5796 = vunpack.c.h.b16 %v819
    %v5797 = vunpack.c.l.b16 %v820
    %v5798 = vunpack.c.h.b16 %v820
    %v5799 = vunpack.c.l.b16 %v821
    %v5800 = vunpack.c.h.b16 %v821
    %v5801 = vunpack.c.l.b16 %v822
    %v5802 = vunpack.c.h.b16 %v822
    %v5803 = vunpack.c.l.b16 %v823
    %v5804 = vunpack.c.h.b16 %v823
    %v5805 = vunpack.c.l.b16 %v824
    %v5806 = vunpack.c.h.b16 %v824
    %v5807 = vunpack.c.l.b16 %v825
    %v5808 = vunpack.c.h.b16 %v825
    %v5809 = vunpack.c.l.b16 %v826
    %v5810 = vunpack.c.h.b16 %v826
    %v5811 = vunpack.c.l.b16 %v827
    %v5812 = vunpack.c.h.b16 %v827
    %v5813 = vunpack.c.l.b16 %v828
    %v5814 = vunpack.c.h.b16 %v828
    %v5815 = vunpack.c.l.b16 %v829
    %v5816 = vunpack.c.h.b16 %v829
    %v5817 = vunpack.c.l.b16 %v830
    %v5818 = vunpack.c.h.b16 %v830
    %v5819 = vunpack.c.l.b16 %v831
    %v5820 = vunpack.c.h.b16 %v831
    %v5821 = vunpack.c.l.b16 %v832
    %v5822 = vunpack.c.h.b16 %v832
    %v5823 = vunpack.c.l.b16 %v833
    %v5824 = vunpack.c.h.b16 %v833
    %v5825 = vunpack.c.l.b16 %v834
    %v5826 = vunpack.c.h.b16 %v834
    %v5827 = vunpack.c.l.b16 %v835
    %v5828 = vunpack.c.h.b16 %v835
    %v5829 = vunpack.c.l.b16 %v836
    %v5830 = vunpack.c.h.b16 %v836
    %v5831 = vunpack.c.l.b16 %v837
    %v5832 = vunpack.c.h.b16 %v837
    %v5833 = vunpack.c.l.b16 %v838
    %v5834 = vunpack.c.h.b16 %v838
    %v5835 = vunpack.c.l.b16 %v839
    %v5836 = vunpack.c.h.b16 %v839
    %v5837 = vunpack.c.l.b16 %v840
    %v5838 = vunpack.c.h.b16 %v840
    %v5839 = vunpack.c.l.b16 %v841
    %v5840 = vunpack.c.h.b16 %v841
    %v5841 = vunpack.c.l.b16 %v842
    %v5842 = vunpack.c.h.b16 %v842
    %v5843 = vunpack.c.l.b16 %v843
    %v5844 = vunpack.c.h.b16 %v843
    %v5845 = vunpack.c.l.b16 %v844
    %v5846 = vunpack.c.h.b16 %v844
    %v5847 = vunpack.c.l.b16 %v845
    %v5848 = vunpack.c.h.b16 %v845
    %v5849 = vunpack.c.l.b16 %v846
    %v5850 = vunpack.c.h.b16 %v846
    %v5851 = vunpack.c.l.b16 %v847
    %v5852 = vunpack.c.h.b16 %v847
    %v5853 = vunpack.c.l.b16 %v848
    %v5854 = vunpack.c.h.b16 %v848
    %v5855 = vunpack.c.l.b16 %v849
    %v5856 = vunpack.c.h.b16 %v849
    %v5857 = vunpack.c.l.b16 %v850
    %v5858 = vunpack.c.h.b16 %v850
    %v5859 = vunpack.c.l.b16 %v851
    %v5860 = vunpack.c.h.b16 %v851
    %v5861 = vunpack.c.l.b16 %v852
    %v5862 = vunpack.c.h.b16 %v852
    %v5863 = vunpack.c.l.b16 %v853
    %v5864 = vunpack.c.h.b16 %v853
    %v5865 = vunpack.c.l.b16 %v854
    %v5866 = vunpack.c.h.b16 %v854
    %v5867 = vunpack.c.l.b16 %v855
    %v5868 = vunpack.c.h.b16 %v855
    %v5869 = vunpack.c.l.b16 %v856
    %v5870 = vunpack.c.h.b16 %v856
    %v5871 = vunpack.c.l.b16 %v857
    %v5872 = vunpack.c.h.b16 %v857
    %v5873 = vunpack.c.l.b16 %v858
    %v5874 = vunpack.c.h.b16 %v858
    %v5875 = vunpack.c.l.b16 %v859
    %v5876 = vunpack.c.h.b16 %v859
    %v5877 = vunpack.c.l.b16 %v860
    %v5878 = vunpack.c.h.b16 %v860
    %v5879 = vunpack.c.l.b16 %v861
    %v5880 = vunpack.c.h.b16 %v861
    %v5881 = vunpack.c.l.b16 %v862
    %v5882 = vunpack.c.h.b16 %v862
    %v5883 = vunpack.c.l.b16 %v863
    %v5884 = vunpack.c.h.b16 %v863
    %v5885 = vunpack.c.l.b16 %v864
    %v5886 = vunpack.c.h.b16 %v864
    %v5887 = vunpack.c.l.b16 %v865
    %v5888 = vunpack.c.h.b16 %v865
    %v5889 = vunpack.c.l.b16 %v866
    %v5890 = vunpack.c.h.b16 %v866
    %v5891 = vunpack.c.l.b16 %v867
    %v5892 = vunpack.c.h.b16 %v867
    %v5893 = vunpack.c.l.b16 %v868
    %v5894 = vunpack.c.h.b16 %v868
    %v5895 = vunpack.c.l.b16 %v869
    %v5896 = vunpack.c.h.b16 %v869
    %v5897 = vunpack.c.l.b16 %v870
    %v5898 = vunpack.c.h.b16 %v870
    %v5899 = vunpack.c.l.b16 %v871
    %v5900 = vunpack.c.h.b16 %v871
    %v5901 = vunpack.c.l.b16 %v872
    %v5902 = vunpack.c.h.b16 %v872
    %v5903 = vunpack.c.l.b16 %v873
    %v5904 = vunpack.c.h.b16 %v873
    %v5905 = vunpack.c.l.b16 %v874
    %v5906 = vunpack.c.h.b16 %v874
    %v5907 = vunpack.c.l.b16 %v875
    %v5908 = vunpack.c.h.b16 %v875
    %v5909 = vunpack.c.l.b16 %v876
    %v5910 = vunpack.c.h.b16 %v876
    %v5911 = vunpack.c.l.b16 %v877
    %v5912 = vunpack.c.h.b16 %v877
    %v5913 = vunpack.c.l.b16 %v878
    %v5914 = vunpack.c.h.b16 %v878
    %v5915 = vunpack.c.l.b16 %v879
    %v5916 = vunpack.c.h.b16 %v879
    %v5917 = vunpack.c.l.b16 %v880
    %v5918 = vunpack.c.h.b16 %v880
    %v5919 = vunpack.c.l.b16 %v881
    %v5920 = vunpack.c.h.b16 %v881
    %v5921 = vunpack.c.l.b16 %v882
    %v5922 = vunpack.c.h.b16 %v882
    %v5923 = vunpack.c.l.b16 %v883
    %v5924 = vunpack.c.h.b16 %v883
    %v5925 = vunpack.c.l.b16 %v884
    %v5926 = vunpack.c.h.b16 %v884
    %v5927 = vunpack.c.l.b16 %v885
    %v5928 = vunpack.c.h.b16 %v885
    %v5929 = vunpack.c.l.b16 %v886
    %v5930 = vunpack.c.h.b16 %v886
    %v5931 = vunpack.c.l.b16 %v887
    %v5932 = vunpack.c.h.b16 %v887
    %v5933 = vunpack.c.l.b16 %v888
    %v5934 = vunpack.c.h.b16 %v888
    %v5935 = vunpack.c.l.b16 %v889
    %v5936 = vunpack.c.h.b16 %v889
    %v5937 = vunpack.c.l.b16 %v890
    %v5938 = vunpack.c.h.b16 %v890
    %v5939 = vunpack.c.l.b16 %v891
    %v5940 = vunpack.c.h.b16 %v891
    %v5941 = vunpack.c.l.b16 %v892
    %v5942 = vunpack.c.h.b16 %v892
    %v5943 = vunpack.c.l.b16 %v893
    %v5944 = vunpack.c.h.b16 %v893
    %v5945 = vunpack.c.l.b16 %v894
    %v5946 = vunpack.c.h.b16 %v894
    %v5947 = vunpack.c.l.b16 %v895
    %v5948 = vunpack.c.h.b16 %v895
    %v5949 = vunpack.c.l.b16 %v896
    %v5950 = vunpack.c.h.b16 %v896
    %v5951 = vunpack.c.l.b16 %v897
    %v5952 = vunpack.c.h.b16 %v897
    %v5953 = vunpack.c.l.b16 %v898
    %v5954 = vunpack.c.h.b16 %v898
    %v5955 = vunpack.c.l.b16 %v899
    %v5956 = vunpack.c.h.b16 %v899
    %v5957 = vunpack.c.l.b16 %v900
    %v5958 = vunpack.c.h.b16 %v900
    %v5959 = vunpack.c.l.b16 %v901
    %v5960 = vunpack.c.h.b16 %v901
    %v5961 = vunpack.c.l.b16 %v902
    %v5962 = vunpack.c.h.b16 %v902
    %v5963 = vunpack.c.l.b16 %v903
    %v5964 = vunpack.c.h.b16 %v903
    %v5965 = vunpack.c.l.b16 %v904
    %v5966 = vunpack.c.h.b16 %v904
    %v5967 = vunpack.c.l.b16 %v905
    %v5968 = vunpack.c.h.b16 %v905
    %v5969 = vunpack.c.l.b16 %v906
    %v5970 = vunpack.c.h.b16 %v906
    %v5971 = vunpack.c.l.b16 %v907
    %v5972 = vunpack.c.h.b16 %v907
    %v5973 = vunpack.c.l.b16 %v908
    %v5974 = vunpack.c.h.b16 %v908
    %v5975 = vunpack.c.l.b16 %v909
    %v5976 = vunpack.c.h.b16 %v909
    %v5977 = vunpack.c.l.b16 %v910
    %v5978 = vunpack.c.h.b16 %v910
    %v5979 = vunpack.c.l.b16 %v911
    %v5980 = vunpack.c.h.b16 %v911
    %v5981 = vunpack.c.l.b16 %v912
    %v5982 = vunpack.c.h.b16 %v912
    %v5983 = vunpack.c.l.b16 %v913
    %v5984 = vunpack.c.h.b16 %v913
    %v5985 = vunpack.c.l.b16 %v914
    %v5986 = vunpack.c.h.b16 %v914
    %v5987 = vunpack.c.l.b16 %v915
    %v5988 = vunpack.c.h.b16 %v915
    %v5989 = vunpack.c.l.b16 %v916
    %v5990 = vunpack.c.h.b16 %v916
    %v5991 = vunpack.c.l.b16 %v917
    %v5992 = vunpack.c.h.b16 %v917
    %v5993 = vunpack.c.l.b16 %v918
    %v5994 = vunpack.c.h.b16 %v918
    %v5995 = vunpack.c.l.b16 %v919
    %v5996 = vunpack.c.h.b16 %v919
    %v5997 = vunpack.c.l.b16 %v920
    %v5998 = vunpack.c.h.b16 %v920
    %v5999 = vunpack.c.l.b16 %v921
    %v6000 = vunpack.c.h.b16 %v921
    %v6001 = vunpack.c.l.b16 %v922
    %v6002 = vunpack.c.h.b16 %v922
    %v6003 = vunpack.c.l.b16 %v923
    %v6004 = vunpack.c.h.b16 %v923
    %v6005 = vunpack.c.l.b16 %v924
    %v6006 = vunpack.c.h.b16 %v924
    %v6007 = vunpack.c.l.b16 %v925
    %v6008 = vunpack.c.h.b16 %v925
    %v6009 = vunpack.c.l.b16 %v926
    %v6010 = vunpack.c.h.b16 %v926
    %v6011 = vunpack.c.l.b16 %v927
    %v6012 = vunpack.c.h.b16 %v927
    %v6013 = vunpack.c.l.b16 %v928
    %v6014 = vunpack.c.h.b16 %v928
    %v6015 = vunpack.c.l.b16 %v929
    %v6016 = vunpack.c.h.b16 %v929
    %v6017 = vunpack.c.l.b16 %v930
    %v6018 = vunpack.c.h.b16 %v930
    %v6019 = vunpack.c.l.b16 %v931
    %v6020 = vunpack.c.h.b16 %v931
    %v6021 = vunpack.c.l.b16 %v932
    %v6022 = vunpack.c.h.b16 %v932
    %v6023 = vunpack.c.l.b16 %v933
    %v6024 = vunpack.c.h.b16 %v933
    %v6025 = vunpack.c.l.b16 %v934
    %v6026 = vunpack.c.h.b16 %v934
    %v6027 = vunpack.c.l.b16 %v935
    %v6028 = vunpack.c.h.b16 %v935
    %v6029 = vunpack.c.l.b16 %v936
    %v6030 = vunpack.c.h.b16 %v936
    %v6031 = vunpack.c.l.b16 %v937
    %v6032 = vunpack.c.h.b16 %v937
    %v6033 = vunpack.c.l.b16 %v938
    %v6034 = vunpack.c.h.b16 %v938
    %v6035 = vunpack.c.l.b16 %v939
    %v6036 = vunpack.c.h.b16 %v939
    %v6037 = vunpack.c.l.b16 %v940
    %v6038 = vunpack.c.h.b16 %v940
    %v6039 = vunpack.c.l.b16 %v941
    %v6040 = vunpack.c.h.b16 %v941
    %v6041 = vunpack.c.l.b16 %v942
    %v6042 = vunpack.c.h.b16 %v942
    %v6043 = vunpack.c.l.b16 %v943
    %v6044 = vunpack.c.h.b16 %v943
    %v6045 = vunpack.c.l.b16 %v944
    %v6046 = vunpack.c.h.b16 %v944
    %v6047 = vunpack.c.l.b16 %v945
    %v6048 = vunpack.c.h.b16 %v945
    %v6049 = vunpack.c.l.b16 %v946
    %v6050 = vunpack.c.h.b16 %v946
    %v6051 = vunpack.c.l.b16 %v947
    %v6052 = vunpack.c.h.b16 %v947
    %v6053 = vunpack.c.l.b16 %v948
    %v6054 = vunpack.c.h.b16 %v948
    %v6055 = vunpack.c.l.b16 %v949
    %v6056 = vunpack.c.h.b16 %v949
    %v6057 = vunpack.c.l.b16 %v950
    %v6058 = vunpack.c.h.b16 %v950
    %v6059 = vunpack.c.l.b16 %v951
    %v6060 = vunpack.c.h.b16 %v951
    %v6061 = vunpack.c.l.b16 %v952
    %v6062 = vunpack.c.h.b16 %v952
    %v6063 = vunpack.c.l.b16 %v953
    %v6064 = vunpack.c.h.b16 %v953
    %v6065 = vunpack.c.l.b16 %v954
    %v6066 = vunpack.c.h.b16 %v954
    %v6067 = vunpack.c.l.b16 %v955
    %v6068 = vunpack.c.h.b16 %v955
    %v6069 = vunpack.c.l.b16 %v956
    %v6070 = vunpack.c.h.b16 %v956
    %v6071 = vunpack.c.l.b16 %v957
    %v6072 = vunpack.c.h.b16 %v957
    %v6073 = vunpack.c.l.b16 %v958
    %v6074 = vunpack.c.h.b16 %v958
    %v6075 = vunpack.c.l.b16 %v959
    %v6076 = vunpack.c.h.b16 %v959
    %v6077 = vunpack.c.l.b16 %v960
    %v6078 = vunpack.c.h.b16 %v960
    %v6079 = vunpack.c.l.b16 %v961
    %v6080 = vunpack.c.h.b16 %v961
    %v6081 = vunpack.c.l.b16 %v962
    %v6082 = vunpack.c.h.b16 %v962
    %v6083 = vunpack.c.l.b16 %v963
    %v6084 = vunpack.c.h.b16 %v963
    %v6085 = vunpack.c.l.b16 %v964
    %v6086 = vunpack.c.h.b16 %v964
    %v6087 = vunpack.c.l.b16 %v965
    %v6088 = vunpack.c.h.b16 %v965
    %v6089 = vunpack.c.l.b16 %v966
    %v6090 = vunpack.c.h.b16 %v966
    %v6091 = vunpack.c.l.b16 %v967
    %v6092 = vunpack.c.h.b16 %v967
    %v6093 = vunpack.c.l.b16 %v968
    %v6094 = vunpack.c.h.b16 %v968
    %v6095 = vunpack.c.l.b16 %v969
    %v6096 = vunpack.c.h.b16 %v969
    %v6097 = vunpack.c.l.b16 %v970
    %v6098 = vunpack.c.h.b16 %v970
    %v6099 = vunpack.c.l.b16 %v971
    %v6100 = vunpack.c.h.b16 %v971
    %v6101 = vunpack.c.l.b16 %v972
    %v6102 = vunpack.c.h.b16 %v972
    %v6103 = vunpack.c.l.b16 %v973
    %v6104 = vunpack.c.h.b16 %v973
    %v6105 = vunpack.c.l.b16 %v974
    %v6106 = vunpack.c.h.b16 %v974
    %v6107 = vunpack.c.l.b16 %v975
    %v6108 = vunpack.c.h.b16 %v975
    %v6109 = vunpack.c.l.b16 %v976
    %v6110 = vunpack.c.h.b16 %v976
    %v6111 = vunpack.c.l.b16 %v977
    %v6112 = vunpack.c.h.b16 %v977
    %v6113 = vunpack.c.l.b16 %v978
    %v6114 = vunpack.c.h.b16 %v978
    %v6115 = vunpack.c.l.b16 %v979
    %v6116 = vunpack.c.h.b16 %v979
    %v6117 = vunpack.c.l.b16 %v980
    %v6118 = vunpack.c.h.b16 %v980
    %v6119 = vunpack.c.l.b16 %v981
    %v6120 = vunpack.c.h.b16 %v981
    %v6121 = vunpack.c.l.b16 %v982
    %v6122 = vunpack.c.h.b16 %v982
    %v6123 = vunpack.c.l.b16 %v983
    %v6124 = vunpack.c.h.b16 %v983
    %v6125 = vunpack.c.l.b16 %v984
    %v6126 = vunpack.c.h.b16 %v984
    %v6127 = vunpack.c.l.b16 %v985
    %v6128 = vunpack.c.h.b16 %v985
    %v6129 = vunpack.c.l.b16 %v986
    %v6130 = vunpack.c.h.b16 %v986
    %v6131 = vunpack.c.l.b16 %v987
    %v6132 = vunpack.c.h.b16 %v987
    %v6133 = vunpack.c.l.b16 %v988
    %v6134 = vunpack.c.h.b16 %v988
    %v6135 = vunpack.c.l.b16 %v989
    %v6136 = vunpack.c.h.b16 %v989
    %v6137 = vunpack.c.l.b16 %v990
    %v6138 = vunpack.c.h.b16 %v990
    %v6139 = vunpack.c.l.b16 %v991
    %v6140 = vunpack.c.h.b16 %v991
    %v6141 = vunpack.c.l.b16 %v992
    %v6142 = vunpack.c.h.b16 %v992
    %v6143 = vunpack.c.l.b16 %v993
    %v6144 = vunpack.c.h.b16 %v993
    %v6145 = vunpack.c.l.b16 %v994
    %v6146 = vunpack.c.h.b16 %v994
    %v6147 = vunpack.c.l.b16 %v995
    %v6148 = vunpack.c.h.b16 %v995
    %v6149 = vunpack.c.l.b16 %v996
    %v6150 = vunpack.c.h.b16 %v996
    %v6151 = vunpack.c.l.b16 %v997
    %v6152 = vunpack.c.h.b16 %v997
    %v6153 = vunpack.c.l.b16 %v998
    %v6154 = vunpack.c.h.b16 %v998
    %v6155 = vunpack.c.l.b16 %v999
    %v6156 = vunpack.c.h.b16 %v999
    %v6157 = vunpack.c.l.b16 %v1000
    %v6158 = vunpack.c.h.b16 %v1000
    %v6159 = vunpack.c.l.b16 %v1001
    %v6160 = vunpack.c.h.b16 %v1001
    %v6161 = vunpack.c.l.b16 %v1002
    %v6162 = vunpack.c.h.b16 %v1002
    %v6163 = vunpack.c.l.b16 %v1003
    %v6164 = vunpack.c.h.b16 %v1003
    %v6165 = vunpack.c.l.b16 %v1004
    %v6166 = vunpack.c.h.b16 %v1004
    %v6167 = vunpack.c.l.b16 %v1005
    %v6168 = vunpack.c.h.b16 %v1005
    %v6169 = vunpack.c.l.b16 %v1006
    %v6170 = vunpack.c.h.b16 %v1006
    %v6171 = vunpack.c.l.b16 %v1007
    %v6172 = vunpack.c.h.b16 %v1007
    %v6173 = vunpack.c.l.b16 %v1008
    %v6174 = vunpack.c.h.b16 %v1008
    %v6175 = vunpack.c.l.b16 %v1009
    %v6176 = vunpack.c.h.b16 %v1009
    %v6177 = vunpack.c.l.b16 %v1010
    %v6178 = vunpack.c.h.b16 %v1010
    %v6179 = vunpack.c.l.b16 %v1011
    %v6180 = vunpack.c.h.b16 %v1011
    %v6181 = vunpack.c.l.b16 %v1012
    %v6182 = vunpack.c.h.b16 %v1012
    %v6183 = vunpack.c.l.b16 %v1013
    %v6184 = vunpack.c.h.b16 %v1013
    %v6185 = vunpack.c.l.b16 %v1014
    %v6186 = vunpack.c.h.b16 %v1014
    %v6187 = vunpack.c.l.b16 %v1015
    %v6188 = vunpack.c.h.b16 %v1015
    %v6189 = vunpack.c.l.b16 %v1016
    %v6190 = vunpack.c.h.b16 %v1016
    %v6191 = vunpack.c.l.b16 %v1017
    %v6192 = vunpack.c.h.b16 %v1017
    %v6193 = vunpack.c.l.b16 %v1018
    %v6194 = vunpack.c.h.b16 %v1018
    %v6195 = vunpack.c.l.b16 %v1019
    %v6196 = vunpack.c.h.b16 %v1019
    %v6197 = vunpack.c.l.b16 %v1020
    %v6198 = vunpack.c.h.b16 %v1020
    %v6199 = vunpack.c.l.b16 %v1021
    %v6200 = vunpack.c.h.b16 %v1021
    %v6201 = vunpack.c.l.b16 %v1022
    %v6202 = vunpack.c.h.b16 %v1022
    %v6203 = vunpack.c.l.b16 %v1023
    %v6204 = vunpack.c.h.b16 %v1023
    %v6205 = vunpack.c.l.b16 %v1024
    %v6206 = vunpack.c.h.b16 %v1024
    %v6207 = vunpack.c.l.b16 %v1025
    %v6208 = vunpack.c.h.b16 %v1025
    %v6209 = vunpack.c.l.b16 %v1026
    %v6210 = vunpack.c.h.b16 %v1026
    %v6211 = vunpack.c.l.b16 %v1027
    %v6212 = vunpack.c.h.b16 %v1027
    %v6213 = vunpack.c.l.b16 %v1028
    %v6214 = vunpack.c.h.b16 %v1028
    %v6215 = vunpack.c.l.b16 %v1029
    %v6216 = vunpack.c.h.b16 %v1029
    %v6217 = vunpack.c.l.b16 %v1030
    %v6218 = vunpack.c.h.b16 %v1030
    %v6219 = vunpack.c.l.b16 %v1031
    %v6220 = vunpack.c.h.b16 %v1031
    %v6221 = vunpack.c.l.b16 %v1032
    %v6222 = vunpack.c.h.b16 %v1032
    %v6223 = vunpack.c.l.b16 %v1033
    %v6224 = vunpack.c.h.b16 %v1033
    %v6225 = vunpack.c.l.b16 %v1034
    %v6226 = vunpack.c.h.b16 %v1034
    %v6227 = vunpack.c.l.b16 %v1035
    %v6228 = vunpack.c.h.b16 %v1035
    %v6229 = vunpack.c.l.b16 %v1036
    %v6230 = vunpack.c.h.b16 %v1036
    %v6231 = vunpack.c.l.b16 %v1037
    %v6232 = vunpack.c.h.b16 %v1037
    %v6233 = vunpack.c.l.b16 %v1038
    %v6234 = vunpack.c.h.b16 %v1038
    %v6235 = vunpack.c.l.b16 %v1039
    %v6236 = vunpack.c.h.b16 %v1039
    %v6237 = vunpack.c.l.b16 %v1040
    %v6238 = vunpack.c.h.b16 %v1040
    %v6239 = vunpack.c.l.b16 %v1041
    %v6240 = vunpack.c.h.b16 %v1041
    %v6241 = vunpack.c.l.b16 %v1042
    %v6242 = vunpack.c.h.b16 %v1042
    %v6243 = vunpack.c.l.b16 %v1043
    %v6244 = vunpack.c.h.b16 %v1043
    %v6245 = vunpack.c.l.b16 %v1044
    %v6246 = vunpack.c.h.b16 %v1044
    %v6247 = vunpack.c.l.b16 %v1045
    %v6248 = vunpack.c.h.b16 %v1045
    %v6249 = vunpack.c.l.b16 %v1046
    %v6250 = vunpack.c.h.b16 %v1046
    %v6251 = vunpack.c.l.b16 %v1047
    %v6252 = vunpack.c.h.b16 %v1047
    %v6253 = vunpack.c.l.b16 %v1048
    %v6254 = vunpack.c.h.b16 %v1048
    %v6255 = vunpack.c.l.b16 %v1049
    %v6256 = vunpack.c.h.b16 %v1049
    %v6257 = vunpack.c.l.b16 %v1050
    %v6258 = vunpack.c.h.b16 %v1050
    %v6259 = vunpack.c.l.b16 %v1051
    %v6260 = vunpack.c.h.b16 %v1051
    %v6261 = vunpack.c.l.b16 %v1052
    %v6262 = vunpack.c.h.b16 %v1052
    %v6263 = vunpack.c.l.b16 %v1053
    %v6264 = vunpack.c.h.b16 %v1053
    %v6265 = vunpack.c.l.b16 %v1054
    %v6266 = vunpack.c.h.b16 %v1054
    %v6267 = vunpack.c.l.b16 %v1055
    %v6268 = vunpack.c.h.b16 %v1055
    %v6269 = vunpack.c.l.b16 %v1056
    %v6270 = vunpack.c.h.b16 %v1056
    %v6271 = vunpack.c.l.b16 %v1057
    %v6272 = vunpack.c.h.b16 %v1057
    %v6273 = vunpack.c.l.b16 %v1058
    %v6274 = vunpack.c.h.b16 %v1058
    %v6275 = vunpack.c.l.b16 %v1059
    %v6276 = vunpack.c.h.b16 %v1059
    %v6277 = vunpack.c.l.b16 %v1060
    %v6278 = vunpack.c.h.b16 %v1060
    %v6279 = vunpack.c.l.b16 %v1061
    %v6280 = vunpack.c.h.b16 %v1061
    %v6281 = vunpack.c.l.b16 %v1062
    %v6282 = vunpack.c.h.b16 %v1062
    %v6283 = vunpack.c.l.b16 %v1063
    %v6284 = vunpack.c.h.b16 %v1063
    %v6285 = vunpack.c.l.b16 %v1064
    %v6286 = vunpack.c.h.b16 %v1064
    %v6287 = vunpack.c.l.b16 %v1065
    %v6288 = vunpack.c.h.b16 %v1065
    %v6289 = vunpack.c.l.b16 %v1066
    %v6290 = vunpack.c.h.b16 %v1066
    %v6291 = vunpack.c.l.b16 %v1067
    %v6292 = vunpack.c.h.b16 %v1067
    %v6293 = vunpack.c.l.b16 %v1068
    %v6294 = vunpack.c.h.b16 %v1068
    %v6295 = vunpack.c.l.b16 %v1069
    %v6296 = vunpack.c.h.b16 %v1069
    %v6297 = vunpack.c.l.b16 %v1070
    %v6298 = vunpack.c.h.b16 %v1070
    %v6299 = vunpack.c.l.b16 %v1071
    %v6300 = vunpack.c.h.b16 %v1071
    %v6301 = vunpack.c.l.b16 %v1072
    %v6302 = vunpack.c.h.b16 %v1072
    %v6303 = vunpack.c.l.b16 %v1073
    %v6304 = vunpack.c.h.b16 %v1073
    %v6305 = vunpack.c.l.b16 %v1074
    %v6306 = vunpack.c.h.b16 %v1074
    %v6307 = vunpack.c.l.b16 %v1075
    %v6308 = vunpack.c.h.b16 %v1075
    %v6309 = vunpack.c.l.b16 %v1076
    %v6310 = vunpack.c.h.b16 %v1076
    %v6311 = vunpack.c.l.b16 %v1077
    %v6312 = vunpack.c.h.b16 %v1077
    %v6313 = vunpack.c.l.b16 %v1078
    %v6314 = vunpack.c.h.b16 %v1078
    %v6315 = vunpack.c.l.b16 %v1079
    %v6316 = vunpack.c.h.b16 %v1079
    %v6317 = vunpack.c.l.b16 %v1080
    %v6318 = vunpack.c.h.b16 %v1080
    %v6319 = vunpack.c.l.b16 %v1081
    %v6320 = vunpack.c.h.b16 %v1081
    %v6321 = vunpack.c.l.b16 %v1082
    %v6322 = vunpack.c.h.b16 %v1082
    %v6323 = vunpack.c.l.b16 %v1083
    %v6324 = vunpack.c.h.b16 %v1083
    %v6325 = vunpack.c.l.b16 %v1084
    %v6326 = vunpack.c.h.b16 %v1084
    %v6327 = vunpack.c.l.b16 %v1085
    %v6328 = vunpack.c.h.b16 %v1085
    %v6329 = vunpack.c.l.b16 %v1086
    %v6330 = vunpack.c.h.b16 %v1086
    %v6331 = vunpack.c.l.b16 %v1087
    %v6332 = vunpack.c.h.b16 %v1087
    %v6333 = vunpack.c.l.b16 %v1088
    %v6334 = vunpack.c.h.b16 %v1088
    %v6335 = vunpack.c.l.b16 %v1089
    %v6336 = vunpack.c.h.b16 %v1089
    %v6337 = vunpack.c.l.b16 %v1090
    %v6338 = vunpack.c.h.b16 %v1090
    %v6339 = vunpack.c.l.b16 %v1091
    %v6340 = vunpack.c.h.b16 %v1091
    %v6341 = vunpack.c.l.b16 %v1092
    %v6342 = vunpack.c.h.b16 %v1092
    %v6343 = vunpack.c.l.b16 %v1093
    %v6344 = vunpack.c.h.b16 %v1093
    %v6345 = vunpack.c.l.b16 %v1094
    %v6346 = vunpack.c.h.b16 %v1094
    %v6347 = vunpack.c.l.b16 %v1095
    %v6348 = vunpack.c.h.b16 %v1095
    %v6349 = vunpack.c.l.b16 %v1096
    %v6350 = vunpack.c.h.b16 %v1096
    %v6351 = vunpack.c.l.b16 %v1097
    %v6352 = vunpack.c.h.b16 %v1097
    %v6353 = vunpack.c.l.b16 %v1098
    %v6354 = vunpack.c.h.b16 %v1098
    %v6355 = vunpack.c.l.b16 %v1099
    %v6356 = vunpack.c.h.b16 %v1099
    %v6357 = vunpack.c.l.b16 %v1100
    %v6358 = vunpack.c.h.b16 %v1100
    %v6359 = vunpack.c.l.b16 %v1101
    %v6360 = vunpack.c.h.b16 %v1101
    %v6361 = vunpack.c.l.b16 %v1102
    %v6362 = vunpack.c.h.b16 %v1102
    %v6363 = vunpack.c.l.b16 %v1103
    %v6364 = vunpack.c.h.b16 %v1103
    %v6365 = vunpack.c.l.b16 %v1104
    %v6366 = vunpack.c.h.b16 %v1104
    %v6367 = vunpack.c.l.b16 %v1105
    %v6368 = vunpack.c.h.b16 %v1105
    %v6369 = vunpack.c.l.b16 %v1106
    %v6370 = vunpack.c.h.b16 %v1106
    %v6371 = vunpack.c.l.b16 %v1107
    %v6372 = vunpack.c.h.b16 %v1107
    %v6373 = vunpack.c.l.b16 %v1108
    %v6374 = vunpack.c.h.b16 %v1108
    %v6375 = vunpack.c.l.b16 %v1109
    %v6376 = vunpack.c.h.b16 %v1109
    %v6377 = vunpack.c.l.b16 %v1110
    %v6378 = vunpack.c.h.b16 %v1110
    %v6379 = vunpack.c.l.b16 %v1111
    %v6380 = vunpack.c.h.b16 %v1111
    %v6381 = vunpack.c.l.b16 %v1112
    %v6382 = vunpack.c.h.b16 %v1112
    %v6383 = vunpack.c.l.b16 %v1113
    %v6384 = vunpack.c.h.b16 %v1113
    %v6385 = vunpack.c.l.b16 %v1114
    %v6386 = vunpack.c.h.b16 %v1114
    %v6387 = vunpack.c.l.b16 %v1115
    %v6388 = vunpack.c.h.b16 %v1115
    %v6389 = vunpack.c.l.b16 %v1116
    %v6390 = vunpack.c.h.b16 %v1116
    %v6391 = vunpack.c.l.b16 %v1117
    %v6392 = vunpack.c.h.b16 %v1117
    %v6393 = vunpack.c.l.b16 %v1118
    %v6394 = vunpack.c.h.b16 %v1118
    %v6395 = vunpack.c.l.b16 %v1119
    %v6396 = vunpack.c.h.b16 %v1119
    %v6397 = vunpack.c.l.b16 %v1120
    %v6398 = vunpack.c.h.b16 %v1120
    %v6399 = vunpack.c.l.b16 %v1121
    %v6400 = vunpack.c.h.b16 %v1121
    %v6401 = vunpack.c.l.b16 %v1122
    %v6402 = vunpack.c.h.b16 %v1122
    %v6403 = vunpack.c.l.b16 %v1123
    %v6404 = vunpack.c.h.b16 %v1123
    %v6405 = vunpack.c.l.b16 %v1124
    %v6406 = vunpack.c.h.b16 %v1124
    %v6407 = vunpack.c.l.b16 %v1125
    %v6408 = vunpack.c.h.b16 %v1125
    %v6409 = vunpack.c.l.b16 %v1126
    %v6410 = vunpack.c.h.b16 %v1126
    %v6411 = vunpack.c.l.b16 %v1127
    %v6412 = vunpack.c.h.b16 %v1127
    %v6413 = vunpack.c.l.b16 %v1128
    %v6414 = vunpack.c.h.b16 %v1128
    %v6415 = vunpack.c.l.b16 %v1129
    %v6416 = vunpack.c.h.b16 %v1129
    %v6417 = vunpack.c.l.b16 %v1130
    %v6418 = vunpack.c.h.b16 %v1130
    %v6419 = vunpack.c.l.b16 %v1131
    %v6420 = vunpack.c.h.b16 %v1131
    %v6421 = vunpack.c.l.b16 %v1132
    %v6422 = vunpack.c.h.b16 %v1132
    %v6423 = vunpack.c.l.b16 %v1133
    %v6424 = vunpack.c.h.b16 %v1133
    %v6425 = vunpack.c.l.b16 %v1134
    %v6426 = vunpack.c.h.b16 %v1134
    %v6427 = vunpack.c.l.b16 %v1135
    %v6428 = vunpack.c.h.b16 %v1135
    %v6429 = vunpack.c.l.b16 %v1136
    %v6430 = vunpack.c.h.b16 %v1136
    %v6431 = vunpack.c.l.b16 %v1137
    %v6432 = vunpack.c.h.b16 %v1137
    %v6433 = vunpack.c.l.b16 %v1138
    %v6434 = vunpack.c.h.b16 %v1138
    %v6435 = vunpack.c.l.b16 %v1139
    %v6436 = vunpack.c.h.b16 %v1139
    %v6437 = vunpack.c.l.b16 %v1140
    %v6438 = vunpack.c.h.b16 %v1140
    %v6439 = vunpack.c.l.b16 %v1141
    %v6440 = vunpack.c.h.b16 %v1141
    %v6441 = vunpack.c.l.b16 %v1142
    %v6442 = vunpack.c.h.b16 %v1142
    %v6443 = vunpack.c.l.b16 %v1143
    %v6444 = vunpack.c.h.b16 %v1143
    %v6445 = vunpack.c.l.b16 %v1144
    %v6446 = vunpack.c.h.b16 %v1144
    %v6447 = vunpack.c.l.b16 %v1145
    %v6448 = vunpack.c.h.b16 %v1145
    %v6449 = vunpack.c.l.b16 %v1146
    %v6450 = vunpack.c.h.b16 %v1146
    %v6451 = vunpack.c.l.b16 %v1147
    %v6452 = vunpack.c.h.b16 %v1147
    %v6453 = vunpack.c.l.b16 %v1148
    %v6454 = vunpack.c.h.b16 %v1148
    %v6455 = vunpack.c.l.b16 %v1149
    %v6456 = vunpack.c.h.b16 %v1149
    %v6457 = vunpack.c.l.b16 %v1150
    %v6458 = vunpack.c.h.b16 %v1150
    %v6459 = vunpack.c.l.b16 %v1151
    %v6460 = vunpack.c.h.b16 %v1151
    %v6461 = vunpack.c.l.b16 %v1152
    %v6462 = vunpack.c.h.b16 %v1152
    %v6463 = vunpack.c.l.b16 %v1153
    %v6464 = vunpack.c.h.b16 %v1153
    %v6465 = vunpack.c.l.b16 %v1154
    %v6466 = vunpack.c.h.b16 %v1154
    %v6467 = vunpack.c.l.b16 %v1155
    %v6468 = vunpack.c.h.b16 %v1155
    %v6469 = vunpack.c.l.b16 %v1156
    %v6470 = vunpack.c.h.b16 %v1156
    %v6471 = vunpack.c.l.b16 %v1157
    %v6472 = vunpack.c.h.b16 %v1157
    %v6473 = vunpack.c.l.b16 %v1158
    %v6474 = vunpack.c.h.b16 %v1158
    %v6475 = vunpack.c.l.b16 %v1159
    %v6476 = vunpack.c.h.b16 %v1159
    %v6477 = vunpack.c.l.b16 %v1160
    %v6478 = vunpack.c.h.b16 %v1160
    %v6479 = vunpack.c.l.b16 %v1161
    %v6480 = vunpack.c.h.b16 %v1161
    %v6481 = vunpack.c.l.b16 %v1162
    %v6482 = vunpack.c.h.b16 %v1162
    %v6483 = vunpack.c.l.b16 %v1163
    %v6484 = vunpack.c.h.b16 %v1163
    %v6485 = vunpack.c.l.b16 %v1164
    %v6486 = vunpack.c.h.b16 %v1164
    %v6487 = vunpack.c.l.b16 %v1165
    %v6488 = vunpack.c.h.b16 %v1165
    %v6489 = vunpack.c.l.b16 %v1166
    %v6490 = vunpack.c.h.b16 %v1166
    %v6491 = vunpack.c.l.b16 %v1167
    %v6492 = vunpack.c.h.b16 %v1167
    %v6493 = vunpack.c.l.b16 %v1168
    %v6494 = vunpack.c.h.b16 %v1168
    %v6495 = vunpack.c.l.b16 %v1169
    %v6496 = vunpack.c.h.b16 %v1169
    %v6497 = vunpack.c.l.b16 %v1170
    %v6498 = vunpack.c.h.b16 %v1170
    %v6499 = vunpack.c.l.b16 %v1171
    %v6500 = vunpack.c.h.b16 %v1171
    %v6501 = vunpack.c.l.b16 %v1172
    %v6502 = vunpack.c.h.b16 %v1172
    %v6503 = vunpack.c.l.b16 %v1173
    %v6504 = vunpack.c.h.b16 %v1173
    %v6505 = vunpack.c.l.b16 %v1174
    %v6506 = vunpack.c.h.b16 %v1174
    %v6507 = vunpack.c.l.b16 %v1175
    %v6508 = vunpack.c.h.b16 %v1175
    %v6509 = vunpack.c.l.b16 %v1176
    %v6510 = vunpack.c.h.b16 %v1176
    %v6511 = vunpack.c.l.b16 %v1177
    %v6512 = vunpack.c.h.b16 %v1177
    %v6513 = vunpack.c.l.b16 %v1178
    %v6514 = vunpack.c.h.b16 %v1178
    %v6515 = vunpack.c.l.b16 %v1179
    %v6516 = vunpack.c.h.b16 %v1179
    %v6517 = vunpack.c.l.b16 %v1180
    %v6518 = vunpack.c.h.b16 %v1180
    %v6519 = vunpack.c.l.b16 %v1181
    %v6520 = vunpack.c.h.b16 %v1181
    %v6521 = vunpack.c.l.b16 %v1182
    %v6522 = vunpack.c.h.b16 %v1182
    %v6523 = vunpack.c.l.b16 %v1183
    %v6524 = vunpack.c.h.b16 %v1183
    %v6525 = vunpack.c.l.b16 %v1184
    %v6526 = vunpack.c.h.b16 %v1184
    %v6527 = vunpack.c.l.b16 %v1185
    %v6528 = vunpack.c.h.b16 %v1185
    %v6529 = vunpack.c.l.b16 %v1186
    %v6530 = vunpack.c.h.b16 %v1186
    %v6531 = vunpack.c.l.b16 %v1187
    %v6532 = vunpack.c.h.b16 %v1187
    %v6533 = vunpack.c.l.b16 %v1188
    %v6534 = vunpack.c.h.b16 %v1188
    %v6535 = vunpack.c.l.b16 %v1189
    %v6536 = vunpack.c.h.b16 %v1189
    %v6537 = vunpack.c.l.b16 %v1190
    %v6538 = vunpack.c.h.b16 %v1190
    %v6539 = vunpack.c.l.b16 %v1191
    %v6540 = vunpack.c.h.b16 %v1191
    %v6541 = vunpack.c.l.b16 %v1192
    %v6542 = vunpack.c.h.b16 %v1192
    %v6543 = vunpack.c.l.b16 %v1193
    %v6544 = vunpack.c.h.b16 %v1193
    %v6545 = vunpack.c.l.b16 %v1194
    %v6546 = vunpack.c.h.b16 %v1194
    %v6547 = vunpack.c.l.b16 %v1195
    %v6548 = vunpack.c.h.b16 %v1195
    %v6549 = vunpack.c.l.b16 %v1196
    %v6550 = vunpack.c.h.b16 %v1196
    %v6551 = vunpack.c.l.b16 %v1197
    %v6552 = vunpack.c.h.b16 %v1197
    %v6553 = vunpack.c.l.b16 %v1198
    %v6554 = vunpack.c.h.b16 %v1198
    %v6555 = vunpack.c.l.b16 %v1199
    %v6556 = vunpack.c.h.b16 %v1199
    %v6557 = vunpack.c.l.b16 %v1200
    %v6558 = vunpack.c.h.b16 %v1200
    %v6559 = vunpack.c.l.b16 %v1201
    %v6560 = vunpack.c.h.b16 %v1201
    %v6561 = vunpack.c.l.b16 %v1202
    %v6562 = vunpack.c.h.b16 %v1202
    %v6563 = vunpack.c.l.b16 %v1203
    %v6564 = vunpack.c.h.b16 %v1203
    %v6565 = vunpack.c.l.b16 %v1204
    %v6566 = vunpack.c.h.b16 %v1204
    %v6567 = vunpack.c.l.b16 %v1205
    %v6568 = vunpack.c.h.b16 %v1205
    %v6569 = vunpack.c.l.b16 %v1206
    %v6570 = vunpack.c.h.b16 %v1206
    %v6571 = vunpack.c.l.b16 %v1207
    %v6572 = vunpack.c.h.b16 %v1207
    %v6573 = vunpack.c.l.b16 %v1208
    %v6574 = vunpack.c.h.b16 %v1208
    %v6575 = vunpack.c.l.b16 %v1209
    %v6576 = vunpack.c.h.b16 %v1209
    %v6577 = vunpack.c.l.b16 %v1210
    %v6578 = vunpack.c.h.b16 %v1210
    %v6579 = vunpack.c.l.b16 %v1211
    %v6580 = vunpack.c.h.b16 %v1211
    %v6581 = vunpack.c.l.b16 %v1212
    %v6582 = vunpack.c.h.b16 %v1212
    %v6583 = vunpack.c.l.b16 %v1213
    %v6584 = vunpack.c.h.b16 %v1213
    %v6585 = vunpack.c.l.b16 %v1214
    %v6586 = vunpack.c.h.b16 %v1214
    %v6587 = vunpack.c.l.b16 %v1215
    %v6588 = vunpack.c.h.b16 %v1215
    %v6589 = vunpack.c.l.b16 %v1216
    %v6590 = vunpack.c.h.b16 %v1216
    %v6591 = vunpack.c.l.b16 %v1217
    %v6592 = vunpack.c.h.b16 %v1217
    %v6593 = vunpack.c.l.b16 %v1218
    %v6594 = vunpack.c.h.b16 %v1218
    %v6595 = vunpack.c.l.b16 %v1219
    %v6596 = vunpack.c.h.b16 %v1219
    %v6597 = vunpack.c.l.b16 %v1220
    %v6598 = vunpack.c.h.b16 %v1220
    %v6599 = vunpack.c.l.b16 %v1221
    %v6600 = vunpack.c.h.b16 %v1221
    %v6601 = vunpack.c.l.b16 %v1222
    %v6602 = vunpack.c.h.b16 %v1222
    %v6603 = vunpack.c.l.b16 %v1223
    %v6604 = vunpack.c.h.b16 %v1223
    %v6605 = vunpack.c.l.b16 %v1224
    %v6606 = vunpack.c.h.b16 %v1224
    %v6607 = vunpack.c.l.b16 %v1225
    %v6608 = vunpack.c.h.b16 %v1225
    %v6609 = vunpack.c.l.b16 %v1226
    %v6610 = vunpack.c.h.b16 %v1226
    %v6611 = vunpack.c.l.b16 %v1227
    %v6612 = vunpack.c.h.b16 %v1227
    %v6613 = vunpack.c.l.b16 %v1228
    %v6614 = vunpack.c.h.b16 %v1228
    %v6615 = vunpack.c.l.b16 %v1229
    %v6616 = vunpack.c.h.b16 %v1229
    %v6617 = vunpack.c.l.b16 %v1230
    %v6618 = vunpack.c.h.b16 %v1230
    %v6619 = vunpack.c.l.b16 %v1231
    %v6620 = vunpack.c.h.b16 %v1231
    %v6621 = vunpack.c.l.b16 %v1232
    %v6622 = vunpack.c.h.b16 %v1232
    %v6623 = vunpack.c.l.b16 %v1233
    %v6624 = vunpack.c.h.b16 %v1233
    %v6625 = vunpack.c.l.b16 %v1234
    %v6626 = vunpack.c.h.b16 %v1234
    %v6627 = vunpack.c.l.b16 %v1235
    %v6628 = vunpack.c.h.b16 %v1235
    %v6629 = vunpack.c.l.b16 %v1236
    %v6630 = vunpack.c.h.b16 %v1236
    %v6631 = vunpack.c.l.b16 %v1237
    %v6632 = vunpack.c.h.b16 %v1237
    %v6633 = vunpack.c.l.b16 %v1238
    %v6634 = vunpack.c.h.b16 %v1238
    %v6635 = vunpack.c.l.b16 %v1239
    %v6636 = vunpack.c.h.b16 %v1239
    %v6637 = vunpack.c.l.b16 %v1240
    %v6638 = vunpack.c.h.b16 %v1240
    %v6639 = vunpack.c.l.b16 %v1241
    %v6640 = vunpack.c.h.b16 %v1241
    %v6641 = vunpack.c.l.b16 %v1242
    %v6642 = vunpack.c.h.b16 %v1242
    %v6643 = vunpack.c.l.b16 %v1243
    %v6644 = vunpack.c.h.b16 %v1243
    %v6645 = vunpack.c.l.b16 %v1244
    %v6646 = vunpack.c.h.b16 %v1244
    %v6647 = vunpack.c.l.b16 %v1245
    %v6648 = vunpack.c.h.b16 %v1245
    %v6649 = vunpack.c.l.b16 %v1246
    %v6650 = vunpack.c.h.b16 %v1246
    %v6651 = vunpack.c.l.b16 %v1247
    %v6652 = vunpack.c.h.b16 %v1247
    %v6653 = vunpack.c.l.b16 %v1248
    %v6654 = vunpack.c.h.b16 %v1248
    %v6655 = vunpack.c.l.b16 %v1249
    %v6656 = vunpack.c.h.b16 %v1249
    %v6657 = vunpack.c.l.b16 %v1250
    %v6658 = vunpack.c.h.b16 %v1250
    %v6659 = vunpack.c.l.b16 %v1251
    %v6660 = vunpack.c.h.b16 %v1251
    %v6661 = vunpack.c.l.b16 %v1252
    %v6662 = vunpack.c.h.b16 %v1252
    %v6663 = vunpack.c.l.b16 %v1253
    %v6664 = vunpack.c.h.b16 %v1253
    %v6665 = vunpack.c.l.b16 %v1254
    %v6666 = vunpack.c.h.b16 %v1254
    %v6667 = vunpack.c.l.b16 %v1255
    %v6668 = vunpack.c.h.b16 %v1255
    %v6669 = vunpack.c.l.b16 %v1256
    %v6670 = vunpack.c.h.b16 %v1256
    %v6671 = vunpack.c.l.b16 %v1257
    %v6672 = vunpack.c.h.b16 %v1257
    %v6673 = vunpack.c.l.b16 %v1258
    %v6674 = vunpack.c.h.b16 %v1258
    %v6675 = vunpack.c.l.b16 %v1259
    %v6676 = vunpack.c.h.b16 %v1259
    %v6677 = vunpack.c.l.b16 %v1260
    %v6678 = vunpack.c.h.b16 %v1260
    %v6679 = vunpack.c.l.b16 %v1261
    %v6680 = vunpack.c.h.b16 %v1261
    %v6681 = vunpack.c.l.b16 %v1262
    %v6682 = vunpack.c.h.b16 %v1262
    %v6683 = vunpack.c.l.b16 %v1263
    %v6684 = vunpack.c.h.b16 %v1263
    %v6685 = vunpack.c.l.b16 %v1264
    %v6686 = vunpack.c.h.b16 %v1264
    %v6687 = vunpack.c.l.b16 %v1265
    %v6688 = vunpack.c.h.b16 %v1265
    %v6689 = vunpack.c.l.b16 %v1266
    %v6690 = vunpack.c.h.b16 %v1266
    %v6691 = vunpack.c.l.b16 %v1267
    %v6692 = vunpack.c.h.b16 %v1267
    %v6693 = vunpack.c.l.b16 %v1268
    %v6694 = vunpack.c.h.b16 %v1268
    %v6695 = vunpack.c.l.b16 %v1269
    %v6696 = vunpack.c.h.b16 %v1269
    %v6697 = vunpack.c.l.b16 %v1270
    %v6698 = vunpack.c.h.b16 %v1270
    %v6699 = vunpack.c.l.b16 %v1271
    %v6700 = vunpack.c.h.b16 %v1271
    %v6701 = vunpack.c.l.b16 %v1272
    %v6702 = vunpack.c.h.b16 %v1272
    %v6703 = vunpack.c.l.b16 %v1273
    %v6704 = vunpack.c.h.b16 %v1273
    %v6705 = vunpack.c.l.b16 %v1274
    %v6706 = vunpack.c.h.b16 %v1274
    %v6707 = vunpack.c.l.b16 %v1275
    %v6708 = vunpack.c.h.b16 %v1275
    %v6709 = vunpack.c.l.b16 %v1276
    %v6710 = vunpack.c.h.b16 %v1276
    %v6711 = vunpack.c.l.b16 %v1277
    %v6712 = vunpack.c.h.b16 %v1277
    %v6713 = vunpack.c.l.b16 %v1278
    %v6714 = vunpack.c.h.b16 %v1278
    %v6715 = vunpack.c.l.b16 %v1279
    %v6716 = vunpack.c.h.b16 %v1279
    %v6717 = vunpack.c.l.b16 %v1280
    %v6718 = vunpack.c.h.b16 %v1280
    %v6719 = vunpack.c.l.b16 %v1281
    %v6720 = vunpack.c.h.b16 %v1281
    %v6721 = vunpack.c.l.b16 %v1282
    %v6722 = vunpack.c.h.b16 %v1282
    %v6723 = vunpack.c.l.b16 %v1283
    %v6724 = vunpack.c.h.b16 %v1283
    %v6725 = vunpack.c.l.b16 %v1284
    %v6726 = vunpack.c.h.b16 %v1284
    %v6727 = vunpack.c.l.b16 %v1285
    %v6728 = vunpack.c.h.b16 %v1285
    %v6729 = vunpack.c.l.b16 %v1286
    %v6730 = vunpack.c.h.b16 %v1286
    %v6731 = vunpack.c.l.b16 %v1287
    %v6732 = vunpack.c.h.b16 %v1287
    %v6733 = vunpack.c.l.b16 %v1288
    %v6734 = vunpack.c.h.b16 %v1288
    %v6735 = vunpack.c.l.b16 %v1289
    %v6736 = vunpack.c.h.b16 %v1289
    %v6737 = vunpack.c.l.b16 %v1290
    %v6738 = vunpack.c.h.b16 %v1290
    %v6739 = vunpack.c.l.b16 %v1291
    %v6740 = vunpack.c.h.b16 %v1291
    %v6741 = vunpack.c.l.b16 %v1292
    %v6742 = vunpack.c.h.b16 %v1292
    %v6743 = vunpack.c.l.b16 %v1293
    %v6744 = vunpack.c.h.b16 %v1293
    %v6745 = vunpack.c.l.b16 %v1294
    %v6746 = vunpack.c.h.b16 %v1294
    %v6747 = vunpack.c.l.b16 %v1295
    %v6748 = vunpack.c.h.b16 %v1295
    %v6749 = vunpack.c.l.b16 %v1296
    %v6750 = vunpack.c.h.b16 %v1296
    %v6751 = vunpack.c.l.b16 %v1297
    %v6752 = vunpack.c.h.b16 %v1297
    %v6753 = vunpack.c.l.b16 %v1298
    %v6754 = vunpack.c.h.b16 %v1298
    %v6755 = vunpack.c.l.b16 %v1299
    %v6756 = vunpack.c.h.b16 %v1299
    %v6757 = vunpack.c.l.b16 %v1300
    %v6758 = vunpack.c.h.b16 %v1300
    %v6759 = vunpack.c.l.b16 %v1301
    %v6760 = vunpack.c.h.b16 %v1301
    %v6761 = vunpack.c.l.b16 %v1302
    %v6762 = vunpack.c.h.b16 %v1302
    %v6763 = vunpack.c.l.b16 %v1303
    %v6764 = vunpack.c.h.b16 %v1303
    %v6765 = vunpack.c.l.b16 %v1304
    %v6766 = vunpack.c.h.b16 %v1304
    %v6767 = vunpack.c.l.b16 %v1305
    %v6768 = vunpack.c.h.b16 %v1305
    %v6769 = vunpack.c.l.b16 %v1306
    %v6770 = vunpack.c.h.b16 %v1306
    %v6771 = vunpack.c.l.b16 %v1307
    %v6772 = vunpack.c.h.b16 %v1307
    %v6773 = vunpack.c.l.b16 %v1308
    %v6774 = vunpack.c.h.b16 %v1308
    %v6775 = vunpack.c.l.b16 %v1309
    %v6776 = vunpack.c.h.b16 %v1309
    %v6777 = vunpack.c.l.b16 %v1310
    %v6778 = vunpack.c.h.b16 %v1310
    %v6779 = vunpack.c.l.b16 %v1311
    %v6780 = vunpack.c.h.b16 %v1311
    %v6781 = vunpack.c.l.b16 %v1312
    %v6782 = vunpack.c.h.b16 %v1312
    %v6783 = vunpack.c.l.b16 %v1313
    %v6784 = vunpack.c.h.b16 %v1313
    %v6785 = vunpack.c.l.b16 %v1314
    %v6786 = vunpack.c.h.b16 %v1314
    %v6787 = vunpack.c.l.b16 %v1315
    %v6788 = vunpack.c.h.b16 %v1315
    %v6789 = vunpack.c.l.b16 %v1316
    %v6790 = vunpack.c.h.b16 %v1316
    %v6791 = vunpack.c.l.b16 %v1317
    %v6792 = vunpack.c.h.b16 %v1317
    %v6793 = vunpack.c.l.b16 %v1318
    %v6794 = vunpack.c.h.b16 %v1318
    %v6795 = vunpack.c.l.b16 %v1319
    %v6796 = vunpack.c.h.b16 %v1319
    %v6797 = vunpack.c.l.b16 %v1320
    %v6798 = vunpack.c.h.b16 %v1320
    %v6799 = vunpack.c.l.b16 %v1321
    %v6800 = vunpack.c.h.b16 %v1321
    %v6801 = vunpack.c.l.b16 %v1322
    %v6802 = vunpack.c.h.b16 %v1322
    %v6803 = vunpack.c.l.b16 %v1323
    %v6804 = vunpack.c.h.b16 %v1323
    %v6805 = vunpack.c.l.b16 %v1324
    %v6806 = vunpack.c.h.b16 %v1324
    %v6807 = vunpack.c.l.b16 %v1325
    %v6808 = vunpack.c.h.b16 %v1325
    %v6809 = vunpack.c.l.b16 %v1326
    %v6810 = vunpack.c.h.b16 %v1326
    %v6811 = vunpack.c.l.b16 %v1327
    %v6812 = vunpack.c.h.b16 %v1327
    %v6813 = vunpack.c.l.b16 %v1328
    %v6814 = vunpack.c.h.b16 %v1328
    %v6815 = vunpack.c.l.b16 %v1329
    %v6816 = vunpack.c.h.b16 %v1329
    %v6817 = vunpack.c.l.b16 %v1330
    %v6818 = vunpack.c.h.b16 %v1330
    %v6819 = vunpack.c.l.b16 %v1331
    %v6820 = vunpack.c.h.b16 %v1331
    %v6821 = vunpack.c.l.b16 %v1332
    %v6822 = vunpack.c.h.b16 %v1332
    %v6823 = vunpack.c.l.b16 %v1333
    %v6824 = vunpack.c.h.b16 %v1333
    %v6825 = vunpack.c.l.b16 %v1334
    %v6826 = vunpack.c.h.b16 %v1334
    %v6827 = vunpack.c.l.b16 %v1335
    %v6828 = vunpack.c.h.b16 %v1335
    %v6829 = vunpack.c.l.b16 %v1336
    %v6830 = vunpack.c.h.b16 %v1336
    %v6831 = vunpack.c.l.b16 %v1337
    %v6832 = vunpack.c.h.b16 %v1337
    %v6833 = vunpack.c.l.b16 %v1338
    %v6834 = vunpack.c.h.b16 %v1338
    %v6835 = vunpack.c.l.b16 %v1339
    %v6836 = vunpack.c.h.b16 %v1339
    %v6837 = vunpack.c.l.b16 %v1340
    %v6838 = vunpack.c.h.b16 %v1340
    %v6839 = vunpack.c.l.b16 %v1341
    %v6840 = vunpack.c.h.b16 %v1341
    %v6841 = vunpack.c.l.b16 %v1342
    %v6842 = vunpack.c.h.b16 %v1342
    %v6843 = vunpack.c.l.b16 %v1343
    %v6844 = vunpack.c.h.b16 %v1343
    %v6845 = vunpack.c.l.b16 %v1344
    %v6846 = vunpack.c.h.b16 %v1344
    %v6847 = vunpack.c.l.b16 %v1345
    %v6848 = vunpack.c.h.b16 %v1345
    %v6849 = vunpack.c.l.b16 %v1346
    %v6850 = vunpack.c.h.b16 %v1346
    %v6851 = vunpack.c.l.b16 %v1347
    %v6852 = vunpack.c.h.b16 %v1347
    %v6853 = vunpack.c.l.b16 %v1348
    %v6854 = vunpack.c.h.b16 %v1348
    %v6855 = vunpack.c.l.b16 %v1349
    %v6856 = vunpack.c.h.b16 %v1349
    %v6857 = vunpack.c.l.b16 %v1350
    %v6858 = vunpack.c.h.b16 %v1350
    %v6859 = vunpack.c.l.b16 %v1351
    %v6860 = vunpack.c.h.b16 %v1351
    %v6861 = vunpack.c.l.b16 %v1352
    %v6862 = vunpack.c.h.b16 %v1352
    %v6863 = vunpack.c.l.b16 %v1353
    %v6864 = vunpack.c.h.b16 %v1353
    %v6865 = vunpack.c.l.b16 %v1354
    %v6866 = vunpack.c.h.b16 %v1354
    %v6867 = vunpack.c.l.b16 %v1355
    %v6868 = vunpack.c.h.b16 %v1355
    %v6869 = vunpack.c.l.b16 %v1356
    %v6870 = vunpack.c.h.b16 %v1356
    %v6871 = vunpack.c.l.b16 %v1357
    %v6872 = vunpack.c.h.b16 %v1357
    %v6873 = vunpack.c.l.b16 %v1358
    %v6874 = vunpack.c.h.b16 %v1358
    %v6875 = vunpack.c.l.b16 %v1359
    %v6876 = vunpack.c.h.b16 %v1359
    %v6877 = vunpack.c.l.b16 %v1360
    %v6878 = vunpack.c.h.b16 %v1360
    %v6879 = vunpack.c.l.b16 %v1361
    %v6880 = vunpack.c.h.b16 %v1361
    %v6881 = vunpack.c.l.b16 %v1362
    %v6882 = vunpack.c.h.b16 %v1362
    %v6883 = vunpack.c.l.b16 %v1363
    %v6884 = vunpack.c.h.b16 %v1363
    %v6885 = vunpack.c.l.b16 %v1364
    %v6886 = vunpack.c.h.b16 %v1364
    %v6887 = vunpack.c.l.b16 %v1365
    %v6888 = vunpack.c.h.b16 %v1365
    %v6889 = vunpack.c.l.b16 %v1366
    %v6890 = vunpack.c.h.b16 %v1366
    %v6891 = vunpack.c.l.b16 %v1367
    %v6892 = vunpack.c.h.b16 %v1367
    %v6893 = vunpack.c.l.b16 %v1368
    %v6894 = vunpack.c.h.b16 %v1368
    %v6895 = vunpack.c.l.b16 %v1369
    %v6896 = vunpack.c.h.b16 %v1369
    %v6897 = vunpack.c.l.b16 %v1370
    %v6898 = vunpack.c.h.b16 %v1370
    %v6899 = vunpack.c.l.b16 %v1371
    %v6900 = vunpack.c.h.b16 %v1371
    %v6901 = vunpack.c.l.b16 %v1372
    %v6902 = vunpack.c.h.b16 %v1372
    %v6903 = vunpack.c.l.b16 %v1373
    %v6904 = vunpack.c.h.b16 %v1373
    %v6905 = vunpack.c.l.b16 %v1374
    %v6906 = vunpack.c.h.b16 %v1374
    %v6907 = vunpack.c.l.b16 %v1375
    %v6908 = vunpack.c.h.b16 %v1375
    %v6909 = vunpack.c.l.b16 %v1376
    %v6910 = vunpack.c.h.b16 %v1376
    %v6911 = vunpack.c.l.b16 %v1377
    %v6912 = vunpack.c.h.b16 %v1377
    %v6913 = vunpack.c.l.b16 %v1378
    %v6914 = vunpack.c.h.b16 %v1378
    %v6915 = vunpack.c.l.b16 %v1379
    %v6916 = vunpack.c.h.b16 %v1379
    %v6917 = vunpack.c.l.b16 %v1380
    %v6918 = vunpack.c.h.b16 %v1380
    %v6919 = vunpack.c.l.b16 %v1381
    %v6920 = vunpack.c.h.b16 %v1381
    %v6921 = vunpack.c.l.b16 %v1382
    %v6922 = vunpack.c.h.b16 %v1382
    %v6923 = vunpack.c.l.b16 %v1383
    %v6924 = vunpack.c.h.b16 %v1383
    %v6925 = vunpack.c.l.b16 %v1384
    %v6926 = vunpack.c.h.b16 %v1384
    %v6927 = vunpack.c.l.b16 %v1385
    %v6928 = vunpack.c.h.b16 %v1385
    %v6929 = vunpack.c.l.b16 %v1386
    %v6930 = vunpack.c.h.b16 %v1386
    %v6931 = vunpack.c.l.b16 %v1387
    %v6932 = vunpack.c.h.b16 %v1387
    %v6933 = vunpack.c.l.b16 %v1388
    %v6934 = vunpack.c.h.b16 %v1388
    %v6935 = vunpack.c.l.b16 %v1389
    %v6936 = vunpack.c.h.b16 %v1389
    %v6937 = vunpack.c.l.b16 %v1390
    %v6938 = vunpack.c.h.b16 %v1390
    %v6939 = vunpack.c.l.b16 %v1391
    %v6940 = vunpack.c.h.b16 %v1391
    %v6941 = vunpack.c.l.b16 %v1392
    %v6942 = vunpack.c.h.b16 %v1392
    %v6943 = vunpack.c.l.b16 %v1393
    %v6944 = vunpack.c.h.b16 %v1393
    %v6945 = vunpack.c.l.b16 %v1394
    %v6946 = vunpack.c.h.b16 %v1394
    %v6947 = vunpack.c.l.b16 %v1395
    %v6948 = vunpack.c.h.b16 %v1395
    %v6949 = vunpack.c.l.b16 %v1396
    %v6950 = vunpack.c.h.b16 %v1396
    %v6951 = vunpack.c.l.b16 %v1397
    %v6952 = vunpack.c.h.b16 %v1397
    %v6953 = vunpack.c.l.b16 %v1398
    %v6954 = vunpack.c.h.b16 %v1398
    %v6955 = vunpack.c.l.b16 %v1399
    %v6956 = vunpack.c.h.b16 %v1399
    %v6957 = vunpack.c.l.b16 %v1400
    %v6958 = vunpack.c.h.b16 %v1400
    %v6959 = vunpack.c.l.b16 %v1401
    %v6960 = vunpack.c.h.b16 %v1401
    %v6961 = vunpack.c.l.b16 %v1402
    %v6962 = vunpack.c.h.b16 %v1402
    %v6963 = vunpack.c.l.b16 %v1403
    %v6964 = vunpack.c.h.b16 %v1403
    %v6965 = vunpack.c.l.b16 %v1404
    %v6966 = vunpack.c.h.b16 %v1404
    %v6967 = vunpack.c.l.b16 %v1405
    %v6968 = vunpack.c.h.b16 %v1405
    %v6969 = vunpack.c.l.b16 %v1406
    %v6970 = vunpack.c.h.b16 %v1406
    %v6971 = vunpack.c.l.b16 %v1407
    %v6972 = vunpack.c.h.b16 %v1407
    %v6973 = vunpack.c.l.b16 %v1408
    %v6974 = vunpack.c.h.b16 %v1408
    %v6975 = vunpack.c.l.b16 %v1409
    %v6976 = vunpack.c.h.b16 %v1409
    %v6977 = vunpack.c.l.b16 %v1410
    %v6978 = vunpack.c.h.b16 %v1410
    %v6979 = vunpack.c.l.b16 %v1411
    %v6980 = vunpack.c.h.b16 %v1411
    %v6981 = vunpack.c.l.b16 %v1412
    %v6982 = vunpack.c.h.b16 %v1412
    %v6983 = vunpack.c.l.b16 %v1413
    %v6984 = vunpack.c.h.b16 %v1413
    %v6985 = vunpack.c.l.b16 %v1414
    %v6986 = vunpack.c.h.b16 %v1414
    %v6987 = vunpack.c.l.b16 %v1415
    %v6988 = vunpack.c.h.b16 %v1415
    %v6989 = vunpack.c.l.b16 %v1416
    %v6990 = vunpack.c.h.b16 %v1416
    %v6991 = vunpack.c.l.b16 %v1417
    %v6992 = vunpack.c.h.b16 %v1417
    %v6993 = vunpack.c.l.b16 %v1418
    %v6994 = vunpack.c.h.b16 %v1418
    %v6995 = vunpack.c.l.b16 %v1419
    %v6996 = vunpack.c.h.b16 %v1419
    %v6997 = vunpack.c.l.b16 %v1420
    %v6998 = vunpack.c.h.b16 %v1420
    %v6999 = vunpack.c.l.b16 %v1421
    %v7000 = vunpack.c.h.b16 %v1421
    %v7001 = vunpack.c.l.b16 %v1422
    %v7002 = vunpack.c.h.b16 %v1422
    %v7003 = vunpack.c.l.b16 %v1423
    %v7004 = vunpack.c.h.b16 %v1423
    %v7005 = vunpack.c.l.b16 %v1424
    %v7006 = vunpack.c.h.b16 %v1424
    %v7007 = vunpack.c.l.b16 %v1425
    %v7008 = vunpack.c.h.b16 %v1425
    %v7009 = vunpack.c.l.b16 %v1426
    %v7010 = vunpack.c.h.b16 %v1426
    %v7011 = vunpack.c.l.b16 %v1427
    %v7012 = vunpack.c.h.b16 %v1427
    %v7013 = vunpack.c.l.b16 %v1428
    %v7014 = vunpack.c.h.b16 %v1428
    %v7015 = vunpack.c.l.b16 %v1429
    %v7016 = vunpack.c.h.b16 %v1429
    %v7017 = vunpack.c.l.b16 %v1430
    %v7018 = vunpack.c.h.b16 %v1430
    %v7019 = vunpack.c.l.b16 %v1431
    %v7020 = vunpack.c.h.b16 %v1431
    %v7021 = vunpack.c.l.b16 %v1432
    %v7022 = vunpack.c.h.b16 %v1432
    %v7023 = vunpack.c.l.b16 %v1433
    %v7024 = vunpack.c.h.b16 %v1433
    %v7025 = vunpack.c.l.b16 %v1434
    %v7026 = vunpack.c.h.b16 %v1434
    %v7027 = vunpack.c.l.b16 %v1435
    %v7028 = vunpack.c.h.b16 %v1435
    %v7029 = vunpack.c.l.b16 %v1436
    %v7030 = vunpack.c.h.b16 %v1436
    %v7031 = vunpack.c.l.b16 %v1437
    %v7032 = vunpack.c.h.b16 %v1437
    %v7033 = vunpack.c.l.b16 %v1438
    %v7034 = vunpack.c.h.b16 %v1438
    %v7035 = vunpack.c.l.b16 %v1439
    %v7036 = vunpack.c.h.b16 %v1439
    %v7037 = vunpack.c.l.b16 %v1440
    %v7038 = vunpack.c.h.b16 %v1440
    %v7039 = vunpack.c.l.b16 %v1441
    %v7040 = vunpack.c.h.b16 %v1441
    %v7041 = vunpack.c.l.b16 %v1442
    %v7042 = vunpack.c.h.b16 %v1442
    %v7043 = vunpack.c.l.b16 %v1443
    %v7044 = vunpack.c.h.b16 %v1443
    %v7045 = vunpack.c.l.b16 %v1444
    %v7046 = vunpack.c.h.b16 %v1444
    %v7047 = vunpack.c.l.b16 %v1445
    %v7048 = vunpack.c.h.b16 %v1445
    %v7049 = vunpack.c.l.b16 %v1446
    %v7050 = vunpack.c.h.b16 %v1446
    %v7051 = vunpack.c.l.b16 %v1447
    %v7052 = vunpack.c.h.b16 %v1447
    %v7053 = vunpack.c.l.b16 %v1448
    %v7054 = vunpack.c.h.b16 %v1448
    %v7055 = vunpack.c.l.b16 %v1449
    %v7056 = vunpack.c.h.b16 %v1449
    %v7057 = vunpack.c.l.b16 %v1450
    %v7058 = vunpack.c.h.b16 %v1450
    %v7059 = vunpack.c.l.b16 %v1451
    %v7060 = vunpack.c.h.b16 %v1451
    %v7061 = vunpack.c.l.b16 %v1452
    %v7062 = vunpack.c.h.b16 %v1452
    %v7063 = vunpack.c.l.b16 %v1453
    %v7064 = vunpack.c.h.b16 %v1453
    %v7065 = vunpack.c.l.b16 %v1454
    %v7066 = vunpack.c.h.b16 %v1454
    %v7067 = vunpack.c.l.b16 %v1455
    %v7068 = vunpack.c.h.b16 %v1455
    %v7069 = vunpack.c.l.b16 %v1456
    %v7070 = vunpack.c.h.b16 %v1456
    %v7071 = vunpack.c.l.b16 %v1457
    %v7072 = vunpack.c.h.b16 %v1457
    %v7073 = vunpack.c.l.b16 %v1458
    %v7074 = vunpack.c.h.b16 %v1458
    %v7075 = vunpack.c.l.b16 %v1459
    %v7076 = vunpack.c.h.b16 %v1459
    %v7077 = vunpack.c.l.b16 %v1460
    %v7078 = vunpack.c.h.b16 %v1460
    %v7079 = vunpack.c.l.b16 %v1461
    %v7080 = vunpack.c.h.b16 %v1461
    %v7081 = vunpack.c.l.b16 %v1462
    %v7082 = vunpack.c.h.b16 %v1462
    %v7083 = vunpack.c.l.b16 %v1463
    %v7084 = vunpack.c.h.b16 %v1463
    %v7085 = vunpack.c.l.b16 %v1464
    %v7086 = vunpack.c.h.b16 %v1464
    %v7087 = vunpack.c.l.b16 %v1465
    %v7088 = vunpack.c.h.b16 %v1465
    %v7089 = vunpack.c.l.b16 %v1466
    %v7090 = vunpack.c.h.b16 %v1466
    %v7091 = vunpack.c.l.b16 %v1467
    %v7092 = vunpack.c.h.b16 %v1467
    %v7093 = vunpack.c.l.b16 %v1468
    %v7094 = vunpack.c.h.b16 %v1468
    %v7095 = vunpack.c.l.b16 %v1469
    %v7096 = vunpack.c.h.b16 %v1469
    %v7097 = vunpack.c.l.b16 %v1470
    %v7098 = vunpack.c.h.b16 %v1470
    %v7099 = vunpack.c.l.b16 %v1471
    %v7100 = vunpack.c.h.b16 %v1471
    %v7101 = vunpack.c.l.b16 %v1472
    %v7102 = vunpack.c.h.b16 %v1472
    %v7103 = vunpack.c.l.b16 %v1473
    %v7104 = vunpack.c.h.b16 %v1473
    %v7105 = vunpack.c.l.b16 %v1474
    %v7106 = vunpack.c.h.b16 %v1474
    %v7107 = vunpack.c.l.b16 %v1475
    %v7108 = vunpack.c.h.b16 %v1475
    %v7109 = vunpack.c.l.b16 %v1476
    %v7110 = vunpack.c.h.b16 %v1476
    %v7111 = vunpack.c.l.b16 %v1477
    %v7112 = vunpack.c.h.b16 %v1477
    %v7113 = vunpack.c.l.b16 %v1478
    %v7114 = vunpack.c.h.b16 %v1478
    %v7115 = vunpack.c.l.b16 %v1479
    %v7116 = vunpack.c.h.b16 %v1479
    %v7117 = vunpack.c.l.b16 %v1480
    %v7118 = vunpack.c.h.b16 %v1480
    %v7119 = vunpack.c.l.b16 %v1481
    %v7120 = vunpack.c.h.b16 %v1481
    %v7121 = vunpack.c.l.b16 %v1482
    %v7122 = vunpack.c.h.b16 %v1482
    %v7123 = vunpack.c.l.b16 %v1483
    %v7124 = vunpack.c.h.b16 %v1483
    %v7125 = vunpack.c.l.b16 %v1484
    %v7126 = vunpack.c.h.b16 %v1484
    %v7127 = vunpack.c.l.b16 %v1485
    %v7128 = vunpack.c.h.b16 %v1485
    %v7129 = vunpack.c.l.b16 %v1486
    %v7130 = vunpack.c.h.b16 %v1486
    %v7131 = vunpack.c.l.b16 %v1487
    %v7132 = vunpack.c.h.b16 %v1487
    %v7133 = vunpack.c.l.b16 %v1488
    %v7134 = vunpack.c.h.b16 %v1488
    %v7135 = vunpack.c.l.b16 %v1489
    %v7136 = vunpack.c.h.b16 %v1489
    %v7137 = vunpack.c.l.b16 %v1490
    %v7138 = vunpack.c.h.b16 %v1490
    %v7139 = vunpack.c.l.b16 %v1491
    %v7140 = vunpack.c.h.b16 %v1491
    %v7141 = vunpack.c.l.b16 %v1492
    %v7142 = vunpack.c.h.b16 %v1492
    %v7143 = vunpack.c.l.b16 %v1493
    %v7144 = vunpack.c.h.b16 %v1493
    %v7145 = vunpack.c.l.b16 %v1494
    %v7146 = vunpack.c.h.b16 %v1494
    %v7147 = vunpack.c.l.b16 %v1495
    %v7148 = vunpack.c.h.b16 %v1495
    %v7149 = vunpack.c.l.b16 %v1496
    %v7150 = vunpack.c.h.b16 %v1496
    %v7151 = vunpack.c.l.b16 %v1497
    %v7152 = vunpack.c.h.b16 %v1497
    %v7153 = vunpack.c.l.b16 %v1498
    %v7154 = vunpack.c.h.b16 %v1498
    %v7155 = vunpack.c.l.b16 %v1499
    %v7156 = vunpack.c.h.b16 %v1499
    %v7157 = vunpack.c.l.b16 %v1500
    %v7158 = vunpack.c.h.b16 %v1500
    %v7159 = vunpack.c.l.b16 %v1501
    %v7160 = vunpack.c.h.b16 %v1501
    %v7161 = vunpack.c.l.b16 %v1502
    %v7162 = vunpack.c.h.b16 %v1502
    %v7163 = vunpack.c.l.b16 %v1503
    %v7164 = vunpack.c.h.b16 %v1503
    %v7165 = vunpack.c.l.b16 %v1504
    %v7166 = vunpack.c.h.b16 %v1504
    %v7167 = vunpack.c.l.b16 %v1505
    %v7168 = vunpack.c.h.b16 %v1505
    %v7169 = vunpack.c.l.b16 %v1506
    %v7170 = vunpack.c.h.b16 %v1506
    %v7171 = vunpack.c.l.b16 %v1507
    %v7172 = vunpack.c.h.b16 %v1507
    %v7173 = vunpack.c.l.b16 %v1508
    %v7174 = vunpack.c.h.b16 %v1508
    %v7175 = vunpack.c.l.b16 %v1509
    %v7176 = vunpack.c.h.b16 %v1509
    %v7177 = vunpack.c.l.b16 %v1510
    %v7178 = vunpack.c.h.b16 %v1510
    %v7179 = vunpack.c.l.b16 %v1511
    %v7180 = vunpack.c.h.b16 %v1511
    %v7181 = vunpack.c.l.b16 %v1512
    %v7182 = vunpack.c.h.b16 %v1512
    %v7183 = vunpack.c.l.b16 %v1513
    %v7184 = vunpack.c.h.b16 %v1513
    %v7185 = vunpack.c.l.b16 %v1514
    %v7186 = vunpack.c.h.b16 %v1514
    %v7187 = vunpack.c.l.b16 %v1515
    %v7188 = vunpack.c.h.b16 %v1515
    %v7189 = vunpack.c.l.b16 %v1516
    %v7190 = vunpack.c.h.b16 %v1516
    %v7191 = vunpack.c.l.b16 %v1517
    %v7192 = vunpack.c.h.b16 %v1517
    %v7193 = vunpack.c.l.b16 %v1518
    %v7194 = vunpack.c.h.b16 %v1518
    %v7195 = vunpack.c.l.b16 %v1519
    %v7196 = vunpack.c.h.b16 %v1519
    %v7197 = vunpack.c.l.b16 %v1520
    %v7198 = vunpack.c.h.b16 %v1520
    %v7199 = vunpack.c.l.b16 %v1521
    %v7200 = vunpack.c.h.b16 %v1521
    %v7201 = vunpack.c.l.b16 %v1522
    %v7202 = vunpack.c.h.b16 %v1522
    %v7203 = vunpack.c.l.b16 %v1523
    %v7204 = vunpack.c.h.b16 %v1523
    %v7205 = vunpack.c.l.b16 %v1524
    %v7206 = vunpack.c.h.b16 %v1524
    %v7207 = vunpack.c.l.b16 %v1525
    %v7208 = vunpack.c.h.b16 %v1525
    %v7209 = vunpack.c.l.b16 %v1526
    %v7210 = vunpack.c.h.b16 %v1526
    %v7211 = vunpack.c.l.b16 %v1527
    %v7212 = vunpack.c.h.b16 %v1527
    %v7213 = vunpack.c.l.b16 %v1528
    %v7214 = vunpack.c.h.b16 %v1528
    %v7215 = vunpack.c.l.b16 %v1529
    %v7216 = vunpack.c.h.b16 %v1529
    %v7217 = vunpack.c.l.b16 %v1530
    %v7218 = vunpack.c.h.b16 %v1530
    %v7219 = vunpack.c.l.b16 %v1531
    %v7220 = vunpack.c.h.b16 %v1531
    %v7221 = vunpack.c.l.b16 %v1532
    %v7222 = vunpack.c.h.b16 %v1532
    %v7223 = vunpack.c.l.b16 %v1533
    %v7224 = vunpack.c.h.b16 %v1533
    %v7225 = vunpack.c.l.b16 %v1534
    %v7226 = vunpack.c.h.b16 %v1534
    %v7227 = vunpack.c.l.b16 %v1535
    %v7228 = vunpack.c.h.b16 %v1535
    %v7229 = vunpack.c.l.b16 %v1536
    %v7230 = vunpack.c.h.b16 %v1536
    %v7231 = vunpack.c.l.b16 %v1537
    %v7232 = vunpack.c.h.b16 %v1537
    %v7233 = vunpack.c.l.b16 %v1538
    %v7234 = vunpack.c.h.b16 %v1538
    %v7235 = vunpack.c.l.b16 %v1539
    %v7236 = vunpack.c.h.b16 %v1539
    %v7237 = vunpack.c.l.b16 %v1540
    %v7238 = vunpack.c.h.b16 %v1540
    %v7239 = vunpack.c.l.b16 %v1541
    %v7240 = vunpack.c.h.b16 %v1541
    %v7241 = vunpack.c.l.b16 %v1542
    %v7242 = vunpack.c.h.b16 %v1542
    %v7243 = vunpack.c.l.b16 %v1543
    %v7244 = vunpack.c.h.b16 %v1543
    %v7245 = vunpack.c.l.b16 %v1544
    %v7246 = vunpack.c.h.b16 %v1544
    %v7247 = vunpack.c.l.b16 %v1545
    %v7248 = vunpack.c.h.b16 %v1545
    %v7249 = vunpack.c.l.b16 %v1546
    %v7250 = vunpack.c.h.b16 %v1546
    %v7251 = vunpack.c.l.b16 %v1547
    %v7252 = vunpack.c.h.b16 %v1547
    %v7253 = vunpack.c.l.b16 %v1548
    %v7254 = vunpack.c.h.b16 %v1548
    %v7255 = vunpack.c.l.b16 %v1549
    %v7256 = vunpack.c.h.b16 %v1549
    %v7257 = vunpack.c.l.b16 %v1550
    %v7258 = vunpack.c.h.b16 %v1550
    %v7259 = vunpack.c.l.b16 %v1551
    %v7260 = vunpack.c.h.b16 %v1551
    %v7261 = vunpack.c.l.b16 %v1552
    %v7262 = vunpack.c.h.b16 %v1552
    %v7263 = vunpack.c.l.b16 %v1553
    %v7264 = vunpack.c.h.b16 %v1553
    %v7265 = vunpack.c.l.b16 %v1554
    %v7266 = vunpack.c.h.b16 %v1554
    %v7267 = vunpack.c.l.b16 %v1555
    %v7268 = vunpack.c.h.b16 %v1555
    %v7269 = vunpack.c.l.b16 %v1556
    %v7270 = vunpack.c.h.b16 %v1556
    %v7271 = vunpack.c.l.b16 %v1557
    %v7272 = vunpack.c.h.b16 %v1557
    %v7273 = vunpack.c.l.b16 %v1558
    %v7274 = vunpack.c.h.b16 %v1558
    %v7275 = vunpack.c.l.b16 %v1559
    %v7276 = vunpack.c.h.b16 %v1559
    %v7277 = vunpack.c.l.b16 %v1560
    %v7278 = vunpack.c.h.b16 %v1560
    %v7279 = vunpack.c.l.b16 %v1561
    %v7280 = vunpack.c.h.b16 %v1561
    %v7281 = vunpack.c.l.b16 %v1562
    %v7282 = vunpack.c.h.b16 %v1562
    %v7283 = vunpack.c.l.b16 %v1563
    %v7284 = vunpack.c.h.b16 %v1563
    %v7285 = vunpack.c.l.b16 %v1564
    %v7286 = vunpack.c.h.b16 %v1564
    %v7287 = vunpack.c.l.b16 %v1565
    %v7288 = vunpack.c.h.b16 %v1565
    %v7289 = vunpack.c.l.b16 %v1566
    %v7290 = vunpack.c.h.b16 %v1566
    %v7291 = vunpack.c.l.b16 %v1567
    %v7292 = vunpack.c.h.b16 %v1567
    %v7293 = vunpack.c.l.b16 %v1568
    %v7294 = vunpack.c.h.b16 %v1568
    %v7295 = vunpack.c.l.b16 %v1569
    %v7296 = vunpack.c.h.b16 %v1569
    %v7297 = vunpack.c.l.b16 %v1570
    %v7298 = vunpack.c.h.b16 %v1570
    %v7299 = vunpack.c.l.b16 %v1571
    %v7300 = vunpack.c.h.b16 %v1571
    %v7301 = vunpack.c.l.b16 %v1572
    %v7302 = vunpack.c.h.b16 %v1572
    %v7303 = vunpack.c.l.b16 %v1573
    %v7304 = vunpack.c.h.b16 %v1573
    %v7305 = vunpack.c.l.b16 %v1574
    %v7306 = vunpack.c.h.b16 %v1574
    %v7307 = vunpack.c.l.b16 %v1575
    %v7308 = vunpack.c.h.b16 %v1575
    %v7309 = vunpack.c.l.b16 %v1576
    %v7310 = vunpack.c.h.b16 %v1576
    %v7311 = vunpack.c.l.b16 %v1577
    %v7312 = vunpack.c.h.b16 %v1577
    %v7313 = vunpack.c.l.b16 %v1578
    %v7314 = vunpack.c.h.b16 %v1578
    %v7315 = vunpack.c.l.b16 %v1579
    %v7316 = vunpack.c.h.b16 %v1579
    %v7317 = vunpack.c.l.b16 %v1580
    %v7318 = vunpack.c.h.b16 %v1580
    %v7319 = vunpack.c.l.b16 %v1581
    %v7320 = vunpack.c.h.b16 %v1581
    %v7321 = vunpack.c.l.b16 %v1582
    %v7322 = vunpack.c.h.b16 %v1582
    %v7323 = vunpack.c.l.b16 %v1583
    %v7324 = vunpack.c.h.b16 %v1583
    %v7325 = vunpack.c.l.b16 %v1584
    %v7326 = vunpack.c.h.b16 %v1584
    %v7327 = vunpack.c.l.b16 %v1585
    %v7328 = vunpack.c.h.b16 %v1585
    %v7329 = vunpack.c.l.b16 %v1586
    %v7330 = vunpack.c.h.b16 %v1586
    %v7331 = vunpack.c.l.b16 %v1587
    %v7332 = vunpack.c.h.b16 %v1587
    %v7333 = vunpack.c.l.b16 %v1588
    %v7334 = vunpack.c.h.b16 %v1588
    %v7335 = vunpack.c.l.b16 %v1589
    %v7336 = vunpack.c.h.b16 %v1589
    %v7337 = vunpack.c.l.b16 %v1590
    %v7338 = vunpack.c.h.b16 %v1590
    %v7339 = vunpack.c.l.b16 %v1591
    %v7340 = vunpack.c.h.b16 %v1591
    %v7341 = vunpack.c.l.b16 %v1592
    %v7342 = vunpack.c.h.b16 %v1592
    %v7343 = vunpack.c.l.b16 %v1593
    %v7344 = vunpack.c.h.b16 %v1593
    %v7345 = vunpack.c.l.b16 %v1594
    %v7346 = vunpack.c.h.b16 %v1594
    %v7347 = vunpack.c.l.b16 %v1595
    %v7348 = vunpack.c.h.b16 %v1595
    %v7349 = vunpack.c.l.b16 %v1596
    %v7350 = vunpack.c.h.b16 %v1596
    %v7351 = vunpack.c.l.b16 %v1597
    %v7352 = vunpack.c.h.b16 %v1597
    %v7353 = vunpack.c.l.b16 %v1598
    %v7354 = vunpack.c.h.b16 %v1598
    %v7355 = vunpack.c.l.b16 %v1599
    %v7356 = vunpack.c.h.b16 %v1599
    %v7357 = vunpack.c.l.b16 %v1600
    %v7358 = vunpack.c.h.b16 %v1600
    %v7359 = vunpack.c.l.b16 %v1601
    %v7360 = vunpack.c.h.b16 %v1601
    %v7361 = vunpack.c.l.b16 %v1602
    %v7362 = vunpack.c.h.b16 %v1602
    %v7363 = vunpack.c.l.b16 %v1603
    %v7364 = vunpack.c.h.b16 %v1603
    %v7365 = vunpack.c.l.b16 %v1604
    %v7366 = vunpack.c.h.b16 %v1604
    %v7367 = vunpack.c.l.b16 %v1605
    %v7368 = vunpack.c.h.b16 %v1605
    %v7369 = vunpack.c.l.b16 %v1606
    %v7370 = vunpack.c.h.b16 %v1606
    %v7371 = vunpack.c.l.b16 %v1607
    %v7372 = vunpack.c.h.b16 %v1607
    %v7373 = vunpack.c.l.b16 %v1608
    %v7374 = vunpack.c.h.b16 %v1608
    %v7375 = vunpack.c.l.b16 %v1609
    %v7376 = vunpack.c.h.b16 %v1609
    %v7377 = vunpack.c.l.b16 %v1610
    %v7378 = vunpack.c.h.b16 %v1610
    %v7379 = vunpack.c.l.b16 %v1611
    %v7380 = vunpack.c.h.b16 %v1611
    %v7381 = vunpack.c.l.b16 %v1612
    %v7382 = vunpack.c.h.b16 %v1612
    %v7383 = vunpack.c.l.b16 %v1613
    %v7384 = vunpack.c.h.b16 %v1613
    %v7385 = vunpack.c.l.b16 %v1614
    %v7386 = vunpack.c.h.b16 %v1614
    %v7387 = vunpack.c.l.b16 %v1615
    %v7388 = vunpack.c.h.b16 %v1615
    %v7389 = vunpack.c.l.b16 %v1616
    %v7390 = vunpack.c.h.b16 %v1616
    %v7391 = vunpack.c.l.b16 %v1617
    %v7392 = vunpack.c.h.b16 %v1617
    %v7393 = vunpack.c.l.b16 %v1618
    %v7394 = vunpack.c.h.b16 %v1618
    %v7395 = vunpack.c.l.b16 %v1619
    %v7396 = vunpack.c.h.b16 %v1619
    %v7397 = vunpack.c.l.b16 %v1620
    %v7398 = vunpack.c.h.b16 %v1620
    %v7399 = vunpack.c.l.b16 %v1621
    %v7400 = vunpack.c.h.b16 %v1621
    %v7401 = vunpack.c.l.b16 %v1622
    %v7402 = vunpack.c.h.b16 %v1622
    %v7403 = vunpack.c.l.b16 %v1623
    %v7404 = vunpack.c.h.b16 %v1623
    %v7405 = vunpack.c.l.b16 %v1624
    %v7406 = vunpack.c.h.b16 %v1624
    %v7407 = vunpack.c.l.b16 %v1625
    %v7408 = vunpack.c.h.b16 %v1625
    %v7409 = vunpack.c.l.b16 %v1626
    %v7410 = vunpack.c.h.b16 %v1626
    %v7411 = vunpack.c.l.b16 %v1627
    %v7412 = vunpack.c.h.b16 %v1627
    %v7413 = vunpack.c.l.b16 %v1628
    %v7414 = vunpack.c.h.b16 %v1628
    %v7415 = vunpack.c.l.b16 %v1629
    %v7416 = vunpack.c.h.b16 %v1629
    %v7417 = vunpack.c.l.b16 %v1630
    %v7418 = vunpack.c.h.b16 %v1630
    %v7419 = vunpack.c.l.b16 %v1631
    %v7420 = vunpack.c.h.b16 %v1631
    %v7421 = vunpack.c.l.b16 %v1632
    %v7422 = vunpack.c.h.b16 %v1632
    %v7423 = vunpack.c.l.b16 %v1633
    %v7424 = vunpack.c.h.b16 %v1633
    %v7425 = vunpack.c.l.b16 %v1634
    %v7426 = vunpack.c.h.b16 %v1634
    %v7427 = vunpack.c.l.b16 %v1635
    %v7428 = vunpack.c.h.b16 %v1635
    %v7429 = vunpack.c.l.b16 %v1636
    %v7430 = vunpack.c.h.b16 %v1636
    %v7431 = vunpack.c.l.b16 %v1637
    %v7432 = vunpack.c.h.b16 %v1637
    %v7433 = vunpack.c.l.b16 %v1638
    %v7434 = vunpack.c.h.b16 %v1638
    %v7435 = vunpack.c.l.b16 %v1639
    %v7436 = vunpack.c.h.b16 %v1639
    %v7437 = vunpack.c.l.b16 %v1640
    %v7438 = vunpack.c.h.b16 %v1640
    %v7439 = vunpack.c.l.b16 %v1641
    %v7440 = vunpack.c.h.b16 %v1641
    %v7441 = vunpack.c.l.b16 %v1642
    %v7442 = vunpack.c.h.b16 %v1642
    %v7443 = vunpack.c.l.b16 %v1643
    %v7444 = vunpack.c.h.b16 %v1643
    %v7445 = vunpack.c.l.b16 %v1644
    %v7446 = vunpack.c.h.b16 %v1644
    %v7447 = vunpack.c.l.b16 %v1645
    %v7448 = vunpack.c.h.b16 %v1645
    %v7449 = vunpack.c.l.b16 %v1646
    %v7450 = vunpack.c.h.b16 %v1646
    %v7451 = vunpack.c.l.b16 %v1647
    %v7452 = vunpack.c.h.b16 %v1647
    %v7453 = vunpack.c.l.b16 %v1648
    %v7454 = vunpack.c.h.b16 %v1648
    %v7455 = vunpack.c.l.b16 %v1649
    %v7456 = vunpack.c.h.b16 %v1649
    %v7457 = vunpack.c.l.b16 %v1650
    %v7458 = vunpack.c.h.b16 %v1650
    %v7459 = vunpack.c.l.b16 %v1651
    %v7460 = vunpack.c.h.b16 %v1651
    %v7461 = vunpack.c.l.b16 %v1652
    %v7462 = vunpack.c.h.b16 %v1652
    %v7463 = vunpack.c.l.b16 %v1653
    %v7464 = vunpack.c.h.b16 %v1653
    %v7465 = vunpack.c.l.b16 %v1654
    %v7466 = vunpack.c.h.b16 %v1654
    %v7467 = vunpack.c.l.b16 %v1655
    %v7468 = vunpack.c.h.b16 %v1655
    %v7469 = vunpack.c.l.b16 %v1656
    %v7470 = vunpack.c.h.b16 %v1656
    %v7471 = vunpack.c.l.b16 %v1657
    %v7472 = vunpack.c.h.b16 %v1657
    %v7473 = vunpack.c.l.b16 %v1658
    %v7474 = vunpack.c.h.b16 %v1658
    %v7475 = vunpack.c.l.b16 %v1659
    %v7476 = vunpack.c.h.b16 %v1659
    %v7477 = vunpack.c.l.b16 %v1660
    %v7478 = vunpack.c.h.b16 %v1660
    %v7479 = vunpack.c.l.b16 %v1661
    %v7480 = vunpack.c.h.b16 %v1661
    %v7481 = vunpack.c.l.b16 %v1662
    %v7482 = vunpack.c.h.b16 %v1662
    %v7483 = vunpack.c.l.b16 %v1663
    %v7484 = vunpack.c.h.b16 %v1663
    %v7485 = vunpack.c.l.b16 %v1664
    %v7486 = vunpack.c.h.b16 %v1664
    %v7487 = vunpack.c.l.b16 %v1665
    %v7488 = vunpack.c.h.b16 %v1665
    %v7489 = vunpack.c.l.b16 %v1666
    %v7490 = vunpack.c.h.b16 %v1666
    %v7491 = vunpack.c.l.b16 %v1667
    %v7492 = vunpack.c.h.b16 %v1667
    %v7493 = vunpack.c.l.b16 %v1668
    %v7494 = vunpack.c.h.b16 %v1668
    %v7495 = vunpack.c.l.b16 %v1669
    %v7496 = vunpack.c.h.b16 %v1669
    %v7497 = vunpack.c.l.b16 %v1670
    %v7498 = vunpack.c.h.b16 %v1670
    %v7499 = vunpack.c.l.b16 %v1671
    %v7500 = vunpack.c.h.b16 %v1671
    %v7501 = vunpack.c.l.b16 %v1672
    %v7502 = vunpack.c.h.b16 %v1672
    %v7503 = vunpack.c.l.b16 %v1673
    %v7504 = vunpack.c.h.b16 %v1673
    %v7505 = vunpack.c.l.b16 %v1674
    %v7506 = vunpack.c.h.b16 %v1674
    %v7507 = vunpack.c.l.b16 %v1675
    %v7508 = vunpack.c.h.b16 %v1675
    %v7509 = vunpack.c.l.b16 %v1676
    %v7510 = vunpack.c.h.b16 %v1676
    %v7511 = vunpack.c.l.b16 %v1677
    %v7512 = vunpack.c.h.b16 %v1677
    %v7513 = vunpack.c.l.b16 %v1678
    %v7514 = vunpack.c.h.b16 %v1678
    %v7515 = vunpack.c.l.b16 %v1679
    %v7516 = vunpack.c.h.b16 %v1679
    %v7517 = vunpack.c.l.b16 %v1680
    %v7518 = vunpack.c.h.b16 %v1680
    %v7519 = vunpack.c.l.b16 %v1681
    %v7520 = vunpack.c.h.b16 %v1681
    %v7521 = vunpack.c.l.b16 %v1682
    %v7522 = vunpack.c.h.b16 %v1682
    %v7523 = vunpack.c.l.b16 %v1683
    %v7524 = vunpack.c.h.b16 %v1683
    %v7525 = vunpack.c.l.b16 %v1684
    %v7526 = vunpack.c.h.b16 %v1684
    %v7527 = vunpack.c.l.b16 %v1685
    %v7528 = vunpack.c.h.b16 %v1685
    %v7529 = vunpack.c.l.b16 %v1686
    %v7530 = vunpack.c.h.b16 %v1686
    %v7531 = vunpack.c.l.b16 %v1687
    %v7532 = vunpack.c.h.b16 %v1687
    %v7533 = vunpack.c.l.b16 %v1688
    %v7534 = vunpack.c.h.b16 %v1688
    %v7535 = vunpack.c.l.b16 %v1689
    %v7536 = vunpack.c.h.b16 %v1689
    %v7537 = vunpack.c.l.b16 %v1690
    %v7538 = vunpack.c.h.b16 %v1690
    %v7539 = vunpack.c.l.b16 %v1691
    %v7540 = vunpack.c.h.b16 %v1691
    %v7541 = vunpack.c.l.b16 %v1692
    %v7542 = vunpack.c.h.b16 %v1692
    %v7543 = vunpack.c.l.b16 %v1693
    %v7544 = vunpack.c.h.b16 %v1693
    %v7545 = vunpack.c.l.b16 %v1694
    %v7546 = vunpack.c.h.b16 %v1694
    %v7547 = vunpack.c.l.b16 %v1695
    %v7548 = vunpack.c.h.b16 %v1695
    %v7549 = vunpack.c.l.b16 %v1696
    %v7550 = vunpack.c.h.b16 %v1696
    %v7551 = vunpack.c.l.b16 %v1697
    %v7552 = vunpack.c.h.b16 %v1697
    %v7553 = vunpack.c.l.b16 %v1698
    %v7554 = vunpack.c.h.b16 %v1698
    %v7555 = vunpack.c.l.b16 %v1699
    %v7556 = vunpack.c.h.b16 %v1699
    %v7557 = vunpack.c.l.b16 %v1700
    %v7558 = vunpack.c.h.b16 %v1700
    %v7559 = vunpack.c.l.b16 %v1701
    %v7560 = vunpack.c.h.b16 %v1701
    %v7561 = vunpack.c.l.b16 %v1702
    %v7562 = vunpack.c.h.b16 %v1702
    %v7563 = vunpack.c.l.b16 %v1703
    %v7564 = vunpack.c.h.b16 %v1703
    %v7565 = vunpack.c.l.b16 %v1704
    %v7566 = vunpack.c.h.b16 %v1704
    %v7567 = vunpack.c.l.b16 %v1705
    %v7568 = vunpack.c.h.b16 %v1705
    %v7569 = vunpack.c.l.b16 %v1706
    %v7570 = vunpack.c.h.b16 %v1706
    %v7571 = vunpack.c.l.b16 %v1707
    %v7572 = vunpack.c.h.b16 %v1707
    %v7573 = vunpack.c.l.b16 %v1708
    %v7574 = vunpack.c.h.b16 %v1708
    %v7575 = vunpack.c.l.b16 %v1709
    %v7576 = vunpack.c.h.b16 %v1709
    %v7577 = vunpack.c.l.b16 %v1710
    %v7578 = vunpack.c.h.b16 %v1710
    %v7579 = vunpack.c.l.b16 %v1711
    %v7580 = vunpack.c.h.b16 %v1711
    %v7581 = vunpack.c.l.b16 %v1712
    %v7582 = vunpack.c.h.b16 %v1712
    %v7583 = vunpack.c.l.b16 %v1713
    %v7584 = vunpack.c.h.b16 %v1713
    %v7585 = vunpack.c.l.b16 %v1714
    %v7586 = vunpack.c.h.b16 %v1714
    %v7587 = vunpack.c.l.b16 %v1715
    %v7588 = vunpack.c.h.b16 %v1715
    %v7589 = vunpack.c.l.b16 %v1716
    %v7590 = vunpack.c.h.b16 %v1716
    %v7591 = vunpack.c.l.b16 %v1717
    %v7592 = vunpack.c.h.b16 %v1717
    %v7593 = vunpack.c.l.b16 %v1718
    %v7594 = vunpack.c.h.b16 %v1718
    %v7595 = vunpack.c.l.b16 %v1719
    %v7596 = vunpack.c.h.b16 %v1719
    %v7597 = vunpack.c.l.b16 %v1720
    %v7598 = vunpack.c.h.b16 %v1720
    %v7599 = vunpack.c.l.b16 %v1721
    %v7600 = vunpack.c.h.b16 %v1721
    %v7601 = vunpack.c.l.b16 %v1722
    %v7602 = vunpack.c.h.b16 %v1722
    %v7603 = vunpack.c.l.b16 %v1723
    %v7604 = vunpack.c.h.b16 %v1723
    %v7605 = vunpack.c.l.b16 %v1724
    %v7606 = vunpack.c.h.b16 %v1724
    %v7607 = vunpack.c.l.b16 %v1725
    %v7608 = vunpack.c.h.b16 %v1725
    %v7609 = vunpack.c.l.b16 %v1726
    %v7610 = vunpack.c.h.b16 %v1726
    %v7611 = vunpack.c.l.b16 %v1727
    %v7612 = vunpack.c.h.b16 %v1727
    %v7613 = vunpack.c.l.b16 %v1728
    %v7614 = vunpack.c.h.b16 %v1728
    %v7615 = vunpack.c.l.b16 %v1729
    %v7616 = vunpack.c.h.b16 %v1729
    %v7617 = vunpack.c.l.b16 %v1730
    %v7618 = vunpack.c.h.b16 %v1730
    %v7619 = vunpack.c.l.b16 %v1731
    %v7620 = vunpack.c.h.b16 %v1731
    %v7621 = vunpack.c.l.b16 %v1732
    %v7622 = vunpack.c.h.b16 %v1732
    %v7623 = vunpack.c.l.b16 %v1733
    %v7624 = vunpack.c.h.b16 %v1733
    %v7625 = vunpack.c.l.b16 %v1734
    %v7626 = vunpack.c.h.b16 %v1734
    %v7627 = vunpack.c.l.b16 %v1735
    %v7628 = vunpack.c.h.b16 %v1735
    %v7629 = vunpack.c.l.b16 %v1736
    %v7630 = vunpack.c.h.b16 %v1736
    %v7631 = vunpack.c.l.b16 %v1737
    %v7632 = vunpack.c.h.b16 %v1737
    %v7633 = vunpack.c.l.b16 %v1738
    %v7634 = vunpack.c.h.b16 %v1738
    %v7635 = vunpack.c.l.b16 %v1739
    %v7636 = vunpack.c.h.b16 %v1739
    %v7637 = vunpack.c.l.b16 %v1740
    %v7638 = vunpack.c.h.b16 %v1740
    %v7639 = vunpack.c.l.b16 %v1741
    %v7640 = vunpack.c.h.b16 %v1741
    %v7641 = vunpack.c.l.b16 %v1742
    %v7642 = vunpack.c.h.b16 %v1742
    %v7643 = vunpack.c.l.b16 %v1743
    %v7644 = vunpack.c.h.b16 %v1743
    %v7645 = vunpack.c.l.b16 %v1744
    %v7646 = vunpack.c.h.b16 %v1744
    %v7647 = vunpack.c.l.b16 %v1745
    %v7648 = vunpack.c.h.b16 %v1745
    %v7649 = vunpack.c.l.b16 %v1746
    %v7650 = vunpack.c.h.b16 %v1746
    %v7651 = vunpack.c.l.b16 %v1747
    %v7652 = vunpack.c.h.b16 %v1747
    %v7653 = vunpack.c.l.b16 %v1748
    %v7654 = vunpack.c.h.b16 %v1748
    %v7655 = vunpack.c.l.b16 %v1749
    %v7656 = vunpack.c.h.b16 %v1749
    %v7657 = vunpack.c.l.b16 %v1750
    %v7658 = vunpack.c.h.b16 %v1750
    %v7659 = vunpack.c.l.b16 %v1751
    %v7660 = vunpack.c.h.b16 %v1751
    %v7661 = vunpack.c.l.b16 %v1752
    %v7662 = vunpack.c.h.b16 %v1752
    %v7663 = vunpack.c.l.b16 %v1753
    %v7664 = vunpack.c.h.b16 %v1753
    %v7665 = vunpack.c.l.b16 %v1754
    %v7666 = vunpack.c.h.b16 %v1754
    %v7667 = vunpack.c.l.b16 %v1755
    %v7668 = vunpack.c.h.b16 %v1755
    %v7669 = vunpack.c.l.b16 %v1756
    %v7670 = vunpack.c.h.b16 %v1756
    %v7671 = vunpack.c.l.b16 %v1757
    %v7672 = vunpack.c.h.b16 %v1757
    %v7673 = vunpack.c.l.b16 %v1758
    %v7674 = vunpack.c.h.b16 %v1758
    %v7675 = vunpack.c.l.b16 %v1759
    %v7676 = vunpack.c.h.b16 %v1759
    %v7677 = vunpack.c.l.b16 %v1760
    %v7678 = vunpack.c.h.b16 %v1760
    %v7679 = vunpack.c.l.b16 %v1761
    %v7680 = vunpack.c.h.b16 %v1761
    %v7681 = vunpack.c.l.b16 %v1762
    %v7682 = vunpack.c.h.b16 %v1762
    %v7683 = vunpack.c.l.b16 %v1763
    %v7684 = vunpack.c.h.b16 %v1763
    %v7685 = vunpack.c.l.b16 %v1764
    %v7686 = vunpack.c.h.b16 %v1764
    %v7687 = vunpack.c.l.b16 %v1765
    %v7688 = vunpack.c.h.b16 %v1765
    %v7689 = vunpack.c.l.b16 %v1766
    %v7690 = vunpack.c.h.b16 %v1766
    %v7691 = vunpack.c.l.b16 %v1767
    %v7692 = vunpack.c.h.b16 %v1767
    %v7693 = vunpack.c.l.b16 %v1768
    %v7694 = vunpack.c.h.b16 %v1768
    %v7695 = vunpack.c.l.b16 %v1769
    %v7696 = vunpack.c.h.b16 %v1769
    %v7697 = vunpack.c.l.b16 %v1770
    %v7698 = vunpack.c.h.b16 %v1770
    %v7699 = vunpack.c.l.b16 %v1771
    %v7700 = vunpack.c.h.b16 %v1771
    %v7701 = vunpack.c.l.b16 %v1772
    %v7702 = vunpack.c.h.b16 %v1772
    %v7703 = vunpack.c.l.b16 %v1773
    %v7704 = vunpack.c.h.b16 %v1773
    %v7705 = vunpack.c.l.b16 %v1774
    %v7706 = vunpack.c.h.b16 %v1774
    %v7707 = vunpack.c.l.b16 %v1775
    %v7708 = vunpack.c.h.b16 %v1775
    %v7709 = vunpack.c.l.b16 %v1776
    %v7710 = vunpack.c.h.b16 %v1776
    %v7711 = vunpack.c.l.b16 %v1777
    %v7712 = vunpack.c.h.b16 %v1777
    %v7713 = vunpack.c.l.b16 %v1778
    %v7714 = vunpack.c.h.b16 %v1778
    %v7715 = vunpack.c.l.b16 %v1779
    %v7716 = vunpack.c.h.b16 %v1779
    %v7717 = vunpack.c.l.b16 %v1780
    %v7718 = vunpack.c.h.b16 %v1780
    %v7719 = vunpack.c.l.b16 %v1781
    %v7720 = vunpack.c.h.b16 %v1781
    %v7721 = vunpack.c.l.b16 %v1782
    %v7722 = vunpack.c.h.b16 %v1782
    %v7723 = vunpack.c.l.b16 %v1783
    %v7724 = vunpack.c.h.b16 %v1783
    %v7725 = vunpack.c.l.b16 %v1784
    %v7726 = vunpack.c.h.b16 %v1784
    %v7727 = vunpack.c.l.b16 %v1785
    %v7728 = vunpack.c.h.b16 %v1785
    %v7729 = vunpack.c.l.b16 %v1786
    %v7730 = vunpack.c.h.b16 %v1786
    %v7731 = vunpack.c.l.b16 %v1787
    %v7732 = vunpack.c.h.b16 %v1787
    %v7733 = vunpack.c.l.b16 %v1788
    %v7734 = vunpack.c.h.b16 %v1788
    %v7735 = vunpack.c.l.b16 %v1789
    %v7736 = vunpack.c.h.b16 %v1789
    %v7737 = vunpack.c.l.b16 %v1790
    %v7738 = vunpack.c.h.b16 %v1790
    %v7739 = vunpack.c.l.b16 %v1791
    %v7740 = vunpack.c.h.b16 %v1791
    %v7741 = vunpack.c.l.b16 %v1792
    %v7742 = vunpack.c.h.b16 %v1792
    %v7743 = vunpack.c.l.b16 %v1793
    %v7744 = vunpack.c.h.b16 %v1793
    %v7745 = vunpack.c.l.b16 %v1794
    %v7746 = vunpack.c.h.b16 %v1794
    %v7747 = vunpack.c.l.b16 %v1795
    %v7748 = vunpack.c.h.b16 %v1795
    %v7749 = vunpack.c.l.b16 %v1796
    %v7750 = vunpack.c.h.b16 %v1796
    %v7751 = vunpack.c.l.b16 %v1797
    %v7752 = vunpack.c.h.b16 %v1797
    %v7753 = vunpack.c.l.b16 %v1798
    %v7754 = vunpack.c.h.b16 %v1798
    %v7755 = vunpack.c.l.b16 %v1799
    %v7756 = vunpack.c.h.b16 %v1799
    %v7757 = vunpack.c.l.b16 %v1800
    %v7758 = vunpack.c.h.b16 %v1800
    %v7759 = vunpack.c.l.b16 %v1801
    %v7760 = vunpack.c.h.b16 %v1801
    %v7761 = vunpack.c.l.b16 %v1802
    %v7762 = vunpack.c.h.b16 %v1802
    %v7763 = vunpack.c.l.b16 %v1803
    %v7764 = vunpack.c.h.b16 %v1803
    %v7765 = vunpack.c.l.b16 %v1804
    %v7766 = vunpack.c.h.b16 %v1804
    %v7767 = vunpack.c.l.b16 %v1805
    %v7768 = vunpack.c.h.b16 %v1805
    %v7769 = vunpack.c.l.b16 %v1806
    %v7770 = vunpack.c.h.b16 %v1806
    %v7771 = vunpack.c.l.b16 %v1807
    %v7772 = vunpack.c.h.b16 %v1807
    %v7773 = vunpack.c.l.b16 %v1808
    %v7774 = vunpack.c.h.b16 %v1808
    %v7775 = vunpack.c.l.b16 %v1809
    %v7776 = vunpack.c.h.b16 %v1809
    %v7777 = vunpack.c.l.b16 %v1810
    %v7778 = vunpack.c.h.b16 %v1810
    %v7779 = vunpack.c.l.b16 %v1811
    %v7780 = vunpack.c.h.b16 %v1811
    %v7781 = vunpack.c.l.b16 %v1812
    %v7782 = vunpack.c.h.b16 %v1812
    %v7783 = vunpack.c.l.b16 %v1813
    %v7784 = vunpack.c.h.b16 %v1813
    %v7785 = vunpack.c.l.b16 %v1814
    %v7786 = vunpack.c.h.b16 %v1814
    %v7787 = vunpack.c.l.b16 %v1815
    %v7788 = vunpack.c.h.b16 %v1815
    %v7789 = vunpack.c.l.b16 %v1816
    %v7790 = vunpack.c.h.b16 %v1816
    %v7791 = vunpack.c.l.b16 %v1817
    %v7792 = vunpack.c.h.b16 %v1817
    %v7793 = vunpack.c.l.b16 %v1818
    %v7794 = vunpack.c.h.b16 %v1818
    %v7795 = vunpack.c.l.b16 %v1819
    %v7796 = vunpack.c.h.b16 %v1819
    %v7797 = vunpack.c.l.b16 %v1820
    %v7798 = vunpack.c.h.b16 %v1820
    %v7799 = vunpack.c.l.b16 %v1821
    %v7800 = vunpack.c.h.b16 %v1821
    %v7801 = vunpack.c.l.b16 %v1822
    %v7802 = vunpack.c.h.b16 %v1822
    %v7803 = vunpack.c.l.b16 %v1823
    %v7804 = vunpack.c.h.b16 %v1823
    %v7805 = vunpack.c.l.b16 %v1824
    %v7806 = vunpack.c.h.b16 %v1824
    %v7807 = vunpack.c.l.b16 %v1825
    %v7808 = vunpack.c.h.b16 %v1825
    %v7809 = vunpack.c.l.b16 %v1826
    %v7810 = vunpack.c.h.b16 %v1826
    %v7811 = vunpack.c.l.b16 %v1827
    %v7812 = vunpack.c.h.b16 %v1827
    %v7813 = vunpack.c.l.b16 %v1828
    %v7814 = vunpack.c.h.b16 %v1828
    %v7815 = vunpack.c.l.b16 %v1829
    %v7816 = vunpack.c.h.b16 %v1829
    %v7817 = vunpack.c.l.b16 %v1830
    %v7818 = vunpack.c.h.b16 %v1830
    %v7819 = vunpack.c.l.b16 %v1831
    %v7820 = vunpack.c.h.b16 %v1831
    %v7821 = vunpack.c.l.b16 %v1832
    %v7822 = vunpack.c.h.b16 %v1832
    %v7823 = vunpack.c.l.b16 %v1833
    %v7824 = vunpack.c.h.b16 %v1833
    %v7825 = vunpack.c.l.b16 %v1834
    %v7826 = vunpack.c.h.b16 %v1834
    %v7827 = vunpack.c.l.b16 %v1835
    %v7828 = vunpack.c.h.b16 %v1835
    %v7829 = vunpack.c.l.b16 %v1836
    %v7830 = vunpack.c.h.b16 %v1836
    %v7831 = vunpack.c.l.b16 %v1837
    %v7832 = vunpack.c.h.b16 %v1837
    %v7833 = vunpack.c.l.b16 %v1838
    %v7834 = vunpack.c.h.b16 %v1838
    %v7835 = vunpack.c.l.b16 %v1839
    %v7836 = vunpack.c.h.b16 %v1839
    %v7837 = vunpack.c.l.b16 %v1840
    %v7838 = vunpack.c.h.b16 %v1840
    %v7839 = vunpack.c.l.b16 %v1841
    %v7840 = vunpack.c.h.b16 %v1841
    %v7841 = vunpack.c.l.b16 %v1842
    %v7842 = vunpack.c.h.b16 %v1842
    %v7843 = vunpack.c.l.b16 %v1843
    %v7844 = vunpack.c.h.b16 %v1843
    %v7845 = vunpack.c.l.b16 %v1844
    %v7846 = vunpack.c.h.b16 %v1844
    %v7847 = vunpack.c.l.b16 %v1845
    %v7848 = vunpack.c.h.b16 %v1845
    %v7849 = vunpack.c.l.b16 %v1846
    %v7850 = vunpack.c.h.b16 %v1846
    %v7851 = vunpack.c.l.b16 %v1847
    %v7852 = vunpack.c.h.b16 %v1847
    %v7853 = vunpack.c.l.b16 %v1848
    %v7854 = vunpack.c.h.b16 %v1848
    %v7855 = vunpack.c.l.b16 %v1849
    %v7856 = vunpack.c.h.b16 %v1849
    %v7857 = vunpack.c.l.b16 %v1850
    %v7858 = vunpack.c.h.b16 %v1850
    %v7859 = vunpack.c.l.b16 %v1851
    %v7860 = vunpack.c.h.b16 %v1851
    %v7861 = vunpack.c.l.b16 %v1852
    %v7862 = vunpack.c.h.b16 %v1852
    %v7863 = vunpack.c.l.b16 %v1853
    %v7864 = vunpack.c.h.b16 %v1853
    %v7865 = vunpack.c.l.b16 %v1854
    %v7866 = vunpack.c.h.b16 %v1854
    %v7867 = vunpack.c.l.b16 %v1855
    %v7868 = vunpack.c.h.b16 %v1855
    %v7869 = vunpack.c.l.b16 %v1856
    %v7870 = vunpack.c.h.b16 %v1856
    %v7871 = vunpack.c.l.b16 %v1857
    %v7872 = vunpack.c.h.b16 %v1857
    %v7873 = vunpack.c.l.b16 %v1858
    %v7874 = vunpack.c.h.b16 %v1858
    %v7875 = vunpack.c.l.b16 %v1859
    %v7876 = vunpack.c.h.b16 %v1859
    %v7877 = vunpack.c.l.b16 %v1860
    %v7878 = vunpack.c.h.b16 %v1860
    %v7879 = vunpack.c.l.b16 %v1861
    %v7880 = vunpack.c.h.b16 %v1861
    %v7881 = vunpack.c.l.b16 %v1862
    %v7882 = vunpack.c.h.b16 %v1862
    %v7883 = vunpack.c.l.b16 %v1863
    %v7884 = vunpack.c.h.b16 %v1863
    %v7885 = vunpack.c.l.b16 %v1864
    %v7886 = vunpack.c.h.b16 %v1864
    %v7887 = vunpack.c.l.b16 %v1865
    %v7888 = vunpack.c.h.b16 %v1865
    %v7889 = vunpack.c.l.b16 %v1866
    %v7890 = vunpack.c.h.b16 %v1866
    %v7891 = vunpack.c.l.b16 %v1867
    %v7892 = vunpack.c.h.b16 %v1867
    %v7893 = vunpack.c.l.b16 %v1868
    %v7894 = vunpack.c.h.b16 %v1868
    %v7895 = vunpack.c.l.b16 %v1869
    %v7896 = vunpack.c.h.b16 %v1869
    %v7897 = vunpack.c.l.b16 %v1870
    %v7898 = vunpack.c.h.b16 %v1870
    %v7899 = vunpack.c.l.b16 %v1871
    %v7900 = vunpack.c.h.b16 %v1871
    %v7901 = vunpack.c.l.b16 %v1872
    %v7902 = vunpack.c.h.b16 %v1872
    %v7903 = vunpack.c.l.b16 %v1873
    %v7904 = vunpack.c.h.b16 %v1873
    %v7905 = vunpack.c.l.b16 %v1874
    %v7906 = vunpack.c.h.b16 %v1874
    %v7907 = vunpack.c.l.b16 %v1875
    %v7908 = vunpack.c.h.b16 %v1875
    %v7909 = vunpack.c.l.b16 %v1876
    %v7910 = vunpack.c.h.b16 %v1876
    %v7911 = vunpack.c.l.b16 %v1877
    %v7912 = vunpack.c.h.b16 %v1877
    %v7913 = vunpack.c.l.b16 %v1878
    %v7914 = vunpack.c.h.b16 %v1878
    %v7915 = vunpack.c.l.b16 %v1879
    %v7916 = vunpack.c.h.b16 %v1879
    %v7917 = vunpack.c.l.b16 %v1880
    %v7918 = vunpack.c.h.b16 %v1880
    %v7919 = vunpack.c.l.b16 %v1881
    %v7920 = vunpack.c.h.b16 %v1881
    %v7921 = vunpack.c.l.b16 %v1882
    %v7922 = vunpack.c.h.b16 %v1882
    %v7923 = vunpack.c.l.b16 %v1883
    %v7924 = vunpack.c.h.b16 %v1883
    %v7925 = vunpack.c.l.b16 %v1884
    %v7926 = vunpack.c.h.b16 %v1884
    %v7927 = vunpack.c.l.b16 %v1885
    %v7928 = vunpack.c.h.b16 %v1885
    %v7929 = vunpack.c.l.b16 %v1886
    %v7930 = vunpack.c.h.b16 %v1886
    %v7931 = vunpack.c.l.b16 %v1887
    %v7932 = vunpack.c.h.b16 %v1887
    %v7933 = vunpack.c.l.b16 %v1888
    %v7934 = vunpack.c.h.b16 %v1888
    %v7935 = vunpack.c.l.b16 %v1889
    %v7936 = vunpack.c.h.b16 %v1889
    %v7937 = vunpack.c.l.b16 %v1890
    %v7938 = vunpack.c.h.b16 %v1890
    %v7939 = vunpack.c.l.b16 %v1891
    %v7940 = vunpack.c.h.b16 %v1891
    %v7941 = vunpack.c.l.b16 %v1892
    %v7942 = vunpack.c.h.b16 %v1892
    %v7943 = vunpack.c.l.b16 %v1893
    %v7944 = vunpack.c.h.b16 %v1893
    %v7945 = vunpack.c.l.b16 %v1894
    %v7946 = vunpack.c.h.b16 %v1894
    %v7947 = vunpack.c.l.b16 %v1895
    %v7948 = vunpack.c.h.b16 %v1895
    %v7949 = vunpack.c.l.b16 %v1896
    %v7950 = vunpack.c.h.b16 %v1896
    %v7951 = vunpack.c.l.b16 %v1897
    %v7952 = vunpack.c.h.b16 %v1897
    %v7953 = vunpack.c.l.b16 %v1898
    %v7954 = vunpack.c.h.b16 %v1898
    %v7955 = vunpack.c.l.b16 %v1899
    %v7956 = vunpack.c.h.b16 %v1899
    %v7957 = vunpack.c.l.b16 %v1900
    %v7958 = vunpack.c.h.b16 %v1900
    %v7959 = vunpack.c.l.b16 %v1901
    %v7960 = vunpack.c.h.b16 %v1901
    %v7961 = vunpack.c.l.b16 %v1902
    %v7962 = vunpack.c.h.b16 %v1902
    %v7963 = vunpack.c.l.b16 %v1903
    %v7964 = vunpack.c.h.b16 %v1903
    %v7965 = vunpack.c.l.b16 %v1904
    %v7966 = vunpack.c.h.b16 %v1904
    %v7967 = vunpack.c.l.b16 %v1905
    %v7968 = vunpack.c.h.b16 %v1905
    %v7969 = vunpack.c.l.b16 %v1906
    %v7970 = vunpack.c.h.b16 %v1906
    %v7971 = vunpack.c.l.b16 %v1907
    %v7972 = vunpack.c.h.b16 %v1907
    %v7973 = vunpack.c.l.b16 %v1908
    %v7974 = vunpack.c.h.b16 %v1908
    %v7975 = vunpack.c.l.b16 %v1909
    %v7976 = vunpack.c.h.b16 %v1909
    %v7977 = vunpack.c.l.b16 %v1910
    %v7978 = vunpack.c.h.b16 %v1910
    %v7979 = vunpack.c.l.b16 %v1911
    %v7980 = vunpack.c.h.b16 %v1911
    %v7981 = vunpack.c.l.b16 %v1912
    %v7982 = vunpack.c.h.b16 %v1912
    %v7983 = vunpack.c.l.b16 %v1913
    %v7984 = vunpack.c.h.b16 %v1913
    %v7985 = vunpack.c.l.b16 %v1914
    %v7986 = vunpack.c.h.b16 %v1914
    %v7987 = vunpack.c.l.b16 %v1915
    %v7988 = vunpack.c.h.b16 %v1915
    %v7989 = vunpack.c.l.b16 %v1916
    %v7990 = vunpack.c.h.b16 %v1916
    %v7991 = vunpack.c.l.b16 %v1917
    %v7992 = vunpack.c.h.b16 %v1917
    %v7993 = vunpack.c.l.b16 %v1918
    %v7994 = vunpack.c.h.b16 %v1918
    %v7995 = vunpack.c.l.b16 %v1919
    %v7996 = vunpack.c.h.b16 %v1919
    %v7997 = vunpack.c.l.b16 %v1920
    %v7998 = vunpack.c.h.b16 %v1920
    %v7999 = vunpack.c.l.b16 %v1921
    %v8000 = vunpack.c.h.b16 %v1921
    %v8001 = vunpack.c.l.b16 %v1922
    %v8002 = vunpack.c.h.b16 %v1922
    %v8003 = vunpack.c.l.b16 %v1923
    %v8004 = vunpack.c.h.b16 %v1923
    %v8005 = vunpack.c.l.b16 %v1924
    %v8006 = vunpack.c.h.b16 %v1924
    %v8007 = vunpack.c.l.b16 %v1925
    %v8008 = vunpack.c.h.b16 %v1925
    %v8009 = vunpack.c.l.b16 %v1926
    %v8010 = vunpack.c.h.b16 %v1926
    %v8011 = vunpack.c.l.b16 %v1927
    %v8012 = vunpack.c.h.b16 %v1927
    %v8013 = vunpack.c.l.b16 %v1928
    %v8014 = vunpack.c.h.b16 %v1928
    %v8015 = vunpack.c.l.b16 %v1929
    %v8016 = vunpack.c.h.b16 %v1929
    %v8017 = vunpack.c.l.b16 %v1930
    %v8018 = vunpack.c.h.b16 %v1930
    %v8019 = vunpack.c.l.b16 %v1931
    %v8020 = vunpack.c.h.b16 %v1931
    %v8021 = vunpack.c.l.b16 %v1932
    %v8022 = vunpack.c.h.b16 %v1932
    %v8023 = vunpack.c.l.b16 %v1933
    %v8024 = vunpack.c.h.b16 %v1933
    %v8025 = vunpack.c.l.b16 %v1934
    %v8026 = vunpack.c.h.b16 %v1934
    %v8027 = vunpack.c.l.b16 %v1935
    %v8028 = vunpack.c.h.b16 %v1935
    %v8029 = vunpack.c.l.b16 %v1936
    %v8030 = vunpack.c.h.b16 %v1936
    %v8031 = vunpack.c.l.b16 %v1937
    %v8032 = vunpack.c.h.b16 %v1937
    %v8033 = vunpack.c.l.b16 %v1938
    %v8034 = vunpack.c.h.b16 %v1938
    %v8035 = vunpack.c.l.b16 %v1939
    %v8036 = vunpack.c.h.b16 %v1939
    %v8037 = vunpack.c.l.b16 %v1940
    %v8038 = vunpack.c.h.b16 %v1940
    %v8039 = vunpack.c.l.b16 %v1941
    %v8040 = vunpack.c.h.b16 %v1941
    %v8041 = vunpack.c.l.b16 %v1942
    %v8042 = vunpack.c.h.b16 %v1942
    %v8043 = vunpack.c.l.b16 %v1943
    %v8044 = vunpack.c.h.b16 %v1943
    %v8045 = vunpack.c.l.b16 %v1944
    %v8046 = vunpack.c.h.b16 %v1944
    %v8047 = vunpack.c.l.b16 %v1945
    %v8048 = vunpack.c.h.b16 %v1945
    %v8049 = vunpack.c.l.b16 %v1946
    %v8050 = vunpack.c.h.b16 %v1946
    %v8051 = vunpack.c.l.b16 %v1947
    %v8052 = vunpack.c.h.b16 %v1947
    %v8053 = vunpack.c.l.b16 %v1948
    %v8054 = vunpack.c.h.b16 %v1948
    %v8055 = vunpack.c.l.b16 %v1949
    %v8056 = vunpack.c.h.b16 %v1949
    %v8057 = vunpack.c.l.b16 %v1950
    %v8058 = vunpack.c.h.b16 %v1950
    %v8059 = vunpack.c.l.b16 %v1951
    %v8060 = vunpack.c.h.b16 %v1951
    %v8061 = vunpack.c.l.b16 %v1952
    %v8062 = vunpack.c.h.b16 %v1952
    %v8063 = vunpack.c.l.b16 %v1953
    %v8064 = vunpack.c.h.b16 %v1953
    %v8065 = vunpack.c.l.b16 %v1954
    %v8066 = vunpack.c.h.b16 %v1954
    %v8067 = vunpack.c.l.b16 %v1955
    %v8068 = vunpack.c.h.b16 %v1955
    %v8069 = vunpack.c.l.b16 %v1956
    %v8070 = vunpack.c.h.b16 %v1956
    %v8071 = vunpack.c.l.b16 %v1957
    %v8072 = vunpack.c.h.b16 %v1957
    %v8073 = vunpack.c.l.b16 %v1958
    %v8074 = vunpack.c.h.b16 %v1958
    %v8075 = vunpack.c.l.b16 %v1959
    %v8076 = vunpack.c.h.b16 %v1959
    %v8077 = vunpack.c.l.b16 %v1960
    %v8078 = vunpack.c.h.b16 %v1960
    %v8079 = vunpack.c.l.b16 %v1961
    %v8080 = vunpack.c.h.b16 %v1961
    %v8081 = vunpack.c.l.b16 %v1962
    %v8082 = vunpack.c.h.b16 %v1962
    %v8083 = vunpack.c.l.b16 %v1963
    %v8084 = vunpack.c.h.b16 %v1963
    %v8085 = vunpack.c.l.b16 %v1964
    %v8086 = vunpack.c.h.b16 %v1964
    %v8087 = vunpack.c.l.b16 %v1965
    %v8088 = vunpack.c.h.b16 %v1965
    %v8089 = vunpack.c.l.b16 %v1966
    %v8090 = vunpack.c.h.b16 %v1966
    %v8091 = vunpack.c.l.b16 %v1967
    %v8092 = vunpack.c.h.b16 %v1967
    %v8093 = vunpack.c.l.b16 %v1968
    %v8094 = vunpack.c.h.b16 %v1968
    %v8095 = vunpack.c.l.b16 %v1969
    %v8096 = vunpack.c.h.b16 %v1969
    %v8097 = vunpack.c.l.b16 %v1970
    %v8098 = vunpack.c.h.b16 %v1970
    %v8099 = vunpack.c.l.b16 %v1971
    %v8100 = vunpack.c.h.b16 %v1971
    %v8101 = vunpack.c.l.b16 %v1972
    %v8102 = vunpack.c.h.b16 %v1972
    %v8103 = vunpack.c.l.b16 %v1973
    %v8104 = vunpack.c.h.b16 %v1973
    %v8105 = vunpack.c.l.b16 %v1974
    %v8106 = vunpack.c.h.b16 %v1974
    %v8107 = vunpack.c.l.b16 %v1975
    %v8108 = vunpack.c.h.b16 %v1975
    %v8109 = vunpack.c.l.b16 %v1976
    %v8110 = vunpack.c.h.b16 %v1976
    %v8111 = vunpack.c.l.b16 %v1977
    %v8112 = vunpack.c.h.b16 %v1977
    %v8113 = vunpack.c.l.b16 %v1978
    %v8114 = vunpack.c.h.b16 %v1978
    %v8115 = vunpack.c.l.b16 %v1979
    %v8116 = vunpack.c.h.b16 %v1979
    %v8117 = vunpack.c.l.b16 %v1980
    %v8118 = vunpack.c.h.b16 %v1980
    %v8119 = vunpack.c.l.b16 %v1981
    %v8120 = vunpack.c.h.b16 %v1981
    %v8121 = vunpack.c.l.b16 %v1982
    %v8122 = vunpack.c.h.b16 %v1982
    %v8123 = vunpack.c.l.b16 %v1983
    %v8124 = vunpack.c.h.b16 %v1983
    %v8125 = vunpack.c.l.b16 %v1984
    %v8126 = vunpack.c.h.b16 %v1984
    %v8127 = vunpack.c.l.b16 %v1985
    %v8128 = vunpack.c.h.b16 %v1985
    %v8129 = vunpack.c.l.b16 %v1986
    %v8130 = vunpack.c.h.b16 %v1986
    %v8131 = vunpack.c.l.b16 %v1987
    %v8132 = vunpack.c.h.b16 %v1987
    %v8133 = vunpack.c.l.b16 %v1988
    %v8134 = vunpack.c.h.b16 %v1988
    %v8135 = vunpack.c.l.b16 %v1989
    %v8136 = vunpack.c.h.b16 %v1989
    %v8137 = vunpack.c.l.b16 %v1990
    %v8138 = vunpack.c.h.b16 %v1990
    %v8139 = vunpack.c.l.b16 %v1991
    %v8140 = vunpack.c.h.b16 %v1991
    %v8141 = vunpack.c.l.b16 %v1992
    %v8142 = vunpack.c.h.b16 %v1992
    %v8143 = vunpack.c.l.b16 %v1993
    %v8144 = vunpack.c.h.b16 %v1993
    %v8145 = vunpack.c.l.b16 %v1994
    %v8146 = vunpack.c.h.b16 %v1994
    %v8147 = vunpack.c.l.b16 %v1995
    %v8148 = vunpack.c.h.b16 %v1995
    %v8149 = vunpack.c.l.b16 %v1996
    %v8150 = vunpack.c.h.b16 %v1996
    %v8151 = vunpack.c.l.b16 %v1997
    %v8152 = vunpack.c.h.b16 %v1997
    %v8153 = vunpack.c.l.b16 %v1998
    %v8154 = vunpack.c.h.b16 %v1998
    %v8155 = vunpack.c.l.b16 %v1999
    %v8156 = vunpack.c.h.b16 %v1999
    %v8157 = vunpack.c.l.b16 %v2000
    %v8158 = vunpack.c.h.b16 %v2000
    %v8159 = vunpack.c.l.b16 %v2001
    %v8160 = vunpack.c.h.b16 %v2001
    %v8161 = vunpack.c.l.b16 %v2002
    %v8162 = vunpack.c.h.b16 %v2002
    %v8163 = vunpack.c.l.b16 %v2003
    %v8164 = vunpack.c.h.b16 %v2003
    %v8165 = vunpack.c.l.b16 %v2004
    %v8166 = vunpack.c.h.b16 %v2004
    %v8167 = vunpack.c.l.b16 %v2005
    %v8168 = vunpack.c.h.b16 %v2005
    %v8169 = vunpack.c.l.b16 %v2006
    %v8170 = vunpack.c.h.b16 %v2006
    %v8171 = vunpack.c.l.b16 %v2007
    %v8172 = vunpack.c.h.b16 %v2007
    %v8173 = vunpack.c.l.b16 %v2008
    %v8174 = vunpack.c.h.b16 %v2008
    %v8175 = vunpack.c.l.b16 %v2009
    %v8176 = vunpack.c.h.b16 %v2009
    %v8177 = vunpack.c.l.b16 %v2010
    %v8178 = vunpack.c.h.b16 %v2010
    %v8179 = vunpack.c.l.b16 %v2011
    %v8180 = vunpack.c.h.b16 %v2011
    %v8181 = vunpack.c.l.b16 %v2012
    %v8182 = vunpack.c.h.b16 %v2012
    %v8183 = vunpack.c.l.b16 %v2013
    %v8184 = vunpack.c.h.b16 %v2013
    %v8185 = vunpack.c.l.b16 %v2014
    %v8186 = vunpack.c.h.b16 %v2014
    %v8187 = vunpack.c.l.b16 %v2015
    %v8188 = vunpack.c.h.b16 %v2015
    %v8189 = vunpack.c.l.b16 %v2016
    %v8190 = vunpack.c.h.b16 %v2016
    %v8191 = vunpack.c.l.b16 %v2017
    %v8192 = vunpack.c.h.b16 %v2017
    %v8193 = vunpack.c.l.b16 %v2018
    %v8194 = vunpack.c.h.b16 %v2018
    %v8195 = vunpack.c.l.b16 %v2019
    %v8196 = vunpack.c.h.b16 %v2019
    %v8197 = vunpack.c.l.b16 %v2020
    %v8198 = vunpack.c.h.b16 %v2020
    %v8199 = vunpack.c.l.b16 %v2021
    %v8200 = vunpack.c.h.b16 %v2021
    %v8201 = vunpack.c.l.b16 %v2022
    %v8202 = vunpack.c.h.b16 %v2022
    %v8203 = vunpack.c.l.b16 %v2023
    %v8204 = vunpack.c.h.b16 %v2023
    %v8205 = vunpack.c.l.b16 %v2024
    %v8206 = vunpack.c.h.b16 %v2024
    %v8207 = vunpack.c.l.b16 %v2025
    %v8208 = vunpack.c.h.b16 %v2025
    %v8209 = vunpack.c.l.b16 %v2026
    %v8210 = vunpack.c.h.b16 %v2026
    %v8211 = vunpack.c.l.b16 %v2027
    %v8212 = vunpack.c.h.b16 %v2027
    %v8213 = vunpack.c.l.b16 %v2028
    %v8214 = vunpack.c.h.b16 %v2028
    %v8215 = vunpack.c.l.b16 %v2029
    %v8216 = vunpack.c.h.b16 %v2029
    %v8217 = vunpack.c.l.b16 %v2030
    %v8218 = vunpack.c.h.b16 %v2030
    %v8219 = vunpack.c.l.b16 %v2031
    %v8220 = vunpack.c.h.b16 %v2031
    %v8221 = vunpack.c.l.b16 %v2032
    %v8222 = vunpack.c.h.b16 %v2032
    %v8223 = vunpack.c.l.b16 %v2033
    %v8224 = vunpack.c.h.b16 %v2033
    %v8225 = vunpack.c.l.b16 %v2034
    %v8226 = vunpack.c.h.b16 %v2034
    %v8227 = vunpack.c.l.b16 %v2035
    %v8228 = vunpack.c.h.b16 %v2035
    %v8229 = vunpack.c.l.b16 %v2036
    %v8230 = vunpack.c.h.b16 %v2036
    %v8231 = vunpack.c.l.b16 %v2037
    %v8232 = vunpack.c.h.b16 %v2037
    %v8233 = vunpack.c.l.b16 %v2038
    %v8234 = vunpack.c.h.b16 %v2038
    %v8235 = vunpack.c.l.b16 %v2039
    %v8236 = vunpack.c.h.b16 %v2039
    %v8237 = vunpack.c.l.b16 %v2040
    %v8238 = vunpack.c.h.b16 %v2040
    %v8239 = vunpack.c.l.b16 %v2041
    %v8240 = vunpack.c.h.b16 %v2041
    %v8241 = vunpack.c.l.b16 %v2042
    %v8242 = vunpack.c.h.b16 %v2042
    %v8243 = vunpack.c.l.b16 %v2043
    %v8244 = vunpack.c.h.b16 %v2043
    %v8245 = vunpack.c.l.b16 %v2044
    %v8246 = vunpack.c.h.b16 %v2044
    %v8247 = vunpack.c.l.b16 %v2045
    %v8248 = vunpack.c.h.b16 %v2045
    %v8249 = vunpack.c.l.b16 %v2046
    %v8250 = vunpack.c.h.b16 %v2046
    %v8251 = vunpack.c.l.b16 %v2047
    %v8252 = vunpack.c.h.b16 %v2047
    %v8253 = vunpack.c.l.b16 %v2048
    %v8254 = vunpack.c.h.b16 %v2048
    %v8255 = vunpack.c.l.b16 %v2049
    %v8256 = vunpack.c.h.b16 %v2049
    %v8257 = vunpack.c.l.b16 %v2050
    %v8258 = vunpack.c.h.b16 %v2050
    %v8259 = vunpack.c.l.b16 %v2051
    %v8260 = vunpack.c.h.b16 %v2051
    %v8261 = vunpack.c.l.b16 %v2052
    %v8262 = vunpack.c.h.b16 %v2052
    %v8263 = vunpack.c.l.b16 %v2053
    %v8264 = vunpack.c.h.b16 %v2053
    %v8265 = vunpack.c.l.b16 %v2054
    %v8266 = vunpack.c.h.b16 %v2054
    %v8267 = vunpack.c.l.b16 %v2055
    %v8268 = vunpack.c.h.b16 %v2055
    %v8269 = vunpack.c.l.b16 %v2056
    %v8270 = vunpack.c.h.b16 %v2056
    %v8271 = vunpack.c.l.b16 %v2057
    %v8272 = vunpack.c.h.b16 %v2057
    %v8273 = vunpack.c.l.b16 %v2058
    %v8274 = vunpack.c.h.b16 %v2058
    %v8275 = vunpack.c.l.b16 %v2059
    %v8276 = vunpack.c.h.b16 %v2059
    %v8277 = vunpack.c.l.b16 %v2060
    %v8278 = vunpack.c.h.b16 %v2060
    %v8279 = vunpack.c.l.b16 %v2061
    %v8280 = vunpack.c.h.b16 %v2061
    %v8281 = vunpack.c.l.b16 %v2062
    %v8282 = vunpack.c.h.b16 %v2062
    %v8283 = vunpack.c.l.b16 %v2063
    %v8284 = vunpack.c.h.b16 %v2063
    %v8285 = vunpack.c.l.b16 %v2064
    %v8286 = vunpack.c.h.b16 %v2064
    %v8287 = vunpack.c.l.b16 %v2065
    %v8288 = vunpack.c.h.b16 %v2065
    %v8289 = vunpack.c.l.b16 %v2066
    %v8290 = vunpack.c.h.b16 %v2066
    %v8291 = vunpack.c.l.b16 %v2067
    %v8292 = vunpack.c.h.b16 %v2067
    %v8293 = vunpack.c.l.b16 %v2068
    %v8294 = vunpack.c.h.b16 %v2068
    %v8295 = vunpack.c.l.b16 %v2069
    %v8296 = vunpack.c.h.b16 %v2069
    %v8297 = vunpack.c.l.b16 %v2070
    %v8298 = vunpack.c.h.b16 %v2070
    %v8299 = vunpack.c.l.b16 %v2071
    %v8300 = vunpack.c.h.b16 %v2071
    %v8301 = vunpack.c.l.b16 %v2072
    %v8302 = vunpack.c.h.b16 %v2072
    %v8303 = vunpack.c.l.b16 %v2073
    %v8304 = vunpack.c.h.b16 %v2073
    %v8305 = vunpack.c.l.b16 %v2074
    %v8306 = vunpack.c.h.b16 %v2074
    %v8307 = vunpack.c.l.b16 %v2075
    %v8308 = vunpack.c.h.b16 %v2075
    %v8309 = vunpack.c.l.b16 %v2076
    %v8310 = vunpack.c.h.b16 %v2076
    %v8311 = vunpack.c.l.b16 %v2077
    %v8312 = vunpack.c.h.b16 %v2077
    %v8313 = vunpack.c.l.b16 %v2078
    %v8314 = vunpack.c.h.b16 %v2078
    %v8315 = vunpack.c.l.b16 %v2079
    %v8316 = vunpack.c.h.b16 %v2079
    %v8317 = vunpack.c.l.b16 %v2080
    %v8318 = vunpack.c.h.b16 %v2080
    %v8319 = vunpack.c.l.b16 %v2081
    %v8320 = vunpack.c.h.b16 %v2081
    %v8321 = vunpack.c.l.b16 %v2082
    %v8322 = vunpack.c.h.b16 %v2082
    %v8323 = vunpack.c.l.b16 %v2083
    %v8324 = vunpack.c.h.b16 %v2083
    %v8325 = vunpack.c.l.b16 %v2084
    %v8326 = vunpack.c.h.b16 %v2084
    %v8327 = vunpack.c.l.b16 %v2085
    %v8328 = vunpack.c.h.b16 %v2085
    %v8329 = vunpack.c.l.b16 %v2086
    %v8330 = vunpack.c.h.b16 %v2086
    %v8331 = vunpack.c.l.b16 %v2087
    %v8332 = vunpack.c.h.b16 %v2087
    %v8333 = vunpack.c.l.b16 %v2088
    %v8334 = vunpack.c.h.b16 %v2088
    %v8335 = vunpack.c.l.b16 %v2089
    %v8336 = vunpack.c.h.b16 %v2089
    %v8337 = vunpack.c.l.b16 %v2090
    %v8338 = vunpack.c.h.b16 %v2090
    %v8339 = vunpack.c.l.b16 %v2091
    %v8340 = vunpack.c.h.b16 %v2091
    %v8341 = vunpack.c.l.b16 %v2092
    %v8342 = vunpack.c.h.b16 %v2092
    %v8343 = vunpack.c.l.b16 %v2093
    %v8344 = vunpack.c.h.b16 %v2093
    %v8345 = vunpack.c.l.b16 %v2094
    %v8346 = vunpack.c.h.b16 %v2094
    %v8347 = vunpack.c.l.b16 %v2095
    %v8348 = vunpack.c.h.b16 %v2095
    %v8349 = vunpack.c.l.b16 %v2096
    %v8350 = vunpack.c.h.b16 %v2096
    %v8351 = vunpack.c.l.b16 %v2097
    %v8352 = vunpack.c.h.b16 %v2097
    %v8353 = vunpack.c.l.b16 %v2098
    %v8354 = vunpack.c.h.b16 %v2098
    %v8355 = vunpack.c.l.b16 %v2099
    %v8356 = vunpack.c.h.b16 %v2099
    %v8357 = vunpack.c.l.b16 %v2100
    %v8358 = vunpack.c.h.b16 %v2100
    %v8359 = vunpack.c.l.b16 %v2101
    %v8360 = vunpack.c.h.b16 %v2101
    %v8361 = vunpack.c.l.b16 %v2102
    %v8362 = vunpack.c.h.b16 %v2102
    %v8363 = vunpack.c.l.b16 %v2103
    %v8364 = vunpack.c.h.b16 %v2103
    %v8365 = vunpack.c.l.b16 %v2104
    %v8366 = vunpack.c.h.b16 %v2104
    %v8367 = vunpack.c.l.b16 %v2105
    %v8368 = vunpack.c.h.b16 %v2105
    %v8369 = vunpack.c.l.b16 %v2106
    %v8370 = vunpack.c.h.b16 %v2106
    %v8371 = vunpack.c.l.b16 %v2107
    %v8372 = vunpack.c.h.b16 %v2107
    %v8373 = vunpack.c.l.b16 %v2108
    %v8374 = vunpack.c.h.b16 %v2108
    %v8375 = vunpack.c.l.b16 %v2109
    %v8376 = vunpack.c.h.b16 %v2109
    %v8377 = vunpack.c.l.b16 %v2110
    %v8378 = vunpack.c.h.b16 %v2110
    %v8379 = vunpack.c.l.b16 %v2111
    %v8380 = vunpack.c.h.b16 %v2111
    %v8381 = vunpack.c.l.b16 %v2112
    %v8382 = vunpack.c.h.b16 %v2112
    %v8383 = vunpack.c.l.b16 %v2113
    %v8384 = vunpack.c.h.b16 %v2113
    %v8385 = vunpack.c.l.b16 %v2114
    %v8386 = vunpack.c.h.b16 %v2114
    %v8387 = vunpack.c.l.b16 %v2115
    %v8388 = vunpack.c.h.b16 %v2115
    %v8389 = vunpack.c.l.b16 %v2116
    %v8390 = vunpack.c.h.b16 %v2116
    %v8391 = vunpack.c.l.b16 %v2117
    %v8392 = vunpack.c.h.b16 %v2117
    %v8393 = vunpack.c.l.b16 %v2118
    %v8394 = vunpack.c.h.b16 %v2118
    %v8395 = vunpack.c.l.b16 %v2119
    %v8396 = vunpack.c.h.b16 %v2119
    %v8397 = vunpack.c.l.b16 %v2120
    %v8398 = vunpack.c.h.b16 %v2120
    %v8399 = vunpack.c.l.b16 %v2121
    %v8400 = vunpack.c.h.b16 %v2121
    %v8401 = vunpack.c.l.b16 %v2122
    %v8402 = vunpack.c.h.b16 %v2122
    %v8403 = vunpack.c.l.b16 %v2123
    %v8404 = vunpack.c.h.b16 %v2123
    %v8405 = vunpack.c.l.b16 %v2124
    %v8406 = vunpack.c.h.b16 %v2124
    %v8407 = vunpack.c.l.b16 %v2125
    %v8408 = vunpack.c.h.b16 %v2125
    %v8409 = vunpack.c.l.b16 %v2126
    %v8410 = vunpack.c.h.b16 %v2126
    %v8411 = vpack.c.b16 %v4331, %v4315
    %v8412 = vpack.c.b16 %v4332, %v4316
    %v8413 = vpack.c.b16 %v4333, %v4317
    %v8414 = vpack.c.b16 %v4334, %v4318
    %v8415 = vpack.c.b16 %v4335, %v4319
    %v8416 = vpack.c.b16 %v4336, %v4320
    %v8417 = vpack.c.b16 %v4337, %v4321
    %v8418 = vpack.c.b16 %v4338, %v4322
    %v8419 = vpack.c.b16 %v4339, %v4323
    %v8420 = vpack.c.b16 %v4340, %v4324
    %v8421 = vpack.c.b16 %v4341, %v4325
    %v8422 = vpack.c.b16 %v4342, %v4326
    %v8423 = vpack.c.b16 %v4343, %v4327
    %v8424 = vpack.c.b16 %v4344, %v4328
    %v8425 = vpack.c.b16 %v4345, %v4329
    %v8426 = vpack.c.b16 %v4346, %v4330
    %v8427 = vpack.c.b16 %v4363, %v4347
    %v8428 = vpack.c.b16 %v4364, %v4348
    %v8429 = vpack.c.b16 %v4365, %v4349
    %v8430 = vpack.c.b16 %v4366, %v4350
    %v8431 = vpack.c.b16 %v4367, %v4351
    %v8432 = vpack.c.b16 %v4368, %v4352
    %v8433 = vpack.c.b16 %v4369, %v4353
    %v8434 = vpack.c.b16 %v4370, %v4354
    %v8435 = vpack.c.b16 %v4371, %v4355
    %v8436 = vpack.c.b16 %v4372, %v4356
    %v8437 = vpack.c.b16 %v4373, %v4357
    %v8438 = vpack.c.b16 %v4374, %v4358
    %v8439 = vpack.c.b16 %v4375, %v4359
    %v8440 = vpack.c.b16 %v4376, %v4360
    %v8441 = vpack.c.b16 %v4377, %v4361
    %v8442 = vpack.c.b16 %v4378, %v4362
    %v8443 = vpack.c.b16 %v4395, %v4379
    %v8444 = vpack.c.b16 %v4396, %v4380
    %v8445 = vpack.c.b16 %v4397, %v4381
    %v8446 = vpack.c.b16 %v4398, %v4382
    %v8447 = vpack.c.b16 %v4399, %v4383
    %v8448 = vpack.c.b16 %v4400, %v4384
    %v8449 = vpack.c.b16 %v4401, %v4385
    %v8450 = vpack.c.b16 %v4402, %v4386
    %v8451 = vpack.c.b16 %v4403, %v4387
    %v8452 = vpack.c.b16 %v4404, %v4388
    %v8453 = vpack.c.b16 %v4405, %v4389
    %v8454 = vpack.c.b16 %v4406, %v4390
    %v8455 = vpack.c.b16 %v4407, %v4391
    %v8456 = vpack.c.b16 %v4408, %v4392
    %v8457 = vpack.c.b16 %v4409, %v4393
    %v8458 = vpack.c.b16 %v4410, %v4394
    %v8459 = vpack.c.b16 %v4427, %v4411
    %v8460 = vpack.c.b16 %v4428, %v4412
    %v8461 = vpack.c.b16 %v4429, %v4413
    %v8462 = vpack.c.b16 %v4430, %v4414
    %v8463 = vpack.c.b16 %v4431, %v4415
    %v8464 = vpack.c.b16 %v4432, %v4416
    %v8465 = vpack.c.b16 %v4433, %v4417
    %v8466 = vpack.c.b16 %v4434, %v4418
    %v8467 = vpack.c.b16 %v4435, %v4419
    %v8468 = vpack.c.b16 %v4436, %v4420
    %v8469 = vpack.c.b16 %v4437, %v4421
    %v8470 = vpack.c.b16 %v4438, %v4422
    %v8471 = vpack.c.b16 %v4439, %v4423
    %v8472 = vpack.c.b16 %v4440, %v4424
    %v8473 = vpack.c.b16 %v4441, %v4425
    %v8474 = vpack.c.b16 %v4442, %v4426
    %v8475 = vpack.c.b16 %v4459, %v4443
    %v8476 = vpack.c.b16 %v4460, %v4444
    %v8477 = vpack.c.b16 %v4461, %v4445
    %v8478 = vpack.c.b16 %v4462, %v4446
    %v8479 = vpack.c.b16 %v4463, %v4447
    %v8480 = vpack.c.b16 %v4464, %v4448
    %v8481 = vpack.c.b16 %v4465, %v4449
    %v8482 = vpack.c.b16 %v4466, %v4450
    %v8483 = vpack.c.b16 %v4467, %v4451
    %v8484 = vpack.c.b16 %v4468, %v4452
    %v8485 = vpack.c.b16 %v4469, %v4453
    %v8486 = vpack.c.b16 %v4470, %v4454
    %v8487 = vpack.c.b16 %v4471, %v4455
    %v8488 = vpack.c.b16 %v4472, %v4456
    %v8489 = vpack.c.b16 %v4473, %v4457
    %v8490 = vpack.c.b16 %v4474, %v4458
    %v8491 = vpack.c.b16 %v4491, %v4475
    %v8492 = vpack.c.b16 %v4492, %v4476
    %v8493 = vpack.c.b16 %v4493, %v4477
    %v8494 = vpack.c.b16 %v4494, %v4478
    %v8495 = vpack.c.b16 %v4495, %v4479
    %v8496 = vpack.c.b16 %v4496, %v4480
    %v8497 = vpack.c.b16 %v4497, %v4481
    %v8498 = vpack.c.b16 %v4498, %v4482
    %v8499 = vpack.c.b16 %v4499, %v4483
    %v8500 = vpack.c.b16 %v4500, %v4484
    %v8501 = vpack.c.b16 %v4501, %v4485
    %v8502 = vpack.c.b16 %v4502, %v4486
    %v8503 = vpack.c.b16 %v4503, %v4487
    %v8504 = vpack.c.b16 %v4504, %v4488
    %v8505 = vpack.c.b16 %v4505, %v4489
    %v8506 = vpack.c.b16 %v4506, %v4490
    %v8507 = vpack.c.b16 %v4523, %v4507
    %v8508 = vpack.c.b16 %v4524, %v4508
    %v8509 = vpack.c.b16 %v4525, %v4509
    %v8510 = vpack.c.b16 %v4526, %v4510
    %v8511 = vpack.c.b16 %v4527, %v4511
    %v8512 = vpack.c.b16 %v4528, %v4512
    %v8513 = vpack.c.b16 %v4529, %v4513
    %v8514 = vpack.c.b16 %v4530, %v4514
    %v8515 = vpack.c.b16 %v4531, %v4515
    %v8516 = vpack.c.b16 %v4532, %v4516
    %v8517 = vpack.c.b16 %v4533, %v4517
    %v8518 = vpack.c.b16 %v4534, %v4518
    %v8519 = vpack.c.b16 %v4535, %v4519
    %v8520 = vpack.c.b16 %v4536, %v4520
    %v8521 = vpack.c.b16 %v4537, %v4521
    %v8522 = vpack.c.b16 %v4538, %v4522
    %v8523 = vpack.c.b16 %v4555, %v4539
    %v8524 = vpack.c.b16 %v4556, %v4540
    %v8525 = vpack.c.b16 %v4557, %v4541
    %v8526 = vpack.c.b16 %v4558, %v4542
    %v8527 = vpack.c.b16 %v4559, %v4543
    %v8528 = vpack.c.b16 %v4560, %v4544
    %v8529 = vpack.c.b16 %v4561, %v4545
    %v8530 = vpack.c.b16 %v4562, %v4546
    %v8531 = vpack.c.b16 %v4563, %v4547
    %v8532 = vpack.c.b16 %v4564, %v4548
    %v8533 = vpack.c.b16 %v4565, %v4549
    %v8534 = vpack.c.b16 %v4566, %v4550
    %v8535 = vpack.c.b16 %v4567, %v4551
    %v8536 = vpack.c.b16 %v4568, %v4552
    %v8537 = vpack.c.b16 %v4569, %v4553
    %v8538 = vpack.c.b16 %v4570, %v4554
    %v8539 = vpack.c.b16 %v4587, %v4571
    %v8540 = vpack.c.b16 %v4588, %v4572
    %v8541 = vpack.c.b16 %v4589, %v4573
    %v8542 = vpack.c.b16 %v4590, %v4574
    %v8543 = vpack.c.b16 %v4591, %v4575
    %v8544 = vpack.c.b16 %v4592, %v4576
    %v8545 = vpack.c.b16 %v4593, %v4577
    %v8546 = vpack.c.b16 %v4594, %v4578
    %v8547 = vpack.c.b16 %v4595, %v4579
    %v8548 = vpack.c.b16 %v4596, %v4580
    %v8549 = vpack.c.b16 %v4597, %v4581
    %v8550 = vpack.c.b16 %v4598, %v4582
    %v8551 = vpack.c.b16 %v4599, %v4583
    %v8552 = vpack.c.b16 %v4600, %v4584
    %v8553 = vpack.c.b16 %v4601, %v4585
    %v8554 = vpack.c.b16 %v4602, %v4586
    %v8555 = vpack.c.b16 %v4619, %v4603
    %v8556 = vpack.c.b16 %v4620, %v4604
    %v8557 = vpack.c.b16 %v4621, %v4605
    %v8558 = vpack.c.b16 %v4622, %v4606
    %v8559 = vpack.c.b16 %v4623, %v4607
    %v8560 = vpack.c.b16 %v4624, %v4608
    %v8561 = vpack.c.b16 %v4625, %v4609
    %v8562 = vpack.c.b16 %v4626, %v4610
    %v8563 = vpack.c.b16 %v4627, %v4611
    %v8564 = vpack.c.b16 %v4628, %v4612
    %v8565 = vpack.c.b16 %v4629, %v4613
    %v8566 = vpack.c.b16 %v4630, %v4614
    %v8567 = vpack.c.b16 %v4631, %v4615
    %v8568 = vpack.c.b16 %v4632, %v4616
    %v8569 = vpack.c.b16 %v4633, %v4617
    %v8570 = vpack.c.b16 %v4634, %v4618
    %v8571 = vpack.c.b16 %v4651, %v4635
    %v8572 = vpack.c.b16 %v4652, %v4636
    %v8573 = vpack.c.b16 %v4653, %v4637
    %v8574 = vpack.c.b16 %v4654, %v4638
    %v8575 = vpack.c.b16 %v4655, %v4639
    %v8576 = vpack.c.b16 %v4656, %v4640
    %v8577 = vpack.c.b16 %v4657, %v4641
    %v8578 = vpack.c.b16 %v4658, %v4642
    %v8579 = vpack.c.b16 %v4659, %v4643
    %v8580 = vpack.c.b16 %v4660, %v4644
    %v8581 = vpack.c.b16 %v4661, %v4645
    %v8582 = vpack.c.b16 %v4662, %v4646
    %v8583 = vpack.c.b16 %v4663, %v4647
    %v8584 = vpack.c.b16 %v4664, %v4648
    %v8585 = vpack.c.b16 %v4665, %v4649
    %v8586 = vpack.c.b16 %v4666, %v4650
    %v8587 = vpack.c.b16 %v4683, %v4667
    %v8588 = vpack.c.b16 %v4684, %v4668
    %v8589 = vpack.c.b16 %v4685, %v4669
    %v8590 = vpack.c.b16 %v4686, %v4670
    %v8591 = vpack.c.b16 %v4687, %v4671
    %v8592 = vpack.c.b16 %v4688, %v4672
    %v8593 = vpack.c.b16 %v4689, %v4673
    %v8594 = vpack.c.b16 %v4690, %v4674
    %v8595 = vpack.c.b16 %v4691, %v4675
    %v8596 = vpack.c.b16 %v4692, %v4676
    %v8597 = vpack.c.b16 %v4693, %v4677
    %v8598 = vpack.c.b16 %v4694, %v4678
    %v8599 = vpack.c.b16 %v4695, %v4679
    %v8600 = vpack.c.b16 %v4696, %v4680
    %v8601 = vpack.c.b16 %v4697, %v4681
    %v8602 = vpack.c.b16 %v4698, %v4682
    %v8603 = vpack.c.b16 %v4715, %v4699
    %v8604 = vpack.c.b16 %v4716, %v4700
    %v8605 = vpack.c.b16 %v4717, %v4701
    %v8606 = vpack.c.b16 %v4718, %v4702
    %v8607 = vpack.c.b16 %v4719, %v4703
    %v8608 = vpack.c.b16 %v4720, %v4704
    %v8609 = vpack.c.b16 %v4721, %v4705
    %v8610 = vpack.c.b16 %v4722, %v4706
    %v8611 = vpack.c.b16 %v4723, %v4707
    %v8612 = vpack.c.b16 %v4724, %v4708
    %v8613 = vpack.c.b16 %v4725, %v4709
    %v8614 = vpack.c.b16 %v4726, %v4710
    %v8615 = vpack.c.b16 %v4727, %v4711
    %v8616 = vpack.c.b16 %v4728, %v4712
    %v8617 = vpack.c.b16 %v4729, %v4713
    %v8618 = vpack.c.b16 %v4730, %v4714
    %v8619 = vpack.c.b16 %v4747, %v4731
    %v8620 = vpack.c.b16 %v4748, %v4732
    %v8621 = vpack.c.b16 %v4749, %v4733
    %v8622 = vpack.c.b16 %v4750, %v4734
    %v8623 = vpack.c.b16 %v4751, %v4735
    %v8624 = vpack.c.b16 %v4752, %v4736
    %v8625 = vpack.c.b16 %v4753, %v4737
    %v8626 = vpack.c.b16 %v4754, %v4738
    %v8627 = vpack.c.b16 %v4755, %v4739
    %v8628 = vpack.c.b16 %v4756, %v4740
    %v8629 = vpack.c.b16 %v4757, %v4741
    %v8630 = vpack.c.b16 %v4758, %v4742
    %v8631 = vpack.c.b16 %v4759, %v4743
    %v8632 = vpack.c.b16 %v4760, %v4744
    %v8633 = vpack.c.b16 %v4761, %v4745
    %v8634 = vpack.c.b16 %v4762, %v4746
    %v8635 = vpack.c.b16 %v4779, %v4763
    %v8636 = vpack.c.b16 %v4780, %v4764
    %v8637 = vpack.c.b16 %v4781, %v4765
    %v8638 = vpack.c.b16 %v4782, %v4766
    %v8639 = vpack.c.b16 %v4783, %v4767
    %v8640 = vpack.c.b16 %v4784, %v4768
    %v8641 = vpack.c.b16 %v4785, %v4769
    %v8642 = vpack.c.b16 %v4786, %v4770
    %v8643 = vpack.c.b16 %v4787, %v4771
    %v8644 = vpack.c.b16 %v4788, %v4772
    %v8645 = vpack.c.b16 %v4789, %v4773
    %v8646 = vpack.c.b16 %v4790, %v4774
    %v8647 = vpack.c.b16 %v4791, %v4775
    %v8648 = vpack.c.b16 %v4792, %v4776
    %v8649 = vpack.c.b16 %v4793, %v4777
    %v8650 = vpack.c.b16 %v4794, %v4778
    %v8651 = vpack.c.b16 %v4811, %v4795
    %v8652 = vpack.c.b16 %v4812, %v4796
    %v8653 = vpack.c.b16 %v4813, %v4797
    %v8654 = vpack.c.b16 %v4814, %v4798
    %v8655 = vpack.c.b16 %v4815, %v4799
    %v8656 = vpack.c.b16 %v4816, %v4800
    %v8657 = vpack.c.b16 %v4817, %v4801
    %v8658 = vpack.c.b16 %v4818, %v4802
    %v8659 = vpack.c.b16 %v4819, %v4803
    %v8660 = vpack.c.b16 %v4820, %v4804
    %v8661 = vpack.c.b16 %v4821, %v4805
    %v8662 = vpack.c.b16 %v4822, %v4806
    %v8663 = vpack.c.b16 %v4823, %v4807
    %v8664 = vpack.c.b16 %v4824, %v4808
    %v8665 = vpack.c.b16 %v4825, %v4809
    %v8666 = vpack.c.b16 %v4826, %v4810
    %v8667 = vpack.c.b16 %v4843, %v4827
    %v8668 = vpack.c.b16 %v4844, %v4828
    %v8669 = vpack.c.b16 %v4845, %v4829
    %v8670 = vpack.c.b16 %v4846, %v4830
    %v8671 = vpack.c.b16 %v4847, %v4831
    %v8672 = vpack.c.b16 %v4848, %v4832
    %v8673 = vpack.c.b16 %v4849, %v4833
    %v8674 = vpack.c.b16 %v4850, %v4834
    %v8675 = vpack.c.b16 %v4851, %v4835
    %v8676 = vpack.c.b16 %v4852, %v4836
    %v8677 = vpack.c.b16 %v4853, %v4837
    %v8678 = vpack.c.b16 %v4854, %v4838
    %v8679 = vpack.c.b16 %v4855, %v4839
    %v8680 = vpack.c.b16 %v4856, %v4840
    %v8681 = vpack.c.b16 %v4857, %v4841
    %v8682 = vpack.c.b16 %v4858, %v4842
    %v8683 = vpack.c.b16 %v4875, %v4859
    %v8684 = vpack.c.b16 %v4876, %v4860
    %v8685 = vpack.c.b16 %v4877, %v4861
    %v8686 = vpack.c.b16 %v4878, %v4862
    %v8687 = vpack.c.b16 %v4879, %v4863
    %v8688 = vpack.c.b16 %v4880, %v4864
    %v8689 = vpack.c.b16 %v4881, %v4865
    %v8690 = vpack.c.b16 %v4882, %v4866
    %v8691 = vpack.c.b16 %v4883, %v4867
    %v8692 = vpack.c.b16 %v4884, %v4868
    %v8693 = vpack.c.b16 %v4885, %v4869
    %v8694 = vpack.c.b16 %v4886, %v4870
    %v8695 = vpack.c.b16 %v4887, %v4871
    %v8696 = vpack.c.b16 %v4888, %v4872
    %v8697 = vpack.c.b16 %v4889, %v4873
    %v8698 = vpack.c.b16 %v4890, %v4874
    %v8699 = vpack.c.b16 %v4907, %v4891
    %v8700 = vpack.c.b16 %v4908, %v4892
    %v8701 = vpack.c.b16 %v4909, %v4893
    %v8702 = vpack.c.b16 %v4910, %v4894
    %v8703 = vpack.c.b16 %v4911, %v4895
    %v8704 = vpack.c.b16 %v4912, %v4896
    %v8705 = vpack.c.b16 %v4913, %v4897
    %v8706 = vpack.c.b16 %v4914, %v4898
    %v8707 = vpack.c.b16 %v4915, %v4899
    %v8708 = vpack.c.b16 %v4916, %v4900
    %v8709 = vpack.c.b16 %v4917, %v4901
    %v8710 = vpack.c.b16 %v4918, %v4902
    %v8711 = vpack.c.b16 %v4919, %v4903
    %v8712 = vpack.c.b16 %v4920, %v4904
    %v8713 = vpack.c.b16 %v4921, %v4905
    %v8714 = vpack.c.b16 %v4922, %v4906
    %v8715 = vpack.c.b16 %v4939, %v4923
    %v8716 = vpack.c.b16 %v4940, %v4924
    %v8717 = vpack.c.b16 %v4941, %v4925
    %v8718 = vpack.c.b16 %v4942, %v4926
    %v8719 = vpack.c.b16 %v4943, %v4927
    %v8720 = vpack.c.b16 %v4944, %v4928
    %v8721 = vpack.c.b16 %v4945, %v4929
    %v8722 = vpack.c.b16 %v4946, %v4930
    %v8723 = vpack.c.b16 %v4947, %v4931
    %v8724 = vpack.c.b16 %v4948, %v4932
    %v8725 = vpack.c.b16 %v4949, %v4933
    %v8726 = vpack.c.b16 %v4950, %v4934
    %v8727 = vpack.c.b16 %v4951, %v4935
    %v8728 = vpack.c.b16 %v4952, %v4936
    %v8729 = vpack.c.b16 %v4953, %v4937
    %v8730 = vpack.c.b16 %v4954, %v4938
    %v8731 = vpack.c.b16 %v4971, %v4955
    %v8732 = vpack.c.b16 %v4972, %v4956
    %v8733 = vpack.c.b16 %v4973, %v4957
    %v8734 = vpack.c.b16 %v4974, %v4958
    %v8735 = vpack.c.b16 %v4975, %v4959
    %v8736 = vpack.c.b16 %v4976, %v4960
    %v8737 = vpack.c.b16 %v4977, %v4961
    %v8738 = vpack.c.b16 %v4978, %v4962
    %v8739 = vpack.c.b16 %v4979, %v4963
    %v8740 = vpack.c.b16 %v4980, %v4964
    %v8741 = vpack.c.b16 %v4981, %v4965
    %v8742 = vpack.c.b16 %v4982, %v4966
    %v8743 = vpack.c.b16 %v4983, %v4967
    %v8744 = vpack.c.b16 %v4984, %v4968
    %v8745 = vpack.c.b16 %v4985, %v4969
    %v8746 = vpack.c.b16 %v4986, %v4970
    %v8747 = vpack.c.b16 %v5003, %v4987
    %v8748 = vpack.c.b16 %v5004, %v4988
    %v8749 = vpack.c.b16 %v5005, %v4989
    %v8750 = vpack.c.b16 %v5006, %v4990
    %v8751 = vpack.c.b16 %v5007, %v4991
    %v8752 = vpack.c.b16 %v5008, %v4992
    %v8753 = vpack.c.b16 %v5009, %v4993
    %v8754 = vpack.c.b16 %v5010, %v4994
    %v8755 = vpack.c.b16 %v5011, %v4995
    %v8756 = vpack.c.b16 %v5012, %v4996
    %v8757 = vpack.c.b16 %v5013, %v4997
    %v8758 = vpack.c.b16 %v5014, %v4998
    %v8759 = vpack.c.b16 %v5015, %v4999
    %v8760 = vpack.c.b16 %v5016, %v5000
    %v8761 = vpack.c.b16 %v5017, %v5001
    %v8762 = vpack.c.b16 %v5018, %v5002
    %v8763 = vpack.c.b16 %v5035, %v5019
    %v8764 = vpack.c.b16 %v5036, %v5020
    %v8765 = vpack.c.b16 %v5037, %v5021
    %v8766 = vpack.c.b16 %v5038, %v5022
    %v8767 = vpack.c.b16 %v5039, %v5023
    %v8768 = vpack.c.b16 %v5040, %v5024
    %v8769 = vpack.c.b16 %v5041, %v5025
    %v8770 = vpack.c.b16 %v5042, %v5026
    %v8771 = vpack.c.b16 %v5043, %v5027
    %v8772 = vpack.c.b16 %v5044, %v5028
    %v8773 = vpack.c.b16 %v5045, %v5029
    %v8774 = vpack.c.b16 %v5046, %v5030
    %v8775 = vpack.c.b16 %v5047, %v5031
    %v8776 = vpack.c.b16 %v5048, %v5032
    %v8777 = vpack.c.b16 %v5049, %v5033
    %v8778 = vpack.c.b16 %v5050, %v5034
    %v8779 = vpack.c.b16 %v5067, %v5051
    %v8780 = vpack.c.b16 %v5068, %v5052
    %v8781 = vpack.c.b16 %v5069, %v5053
    %v8782 = vpack.c.b16 %v5070, %v5054
    %v8783 = vpack.c.b16 %v5071, %v5055
    %v8784 = vpack.c.b16 %v5072, %v5056
    %v8785 = vpack.c.b16 %v5073, %v5057
    %v8786 = vpack.c.b16 %v5074, %v5058
    %v8787 = vpack.c.b16 %v5075, %v5059
    %v8788 = vpack.c.b16 %v5076, %v5060
    %v8789 = vpack.c.b16 %v5077, %v5061
    %v8790 = vpack.c.b16 %v5078, %v5062
    %v8791 = vpack.c.b16 %v5079, %v5063
    %v8792 = vpack.c.b16 %v5080, %v5064
    %v8793 = vpack.c.b16 %v5081, %v5065
    %v8794 = vpack.c.b16 %v5082, %v5066
    %v8795 = vpack.c.b16 %v5099, %v5083
    %v8796 = vpack.c.b16 %v5100, %v5084
    %v8797 = vpack.c.b16 %v5101, %v5085
    %v8798 = vpack.c.b16 %v5102, %v5086
    %v8799 = vpack.c.b16 %v5103, %v5087
    %v8800 = vpack.c.b16 %v5104, %v5088
    %v8801 = vpack.c.b16 %v5105, %v5089
    %v8802 = vpack.c.b16 %v5106, %v5090
    %v8803 = vpack.c.b16 %v5107, %v5091
    %v8804 = vpack.c.b16 %v5108, %v5092
    %v8805 = vpack.c.b16 %v5109, %v5093
    %v8806 = vpack.c.b16 %v5110, %v5094
    %v8807 = vpack.c.b16 %v5111, %v5095
    %v8808 = vpack.c.b16 %v5112, %v5096
    %v8809 = vpack.c.b16 %v5113, %v5097
    %v8810 = vpack.c.b16 %v5114, %v5098
    %v8811 = vpack.c.b16 %v5131, %v5115
    %v8812 = vpack.c.b16 %v5132, %v5116
    %v8813 = vpack.c.b16 %v5133, %v5117
    %v8814 = vpack.c.b16 %v5134, %v5118
    %v8815 = vpack.c.b16 %v5135, %v5119
    %v8816 = vpack.c.b16 %v5136, %v5120
    %v8817 = vpack.c.b16 %v5137, %v5121
    %v8818 = vpack.c.b16 %v5138, %v5122
    %v8819 = vpack.c.b16 %v5139, %v5123
    %v8820 = vpack.c.b16 %v5140, %v5124
    %v8821 = vpack.c.b16 %v5141, %v5125
    %v8822 = vpack.c.b16 %v5142, %v5126
    %v8823 = vpack.c.b16 %v5143, %v5127
    %v8824 = vpack.c.b16 %v5144, %v5128
    %v8825 = vpack.c.b16 %v5145, %v5129
    %v8826 = vpack.c.b16 %v5146, %v5130
    %v8827 = vpack.c.b16 %v5163, %v5147
    %v8828 = vpack.c.b16 %v5164, %v5148
    %v8829 = vpack.c.b16 %v5165, %v5149
    %v8830 = vpack.c.b16 %v5166, %v5150
    %v8831 = vpack.c.b16 %v5167, %v5151
    %v8832 = vpack.c.b16 %v5168, %v5152
    %v8833 = vpack.c.b16 %v5169, %v5153
    %v8834 = vpack.c.b16 %v5170, %v5154
    %v8835 = vpack.c.b16 %v5171, %v5155
    %v8836 = vpack.c.b16 %v5172, %v5156
    %v8837 = vpack.c.b16 %v5173, %v5157
    %v8838 = vpack.c.b16 %v5174, %v5158
    %v8839 = vpack.c.b16 %v5175, %v5159
    %v8840 = vpack.c.b16 %v5176, %v5160
    %v8841 = vpack.c.b16 %v5177, %v5161
    %v8842 = vpack.c.b16 %v5178, %v5162
    %v8843 = vpack.c.b16 %v5195, %v5179
    %v8844 = vpack.c.b16 %v5196, %v5180
    %v8845 = vpack.c.b16 %v5197, %v5181
    %v8846 = vpack.c.b16 %v5198, %v5182
    %v8847 = vpack.c.b16 %v5199, %v5183
    %v8848 = vpack.c.b16 %v5200, %v5184
    %v8849 = vpack.c.b16 %v5201, %v5185
    %v8850 = vpack.c.b16 %v5202, %v5186
    %v8851 = vpack.c.b16 %v5203, %v5187
    %v8852 = vpack.c.b16 %v5204, %v5188
    %v8853 = vpack.c.b16 %v5205, %v5189
    %v8854 = vpack.c.b16 %v5206, %v5190
    %v8855 = vpack.c.b16 %v5207, %v5191
    %v8856 = vpack.c.b16 %v5208, %v5192
    %v8857 = vpack.c.b16 %v5209, %v5193
    %v8858 = vpack.c.b16 %v5210, %v5194
    %v8859 = vpack.c.b16 %v5227, %v5211
    %v8860 = vpack.c.b16 %v5228, %v5212
    %v8861 = vpack.c.b16 %v5229, %v5213
    %v8862 = vpack.c.b16 %v5230, %v5214
    %v8863 = vpack.c.b16 %v5231, %v5215
    %v8864 = vpack.c.b16 %v5232, %v5216
    %v8865 = vpack.c.b16 %v5233, %v5217
    %v8866 = vpack.c.b16 %v5234, %v5218
    %v8867 = vpack.c.b16 %v5235, %v5219
    %v8868 = vpack.c.b16 %v5236, %v5220
    %v8869 = vpack.c.b16 %v5237, %v5221
    %v8870 = vpack.c.b16 %v5238, %v5222
    %v8871 = vpack.c.b16 %v5239, %v5223
    %v8872 = vpack.c.b16 %v5240, %v5224
    %v8873 = vpack.c.b16 %v5241, %v5225
    %v8874 = vpack.c.b16 %v5242, %v5226
    %v8875 = vpack.c.b16 %v5259, %v5243
    %v8876 = vpack.c.b16 %v5260, %v5244
    %v8877 = vpack.c.b16 %v5261, %v5245
    %v8878 = vpack.c.b16 %v5262, %v5246
    %v8879 = vpack.c.b16 %v5263, %v5247
    %v8880 = vpack.c.b16 %v5264, %v5248
    %v8881 = vpack.c.b16 %v5265, %v5249
    %v8882 = vpack.c.b16 %v5266, %v5250
    %v8883 = vpack.c.b16 %v5267, %v5251
    %v8884 = vpack.c.b16 %v5268, %v5252
    %v8885 = vpack.c.b16 %v5269, %v5253
    %v8886 = vpack.c.b16 %v5270, %v5254
    %v8887 = vpack.c.b16 %v5271, %v5255
    %v8888 = vpack.c.b16 %v5272, %v5256
    %v8889 = vpack.c.b16 %v5273, %v5257
    %v8890 = vpack.c.b16 %v5274, %v5258
    %v8891 = vpack.c.b16 %v5291, %v5275
    %v8892 = vpack.c.b16 %v5292, %v5276
    %v8893 = vpack.c.b16 %v5293, %v5277
    %v8894 = vpack.c.b16 %v5294, %v5278
    %v8895 = vpack.c.b16 %v5295, %v5279
    %v8896 = vpack.c.b16 %v5296, %v5280
    %v8897 = vpack.c.b16 %v5297, %v5281
    %v8898 = vpack.c.b16 %v5298, %v5282
    %v8899 = vpack.c.b16 %v5299, %v5283
    %v8900 = vpack.c.b16 %v5300, %v5284
    %v8901 = vpack.c.b16 %v5301, %v5285
    %v8902 = vpack.c.b16 %v5302, %v5286
    %v8903 = vpack.c.b16 %v5303, %v5287
    %v8904 = vpack.c.b16 %v5304, %v5288
    %v8905 = vpack.c.b16 %v5305, %v5289
    %v8906 = vpack.c.b16 %v5306, %v5290
    %v8907 = vpack.c.b16 %v5323, %v5307
    %v8908 = vpack.c.b16 %v5324, %v5308
    %v8909 = vpack.c.b16 %v5325, %v5309
    %v8910 = vpack.c.b16 %v5326, %v5310
    %v8911 = vpack.c.b16 %v5327, %v5311
    %v8912 = vpack.c.b16 %v5328, %v5312
    %v8913 = vpack.c.b16 %v5329, %v5313
    %v8914 = vpack.c.b16 %v5330, %v5314
    %v8915 = vpack.c.b16 %v5331, %v5315
    %v8916 = vpack.c.b16 %v5332, %v5316
    %v8917 = vpack.c.b16 %v5333, %v5317
    %v8918 = vpack.c.b16 %v5334, %v5318
    %v8919 = vpack.c.b16 %v5335, %v5319
    %v8920 = vpack.c.b16 %v5336, %v5320
    %v8921 = vpack.c.b16 %v5337, %v5321
    %v8922 = vpack.c.b16 %v5338, %v5322
    %v8923 = vpack.c.b16 %v5355, %v5339
    %v8924 = vpack.c.b16 %v5356, %v5340
    %v8925 = vpack.c.b16 %v5357, %v5341
    %v8926 = vpack.c.b16 %v5358, %v5342
    %v8927 = vpack.c.b16 %v5359, %v5343
    %v8928 = vpack.c.b16 %v5360, %v5344
    %v8929 = vpack.c.b16 %v5361, %v5345
    %v8930 = vpack.c.b16 %v5362, %v5346
    %v8931 = vpack.c.b16 %v5363, %v5347
    %v8932 = vpack.c.b16 %v5364, %v5348
    %v8933 = vpack.c.b16 %v5365, %v5349
    %v8934 = vpack.c.b16 %v5366, %v5350
    %v8935 = vpack.c.b16 %v5367, %v5351
    %v8936 = vpack.c.b16 %v5368, %v5352
    %v8937 = vpack.c.b16 %v5369, %v5353
    %v8938 = vpack.c.b16 %v5370, %v5354
    %v8939 = vpack.c.b16 %v5387, %v5371
    %v8940 = vpack.c.b16 %v5388, %v5372
    %v8941 = vpack.c.b16 %v5389, %v5373
    %v8942 = vpack.c.b16 %v5390, %v5374
    %v8943 = vpack.c.b16 %v5391, %v5375
    %v8944 = vpack.c.b16 %v5392, %v5376
    %v8945 = vpack.c.b16 %v5393, %v5377
    %v8946 = vpack.c.b16 %v5394, %v5378
    %v8947 = vpack.c.b16 %v5395, %v5379
    %v8948 = vpack.c.b16 %v5396, %v5380
    %v8949 = vpack.c.b16 %v5397, %v5381
    %v8950 = vpack.c.b16 %v5398, %v5382
    %v8951 = vpack.c.b16 %v5399, %v5383
    %v8952 = vpack.c.b16 %v5400, %v5384
    %v8953 = vpack.c.b16 %v5401, %v5385
    %v8954 = vpack.c.b16 %v5402, %v5386
    %v8955 = vpack.c.b16 %v5419, %v5403
    %v8956 = vpack.c.b16 %v5420, %v5404
    %v8957 = vpack.c.b16 %v5421, %v5405
    %v8958 = vpack.c.b16 %v5422, %v5406
    %v8959 = vpack.c.b16 %v5423, %v5407
    %v8960 = vpack.c.b16 %v5424, %v5408
    %v8961 = vpack.c.b16 %v5425, %v5409
    %v8962 = vpack.c.b16 %v5426, %v5410
    %v8963 = vpack.c.b16 %v5427, %v5411
    %v8964 = vpack.c.b16 %v5428, %v5412
    %v8965 = vpack.c.b16 %v5429, %v5413
    %v8966 = vpack.c.b16 %v5430, %v5414
    %v8967 = vpack.c.b16 %v5431, %v5415
    %v8968 = vpack.c.b16 %v5432, %v5416
    %v8969 = vpack.c.b16 %v5433, %v5417
    %v8970 = vpack.c.b16 %v5434, %v5418
    %v8971 = vpack.c.b16 %v5451, %v5435
    %v8972 = vpack.c.b16 %v5452, %v5436
    %v8973 = vpack.c.b16 %v5453, %v5437
    %v8974 = vpack.c.b16 %v5454, %v5438
    %v8975 = vpack.c.b16 %v5455, %v5439
    %v8976 = vpack.c.b16 %v5456, %v5440
    %v8977 = vpack.c.b16 %v5457, %v5441
    %v8978 = vpack.c.b16 %v5458, %v5442
    %v8979 = vpack.c.b16 %v5459, %v5443
    %v8980 = vpack.c.b16 %v5460, %v5444
    %v8981 = vpack.c.b16 %v5461, %v5445
    %v8982 = vpack.c.b16 %v5462, %v5446
    %v8983 = vpack.c.b16 %v5463, %v5447
    %v8984 = vpack.c.b16 %v5464, %v5448
    %v8985 = vpack.c.b16 %v5465, %v5449
    %v8986 = vpack.c.b16 %v5466, %v5450
    %v8987 = vpack.c.b16 %v5483, %v5467
    %v8988 = vpack.c.b16 %v5484, %v5468
    %v8989 = vpack.c.b16 %v5485, %v5469
    %v8990 = vpack.c.b16 %v5486, %v5470
    %v8991 = vpack.c.b16 %v5487, %v5471
    %v8992 = vpack.c.b16 %v5488, %v5472
    %v8993 = vpack.c.b16 %v5489, %v5473
    %v8994 = vpack.c.b16 %v5490, %v5474
    %v8995 = vpack.c.b16 %v5491, %v5475
    %v8996 = vpack.c.b16 %v5492, %v5476
    %v8997 = vpack.c.b16 %v5493, %v5477
    %v8998 = vpack.c.b16 %v5494, %v5478
    %v8999 = vpack.c.b16 %v5495, %v5479
    %v9000 = vpack.c.b16 %v5496, %v5480
    %v9001 = vpack.c.b16 %v5497, %v5481
    %v9002 = vpack.c.b16 %v5498, %v5482
    %v9003 = vpack.c.b16 %v5515, %v5499
    %v9004 = vpack.c.b16 %v5516, %v5500
    %v9005 = vpack.c.b16 %v5517, %v5501
    %v9006 = vpack.c.b16 %v5518, %v5502
    %v9007 = vpack.c.b16 %v5519, %v5503
    %v9008 = vpack.c.b16 %v5520, %v5504
    %v9009 = vpack.c.b16 %v5521, %v5505
    %v9010 = vpack.c.b16 %v5522, %v5506
    %v9011 = vpack.c.b16 %v5523, %v5507
    %v9012 = vpack.c.b16 %v5524, %v5508
    %v9013 = vpack.c.b16 %v5525, %v5509
    %v9014 = vpack.c.b16 %v5526, %v5510
    %v9015 = vpack.c.b16 %v5527, %v5511
    %v9016 = vpack.c.b16 %v5528, %v5512
    %v9017 = vpack.c.b16 %v5529, %v5513
    %v9018 = vpack.c.b16 %v5530, %v5514
    %v9019 = vpack.c.b16 %v5547, %v5531
    %v9020 = vpack.c.b16 %v5548, %v5532
    %v9021 = vpack.c.b16 %v5549, %v5533
    %v9022 = vpack.c.b16 %v5550, %v5534
    %v9023 = vpack.c.b16 %v5551, %v5535
    %v9024 = vpack.c.b16 %v5552, %v5536
    %v9025 = vpack.c.b16 %v5553, %v5537
    %v9026 = vpack.c.b16 %v5554, %v5538
    %v9027 = vpack.c.b16 %v5555, %v5539
    %v9028 = vpack.c.b16 %v5556, %v5540
    %v9029 = vpack.c.b16 %v5557, %v5541
    %v9030 = vpack.c.b16 %v5558, %v5542
    %v9031 = vpack.c.b16 %v5559, %v5543
    %v9032 = vpack.c.b16 %v5560, %v5544
    %v9033 = vpack.c.b16 %v5561, %v5545
    %v9034 = vpack.c.b16 %v5562, %v5546
    %v9035 = vpack.c.b16 %v5579, %v5563
    %v9036 = vpack.c.b16 %v5580, %v5564
    %v9037 = vpack.c.b16 %v5581, %v5565
    %v9038 = vpack.c.b16 %v5582, %v5566
    %v9039 = vpack.c.b16 %v5583, %v5567
    %v9040 = vpack.c.b16 %v5584, %v5568
    %v9041 = vpack.c.b16 %v5585, %v5569
    %v9042 = vpack.c.b16 %v5586, %v5570
    %v9043 = vpack.c.b16 %v5587, %v5571
    %v9044 = vpack.c.b16 %v5588, %v5572
    %v9045 = vpack.c.b16 %v5589, %v5573
    %v9046 = vpack.c.b16 %v5590, %v5574
    %v9047 = vpack.c.b16 %v5591, %v5575
    %v9048 = vpack.c.b16 %v5592, %v5576
    %v9049 = vpack.c.b16 %v5593, %v5577
    %v9050 = vpack.c.b16 %v5594, %v5578
    %v9051 = vpack.c.b16 %v5611, %v5595
    %v9052 = vpack.c.b16 %v5612, %v5596
    %v9053 = vpack.c.b16 %v5613, %v5597
    %v9054 = vpack.c.b16 %v5614, %v5598
    %v9055 = vpack.c.b16 %v5615, %v5599
    %v9056 = vpack.c.b16 %v5616, %v5600
    %v9057 = vpack.c.b16 %v5617, %v5601
    %v9058 = vpack.c.b16 %v5618, %v5602
    %v9059 = vpack.c.b16 %v5619, %v5603
    %v9060 = vpack.c.b16 %v5620, %v5604
    %v9061 = vpack.c.b16 %v5621, %v5605
    %v9062 = vpack.c.b16 %v5622, %v5606
    %v9063 = vpack.c.b16 %v5623, %v5607
    %v9064 = vpack.c.b16 %v5624, %v5608
    %v9065 = vpack.c.b16 %v5625, %v5609
    %v9066 = vpack.c.b16 %v5626, %v5610
    %v9067 = vpack.c.b16 %v5643, %v5627
    %v9068 = vpack.c.b16 %v5644, %v5628
    %v9069 = vpack.c.b16 %v5645, %v5629
    %v9070 = vpack.c.b16 %v5646, %v5630
    %v9071 = vpack.c.b16 %v5647, %v5631
    %v9072 = vpack.c.b16 %v5648, %v5632
    %v9073 = vpack.c.b16 %v5649, %v5633
    %v9074 = vpack.c.b16 %v5650, %v5634
    %v9075 = vpack.c.b16 %v5651, %v5635
    %v9076 = vpack.c.b16 %v5652, %v5636
    %v9077 = vpack.c.b16 %v5653, %v5637
    %v9078 = vpack.c.b16 %v5654, %v5638
    %v9079 = vpack.c.b16 %v5655, %v5639
    %v9080 = vpack.c.b16 %v5656, %v5640
    %v9081 = vpack.c.b16 %v5657, %v5641
    %v9082 = vpack.c.b16 %v5658, %v5642
    %v9083 = vpack.c.b16 %v5675, %v5659
    %v9084 = vpack.c.b16 %v5676, %v5660
    %v9085 = vpack.c.b16 %v5677, %v5661
    %v9086 = vpack.c.b16 %v5678, %v5662
    %v9087 = vpack.c.b16 %v5679, %v5663
    %v9088 = vpack.c.b16 %v5680, %v5664
    %v9089 = vpack.c.b16 %v5681, %v5665
    %v9090 = vpack.c.b16 %v5682, %v5666
    %v9091 = vpack.c.b16 %v5683, %v5667
    %v9092 = vpack.c.b16 %v5684, %v5668
    %v9093 = vpack.c.b16 %v5685, %v5669
    %v9094 = vpack.c.b16 %v5686, %v5670
    %v9095 = vpack.c.b16 %v5687, %v5671
    %v9096 = vpack.c.b16 %v5688, %v5672
    %v9097 = vpack.c.b16 %v5689, %v5673
    %v9098 = vpack.c.b16 %v5690, %v5674
    %v9099 = vpack.c.b16 %v5707, %v5691
    %v9100 = vpack.c.b16 %v5708, %v5692
    %v9101 = vpack.c.b16 %v5709, %v5693
    %v9102 = vpack.c.b16 %v5710, %v5694
    %v9103 = vpack.c.b16 %v5711, %v5695
    %v9104 = vpack.c.b16 %v5712, %v5696
    %v9105 = vpack.c.b16 %v5713, %v5697
    %v9106 = vpack.c.b16 %v5714, %v5698
    %v9107 = vpack.c.b16 %v5715, %v5699
    %v9108 = vpack.c.b16 %v5716, %v5700
    %v9109 = vpack.c.b16 %v5717, %v5701
    %v9110 = vpack.c.b16 %v5718, %v5702
    %v9111 = vpack.c.b16 %v5719, %v5703
    %v9112 = vpack.c.b16 %v5720, %v5704
    %v9113 = vpack.c.b16 %v5721, %v5705
    %v9114 = vpack.c.b16 %v5722, %v5706
    %v9115 = vpack.c.b16 %v5739, %v5723
    %v9116 = vpack.c.b16 %v5740, %v5724
    %v9117 = vpack.c.b16 %v5741, %v5725
    %v9118 = vpack.c.b16 %v5742, %v5726
    %v9119 = vpack.c.b16 %v5743, %v5727
    %v9120 = vpack.c.b16 %v5744, %v5728
    %v9121 = vpack.c.b16 %v5745, %v5729
    %v9122 = vpack.c.b16 %v5746, %v5730
    %v9123 = vpack.c.b16 %v5747, %v5731
    %v9124 = vpack.c.b16 %v5748, %v5732
    %v9125 = vpack.c.b16 %v5749, %v5733
    %v9126 = vpack.c.b16 %v5750, %v5734
    %v9127 = vpack.c.b16 %v5751, %v5735
    %v9128 = vpack.c.b16 %v5752, %v5736
    %v9129 = vpack.c.b16 %v5753, %v5737
    %v9130 = vpack.c.b16 %v5754, %v5738
    %v9131 = vpack.c.b16 %v5771, %v5755
    %v9132 = vpack.c.b16 %v5772, %v5756
    %v9133 = vpack.c.b16 %v5773, %v5757
    %v9134 = vpack.c.b16 %v5774, %v5758
    %v9135 = vpack.c.b16 %v5775, %v5759
    %v9136 = vpack.c.b16 %v5776, %v5760
    %v9137 = vpack.c.b16 %v5777, %v5761
    %v9138 = vpack.c.b16 %v5778, %v5762
    %v9139 = vpack.c.b16 %v5779, %v5763
    %v9140 = vpack.c.b16 %v5780, %v5764
    %v9141 = vpack.c.b16 %v5781, %v5765
    %v9142 = vpack.c.b16 %v5782, %v5766
    %v9143 = vpack.c.b16 %v5783, %v5767
    %v9144 = vpack.c.b16 %v5784, %v5768
    %v9145 = vpack.c.b16 %v5785, %v5769
    %v9146 = vpack.c.b16 %v5786, %v5770
    %v9147 = vpack.c.b16 %v5803, %v5787
    %v9148 = vpack.c.b16 %v5804, %v5788
    %v9149 = vpack.c.b16 %v5805, %v5789
    %v9150 = vpack.c.b16 %v5806, %v5790
    %v9151 = vpack.c.b16 %v5807, %v5791
    %v9152 = vpack.c.b16 %v5808, %v5792
    %v9153 = vpack.c.b16 %v5809, %v5793
    %v9154 = vpack.c.b16 %v5810, %v5794
    %v9155 = vpack.c.b16 %v5811, %v5795
    %v9156 = vpack.c.b16 %v5812, %v5796
    %v9157 = vpack.c.b16 %v5813, %v5797
    %v9158 = vpack.c.b16 %v5814, %v5798
    %v9159 = vpack.c.b16 %v5815, %v5799
    %v9160 = vpack.c.b16 %v5816, %v5800
    %v9161 = vpack.c.b16 %v5817, %v5801
    %v9162 = vpack.c.b16 %v5818, %v5802
    %v9163 = vpack.c.b16 %v5835, %v5819
    %v9164 = vpack.c.b16 %v5836, %v5820
    %v9165 = vpack.c.b16 %v5837, %v5821
    %v9166 = vpack.c.b16 %v5838, %v5822
    %v9167 = vpack.c.b16 %v5839, %v5823
    %v9168 = vpack.c.b16 %v5840, %v5824
    %v9169 = vpack.c.b16 %v5841, %v5825
    %v9170 = vpack.c.b16 %v5842, %v5826
    %v9171 = vpack.c.b16 %v5843, %v5827
    %v9172 = vpack.c.b16 %v5844, %v5828
    %v9173 = vpack.c.b16 %v5845, %v5829
    %v9174 = vpack.c.b16 %v5846, %v5830
    %v9175 = vpack.c.b16 %v5847, %v5831
    %v9176 = vpack.c.b16 %v5848, %v5832
    %v9177 = vpack.c.b16 %v5849, %v5833
    %v9178 = vpack.c.b16 %v5850, %v5834
    %v9179 = vpack.c.b16 %v5867, %v5851
    %v9180 = vpack.c.b16 %v5868, %v5852
    %v9181 = vpack.c.b16 %v5869, %v5853
    %v9182 = vpack.c.b16 %v5870, %v5854
    %v9183 = vpack.c.b16 %v5871, %v5855
    %v9184 = vpack.c.b16 %v5872, %v5856
    %v9185 = vpack.c.b16 %v5873, %v5857
    %v9186 = vpack.c.b16 %v5874, %v5858
    %v9187 = vpack.c.b16 %v5875, %v5859
    %v9188 = vpack.c.b16 %v5876, %v5860
    %v9189 = vpack.c.b16 %v5877, %v5861
    %v9190 = vpack.c.b16 %v5878, %v5862
    %v9191 = vpack.c.b16 %v5879, %v5863
    %v9192 = vpack.c.b16 %v5880, %v5864
    %v9193 = vpack.c.b16 %v5881, %v5865
    %v9194 = vpack.c.b16 %v5882, %v5866
    %v9195 = vpack.c.b16 %v5899, %v5883
    %v9196 = vpack.c.b16 %v5900, %v5884
    %v9197 = vpack.c.b16 %v5901, %v5885
    %v9198 = vpack.c.b16 %v5902, %v5886
    %v9199 = vpack.c.b16 %v5903, %v5887
    %v9200 = vpack.c.b16 %v5904, %v5888
    %v9201 = vpack.c.b16 %v5905, %v5889
    %v9202 = vpack.c.b16 %v5906, %v5890
    %v9203 = vpack.c.b16 %v5907, %v5891
    %v9204 = vpack.c.b16 %v5908, %v5892
    %v9205 = vpack.c.b16 %v5909, %v5893
    %v9206 = vpack.c.b16 %v5910, %v5894
    %v9207 = vpack.c.b16 %v5911, %v5895
    %v9208 = vpack.c.b16 %v5912, %v5896
    %v9209 = vpack.c.b16 %v5913, %v5897
    %v9210 = vpack.c.b16 %v5914, %v5898
    %v9211 = vpack.c.b16 %v5931, %v5915
    %v9212 = vpack.c.b16 %v5932, %v5916
    %v9213 = vpack.c.b16 %v5933, %v5917
    %v9214 = vpack.c.b16 %v5934, %v5918
    %v9215 = vpack.c.b16 %v5935, %v5919
    %v9216 = vpack.c.b16 %v5936, %v5920
    %v9217 = vpack.c.b16 %v5937, %v5921
    %v9218 = vpack.c.b16 %v5938, %v5922
    %v9219 = vpack.c.b16 %v5939, %v5923
    %v9220 = vpack.c.b16 %v5940, %v5924
    %v9221 = vpack.c.b16 %v5941, %v5925
    %v9222 = vpack.c.b16 %v5942, %v5926
    %v9223 = vpack.c.b16 %v5943, %v5927
    %v9224 = vpack.c.b16 %v5944, %v5928
    %v9225 = vpack.c.b16 %v5945, %v5929
    %v9226 = vpack.c.b16 %v5946, %v5930
    %v9227 = vpack.c.b16 %v5963, %v5947
    %v9228 = vpack.c.b16 %v5964, %v5948
    %v9229 = vpack.c.b16 %v5965, %v5949
    %v9230 = vpack.c.b16 %v5966, %v5950
    %v9231 = vpack.c.b16 %v5967, %v5951
    %v9232 = vpack.c.b16 %v5968, %v5952
    %v9233 = vpack.c.b16 %v5969, %v5953
    %v9234 = vpack.c.b16 %v5970, %v5954
    %v9235 = vpack.c.b16 %v5971, %v5955
    %v9236 = vpack.c.b16 %v5972, %v5956
    %v9237 = vpack.c.b16 %v5973, %v5957
    %v9238 = vpack.c.b16 %v5974, %v5958
    %v9239 = vpack.c.b16 %v5975, %v5959
    %v9240 = vpack.c.b16 %v5976, %v5960
    %v9241 = vpack.c.b16 %v5977, %v5961
    %v9242 = vpack.c.b16 %v5978, %v5962
    %v9243 = vpack.c.b16 %v5995, %v5979
    %v9244 = vpack.c.b16 %v5996, %v5980
    %v9245 = vpack.c.b16 %v5997, %v5981
    %v9246 = vpack.c.b16 %v5998, %v5982
    %v9247 = vpack.c.b16 %v5999, %v5983
    %v9248 = vpack.c.b16 %v6000, %v5984
    %v9249 = vpack.c.b16 %v6001, %v5985
    %v9250 = vpack.c.b16 %v6002, %v5986
    %v9251 = vpack.c.b16 %v6003, %v5987
    %v9252 = vpack.c.b16 %v6004, %v5988
    %v9253 = vpack.c.b16 %v6005, %v5989
    %v9254 = vpack.c.b16 %v6006, %v5990
    %v9255 = vpack.c.b16 %v6007, %v5991
    %v9256 = vpack.c.b16 %v6008, %v5992
    %v9257 = vpack.c.b16 %v6009, %v5993
    %v9258 = vpack.c.b16 %v6010, %v5994
    %v9259 = vpack.c.b16 %v6027, %v6011
    %v9260 = vpack.c.b16 %v6028, %v6012
    %v9261 = vpack.c.b16 %v6029, %v6013
    %v9262 = vpack.c.b16 %v6030, %v6014
    %v9263 = vpack.c.b16 %v6031, %v6015
    %v9264 = vpack.c.b16 %v6032, %v6016
    %v9265 = vpack.c.b16 %v6033, %v6017
    %v9266 = vpack.c.b16 %v6034, %v6018
    %v9267 = vpack.c.b16 %v6035, %v6019
    %v9268 = vpack.c.b16 %v6036, %v6020
    %v9269 = vpack.c.b16 %v6037, %v6021
    %v9270 = vpack.c.b16 %v6038, %v6022
    %v9271 = vpack.c.b16 %v6039, %v6023
    %v9272 = vpack.c.b16 %v6040, %v6024
    %v9273 = vpack.c.b16 %v6041, %v6025
    %v9274 = vpack.c.b16 %v6042, %v6026
    %v9275 = vpack.c.b16 %v6059, %v6043
    %v9276 = vpack.c.b16 %v6060, %v6044
    %v9277 = vpack.c.b16 %v6061, %v6045
    %v9278 = vpack.c.b16 %v6062, %v6046
    %v9279 = vpack.c.b16 %v6063, %v6047
    %v9280 = vpack.c.b16 %v6064, %v6048
    %v9281 = vpack.c.b16 %v6065, %v6049
    %v9282 = vpack.c.b16 %v6066, %v6050
    %v9283 = vpack.c.b16 %v6067, %v6051
    %v9284 = vpack.c.b16 %v6068, %v6052
    %v9285 = vpack.c.b16 %v6069, %v6053
    %v9286 = vpack.c.b16 %v6070, %v6054
    %v9287 = vpack.c.b16 %v6071, %v6055
    %v9288 = vpack.c.b16 %v6072, %v6056
    %v9289 = vpack.c.b16 %v6073, %v6057
    %v9290 = vpack.c.b16 %v6074, %v6058
    %v9291 = vpack.c.b16 %v6091, %v6075
    %v9292 = vpack.c.b16 %v6092, %v6076
    %v9293 = vpack.c.b16 %v6093, %v6077
    %v9294 = vpack.c.b16 %v6094, %v6078
    %v9295 = vpack.c.b16 %v6095, %v6079
    %v9296 = vpack.c.b16 %v6096, %v6080
    %v9297 = vpack.c.b16 %v6097, %v6081
    %v9298 = vpack.c.b16 %v6098, %v6082
    %v9299 = vpack.c.b16 %v6099, %v6083
    %v9300 = vpack.c.b16 %v6100, %v6084
    %v9301 = vpack.c.b16 %v6101, %v6085
    %v9302 = vpack.c.b16 %v6102, %v6086
    %v9303 = vpack.c.b16 %v6103, %v6087
    %v9304 = vpack.c.b16 %v6104, %v6088
    %v9305 = vpack.c.b16 %v6105, %v6089
    %v9306 = vpack.c.b16 %v6106, %v6090
    %v9307 = vpack.c.b16 %v6123, %v6107
    %v9308 = vpack.c.b16 %v6124, %v6108
    %v9309 = vpack.c.b16 %v6125, %v6109
    %v9310 = vpack.c.b16 %v6126, %v6110
    %v9311 = vpack.c.b16 %v6127, %v6111
    %v9312 = vpack.c.b16 %v6128, %v6112
    %v9313 = vpack.c.b16 %v6129, %v6113
    %v9314 = vpack.c.b16 %v6130, %v6114
    %v9315 = vpack.c.b16 %v6131, %v6115
    %v9316 = vpack.c.b16 %v6132, %v6116
    %v9317 = vpack.c.b16 %v6133, %v6117
    %v9318 = vpack.c.b16 %v6134, %v6118
    %v9319 = vpack.c.b16 %v6135, %v6119
    %v9320 = vpack.c.b16 %v6136, %v6120
    %v9321 = vpack.c.b16 %v6137, %v6121
    %v9322 = vpack.c.b16 %v6138, %v6122
    %v9323 = vpack.c.b16 %v6155, %v6139
    %v9324 = vpack.c.b16 %v6156, %v6140
    %v9325 = vpack.c.b16 %v6157, %v6141
    %v9326 = vpack.c.b16 %v6158, %v6142
    %v9327 = vpack.c.b16 %v6159, %v6143
    %v9328 = vpack.c.b16 %v6160, %v6144
    %v9329 = vpack.c.b16 %v6161, %v6145
    %v9330 = vpack.c.b16 %v6162, %v6146
    %v9331 = vpack.c.b16 %v6163, %v6147
    %v9332 = vpack.c.b16 %v6164, %v6148
    %v9333 = vpack.c.b16 %v6165, %v6149
    %v9334 = vpack.c.b16 %v6166, %v6150
    %v9335 = vpack.c.b16 %v6167, %v6151
    %v9336 = vpack.c.b16 %v6168, %v6152
    %v9337 = vpack.c.b16 %v6169, %v6153
    %v9338 = vpack.c.b16 %v6170, %v6154
    %v9339 = vpack.c.b16 %v6187, %v6171
    %v9340 = vpack.c.b16 %v6188, %v6172
    %v9341 = vpack.c.b16 %v6189, %v6173
    %v9342 = vpack.c.b16 %v6190, %v6174
    %v9343 = vpack.c.b16 %v6191, %v6175
    %v9344 = vpack.c.b16 %v6192, %v6176
    %v9345 = vpack.c.b16 %v6193, %v6177
    %v9346 = vpack.c.b16 %v6194, %v6178
    %v9347 = vpack.c.b16 %v6195, %v6179
    %v9348 = vpack.c.b16 %v6196, %v6180
    %v9349 = vpack.c.b16 %v6197, %v6181
    %v9350 = vpack.c.b16 %v6198, %v6182
    %v9351 = vpack.c.b16 %v6199, %v6183
    %v9352 = vpack.c.b16 %v6200, %v6184
    %v9353 = vpack.c.b16 %v6201, %v6185
    %v9354 = vpack.c.b16 %v6202, %v6186
    %v9355 = vpack.c.b16 %v6219, %v6203
    %v9356 = vpack.c.b16 %v6220, %v6204
    %v9357 = vpack.c.b16 %v6221, %v6205
    %v9358 = vpack.c.b16 %v6222, %v6206
    %v9359 = vpack.c.b16 %v6223, %v6207
    %v9360 = vpack.c.b16 %v6224, %v6208
    %v9361 = vpack.c.b16 %v6225, %v6209
    %v9362 = vpack.c.b16 %v6226, %v6210
    %v9363 = vpack.c.b16 %v6227, %v6211
    %v9364 = vpack.c.b16 %v6228, %v6212
    %v9365 = vpack.c.b16 %v6229, %v6213
    %v9366 = vpack.c.b16 %v6230, %v6214
    %v9367 = vpack.c.b16 %v6231, %v6215
    %v9368 = vpack.c.b16 %v6232, %v6216
    %v9369 = vpack.c.b16 %v6233, %v6217
    %v9370 = vpack.c.b16 %v6234, %v6218
    %v9371 = vpack.c.b16 %v6251, %v6235
    %v9372 = vpack.c.b16 %v6252, %v6236
    %v9373 = vpack.c.b16 %v6253, %v6237
    %v9374 = vpack.c.b16 %v6254, %v6238
    %v9375 = vpack.c.b16 %v6255, %v6239
    %v9376 = vpack.c.b16 %v6256, %v6240
    %v9377 = vpack.c.b16 %v6257, %v6241
    %v9378 = vpack.c.b16 %v6258, %v6242
    %v9379 = vpack.c.b16 %v6259, %v6243
    %v9380 = vpack.c.b16 %v6260, %v6244
    %v9381 = vpack.c.b16 %v6261, %v6245
    %v9382 = vpack.c.b16 %v6262, %v6246
    %v9383 = vpack.c.b16 %v6263, %v6247
    %v9384 = vpack.c.b16 %v6264, %v6248
    %v9385 = vpack.c.b16 %v6265, %v6249
    %v9386 = vpack.c.b16 %v6266, %v6250
    %v9387 = vpack.c.b16 %v6283, %v6267
    %v9388 = vpack.c.b16 %v6284, %v6268
    %v9389 = vpack.c.b16 %v6285, %v6269
    %v9390 = vpack.c.b16 %v6286, %v6270
    %v9391 = vpack.c.b16 %v6287, %v6271
    %v9392 = vpack.c.b16 %v6288, %v6272
    %v9393 = vpack.c.b16 %v6289, %v6273
    %v9394 = vpack.c.b16 %v6290, %v6274
    %v9395 = vpack.c.b16 %v6291, %v6275
    %v9396 = vpack.c.b16 %v6292, %v6276
    %v9397 = vpack.c.b16 %v6293, %v6277
    %v9398 = vpack.c.b16 %v6294, %v6278
    %v9399 = vpack.c.b16 %v6295, %v6279
    %v9400 = vpack.c.b16 %v6296, %v6280
    %v9401 = vpack.c.b16 %v6297, %v6281
    %v9402 = vpack.c.b16 %v6298, %v6282
    %v9403 = vpack.c.b16 %v6315, %v6299
    %v9404 = vpack.c.b16 %v6316, %v6300
    %v9405 = vpack.c.b16 %v6317, %v6301
    %v9406 = vpack.c.b16 %v6318, %v6302
    %v9407 = vpack.c.b16 %v6319, %v6303
    %v9408 = vpack.c.b16 %v6320, %v6304
    %v9409 = vpack.c.b16 %v6321, %v6305
    %v9410 = vpack.c.b16 %v6322, %v6306
    %v9411 = vpack.c.b16 %v6323, %v6307
    %v9412 = vpack.c.b16 %v6324, %v6308
    %v9413 = vpack.c.b16 %v6325, %v6309
    %v9414 = vpack.c.b16 %v6326, %v6310
    %v9415 = vpack.c.b16 %v6327, %v6311
    %v9416 = vpack.c.b16 %v6328, %v6312
    %v9417 = vpack.c.b16 %v6329, %v6313
    %v9418 = vpack.c.b16 %v6330, %v6314
    %v9419 = vpack.c.b16 %v6347, %v6331
    %v9420 = vpack.c.b16 %v6348, %v6332
    %v9421 = vpack.c.b16 %v6349, %v6333
    %v9422 = vpack.c.b16 %v6350, %v6334
    %v9423 = vpack.c.b16 %v6351, %v6335
    %v9424 = vpack.c.b16 %v6352, %v6336
    %v9425 = vpack.c.b16 %v6353, %v6337
    %v9426 = vpack.c.b16 %v6354, %v6338
    %v9427 = vpack.c.b16 %v6355, %v6339
    %v9428 = vpack.c.b16 %v6356, %v6340
    %v9429 = vpack.c.b16 %v6357, %v6341
    %v9430 = vpack.c.b16 %v6358, %v6342
    %v9431 = vpack.c.b16 %v6359, %v6343
    %v9432 = vpack.c.b16 %v6360, %v6344
    %v9433 = vpack.c.b16 %v6361, %v6345
    %v9434 = vpack.c.b16 %v6362, %v6346
    %v9435 = vpack.c.b16 %v6379, %v6363
    %v9436 = vpack.c.b16 %v6380, %v6364
    %v9437 = vpack.c.b16 %v6381, %v6365
    %v9438 = vpack.c.b16 %v6382, %v6366
    %v9439 = vpack.c.b16 %v6383, %v6367
    %v9440 = vpack.c.b16 %v6384, %v6368
    %v9441 = vpack.c.b16 %v6385, %v6369
    %v9442 = vpack.c.b16 %v6386, %v6370
    %v9443 = vpack.c.b16 %v6387, %v6371
    %v9444 = vpack.c.b16 %v6388, %v6372
    %v9445 = vpack.c.b16 %v6389, %v6373
    %v9446 = vpack.c.b16 %v6390, %v6374
    %v9447 = vpack.c.b16 %v6391, %v6375
    %v9448 = vpack.c.b16 %v6392, %v6376
    %v9449 = vpack.c.b16 %v6393, %v6377
    %v9450 = vpack.c.b16 %v6394, %v6378
    %v9451 = vpack.c.b16 %v6411, %v6395
    %v9452 = vpack.c.b16 %v6412, %v6396
    %v9453 = vpack.c.b16 %v6413, %v6397
    %v9454 = vpack.c.b16 %v6414, %v6398
    %v9455 = vpack.c.b16 %v6415, %v6399
    %v9456 = vpack.c.b16 %v6416, %v6400
    %v9457 = vpack.c.b16 %v6417, %v6401
    %v9458 = vpack.c.b16 %v6418, %v6402
    %v9459 = vpack.c.b16 %v6419, %v6403
    %v9460 = vpack.c.b16 %v6420, %v6404
    %v9461 = vpack.c.b16 %v6421, %v6405
    %v9462 = vpack.c.b16 %v6422, %v6406
    %v9463 = vpack.c.b16 %v6423, %v6407
    %v9464 = vpack.c.b16 %v6424, %v6408
    %v9465 = vpack.c.b16 %v6425, %v6409
    %v9466 = vpack.c.b16 %v6426, %v6410
    %v9467 = vpack.c.b16 %v6443, %v6427
    %v9468 = vpack.c.b16 %v6444, %v6428
    %v9469 = vpack.c.b16 %v6445, %v6429
    %v9470 = vpack.c.b16 %v6446, %v6430
    %v9471 = vpack.c.b16 %v6447, %v6431
    %v9472 = vpack.c.b16 %v6448, %v6432
    %v9473 = vpack.c.b16 %v6449, %v6433
    %v9474 = vpack.c.b16 %v6450, %v6434
    %v9475 = vpack.c.b16 %v6451, %v6435
    %v9476 = vpack.c.b16 %v6452, %v6436
    %v9477 = vpack.c.b16 %v6453, %v6437
    %v9478 = vpack.c.b16 %v6454, %v6438
    %v9479 = vpack.c.b16 %v6455, %v6439
    %v9480 = vpack.c.b16 %v6456, %v6440
    %v9481 = vpack.c.b16 %v6457, %v6441
    %v9482 = vpack.c.b16 %v6458, %v6442
    %v9483 = vpack.c.b16 %v6475, %v6459
    %v9484 = vpack.c.b16 %v6476, %v6460
    %v9485 = vpack.c.b16 %v6477, %v6461
    %v9486 = vpack.c.b16 %v6478, %v6462
    %v9487 = vpack.c.b16 %v6479, %v6463
    %v9488 = vpack.c.b16 %v6480, %v6464
    %v9489 = vpack.c.b16 %v6481, %v6465
    %v9490 = vpack.c.b16 %v6482, %v6466
    %v9491 = vpack.c.b16 %v6483, %v6467
    %v9492 = vpack.c.b16 %v6484, %v6468
    %v9493 = vpack.c.b16 %v6485, %v6469
    %v9494 = vpack.c.b16 %v6486, %v6470
    %v9495 = vpack.c.b16 %v6487, %v6471
    %v9496 = vpack.c.b16 %v6488, %v6472
    %v9497 = vpack.c.b16 %v6489, %v6473
    %v9498 = vpack.c.b16 %v6490, %v6474
    %v9499 = vpack.c.b16 %v6507, %v6491
    %v9500 = vpack.c.b16 %v6508, %v6492
    %v9501 = vpack.c.b16 %v6509, %v6493
    %v9502 = vpack.c.b16 %v6510, %v6494
    %v9503 = vpack.c.b16 %v6511, %v6495
    %v9504 = vpack.c.b16 %v6512, %v6496
    %v9505 = vpack.c.b16 %v6513, %v6497
    %v9506 = vpack.c.b16 %v6514, %v6498
    %v9507 = vpack.c.b16 %v6515, %v6499
    %v9508 = vpack.c.b16 %v6516, %v6500
    %v9509 = vpack.c.b16 %v6517, %v6501
    %v9510 = vpack.c.b16 %v6518, %v6502
    %v9511 = vpack.c.b16 %v6519, %v6503
    %v9512 = vpack.c.b16 %v6520, %v6504
    %v9513 = vpack.c.b16 %v6521, %v6505
    %v9514 = vpack.c.b16 %v6522, %v6506
    %v9515 = vpack.c.b16 %v6539, %v6523
    %v9516 = vpack.c.b16 %v6540, %v6524
    %v9517 = vpack.c.b16 %v6541, %v6525
    %v9518 = vpack.c.b16 %v6542, %v6526
    %v9519 = vpack.c.b16 %v6543, %v6527
    %v9520 = vpack.c.b16 %v6544, %v6528
    %v9521 = vpack.c.b16 %v6545, %v6529
    %v9522 = vpack.c.b16 %v6546, %v6530
    %v9523 = vpack.c.b16 %v6547, %v6531
    %v9524 = vpack.c.b16 %v6548, %v6532
    %v9525 = vpack.c.b16 %v6549, %v6533
    %v9526 = vpack.c.b16 %v6550, %v6534
    %v9527 = vpack.c.b16 %v6551, %v6535
    %v9528 = vpack.c.b16 %v6552, %v6536
    %v9529 = vpack.c.b16 %v6553, %v6537
    %v9530 = vpack.c.b16 %v6554, %v6538
    %v9531 = vpack.c.b16 %v6571, %v6555
    %v9532 = vpack.c.b16 %v6572, %v6556
    %v9533 = vpack.c.b16 %v6573, %v6557
    %v9534 = vpack.c.b16 %v6574, %v6558
    %v9535 = vpack.c.b16 %v6575, %v6559
    %v9536 = vpack.c.b16 %v6576, %v6560
    %v9537 = vpack.c.b16 %v6577, %v6561
    %v9538 = vpack.c.b16 %v6578, %v6562
    %v9539 = vpack.c.b16 %v6579, %v6563
    %v9540 = vpack.c.b16 %v6580, %v6564
    %v9541 = vpack.c.b16 %v6581, %v6565
    %v9542 = vpack.c.b16 %v6582, %v6566
    %v9543 = vpack.c.b16 %v6583, %v6567
    %v9544 = vpack.c.b16 %v6584, %v6568
    %v9545 = vpack.c.b16 %v6585, %v6569
    %v9546 = vpack.c.b16 %v6586, %v6570
    %v9547 = vpack.c.b16 %v6603, %v6587
    %v9548 = vpack.c.b16 %v6604, %v6588
    %v9549 = vpack.c.b16 %v6605, %v6589
    %v9550 = vpack.c.b16 %v6606, %v6590
    %v9551 = vpack.c.b16 %v6607, %v6591
    %v9552 = vpack.c.b16 %v6608, %v6592
    %v9553 = vpack.c.b16 %v6609, %v6593
    %v9554 = vpack.c.b16 %v6610, %v6594
    %v9555 = vpack.c.b16 %v6611, %v6595
    %v9556 = vpack.c.b16 %v6612, %v6596
    %v9557 = vpack.c.b16 %v6613, %v6597
    %v9558 = vpack.c.b16 %v6614, %v6598
    %v9559 = vpack.c.b16 %v6615, %v6599
    %v9560 = vpack.c.b16 %v6616, %v6600
    %v9561 = vpack.c.b16 %v6617, %v6601
    %v9562 = vpack.c.b16 %v6618, %v6602
    %v9563 = vpack.c.b16 %v6635, %v6619
    %v9564 = vpack.c.b16 %v6636, %v6620
    %v9565 = vpack.c.b16 %v6637, %v6621
    %v9566 = vpack.c.b16 %v6638, %v6622
    %v9567 = vpack.c.b16 %v6639, %v6623
    %v9568 = vpack.c.b16 %v6640, %v6624
    %v9569 = vpack.c.b16 %v6641, %v6625
    %v9570 = vpack.c.b16 %v6642, %v6626
    %v9571 = vpack.c.b16 %v6643, %v6627
    %v9572 = vpack.c.b16 %v6644, %v6628
    %v9573 = vpack.c.b16 %v6645, %v6629
    %v9574 = vpack.c.b16 %v6646, %v6630
    %v9575 = vpack.c.b16 %v6647, %v6631
    %v9576 = vpack.c.b16 %v6648, %v6632
    %v9577 = vpack.c.b16 %v6649, %v6633
    %v9578 = vpack.c.b16 %v6650, %v6634
    %v9579 = vpack.c.b16 %v6667, %v6651
    %v9580 = vpack.c.b16 %v6668, %v6652
    %v9581 = vpack.c.b16 %v6669, %v6653
    %v9582 = vpack.c.b16 %v6670, %v6654
    %v9583 = vpack.c.b16 %v6671, %v6655
    %v9584 = vpack.c.b16 %v6672, %v6656
    %v9585 = vpack.c.b16 %v6673, %v6657
    %v9586 = vpack.c.b16 %v6674, %v6658
    %v9587 = vpack.c.b16 %v6675, %v6659
    %v9588 = vpack.c.b16 %v6676, %v6660
    %v9589 = vpack.c.b16 %v6677, %v6661
    %v9590 = vpack.c.b16 %v6678, %v6662
    %v9591 = vpack.c.b16 %v6679, %v6663
    %v9592 = vpack.c.b16 %v6680, %v6664
    %v9593 = vpack.c.b16 %v6681, %v6665
    %v9594 = vpack.c.b16 %v6682, %v6666
    %v9595 = vpack.c.b16 %v6699, %v6683
    %v9596 = vpack.c.b16 %v6700, %v6684
    %v9597 = vpack.c.b16 %v6701, %v6685
    %v9598 = vpack.c.b16 %v6702, %v6686
    %v9599 = vpack.c.b16 %v6703, %v6687
    %v9600 = vpack.c.b16 %v6704, %v6688
    %v9601 = vpack.c.b16 %v6705, %v6689
    %v9602 = vpack.c.b16 %v6706, %v6690
    %v9603 = vpack.c.b16 %v6707, %v6691
    %v9604 = vpack.c.b16 %v6708, %v6692
    %v9605 = vpack.c.b16 %v6709, %v6693
    %v9606 = vpack.c.b16 %v6710, %v6694
    %v9607 = vpack.c.b16 %v6711, %v6695
    %v9608 = vpack.c.b16 %v6712, %v6696
    %v9609 = vpack.c.b16 %v6713, %v6697
    %v9610 = vpack.c.b16 %v6714, %v6698
    %v9611 = vpack.c.b16 %v6731, %v6715
    %v9612 = vpack.c.b16 %v6732, %v6716
    %v9613 = vpack.c.b16 %v6733, %v6717
    %v9614 = vpack.c.b16 %v6734, %v6718
    %v9615 = vpack.c.b16 %v6735, %v6719
    %v9616 = vpack.c.b16 %v6736, %v6720
    %v9617 = vpack.c.b16 %v6737, %v6721
    %v9618 = vpack.c.b16 %v6738, %v6722
    %v9619 = vpack.c.b16 %v6739, %v6723
    %v9620 = vpack.c.b16 %v6740, %v6724
    %v9621 = vpack.c.b16 %v6741, %v6725
    %v9622 = vpack.c.b16 %v6742, %v6726
    %v9623 = vpack.c.b16 %v6743, %v6727
    %v9624 = vpack.c.b16 %v6744, %v6728
    %v9625 = vpack.c.b16 %v6745, %v6729
    %v9626 = vpack.c.b16 %v6746, %v6730
    %v9627 = vpack.c.b16 %v6763, %v6747
    %v9628 = vpack.c.b16 %v6764, %v6748
    %v9629 = vpack.c.b16 %v6765, %v6749
    %v9630 = vpack.c.b16 %v6766, %v6750
    %v9631 = vpack.c.b16 %v6767, %v6751
    %v9632 = vpack.c.b16 %v6768, %v6752
    %v9633 = vpack.c.b16 %v6769, %v6753
    %v9634 = vpack.c.b16 %v6770, %v6754
    %v9635 = vpack.c.b16 %v6771, %v6755
    %v9636 = vpack.c.b16 %v6772, %v6756
    %v9637 = vpack.c.b16 %v6773, %v6757
    %v9638 = vpack.c.b16 %v6774, %v6758
    %v9639 = vpack.c.b16 %v6775, %v6759
    %v9640 = vpack.c.b16 %v6776, %v6760
    %v9641 = vpack.c.b16 %v6777, %v6761
    %v9642 = vpack.c.b16 %v6778, %v6762
    %v9643 = vpack.c.b16 %v6795, %v6779
    %v9644 = vpack.c.b16 %v6796, %v6780
    %v9645 = vpack.c.b16 %v6797, %v6781
    %v9646 = vpack.c.b16 %v6798, %v6782
    %v9647 = vpack.c.b16 %v6799, %v6783
    %v9648 = vpack.c.b16 %v6800, %v6784
    %v9649 = vpack.c.b16 %v6801, %v6785
    %v9650 = vpack.c.b16 %v6802, %v6786
    %v9651 = vpack.c.b16 %v6803, %v6787
    %v9652 = vpack.c.b16 %v6804, %v6788
    %v9653 = vpack.c.b16 %v6805, %v6789
    %v9654 = vpack.c.b16 %v6806, %v6790
    %v9655 = vpack.c.b16 %v6807, %v6791
    %v9656 = vpack.c.b16 %v6808, %v6792
    %v9657 = vpack.c.b16 %v6809, %v6793
    %v9658 = vpack.c.b16 %v6810, %v6794
    %v9659 = vpack.c.b16 %v6827, %v6811
    %v9660 = vpack.c.b16 %v6828, %v6812
    %v9661 = vpack.c.b16 %v6829, %v6813
    %v9662 = vpack.c.b16 %v6830, %v6814
    %v9663 = vpack.c.b16 %v6831, %v6815
    %v9664 = vpack.c.b16 %v6832, %v6816
    %v9665 = vpack.c.b16 %v6833, %v6817
    %v9666 = vpack.c.b16 %v6834, %v6818
    %v9667 = vpack.c.b16 %v6835, %v6819
    %v9668 = vpack.c.b16 %v6836, %v6820
    %v9669 = vpack.c.b16 %v6837, %v6821
    %v9670 = vpack.c.b16 %v6838, %v6822
    %v9671 = vpack.c.b16 %v6839, %v6823
    %v9672 = vpack.c.b16 %v6840, %v6824
    %v9673 = vpack.c.b16 %v6841, %v6825
    %v9674 = vpack.c.b16 %v6842, %v6826
    %v9675 = vpack.c.b16 %v6859, %v6843
    %v9676 = vpack.c.b16 %v6860, %v6844
    %v9677 = vpack.c.b16 %v6861, %v6845
    %v9678 = vpack.c.b16 %v6862, %v6846
    %v9679 = vpack.c.b16 %v6863, %v6847
    %v9680 = vpack.c.b16 %v6864, %v6848
    %v9681 = vpack.c.b16 %v6865, %v6849
    %v9682 = vpack.c.b16 %v6866, %v6850
    %v9683 = vpack.c.b16 %v6867, %v6851
    %v9684 = vpack.c.b16 %v6868, %v6852
    %v9685 = vpack.c.b16 %v6869, %v6853
    %v9686 = vpack.c.b16 %v6870, %v6854
    %v9687 = vpack.c.b16 %v6871, %v6855
    %v9688 = vpack.c.b16 %v6872, %v6856
    %v9689 = vpack.c.b16 %v6873, %v6857
    %v9690 = vpack.c.b16 %v6874, %v6858
    %v9691 = vpack.c.b16 %v6891, %v6875
    %v9692 = vpack.c.b16 %v6892, %v6876
    %v9693 = vpack.c.b16 %v6893, %v6877
    %v9694 = vpack.c.b16 %v6894, %v6878
    %v9695 = vpack.c.b16 %v6895, %v6879
    %v9696 = vpack.c.b16 %v6896, %v6880
    %v9697 = vpack.c.b16 %v6897, %v6881
    %v9698 = vpack.c.b16 %v6898, %v6882
    %v9699 = vpack.c.b16 %v6899, %v6883
    %v9700 = vpack.c.b16 %v6900, %v6884
    %v9701 = vpack.c.b16 %v6901, %v6885
    %v9702 = vpack.c.b16 %v6902, %v6886
    %v9703 = vpack.c.b16 %v6903, %v6887
    %v9704 = vpack.c.b16 %v6904, %v6888
    %v9705 = vpack.c.b16 %v6905, %v6889
    %v9706 = vpack.c.b16 %v6906, %v6890
    %v9707 = vpack.c.b16 %v6923, %v6907
    %v9708 = vpack.c.b16 %v6924, %v6908
    %v9709 = vpack.c.b16 %v6925, %v6909
    %v9710 = vpack.c.b16 %v6926, %v6910
    %v9711 = vpack.c.b16 %v6927, %v6911
    %v9712 = vpack.c.b16 %v6928, %v6912
    %v9713 = vpack.c.b16 %v6929, %v6913
    %v9714 = vpack.c.b16 %v6930, %v6914
    %v9715 = vpack.c.b16 %v6931, %v6915
    %v9716 = vpack.c.b16 %v6932, %v6916
    %v9717 = vpack.c.b16 %v6933, %v6917
    %v9718 = vpack.c.b16 %v6934, %v6918
    %v9719 = vpack.c.b16 %v6935, %v6919
    %v9720 = vpack.c.b16 %v6936, %v6920
    %v9721 = vpack.c.b16 %v6937, %v6921
    %v9722 = vpack.c.b16 %v6938, %v6922
    %v9723 = vpack.c.b16 %v6955, %v6939
    %v9724 = vpack.c.b16 %v6956, %v6940
    %v9725 = vpack.c.b16 %v6957, %v6941
    %v9726 = vpack.c.b16 %v6958, %v6942
    %v9727 = vpack.c.b16 %v6959, %v6943
    %v9728 = vpack.c.b16 %v6960, %v6944
    %v9729 = vpack.c.b16 %v6961, %v6945
    %v9730 = vpack.c.b16 %v6962, %v6946
    %v9731 = vpack.c.b16 %v6963, %v6947
    %v9732 = vpack.c.b16 %v6964, %v6948
    %v9733 = vpack.c.b16 %v6965, %v6949
    %v9734 = vpack.c.b16 %v6966, %v6950
    %v9735 = vpack.c.b16 %v6967, %v6951
    %v9736 = vpack.c.b16 %v6968, %v6952
    %v9737 = vpack.c.b16 %v6969, %v6953
    %v9738 = vpack.c.b16 %v6970, %v6954
    %v9739 = vpack.c.b16 %v6987, %v6971
    %v9740 = vpack.c.b16 %v6988, %v6972
    %v9741 = vpack.c.b16 %v6989, %v6973
    %v9742 = vpack.c.b16 %v6990, %v6974
    %v9743 = vpack.c.b16 %v6991, %v6975
    %v9744 = vpack.c.b16 %v6992, %v6976
    %v9745 = vpack.c.b16 %v6993, %v6977
    %v9746 = vpack.c.b16 %v6994, %v6978
    %v9747 = vpack.c.b16 %v6995, %v6979
    %v9748 = vpack.c.b16 %v6996, %v6980
    %v9749 = vpack.c.b16 %v6997, %v6981
    %v9750 = vpack.c.b16 %v6998, %v6982
    %v9751 = vpack.c.b16 %v6999, %v6983
    %v9752 = vpack.c.b16 %v7000, %v6984
    %v9753 = vpack.c.b16 %v7001, %v6985
    %v9754 = vpack.c.b16 %v7002, %v6986
    %v9755 = vpack.c.b16 %v7019, %v7003
    %v9756 = vpack.c.b16 %v7020, %v7004
    %v9757 = vpack.c.b16 %v7021, %v7005
    %v9758 = vpack.c.b16 %v7022, %v7006
    %v9759 = vpack.c.b16 %v7023, %v7007
    %v9760 = vpack.c.b16 %v7024, %v7008
    %v9761 = vpack.c.b16 %v7025, %v7009
    %v9762 = vpack.c.b16 %v7026, %v7010
    %v9763 = vpack.c.b16 %v7027, %v7011
    %v9764 = vpack.c.b16 %v7028, %v7012
    %v9765 = vpack.c.b16 %v7029, %v7013
    %v9766 = vpack.c.b16 %v7030, %v7014
    %v9767 = vpack.c.b16 %v7031, %v7015
    %v9768 = vpack.c.b16 %v7032, %v7016
    %v9769 = vpack.c.b16 %v7033, %v7017
    %v9770 = vpack.c.b16 %v7034, %v7018
    %v9771 = vpack.c.b16 %v7051, %v7035
    %v9772 = vpack.c.b16 %v7052, %v7036
    %v9773 = vpack.c.b16 %v7053, %v7037
    %v9774 = vpack.c.b16 %v7054, %v7038
    %v9775 = vpack.c.b16 %v7055, %v7039
    %v9776 = vpack.c.b16 %v7056, %v7040
    %v9777 = vpack.c.b16 %v7057, %v7041
    %v9778 = vpack.c.b16 %v7058, %v7042
    %v9779 = vpack.c.b16 %v7059, %v7043
    %v9780 = vpack.c.b16 %v7060, %v7044
    %v9781 = vpack.c.b16 %v7061, %v7045
    %v9782 = vpack.c.b16 %v7062, %v7046
    %v9783 = vpack.c.b16 %v7063, %v7047
    %v9784 = vpack.c.b16 %v7064, %v7048
    %v9785 = vpack.c.b16 %v7065, %v7049
    %v9786 = vpack.c.b16 %v7066, %v7050
    %v9787 = vpack.c.b16 %v7083, %v7067
    %v9788 = vpack.c.b16 %v7084, %v7068
    %v9789 = vpack.c.b16 %v7085, %v7069
    %v9790 = vpack.c.b16 %v7086, %v7070
    %v9791 = vpack.c.b16 %v7087, %v7071
    %v9792 = vpack.c.b16 %v7088, %v7072
    %v9793 = vpack.c.b16 %v7089, %v7073
    %v9794 = vpack.c.b16 %v7090, %v7074
    %v9795 = vpack.c.b16 %v7091, %v7075
    %v9796 = vpack.c.b16 %v7092, %v7076
    %v9797 = vpack.c.b16 %v7093, %v7077
    %v9798 = vpack.c.b16 %v7094, %v7078
    %v9799 = vpack.c.b16 %v7095, %v7079
    %v9800 = vpack.c.b16 %v7096, %v7080
    %v9801 = vpack.c.b16 %v7097, %v7081
    %v9802 = vpack.c.b16 %v7098, %v7082
    %v9803 = vpack.c.b16 %v7115, %v7099
    %v9804 = vpack.c.b16 %v7116, %v7100
    %v9805 = vpack.c.b16 %v7117, %v7101
    %v9806 = vpack.c.b16 %v7118, %v7102
    %v9807 = vpack.c.b16 %v7119, %v7103
    %v9808 = vpack.c.b16 %v7120, %v7104
    %v9809 = vpack.c.b16 %v7121, %v7105
    %v9810 = vpack.c.b16 %v7122, %v7106
    %v9811 = vpack.c.b16 %v7123, %v7107
    %v9812 = vpack.c.b16 %v7124, %v7108
    %v9813 = vpack.c.b16 %v7125, %v7109
    %v9814 = vpack.c.b16 %v7126, %v7110
    %v9815 = vpack.c.b16 %v7127, %v7111
    %v9816 = vpack.c.b16 %v7128, %v7112
    %v9817 = vpack.c.b16 %v7129, %v7113
    %v9818 = vpack.c.b16 %v7130, %v7114
    %v9819 = vpack.c.b16 %v7147, %v7131
    %v9820 = vpack.c.b16 %v7148, %v7132
    %v9821 = vpack.c.b16 %v7149, %v7133
    %v9822 = vpack.c.b16 %v7150, %v7134
    %v9823 = vpack.c.b16 %v7151, %v7135
    %v9824 = vpack.c.b16 %v7152, %v7136
    %v9825 = vpack.c.b16 %v7153, %v7137
    %v9826 = vpack.c.b16 %v7154, %v7138
    %v9827 = vpack.c.b16 %v7155, %v7139
    %v9828 = vpack.c.b16 %v7156, %v7140
    %v9829 = vpack.c.b16 %v7157, %v7141
    %v9830 = vpack.c.b16 %v7158, %v7142
    %v9831 = vpack.c.b16 %v7159, %v7143
    %v9832 = vpack.c.b16 %v7160, %v7144
    %v9833 = vpack.c.b16 %v7161, %v7145
    %v9834 = vpack.c.b16 %v7162, %v7146
    %v9835 = vpack.c.b16 %v7179, %v7163
    %v9836 = vpack.c.b16 %v7180, %v7164
    %v9837 = vpack.c.b16 %v7181, %v7165
    %v9838 = vpack.c.b16 %v7182, %v7166
    %v9839 = vpack.c.b16 %v7183, %v7167
    %v9840 = vpack.c.b16 %v7184, %v7168
    %v9841 = vpack.c.b16 %v7185, %v7169
    %v9842 = vpack.c.b16 %v7186, %v7170
    %v9843 = vpack.c.b16 %v7187, %v7171
    %v9844 = vpack.c.b16 %v7188, %v7172
    %v9845 = vpack.c.b16 %v7189, %v7173
    %v9846 = vpack.c.b16 %v7190, %v7174
    %v9847 = vpack.c.b16 %v7191, %v7175
    %v9848 = vpack.c.b16 %v7192, %v7176
    %v9849 = vpack.c.b16 %v7193, %v7177
    %v9850 = vpack.c.b16 %v7194, %v7178
    %v9851 = vpack.c.b16 %v7211, %v7195
    %v9852 = vpack.c.b16 %v7212, %v7196
    %v9853 = vpack.c.b16 %v7213, %v7197
    %v9854 = vpack.c.b16 %v7214, %v7198
    %v9855 = vpack.c.b16 %v7215, %v7199
    %v9856 = vpack.c.b16 %v7216, %v7200
    %v9857 = vpack.c.b16 %v7217, %v7201
    %v9858 = vpack.c.b16 %v7218, %v7202
    %v9859 = vpack.c.b16 %v7219, %v7203
    %v9860 = vpack.c.b16 %v7220, %v7204
    %v9861 = vpack.c.b16 %v7221, %v7205
    %v9862 = vpack.c.b16 %v7222, %v7206
    %v9863 = vpack.c.b16 %v7223, %v7207
    %v9864 = vpack.c.b16 %v7224, %v7208
    %v9865 = vpack.c.b16 %v7225, %v7209
    %v9866 = vpack.c.b16 %v7226, %v7210
    %v9867 = vpack.c.b16 %v7243, %v7227
    %v9868 = vpack.c.b16 %v7244, %v7228
    %v9869 = vpack.c.b16 %v7245, %v7229
    %v9870 = vpack.c.b16 %v7246, %v7230
    %v9871 = vpack.c.b16 %v7247, %v7231
    %v9872 = vpack.c.b16 %v7248, %v7232
    %v9873 = vpack.c.b16 %v7249, %v7233
    %v9874 = vpack.c.b16 %v7250, %v7234
    %v9875 = vpack.c.b16 %v7251, %v7235
    %v9876 = vpack.c.b16 %v7252, %v7236
    %v9877 = vpack.c.b16 %v7253, %v7237
    %v9878 = vpack.c.b16 %v7254, %v7238
    %v9879 = vpack.c.b16 %v7255, %v7239
    %v9880 = vpack.c.b16 %v7256, %v7240
    %v9881 = vpack.c.b16 %v7257, %v7241
    %v9882 = vpack.c.b16 %v7258, %v7242
    %v9883 = vpack.c.b16 %v7275, %v7259
    %v9884 = vpack.c.b16 %v7276, %v7260
    %v9885 = vpack.c.b16 %v7277, %v7261
    %v9886 = vpack.c.b16 %v7278, %v7262
    %v9887 = vpack.c.b16 %v7279, %v7263
    %v9888 = vpack.c.b16 %v7280, %v7264
    %v9889 = vpack.c.b16 %v7281, %v7265
    %v9890 = vpack.c.b16 %v7282, %v7266
    %v9891 = vpack.c.b16 %v7283, %v7267
    %v9892 = vpack.c.b16 %v7284, %v7268
    %v9893 = vpack.c.b16 %v7285, %v7269
    %v9894 = vpack.c.b16 %v7286, %v7270
    %v9895 = vpack.c.b16 %v7287, %v7271
    %v9896 = vpack.c.b16 %v7288, %v7272
    %v9897 = vpack.c.b16 %v7289, %v7273
    %v9898 = vpack.c.b16 %v7290, %v7274
    %v9899 = vpack.c.b16 %v7307, %v7291
    %v9900 = vpack.c.b16 %v7308, %v7292
    %v9901 = vpack.c.b16 %v7309, %v7293
    %v9902 = vpack.c.b16 %v7310, %v7294
    %v9903 = vpack.c.b16 %v7311, %v7295
    %v9904 = vpack.c.b16 %v7312, %v7296
    %v9905 = vpack.c.b16 %v7313, %v7297
    %v9906 = vpack.c.b16 %v7314, %v7298
    %v9907 = vpack.c.b16 %v7315, %v7299
    %v9908 = vpack.c.b16 %v7316, %v7300
    %v9909 = vpack.c.b16 %v7317, %v7301
    %v9910 = vpack.c.b16 %v7318, %v7302
    %v9911 = vpack.c.b16 %v7319, %v7303
    %v9912 = vpack.c.b16 %v7320, %v7304
    %v9913 = vpack.c.b16 %v7321, %v7305
    %v9914 = vpack.c.b16 %v7322, %v7306
    %v9915 = vpack.c.b16 %v7339, %v7323
    %v9916 = vpack.c.b16 %v7340, %v7324
    %v9917 = vpack.c.b16 %v7341, %v7325
    %v9918 = vpack.c.b16 %v7342, %v7326
    %v9919 = vpack.c.b16 %v7343, %v7327
    %v9920 = vpack.c.b16 %v7344, %v7328
    %v9921 = vpack.c.b16 %v7345, %v7329
    %v9922 = vpack.c.b16 %v7346, %v7330
    %v9923 = vpack.c.b16 %v7347, %v7331
    %v9924 = vpack.c.b16 %v7348, %v7332
    %v9925 = vpack.c.b16 %v7349, %v7333
    %v9926 = vpack.c.b16 %v7350, %v7334
    %v9927 = vpack.c.b16 %v7351, %v7335
    %v9928 = vpack.c.b16 %v7352, %v7336
    %v9929 = vpack.c.b16 %v7353, %v7337
    %v9930 = vpack.c.b16 %v7354, %v7338
    %v9931 = vpack.c.b16 %v7371, %v7355
    %v9932 = vpack.c.b16 %v7372, %v7356
    %v9933 = vpack.c.b16 %v7373, %v7357
    %v9934 = vpack.c.b16 %v7374, %v7358
    %v9935 = vpack.c.b16 %v7375, %v7359
    %v9936 = vpack.c.b16 %v7376, %v7360
    %v9937 = vpack.c.b16 %v7377, %v7361
    %v9938 = vpack.c.b16 %v7378, %v7362
    %v9939 = vpack.c.b16 %v7379, %v7363
    %v9940 = vpack.c.b16 %v7380, %v7364
    %v9941 = vpack.c.b16 %v7381, %v7365
    %v9942 = vpack.c.b16 %v7382, %v7366
    %v9943 = vpack.c.b16 %v7383, %v7367
    %v9944 = vpack.c.b16 %v7384, %v7368
    %v9945 = vpack.c.b16 %v7385, %v7369
    %v9946 = vpack.c.b16 %v7386, %v7370
    %v9947 = vpack.c.b16 %v7403, %v7387
    %v9948 = vpack.c.b16 %v7404, %v7388
    %v9949 = vpack.c.b16 %v7405, %v7389
    %v9950 = vpack.c.b16 %v7406, %v7390
    %v9951 = vpack.c.b16 %v7407, %v7391
    %v9952 = vpack.c.b16 %v7408, %v7392
    %v9953 = vpack.c.b16 %v7409, %v7393
    %v9954 = vpack.c.b16 %v7410, %v7394
    %v9955 = vpack.c.b16 %v7411, %v7395
    %v9956 = vpack.c.b16 %v7412, %v7396
    %v9957 = vpack.c.b16 %v7413, %v7397
    %v9958 = vpack.c.b16 %v7414, %v7398
    %v9959 = vpack.c.b16 %v7415, %v7399
    %v9960 = vpack.c.b16 %v7416, %v7400
    %v9961 = vpack.c.b16 %v7417, %v7401
    %v9962 = vpack.c.b16 %v7418, %v7402
    %v9963 = vpack.c.b16 %v7435, %v7419
    %v9964 = vpack.c.b16 %v7436, %v7420
    %v9965 = vpack.c.b16 %v7437, %v7421
    %v9966 = vpack.c.b16 %v7438, %v7422
    %v9967 = vpack.c.b16 %v7439, %v7423
    %v9968 = vpack.c.b16 %v7440, %v7424
    %v9969 = vpack.c.b16 %v7441, %v7425
    %v9970 = vpack.c.b16 %v7442, %v7426
    %v9971 = vpack.c.b16 %v7443, %v7427
    %v9972 = vpack.c.b16 %v7444, %v7428
    %v9973 = vpack.c.b16 %v7445, %v7429
    %v9974 = vpack.c.b16 %v7446, %v7430
    %v9975 = vpack.c.b16 %v7447, %v7431
    %v9976 = vpack.c.b16 %v7448, %v7432
    %v9977 = vpack.c.b16 %v7449, %v7433
    %v9978 = vpack.c.b16 %v7450, %v7434
    %v9979 = vpack.c.b16 %v7467, %v7451
    %v9980 = vpack.c.b16 %v7468, %v7452
    %v9981 = vpack.c.b16 %v7469, %v7453
    %v9982 = vpack.c.b16 %v7470, %v7454
    %v9983 = vpack.c.b16 %v7471, %v7455
    %v9984 = vpack.c.b16 %v7472, %v7456
    %v9985 = vpack.c.b16 %v7473, %v7457
    %v9986 = vpack.c.b16 %v7474, %v7458
    %v9987 = vpack.c.b16 %v7475, %v7459
    %v9988 = vpack.c.b16 %v7476, %v7460
    %v9989 = vpack.c.b16 %v7477, %v7461
    %v9990 = vpack.c.b16 %v7478, %v7462
    %v9991 = vpack.c.b16 %v7479, %v7463
    %v9992 = vpack.c.b16 %v7480, %v7464
    %v9993 = vpack.c.b16 %v7481, %v7465
    %v9994 = vpack.c.b16 %v7482, %v7466
    %v9995 = vpack.c.b16 %v7499, %v7483
    %v9996 = vpack.c.b16 %v7500, %v7484
    %v9997 = vpack.c.b16 %v7501, %v7485
    %v9998 = vpack.c.b16 %v7502, %v7486
    %v9999 = vpack.c.b16 %v7503, %v7487
    %v10000 = vpack.c.b16 %v7504, %v7488
    %v10001 = vpack.c.b16 %v7505, %v7489
    %v10002 = vpack.c.b16 %v7506, %v7490
    %v10003 = vpack.c.b16 %v7507, %v7491
    %v10004 = vpack.c.b16 %v7508, %v7492
    %v10005 = vpack.c.b16 %v7509, %v7493
    %v10006 = vpack.c.b16 %v7510, %v7494
    %v10007 = vpack.c.b16 %v7511, %v7495
    %v10008 = vpack.c.b16 %v7512, %v7496
    %v10009 = vpack.c.b16 %v7513, %v7497
    %v10010 = vpack.c.b16 %v7514, %v7498
    %v10011 = vpack.c.b16 %v7531, %v7515
    %v10012 = vpack.c.b16 %v7532, %v7516
    %v10013 = vpack.c.b16 %v7533, %v7517
    %v10014 = vpack.c.b16 %v7534, %v7518
    %v10015 = vpack.c.b16 %v7535, %v7519
    %v10016 = vpack.c.b16 %v7536, %v7520
    %v10017 = vpack.c.b16 %v7537, %v7521
    %v10018 = vpack.c.b16 %v7538, %v7522
    %v10019 = vpack.c.b16 %v7539, %v7523
    %v10020 = vpack.c.b16 %v7540, %v7524
    %v10021 = vpack.c.b16 %v7541, %v7525
    %v10022 = vpack.c.b16 %v7542, %v7526
    %v10023 = vpack.c.b16 %v7543, %v7527
    %v10024 = vpack.c.b16 %v7544, %v7528
    %v10025 = vpack.c.b16 %v7545, %v7529
    %v10026 = vpack.c.b16 %v7546, %v7530
    %v10027 = vpack.c.b16 %v7563, %v7547
    %v10028 = vpack.c.b16 %v7564, %v7548
    %v10029 = vpack.c.b16 %v7565, %v7549
    %v10030 = vpack.c.b16 %v7566, %v7550
    %v10031 = vpack.c.b16 %v7567, %v7551
    %v10032 = vpack.c.b16 %v7568, %v7552
    %v10033 = vpack.c.b16 %v7569, %v7553
    %v10034 = vpack.c.b16 %v7570, %v7554
    %v10035 = vpack.c.b16 %v7571, %v7555
    %v10036 = vpack.c.b16 %v7572, %v7556
    %v10037 = vpack.c.b16 %v7573, %v7557
    %v10038 = vpack.c.b16 %v7574, %v7558
    %v10039 = vpack.c.b16 %v7575, %v7559
    %v10040 = vpack.c.b16 %v7576, %v7560
    %v10041 = vpack.c.b16 %v7577, %v7561
    %v10042 = vpack.c.b16 %v7578, %v7562
    %v10043 = vpack.c.b16 %v7595, %v7579
    %v10044 = vpack.c.b16 %v7596, %v7580
    %v10045 = vpack.c.b16 %v7597, %v7581
    %v10046 = vpack.c.b16 %v7598, %v7582
    %v10047 = vpack.c.b16 %v7599, %v7583
    %v10048 = vpack.c.b16 %v7600, %v7584
    %v10049 = vpack.c.b16 %v7601, %v7585
    %v10050 = vpack.c.b16 %v7602, %v7586
    %v10051 = vpack.c.b16 %v7603, %v7587
    %v10052 = vpack.c.b16 %v7604, %v7588
    %v10053 = vpack.c.b16 %v7605, %v7589
    %v10054 = vpack.c.b16 %v7606, %v7590
    %v10055 = vpack.c.b16 %v7607, %v7591
    %v10056 = vpack.c.b16 %v7608, %v7592
    %v10057 = vpack.c.b16 %v7609, %v7593
    %v10058 = vpack.c.b16 %v7610, %v7594
    %v10059 = vpack.c.b16 %v7627, %v7611
    %v10060 = vpack.c.b16 %v7628, %v7612
    %v10061 = vpack.c.b16 %v7629, %v7613
    %v10062 = vpack.c.b16 %v7630, %v7614
    %v10063 = vpack.c.b16 %v7631, %v7615
    %v10064 = vpack.c.b16 %v7632, %v7616
    %v10065 = vpack.c.b16 %v7633, %v7617
    %v10066 = vpack.c.b16 %v7634, %v7618
    %v10067 = vpack.c.b16 %v7635, %v7619
    %v10068 = vpack.c.b16 %v7636, %v7620
    %v10069 = vpack.c.b16 %v7637, %v7621
    %v10070 = vpack.c.b16 %v7638, %v7622
    %v10071 = vpack.c.b16 %v7639, %v7623
    %v10072 = vpack.c.b16 %v7640, %v7624
    %v10073 = vpack.c.b16 %v7641, %v7625
    %v10074 = vpack.c.b16 %v7642, %v7626
    %v10075 = vpack.c.b16 %v7659, %v7643
    %v10076 = vpack.c.b16 %v7660, %v7644
    %v10077 = vpack.c.b16 %v7661, %v7645
    %v10078 = vpack.c.b16 %v7662, %v7646
    %v10079 = vpack.c.b16 %v7663, %v7647
    %v10080 = vpack.c.b16 %v7664, %v7648
    %v10081 = vpack.c.b16 %v7665, %v7649
    %v10082 = vpack.c.b16 %v7666, %v7650
    %v10083 = vpack.c.b16 %v7667, %v7651
    %v10084 = vpack.c.b16 %v7668, %v7652
    %v10085 = vpack.c.b16 %v7669, %v7653
    %v10086 = vpack.c.b16 %v7670, %v7654
    %v10087 = vpack.c.b16 %v7671, %v7655
    %v10088 = vpack.c.b16 %v7672, %v7656
    %v10089 = vpack.c.b16 %v7673, %v7657
    %v10090 = vpack.c.b16 %v7674, %v7658
    %v10091 = vpack.c.b16 %v7691, %v7675
    %v10092 = vpack.c.b16 %v7692, %v7676
    %v10093 = vpack.c.b16 %v7693, %v7677
    %v10094 = vpack.c.b16 %v7694, %v7678
    %v10095 = vpack.c.b16 %v7695, %v7679
    %v10096 = vpack.c.b16 %v7696, %v7680
    %v10097 = vpack.c.b16 %v7697, %v7681
    %v10098 = vpack.c.b16 %v7698, %v7682
    %v10099 = vpack.c.b16 %v7699, %v7683
    %v10100 = vpack.c.b16 %v7700, %v7684
    %v10101 = vpack.c.b16 %v7701, %v7685
    %v10102 = vpack.c.b16 %v7702, %v7686
    %v10103 = vpack.c.b16 %v7703, %v7687
    %v10104 = vpack.c.b16 %v7704, %v7688
    %v10105 = vpack.c.b16 %v7705, %v7689
    %v10106 = vpack.c.b16 %v7706, %v7690
    %v10107 = vpack.c.b16 %v7723, %v7707
    %v10108 = vpack.c.b16 %v7724, %v7708
    %v10109 = vpack.c.b16 %v7725, %v7709
    %v10110 = vpack.c.b16 %v7726, %v7710
    %v10111 = vpack.c.b16 %v7727, %v7711
    %v10112 = vpack.c.b16 %v7728, %v7712
    %v10113 = vpack.c.b16 %v7729, %v7713
    %v10114 = vpack.c.b16 %v7730, %v7714
    %v10115 = vpack.c.b16 %v7731, %v7715
    %v10116 = vpack.c.b16 %v7732, %v7716
    %v10117 = vpack.c.b16 %v7733, %v7717
    %v10118 = vpack.c.b16 %v7734, %v7718
    %v10119 = vpack.c.b16 %v7735, %v7719
    %v10120 = vpack.c.b16 %v7736, %v7720
    %v10121 = vpack.c.b16 %v7737, %v7721
    %v10122 = vpack.c.b16 %v7738, %v7722
    %v10123 = vpack.c.b16 %v7755, %v7739
    %v10124 = vpack.c.b16 %v7756, %v7740
    %v10125 = vpack.c.b16 %v7757, %v7741
    %v10126 = vpack.c.b16 %v7758, %v7742
    %v10127 = vpack.c.b16 %v7759, %v7743
    %v10128 = vpack.c.b16 %v7760, %v7744
    %v10129 = vpack.c.b16 %v7761, %v7745
    %v10130 = vpack.c.b16 %v7762, %v7746
    %v10131 = vpack.c.b16 %v7763, %v7747
    %v10132 = vpack.c.b16 %v7764, %v7748
    %v10133 = vpack.c.b16 %v7765, %v7749
    %v10134 = vpack.c.b16 %v7766, %v7750
    %v10135 = vpack.c.b16 %v7767, %v7751
    %v10136 = vpack.c.b16 %v7768, %v7752
    %v10137 = vpack.c.b16 %v7769, %v7753
    %v10138 = vpack.c.b16 %v7770, %v7754
    %v10139 = vpack.c.b16 %v7787, %v7771
    %v10140 = vpack.c.b16 %v7788, %v7772
    %v10141 = vpack.c.b16 %v7789, %v7773
    %v10142 = vpack.c.b16 %v7790, %v7774
    %v10143 = vpack.c.b16 %v7791, %v7775
    %v10144 = vpack.c.b16 %v7792, %v7776
    %v10145 = vpack.c.b16 %v7793, %v7777
    %v10146 = vpack.c.b16 %v7794, %v7778
    %v10147 = vpack.c.b16 %v7795, %v7779
    %v10148 = vpack.c.b16 %v7796, %v7780
    %v10149 = vpack.c.b16 %v7797, %v7781
    %v10150 = vpack.c.b16 %v7798, %v7782
    %v10151 = vpack.c.b16 %v7799, %v7783
    %v10152 = vpack.c.b16 %v7800, %v7784
    %v10153 = vpack.c.b16 %v7801, %v7785
    %v10154 = vpack.c.b16 %v7802, %v7786
    %v10155 = vpack.c.b16 %v7819, %v7803
    %v10156 = vpack.c.b16 %v7820, %v7804
    %v10157 = vpack.c.b16 %v7821, %v7805
    %v10158 = vpack.c.b16 %v7822, %v7806
    %v10159 = vpack.c.b16 %v7823, %v7807
    %v10160 = vpack.c.b16 %v7824, %v7808
    %v10161 = vpack.c.b16 %v7825, %v7809
    %v10162 = vpack.c.b16 %v7826, %v7810
    %v10163 = vpack.c.b16 %v7827, %v7811
    %v10164 = vpack.c.b16 %v7828, %v7812
    %v10165 = vpack.c.b16 %v7829, %v7813
    %v10166 = vpack.c.b16 %v7830, %v7814
    %v10167 = vpack.c.b16 %v7831, %v7815
    %v10168 = vpack.c.b16 %v7832, %v7816
    %v10169 = vpack.c.b16 %v7833, %v7817
    %v10170 = vpack.c.b16 %v7834, %v7818
    %v10171 = vpack.c.b16 %v7851, %v7835
    %v10172 = vpack.c.b16 %v7852, %v7836
    %v10173 = vpack.c.b16 %v7853, %v7837
    %v10174 = vpack.c.b16 %v7854, %v7838
    %v10175 = vpack.c.b16 %v7855, %v7839
    %v10176 = vpack.c.b16 %v7856, %v7840
    %v10177 = vpack.c.b16 %v7857, %v7841
    %v10178 = vpack.c.b16 %v7858, %v7842
    %v10179 = vpack.c.b16 %v7859, %v7843
    %v10180 = vpack.c.b16 %v7860, %v7844
    %v10181 = vpack.c.b16 %v7861, %v7845
    %v10182 = vpack.c.b16 %v7862, %v7846
    %v10183 = vpack.c.b16 %v7863, %v7847
    %v10184 = vpack.c.b16 %v7864, %v7848
    %v10185 = vpack.c.b16 %v7865, %v7849
    %v10186 = vpack.c.b16 %v7866, %v7850
    %v10187 = vpack.c.b16 %v7883, %v7867
    %v10188 = vpack.c.b16 %v7884, %v7868
    %v10189 = vpack.c.b16 %v7885, %v7869
    %v10190 = vpack.c.b16 %v7886, %v7870
    %v10191 = vpack.c.b16 %v7887, %v7871
    %v10192 = vpack.c.b16 %v7888, %v7872
    %v10193 = vpack.c.b16 %v7889, %v7873
    %v10194 = vpack.c.b16 %v7890, %v7874
    %v10195 = vpack.c.b16 %v7891, %v7875
    %v10196 = vpack.c.b16 %v7892, %v7876
    %v10197 = vpack.c.b16 %v7893, %v7877
    %v10198 = vpack.c.b16 %v7894, %v7878
    %v10199 = vpack.c.b16 %v7895, %v7879
    %v10200 = vpack.c.b16 %v7896, %v7880
    %v10201 = vpack.c.b16 %v7897, %v7881
    %v10202 = vpack.c.b16 %v7898, %v7882
    %v10203 = vpack.c.b16 %v7915, %v7899
    %v10204 = vpack.c.b16 %v7916, %v7900
    %v10205 = vpack.c.b16 %v7917, %v7901
    %v10206 = vpack.c.b16 %v7918, %v7902
    %v10207 = vpack.c.b16 %v7919, %v7903
    %v10208 = vpack.c.b16 %v7920, %v7904
    %v10209 = vpack.c.b16 %v7921, %v7905
    %v10210 = vpack.c.b16 %v7922, %v7906
    %v10211 = vpack.c.b16 %v7923, %v7907
    %v10212 = vpack.c.b16 %v7924, %v7908
    %v10213 = vpack.c.b16 %v7925, %v7909
    %v10214 = vpack.c.b16 %v7926, %v7910
    %v10215 = vpack.c.b16 %v7927, %v7911
    %v10216 = vpack.c.b16 %v7928, %v7912
    %v10217 = vpack.c.b16 %v7929, %v7913
    %v10218 = vpack.c.b16 %v7930, %v7914
    %v10219 = vpack.c.b16 %v7947, %v7931
    %v10220 = vpack.c.b16 %v7948, %v7932
    %v10221 = vpack.c.b16 %v7949, %v7933
    %v10222 = vpack.c.b16 %v7950, %v7934
    %v10223 = vpack.c.b16 %v7951, %v7935
    %v10224 = vpack.c.b16 %v7952, %v7936
    %v10225 = vpack.c.b16 %v7953, %v7937
    %v10226 = vpack.c.b16 %v7954, %v7938
    %v10227 = vpack.c.b16 %v7955, %v7939
    %v10228 = vpack.c.b16 %v7956, %v7940
    %v10229 = vpack.c.b16 %v7957, %v7941
    %v10230 = vpack.c.b16 %v7958, %v7942
    %v10231 = vpack.c.b16 %v7959, %v7943
    %v10232 = vpack.c.b16 %v7960, %v7944
    %v10233 = vpack.c.b16 %v7961, %v7945
    %v10234 = vpack.c.b16 %v7962, %v7946
    %v10235 = vpack.c.b16 %v7979, %v7963
    %v10236 = vpack.c.b16 %v7980, %v7964
    %v10237 = vpack.c.b16 %v7981, %v7965
    %v10238 = vpack.c.b16 %v7982, %v7966
    %v10239 = vpack.c.b16 %v7983, %v7967
    %v10240 = vpack.c.b16 %v7984, %v7968
    %v10241 = vpack.c.b16 %v7985, %v7969
    %v10242 = vpack.c.b16 %v7986, %v7970
    %v10243 = vpack.c.b16 %v7987, %v7971
    %v10244 = vpack.c.b16 %v7988, %v7972
    %v10245 = vpack.c.b16 %v7989, %v7973
    %v10246 = vpack.c.b16 %v7990, %v7974
    %v10247 = vpack.c.b16 %v7991, %v7975
    %v10248 = vpack.c.b16 %v7992, %v7976
    %v10249 = vpack.c.b16 %v7993, %v7977
    %v10250 = vpack.c.b16 %v7994, %v7978
    %v10251 = vpack.c.b16 %v8011, %v7995
    %v10252 = vpack.c.b16 %v8012, %v7996
    %v10253 = vpack.c.b16 %v8013, %v7997
    %v10254 = vpack.c.b16 %v8014, %v7998
    %v10255 = vpack.c.b16 %v8015, %v7999
    %v10256 = vpack.c.b16 %v8016, %v8000
    %v10257 = vpack.c.b16 %v8017, %v8001
    %v10258 = vpack.c.b16 %v8018, %v8002
    %v10259 = vpack.c.b16 %v8019, %v8003
    %v10260 = vpack.c.b16 %v8020, %v8004
    %v10261 = vpack.c.b16 %v8021, %v8005
    %v10262 = vpack.c.b16 %v8022, %v8006
    %v10263 = vpack.c.b16 %v8023, %v8007
    %v10264 = vpack.c.b16 %v8024, %v8008
    %v10265 = vpack.c.b16 %v8025, %v8009
    %v10266 = vpack.c.b16 %v8026, %v8010
    %v10267 = vpack.c.b16 %v8043, %v8027
    %v10268 = vpack.c.b16 %v8044, %v8028
    %v10269 = vpack.c.b16 %v8045, %v8029
    %v10270 = vpack.c.b16 %v8046, %v8030
    %v10271 = vpack.c.b16 %v8047, %v8031
    %v10272 = vpack.c.b16 %v8048, %v8032
    %v10273 = vpack.c.b16 %v8049, %v8033
    %v10274 = vpack.c.b16 %v8050, %v8034
    %v10275 = vpack.c.b16 %v8051, %v8035
    %v10276 = vpack.c.b16 %v8052, %v8036
    %v10277 = vpack.c.b16 %v8053, %v8037
    %v10278 = vpack.c.b16 %v8054, %v8038
    %v10279 = vpack.c.b16 %v8055, %v8039
    %v10280 = vpack.c.b16 %v8056, %v8040
    %v10281 = vpack.c.b16 %v8057, %v8041
    %v10282 = vpack.c.b16 %v8058, %v8042
    %v10283 = vpack.c.b16 %v8075, %v8059
    %v10284 = vpack.c.b16 %v8076, %v8060
    %v10285 = vpack.c.b16 %v8077, %v8061
    %v10286 = vpack.c.b16 %v8078, %v8062
    %v10287 = vpack.c.b16 %v8079, %v8063
    %v10288 = vpack.c.b16 %v8080, %v8064
    %v10289 = vpack.c.b16 %v8081, %v8065
    %v10290 = vpack.c.b16 %v8082, %v8066
    %v10291 = vpack.c.b16 %v8083, %v8067
    %v10292 = vpack.c.b16 %v8084, %v8068
    %v10293 = vpack.c.b16 %v8085, %v8069
    %v10294 = vpack.c.b16 %v8086, %v8070
    %v10295 = vpack.c.b16 %v8087, %v8071
    %v10296 = vpack.c.b16 %v8088, %v8072
    %v10297 = vpack.c.b16 %v8089, %v8073
    %v10298 = vpack.c.b16 %v8090, %v8074
    %v10299 = vpack.c.b16 %v8107, %v8091
    %v10300 = vpack.c.b16 %v8108, %v8092
    %v10301 = vpack.c.b16 %v8109, %v8093
    %v10302 = vpack.c.b16 %v8110, %v8094
    %v10303 = vpack.c.b16 %v8111, %v8095
    %v10304 = vpack.c.b16 %v8112, %v8096
    %v10305 = vpack.c.b16 %v8113, %v8097
    %v10306 = vpack.c.b16 %v8114, %v8098
    %v10307 = vpack.c.b16 %v8115, %v8099
    %v10308 = vpack.c.b16 %v8116, %v8100
    %v10309 = vpack.c.b16 %v8117, %v8101
    %v10310 = vpack.c.b16 %v8118, %v8102
    %v10311 = vpack.c.b16 %v8119, %v8103
    %v10312 = vpack.c.b16 %v8120, %v8104
    %v10313 = vpack.c.b16 %v8121, %v8105
    %v10314 = vpack.c.b16 %v8122, %v8106
    %v10315 = vpack.c.b16 %v8139, %v8123
    %v10316 = vpack.c.b16 %v8140, %v8124
    %v10317 = vpack.c.b16 %v8141, %v8125
    %v10318 = vpack.c.b16 %v8142, %v8126
    %v10319 = vpack.c.b16 %v8143, %v8127
    %v10320 = vpack.c.b16 %v8144, %v8128
    %v10321 = vpack.c.b16 %v8145, %v8129
    %v10322 = vpack.c.b16 %v8146, %v8130
    %v10323 = vpack.c.b16 %v8147, %v8131
    %v10324 = vpack.c.b16 %v8148, %v8132
    %v10325 = vpack.c.b16 %v8149, %v8133
    %v10326 = vpack.c.b16 %v8150, %v8134
    %v10327 = vpack.c.b16 %v8151, %v8135
    %v10328 = vpack.c.b16 %v8152, %v8136
    %v10329 = vpack.c.b16 %v8153, %v8137
    %v10330 = vpack.c.b16 %v8154, %v8138
    %v10331 = vpack.c.b16 %v8171, %v8155
    %v10332 = vpack.c.b16 %v8172, %v8156
    %v10333 = vpack.c.b16 %v8173, %v8157
    %v10334 = vpack.c.b16 %v8174, %v8158
    %v10335 = vpack.c.b16 %v8175, %v8159
    %v10336 = vpack.c.b16 %v8176, %v8160
    %v10337 = vpack.c.b16 %v8177, %v8161
    %v10338 = vpack.c.b16 %v8178, %v8162
    %v10339 = vpack.c.b16 %v8179, %v8163
    %v10340 = vpack.c.b16 %v8180, %v8164
    %v10341 = vpack.c.b16 %v8181, %v8165
    %v10342 = vpack.c.b16 %v8182, %v8166
    %v10343 = vpack.c.b16 %v8183, %v8167
    %v10344 = vpack.c.b16 %v8184, %v8168
    %v10345 = vpack.c.b16 %v8185, %v8169
    %v10346 = vpack.c.b16 %v8186, %v8170
    %v10347 = vpack.c.b16 %v8203, %v8187
    %v10348 = vpack.c.b16 %v8204, %v8188
    %v10349 = vpack.c.b16 %v8205, %v8189
    %v10350 = vpack.c.b16 %v8206, %v8190
    %v10351 = vpack.c.b16 %v8207, %v8191
    %v10352 = vpack.c.b16 %v8208, %v8192
    %v10353 = vpack.c.b16 %v8209, %v8193
    %v10354 = vpack.c.b16 %v8210, %v8194
    %v10355 = vpack.c.b16 %v8211, %v8195
    %v10356 = vpack.c.b16 %v8212, %v8196
    %v10357 = vpack.c.b16 %v8213, %v8197
    %v10358 = vpack.c.b16 %v8214, %v8198
    %v10359 = vpack.c.b16 %v8215, %v8199
    %v10360 = vpack.c.b16 %v8216, %v8200
    %v10361 = vpack.c.b16 %v8217, %v8201
    %v10362 = vpack.c.b16 %v8218, %v8202
    %v10363 = vpack.c.b16 %v8235, %v8219
    %v10364 = vpack.c.b16 %v8236, %v8220
    %v10365 = vpack.c.b16 %v8237, %v8221
    %v10366 = vpack.c.b16 %v8238, %v8222
    %v10367 = vpack.c.b16 %v8239, %v8223
    %v10368 = vpack.c.b16 %v8240, %v8224
    %v10369 = vpack.c.b16 %v8241, %v8225
    %v10370 = vpack.c.b16 %v8242, %v8226
    %v10371 = vpack.c.b16 %v8243, %v8227
    %v10372 = vpack.c.b16 %v8244, %v8228
    %v10373 = vpack.c.b16 %v8245, %v8229
    %v10374 = vpack.c.b16 %v8246, %v8230
    %v10375 = vpack.c.b16 %v8247, %v8231
    %v10376 = vpack.c.b16 %v8248, %v8232
    %v10377 = vpack.c.b16 %v8249, %v8233
    %v10378 = vpack.c.b16 %v8250, %v8234
    %v10379 = vpack.c.b16 %v8267, %v8251
    %v10380 = vpack.c.b16 %v8268, %v8252
    %v10381 = vpack.c.b16 %v8269, %v8253
    %v10382 = vpack.c.b16 %v8270, %v8254
    %v10383 = vpack.c.b16 %v8271, %v8255
    %v10384 = vpack.c.b16 %v8272, %v8256
    %v10385 = vpack.c.b16 %v8273, %v8257
    %v10386 = vpack.c.b16 %v8274, %v8258
    %v10387 = vpack.c.b16 %v8275, %v8259
    %v10388 = vpack.c.b16 %v8276, %v8260
    %v10389 = vpack.c.b16 %v8277, %v8261
    %v10390 = vpack.c.b16 %v8278, %v8262
    %v10391 = vpack.c.b16 %v8279, %v8263
    %v10392 = vpack.c.b16 %v8280, %v8264
    %v10393 = vpack.c.b16 %v8281, %v8265
    %v10394 = vpack.c.b16 %v8282, %v8266
    %v10395 = vpack.c.b16 %v8299, %v8283
    %v10396 = vpack.c.b16 %v8300, %v8284
    %v10397 = vpack.c.b16 %v8301, %v8285
    %v10398 = vpack.c.b16 %v8302, %v8286
    %v10399 = vpack.c.b16 %v8303, %v8287
    %v10400 = vpack.c.b16 %v8304, %v8288
    %v10401 = vpack.c.b16 %v8305, %v8289
    %v10402 = vpack.c.b16 %v8306, %v8290
    %v10403 = vpack.c.b16 %v8307, %v8291
    %v10404 = vpack.c.b16 %v8308, %v8292
    %v10405 = vpack.c.b16 %v8309, %v8293
    %v10406 = vpack.c.b16 %v8310, %v8294
    %v10407 = vpack.c.b16 %v8311, %v8295
    %v10408 = vpack.c.b16 %v8312, %v8296
    %v10409 = vpack.c.b16 %v8313, %v8297
    %v10410 = vpack.c.b16 %v8314, %v8298
    %v10411 = vpack.c.b16 %v8331, %v8315
    %v10412 = vpack.c.b16 %v8332, %v8316
    %v10413 = vpack.c.b16 %v8333, %v8317
    %v10414 = vpack.c.b16 %v8334, %v8318
    %v10415 = vpack.c.b16 %v8335, %v8319
    %v10416 = vpack.c.b16 %v8336, %v8320
    %v10417 = vpack.c.b16 %v8337, %v8321
    %v10418 = vpack.c.b16 %v8338, %v8322
    %v10419 = vpack.c.b16 %v8339, %v8323
    %v10420 = vpack.c.b16 %v8340, %v8324
    %v10421 = vpack.c.b16 %v8341, %v8325
    %v10422 = vpack.c.b16 %v8342, %v8326
    %v10423 = vpack.c.b16 %v8343, %v8327
    %v10424 = vpack.c.b16 %v8344, %v8328
    %v10425 = vpack.c.b16 %v8345, %v8329
    %v10426 = vpack.c.b16 %v8346, %v8330
    %v10427 = vpack.c.b16 %v8363, %v8347
    %v10428 = vpack.c.b16 %v8364, %v8348
    %v10429 = vpack.c.b16 %v8365, %v8349
    %v10430 = vpack.c.b16 %v8366, %v8350
    %v10431 = vpack.c.b16 %v8367, %v8351
    %v10432 = vpack.c.b16 %v8368, %v8352
    %v10433 = vpack.c.b16 %v8369, %v8353
    %v10434 = vpack.c.b16 %v8370, %v8354
    %v10435 = vpack.c.b16 %v8371, %v8355
    %v10436 = vpack.c.b16 %v8372, %v8356
    %v10437 = vpack.c.b16 %v8373, %v8357
    %v10438 = vpack.c.b16 %v8374, %v8358
    %v10439 = vpack.c.b16 %v8375, %v8359
    %v10440 = vpack.c.b16 %v8376, %v8360
    %v10441 = vpack.c.b16 %v8377, %v8361
    %v10442 = vpack.c.b16 %v8378, %v8362
    %v10443 = vpack.c.b16 %v8395, %v8379
    %v10444 = vpack.c.b16 %v8396, %v8380
    %v10445 = vpack.c.b16 %v8397, %v8381
    %v10446 = vpack.c.b16 %v8398, %v8382
    %v10447 = vpack.c.b16 %v8399, %v8383
    %v10448 = vpack.c.b16 %v8400, %v8384
    %v10449 = vpack.c.b16 %v8401, %v8385
    %v10450 = vpack.c.b16 %v8402, %v8386
    %v10451 = vpack.c.b16 %v8403, %v8387
    %v10452 = vpack.c.b16 %v8404, %v8388
    %v10453 = vpack.c.b16 %v8405, %v8389
    %v10454 = vpack.c.b16 %v8406, %v8390
    %v10455 = vpack.c.b16 %v8407, %v8391
    %v10456 = vpack.c.b16 %v8408, %v8392
    %v10457 = vpack.c.b16 %v8409, %v8393
    %v10458 = vpack.c.b16 %v8410, %v8394
    %12507 = vmatprep.subr.bf16.mxu0 %v8412
    %12508 = vmatpush1.bf16.msra.mxu0 %v8411
    %12509 = vmatprep.subr.bf16.mxu0 %v8428
    %12510 = vmatpush1.bf16.msra.mxu0 %v8427
    %12511 = vmatprep.subr.bf16.mxu0 %v8444
    %12512 = vmatpush1.bf16.msra.mxu0 %v8443
    %12513 = vmatprep.subr.bf16.mxu0 %v8460
    %12514 = vmatpush1.bf16.msra.mxu0 %v8459
    %12515 = vmatprep.subr.bf16.mxu0 %v8476
    %12516 = vmatpush1.bf16.msra.mxu0 %v8475
    %12517 = vmatprep.subr.bf16.mxu0 %v8492
    %12518 = vmatpush1.bf16.msra.mxu0 %v8491
    %12519 = vmatprep.subr.bf16.mxu0 %v8508
    %12520 = vmatpush1.bf16.msra.mxu0 %v8507
    %12521 = vmatprep.subr.bf16.mxu0 %v8524
    %12522 = vmatpush1.bf16.msra.mxu0 %v8523
    %12523 = vmatprep.subr.bf16.mxu0 %v8540
    %12524 = vmatpush1.bf16.msra.mxu0 %v8539
    %12525 = vmatprep.subr.bf16.mxu0 %v8556
    %12526 = vmatpush1.bf16.msra.mxu0 %v8555
    %12527 = vmatprep.subr.bf16.mxu0 %v8572
    %12528 = vmatpush1.bf16.msra.mxu0 %v8571
    %12529 = vmatprep.subr.bf16.mxu0 %v8588
    %12530 = vmatpush1.bf16.msra.mxu0 %v8587
    %12531 = vmatprep.subr.bf16.mxu0 %v8604
    %12532 = vmatpush1.bf16.msra.mxu0 %v8603
    %12533 = vmatprep.subr.bf16.mxu0 %v8620
    %12534 = vmatpush1.bf16.msra.mxu0 %v8619
    %12535 = vmatprep.subr.bf16.mxu0 %v8636
    %12536 = vmatpush1.bf16.msra.mxu0 %v8635
    %12537 = vmatprep.subr.bf16.mxu0 %v8652
    %12538 = vmatpush1.bf16.msra.mxu0 %v8651
    %12539 = vmatprep.mubr.bf16.mxu0 %v2236
    %12540 = vmatmul.mubr.bf16.gmra.mrb[0].mxu0 %v2235
    %v12541 = vpop.f32.mrb[0].mxu0
    %v12542 = vadd.f32 %v2134, %v12541
    %v12543 = vpop.f32.mrb[0].mxu0
    %v12544 = vadd.f32 %v2138, %v12543
    %v12545 = vpop.f32.mrb[0].mxu0
    %v12546 = vpop.f32.mrb[0].mxu0
    %12547 = vdwg.mxu0
    %12548 = vmatprep.subr.bf16.mxu0 %v8668
    %12549 = vmatpush1.bf16.msra.mxu0 %v8667
    %12550 = vmatprep.subr.bf16.mxu0 %v8684
    %12551 = vmatpush1.bf16.msra.mxu0 %v8683
    %12552 = vmatprep.subr.bf16.mxu0 %v8700
    %12553 = vmatpush1.bf16.msra.mxu0 %v8699
    %12554 = vmatprep.subr.bf16.mxu0 %v8716
    %12555 = vmatpush1.bf16.msra.mxu0 %v8715
    %12556 = vmatprep.subr.bf16.mxu0 %v8732
    %12557 = vmatpush1.bf16.msra.mxu0 %v8731
    %12558 = vmatprep.subr.bf16.mxu0 %v8748
    %12559 = vmatpush1.bf16.msra.mxu0 %v8747
    %12560 = vmatprep.subr.bf16.mxu0 %v8764
    %12561 = vmatpush1.bf16.msra.mxu0 %v8763
    %12562 = vmatprep.subr.bf16.mxu0 %v8780
    %12563 = vmatpush1.bf16.msra.mxu0 %v8779
    %12564 = vmatprep.subr.bf16.mxu0 %v8796
    %12565 = vmatpush1.bf16.msra.mxu0 %v8795
    %12566 = vmatprep.subr.bf16.mxu0 %v8812
    %12567 = vmatpush1.bf16.msra.mxu0 %v8811
    %12568 = vmatprep.subr.bf16.mxu0 %v8828
    %12569 = vmatpush1.bf16.msra.mxu0 %v8827
    %12570 = vmatprep.subr.bf16.mxu0 %v8844
    %12571 = vmatpush1.bf16.msra.mxu0 %v8843
    %12572 = vmatprep.subr.bf16.mxu0 %v8860
    %12573 = vmatpush1.bf16.msra.mxu0 %v8859
    %12574 = vmatprep.subr.bf16.mxu0 %v8876
    %12575 = vmatpush1.bf16.msra.mxu0 %v8875
    %12576 = vmatprep.subr.bf16.mxu0 %v8892
    %12577 = vmatpush1.bf16.msra.mxu0 %v8891
    %12578 = vmatprep.subr.bf16.mxu0 %v8908
    %12579 = vmatpush1.bf16.msra.mxu0 %v8907
    %12580 = vmatprep.mubr.bf16.mxu0 %v2238
    %12581 = vmatmul.mubr.bf16.gmra.mrb[0].mxu0 %v2237
    %v12582 = vpop.f32.mrb[0].mxu0
    %v12583 = vadd.f32 %v12542, %v12582
    %v12584 = vpop.f32.mrb[0].mxu0
    %v12585 = vadd.f32 %v12544, %v12584
    %v12586 = vpop.f32.mrb[0].mxu0
    %v12587 = vpop.f32.mrb[0].mxu0
    %12588 = vdwg.mxu0
    %12589 = vmatprep.subr.bf16.mxu0 %v8924
    %12590 = vmatpush1.bf16.msra.mxu0 %v8923
    %12591 = vmatprep.subr.bf16.mxu0 %v8940
    %12592 = vmatpush1.bf16.msra.mxu0 %v8939
    %12593 = vmatprep.subr.bf16.mxu0 %v8956
    %12594 = vmatpush1.bf16.msra.mxu0 %v8955
    %12595 = vmatprep.subr.bf16.mxu0 %v8972
    %12596 = vmatpush1.bf16.msra.mxu0 %v8971
    %12597 = vmatprep.subr.bf16.mxu0 %v8988
    %12598 = vmatpush1.bf16.msra.mxu0 %v8987
    %12599 = vmatprep.subr.bf16.mxu0 %v9004
    %12600 = vmatpush1.bf16.msra.mxu0 %v9003
    %12601 = vmatprep.subr.bf16.mxu0 %v9020
    %12602 = vmatpush1.bf16.msra.mxu0 %v9019
    %12603 = vmatprep.subr.bf16.mxu0 %v9036
    %12604 = vmatpush1.bf16.msra.mxu0 %v9035
    %12605 = vmatprep.subr.bf16.mxu0 %v9052
    %12606 = vmatpush1.bf16.msra.mxu0 %v9051
    %12607 = vmatprep.subr.bf16.mxu0 %v9068
    %12608 = vmatpush1.bf16.msra.mxu0 %v9067
    %12609 = vmatprep.subr.bf16.mxu0 %v9084
    %12610 = vmatpush1.bf16.msra.mxu0 %v9083
    %12611 = vmatprep.subr.bf16.mxu0 %v9100
    %12612 = vmatpush1.bf16.msra.mxu0 %v9099
    %12613 = vmatprep.subr.bf16.mxu0 %v9116
    %12614 = vmatpush1.bf16.msra.mxu0 %v9115
    %12615 = vmatprep.subr.bf16.mxu0 %v9132
    %12616 = vmatpush1.bf16.msra.mxu0 %v9131
    %12617 = vmatprep.subr.bf16.mxu0 %v9148
    %12618 = vmatpush1.bf16.msra.mxu0 %v9147
    %12619 = vmatprep.subr.bf16.mxu0 %v9164
    %12620 = vmatpush1.bf16.msra.mxu0 %v9163
    %12621 = vmatprep.mubr.bf16.mxu0 %v2240
    %12622 = vmatmul.mubr.bf16.gmra.mrb[0].mxu0 %v2239
    %v12623 = vpop.f32.mrb[0].mxu0
    %v12624 = vadd.f32 %v12583, %v12623
    %v12625 = vpop.f32.mrb[0].mxu0
    %v12626 = vadd.f32 %v12585, %v12625
    %v12627 = vpop.f32.mrb[0].mxu0
    %v12628 = vpop.f32.mrb[0].mxu0
    %12629 = vdwg.mxu0
    %12630 = vmatprep.subr.bf16.mxu0 %v9180
    %12631 = vmatpush1.bf16.msra.mxu0 %v9179
    %12632 = vmatprep.subr.bf16.mxu0 %v9196
    %12633 = vmatpush1.bf16.msra.mxu0 %v9195
    %12634 = vmatprep.subr.bf16.mxu0 %v9212
    %12635 = vmatpush1.bf16.msra.mxu0 %v9211
    %12636 = vmatprep.subr.bf16.mxu0 %v9228
    %12637 = vmatpush1.bf16.msra.mxu0 %v9227
    %12638 = vmatprep.subr.bf16.mxu0 %v9244
    %12639 = vmatpush1.bf16.msra.mxu0 %v9243
    %12640 = vmatprep.subr.bf16.mxu0 %v9260
    %12641 = vmatpush1.bf16.msra.mxu0 %v9259
    %12642 = vmatprep.subr.bf16.mxu0 %v9276
    %12643 = vmatpush1.bf16.msra.mxu0 %v9275
    %12644 = vmatprep.subr.bf16.mxu0 %v9292
    %12645 = vmatpush1.bf16.msra.mxu0 %v9291
    %12646 = vmatprep.subr.bf16.mxu0 %v9308
    %12647 = vmatpush1.bf16.msra.mxu0 %v9307
    %12648 = vmatprep.subr.bf16.mxu0 %v9324
    %12649 = vmatpush1.bf16.msra.mxu0 %v9323
    %12650 = vmatprep.subr.bf16.mxu0 %v9340
    %12651 = vmatpush1.bf16.msra.mxu0 %v9339
    %12652 = vmatprep.subr.bf16.mxu0 %v9356
    %12653 = vmatpush1.bf16.msra.mxu0 %v9355
    %12654 = vmatprep.subr.bf16.mxu0 %v9372
    %12655 = vmatpush1.bf16.msra.mxu0 %v9371
    %12656 = vmatprep.subr.bf16.mxu0 %v9388
    %12657 = vmatpush1.bf16.msra.mxu0 %v9387
    %12658 = vmatprep.subr.bf16.mxu0 %v9404
    %12659 = vmatpush1.bf16.msra.mxu0 %v9403
    %12660 = vmatprep.subr.bf16.mxu0 %v9420
    %12661 = vmatpush1.bf16.msra.mxu0 %v9419
    %12662 = vmatprep.mubr.bf16.mxu0 %v2242
    %12663 = vmatmul.mubr.bf16.gmra.mrb[0].mxu0 %v2241
    %v12664 = vpop.f32.mrb[0].mxu0
    %v12665 = vadd.f32 %v12624, %v12664
    %v12666 = vpop.f32.mrb[0].mxu0
    %v12667 = vadd.f32 %v12626, %v12666
    %v12668 = vpop.f32.mrb[0].mxu0
    %v12669 = vpop.f32.mrb[0].mxu0
    %12670 = vdwg.mxu0
    %12671 = vmatprep.subr.bf16.mxu0 %v9436
    %12672 = vmatpush1.bf16.msra.mxu0 %v9435
    %12673 = vmatprep.subr.bf16.mxu0 %v9452
    %12674 = vmatpush1.bf16.msra.mxu0 %v9451
    %12675 = vmatprep.subr.bf16.mxu0 %v9468
    %12676 = vmatpush1.bf16.msra.mxu0 %v9467
    %12677 = vmatprep.subr.bf16.mxu0 %v9484
    %12678 = vmatpush1.bf16.msra.mxu0 %v9483
    %12679 = vmatprep.subr.bf16.mxu0 %v9500
    %12680 = vmatpush1.bf16.msra.mxu0 %v9499
    %12681 = vmatprep.subr.bf16.mxu0 %v9516
    %12682 = vmatpush1.bf16.msra.mxu0 %v9515
    %12683 = vmatprep.subr.bf16.mxu0 %v9532
    %12684 = vmatpush1.bf16.msra.mxu0 %v9531
    %12685 = vmatprep.subr.bf16.mxu0 %v9548
    %12686 = vmatpush1.bf16.msra.mxu0 %v9547
    %12687 = vmatprep.subr.bf16.mxu0 %v9564
    %12688 = vmatpush1.bf16.msra.mxu0 %v9563
    %12689 = vmatprep.subr.bf16.mxu0 %v9580
    %12690 = vmatpush1.bf16.msra.mxu0 %v9579
    %12691 = vmatprep.subr.bf16.mxu0 %v9596
    %12692 = vmatpush1.bf16.msra.mxu0 %v9595
    %12693 = vmatprep.subr.bf16.mxu0 %v9612
    %12694 = vmatpush1.bf16.msra.mxu0 %v9611
    %12695 = vmatprep.subr.bf16.mxu0 %v9628
    %12696 = vmatpush1.bf16.msra.mxu0 %v9627
    %12697 = vmatprep.subr.bf16.mxu0 %v9644
    %12698 = vmatpush1.bf16.msra.mxu0 %v9643
    %12699 = vmatprep.subr.bf16.mxu0 %v9660
    %12700 = vmatpush1.bf16.msra.mxu0 %v9659
    %12701 = vmatprep.subr.bf16.mxu0 %v9676
    %12702 = vmatpush1.bf16.msra.mxu0 %v9675
    %12703 = vmatprep.mubr.bf16.mxu0 %v2244
    %12704 = vmatmul.mubr.bf16.gmra.mrb[0].mxu0 %v2243
    %v12705 = vpop.f32.mrb[0].mxu0
    %v12706 = vadd.f32 %v12665, %v12705
    %v12707 = vpop.f32.mrb[0].mxu0
    %v12708 = vadd.f32 %v12667, %v12707
    %v12709 = vpop.f32.mrb[0].mxu0
    %v12710 = vpop.f32.mrb[0].mxu0
    %12711 = vdwg.mxu0
    %12712 = vmatprep.subr.bf16.mxu0 %v9692
    %12713 = vmatpush1.bf16.msra.mxu0 %v9691
    %12714 = vmatprep.subr.bf16.mxu0 %v9708
    %12715 = vmatpush1.bf16.msra.mxu0 %v9707
    %12716 = vmatprep.subr.bf16.mxu0 %v9724
    %12717 = vmatpush1.bf16.msra.mxu0 %v9723
    %12718 = vmatprep.subr.bf16.mxu0 %v9740
    %12719 = vmatpush1.bf16.msra.mxu0 %v9739
    %12720 = vmatprep.subr.bf16.mxu0 %v9756
    %12721 = vmatpush1.bf16.msra.mxu0 %v9755
    %12722 = vmatprep.subr.bf16.mxu0 %v9772
    %12723 = vmatpush1.bf16.msra.mxu0 %v9771
    %12724 = vmatprep.subr.bf16.mxu0 %v9788
    %12725 = vmatpush1.bf16.msra.mxu0 %v9787
    %12726 = vmatprep.subr.bf16.mxu0 %v9804
    %12727 = vmatpush1.bf16.msra.mxu0 %v9803
    %12728 = vmatprep.subr.bf16.mxu0 %v9820
    %12729 = vmatpush1.bf16.msra.mxu0 %v9819
    %12730 = vmatprep.subr.bf16.mxu0 %v9836
    %12731 = vmatpush1.bf16.msra.mxu0 %v9835
    %12732 = vmatprep.subr.bf16.mxu0 %v9852
    %12733 = vmatpush1.bf16.msra.mxu0 %v9851
    %12734 = vmatprep.subr.bf16.mxu0 %v9868
    %12735 = vmatpush1.bf16.msra.mxu0 %v9867
    %12736 = vmatprep.subr.bf16.mxu0 %v9884
    %12737 = vmatpush1.bf16.msra.mxu0 %v9883
    %12738 = vmatprep.subr.bf16.mxu0 %v9900
    %12739 = vmatpush1.bf16.msra.mxu0 %v9899
    %12740 = vmatprep.subr.bf16.mxu0 %v9916
    %12741 = vmatpush1.bf16.msra.mxu0 %v9915
    %12742 = vmatprep.subr.bf16.mxu0 %v9932
    %12743 = vmatpush1.bf16.msra.mxu0 %v9931
    %12744 = vmatprep.mubr.bf16.mxu0 %v2246
    %12745 = vmatmul.mubr.bf16.gmra.mrb[0].mxu0 %v2245
    %v12746 = vpop.f32.mrb[0].mxu0
    %v12747 = vadd.f32 %v12706, %v12746
    %v12748 = vpop.f32.mrb[0].mxu0
    %v12749 = vadd.f32 %v12708, %v12748
    %v12750 = vpop.f32.mrb[0].mxu0
    %v12751 = vpop.f32.mrb[0].mxu0
    %12752 = vdwg.mxu0
    %12753 = vmatprep.subr.bf16.mxu0 %v9948
    %12754 = vmatpush1.bf16.msra.mxu0 %v9947
    %12755 = vmatprep.subr.bf16.mxu0 %v9964
    %12756 = vmatpush1.bf16.msra.mxu0 %v9963
    %12757 = vmatprep.subr.bf16.mxu0 %v9980
    %12758 = vmatpush1.bf16.msra.mxu0 %v9979
    %12759 = vmatprep.subr.bf16.mxu0 %v9996
    %12760 = vmatpush1.bf16.msra.mxu0 %v9995
    %12761 = vmatprep.subr.bf16.mxu0 %v10012
    %12762 = vmatpush1.bf16.msra.mxu0 %v10011
    %12763 = vmatprep.subr.bf16.mxu0 %v10028
    %12764 = vmatpush1.bf16.msra.mxu0 %v10027
    %12765 = vmatprep.subr.bf16.mxu0 %v10044
    %12766 = vmatpush1.bf16.msra.mxu0 %v10043
    %12767 = vmatprep.subr.bf16.mxu0 %v10060
    %12768 = vmatpush1.bf16.msra.mxu0 %v10059
    %12769 = vmatprep.subr.bf16.mxu0 %v10076
    %12770 = vmatpush1.bf16.msra.mxu0 %v10075
    %12771 = vmatprep.subr.bf16.mxu0 %v10092
    %12772 = vmatpush1.bf16.msra.mxu0 %v10091
    %12773 = vmatprep.subr.bf16.mxu0 %v10108
    %12774 = vmatpush1.bf16.msra.mxu0 %v10107
    %12775 = vmatprep.subr.bf16.mxu0 %v10124
    %12776 = vmatpush1.bf16.msra.mxu0 %v10123
    %12777 = vmatprep.subr.bf16.mxu0 %v10140
    %12778 = vmatpush1.bf16.msra.mxu0 %v10139
    %12779 = vmatprep.subr.bf16.mxu0 %v10156
    %12780 = vmatpush1.bf16.msra.mxu0 %v10155
    %12781 = vmatprep.subr.bf16.mxu0 %v10172
    %12782 = vmatpush1.bf16.msra.mxu0 %v10171
    %12783 = vmatprep.subr.bf16.mxu0 %v10188
    %12784 = vmatpush1.bf16.msra.mxu0 %v10187
    %12785 = vmatprep.mubr.bf16.mxu0 %v2248
    %12786 = vmatmul.mubr.bf16.gmra.mrb[0].mxu0 %v2247
    %v12787 = vpop.f32.mrb[0].mxu0
    %v12788 = vadd.f32 %v12747, %v12787
    %v12789 = vpop.f32.mrb[0].mxu0
    %v12790 = vadd.f32 %v12749, %v12789
    %v12791 = vpop.f32.mrb[0].mxu0
    %v12792 = vpop.f32.mrb[0].mxu0
    %12793 = vdwg.mxu0
    %12794 = vmatprep.subr.bf16.mxu0 %v10204
    %12795 = vmatpush1.bf16.msra.mxu0 %v10203
    %12796 = vmatprep.subr.bf16.mxu0 %v10220
    %12797 = vmatpush1.bf16.msra.mxu0 %v10219
    %12798 = vmatprep.subr.bf16.mxu0 %v10236
    %12799 = vmatpush1.bf16.msra.mxu0 %v10235
    %12800 = vmatprep.subr.bf16.mxu0 %v10252
    %12801 = vmatpush1.bf16.msra.mxu0 %v10251
    %12802 = vmatprep.subr.bf16.mxu0 %v10268
    %12803 = vmatpush1.bf16.msra.mxu0 %v10267
    %12804 = vmatprep.subr.bf16.mxu0 %v10284
    %12805 = vmatpush1.bf16.msra.mxu0 %v10283
    %12806 = vmatprep.subr.bf16.mxu0 %v10300
    %12807 = vmatpush1.bf16.msra.mxu0 %v10299
    %12808 = vmatprep.subr.bf16.mxu0 %v10316
    %12809 = vmatpush1.bf16.msra.mxu0 %v10315
    %12810 = vmatprep.subr.bf16.mxu0 %v10332
    %12811 = vmatpush1.bf16.msra.mxu0 %v10331
    %12812 = vmatprep.subr.bf16.mxu0 %v10348
    %12813 = vmatpush1.bf16.msra.mxu0 %v10347
    %12814 = vmatprep.subr.bf16.mxu0 %v10364
    %12815 = vmatpush1.bf16.msra.mxu0 %v10363
    %12816 = vmatprep.subr.bf16.mxu0 %v10380
    %12817 = vmatpush1.bf16.msra.mxu0 %v10379
    %12818 = vmatprep.subr.bf16.mxu0 %v10396
    %12819 = vmatpush1.bf16.msra.mxu0 %v10395
    %12820 = vmatprep.subr.bf16.mxu0 %v10412
    %12821 = vmatpush1.bf16.msra.mxu0 %v10411
    %12822 = vmatprep.subr.bf16.mxu0 %v10428
    %12823 = vmatpush1.bf16.msra.mxu0 %v10427
    %12824 = vmatprep.subr.bf16.mxu0 %v10444
    %12825 = vmatpush1.bf16.msra.mxu0 %v10443
    %12826 = vmatprep.mubr.bf16.mxu0 %v2250
    %12827 = vmatmul.mubr.bf16.gmra.mrb[0].mxu0 %v2249
    %v12828 = vpop.f32.mrb[0].mxu0
    %v12829 = vadd.f32 %v12788, %v12828
    %v12830 = vpop.f32.mrb[0].mxu0
    %v12831 = vadd.f32 %v12790, %v12830
    %v12832 = vpop.f32.mrb[0].mxu0
    %v12833 = vpop.f32.mrb[0].mxu0
    %12834 = vdwg.mxu0
    %12835 = vmatprep.subr.bf16.mxu0 %v8414
    %12836 = vmatpush1.bf16.msra.mxu0 %v8413
    %12837 = vmatprep.subr.bf16.mxu0 %v8430
    %12838 = vmatpush1.bf16.msra.mxu0 %v8429
    %12839 = vmatprep.subr.bf16.mxu0 %v8446
    %12840 = vmatpush1.bf16.msra.mxu0 %v8445
    %12841 = vmatprep.subr.bf16.mxu0 %v8462
    %12842 = vmatpush1.bf16.msra.mxu0 %v8461
    %12843 = vmatprep.subr.bf16.mxu0 %v8478
    %12844 = vmatpush1.bf16.msra.mxu0 %v8477
    %12845 = vmatprep.subr.bf16.mxu0 %v8494
    %12846 = vmatpush1.bf16.msra.mxu0 %v8493
    %12847 = vmatprep.subr.bf16.mxu0 %v8510
    %12848 = vmatpush1.bf16.msra.mxu0 %v8509
    %12849 = vmatprep.subr.bf16.mxu0 %v8526
    %12850 = vmatpush1.bf16.msra.mxu0 %v8525
    %12851 = vmatprep.subr.bf16.mxu0 %v8542
    %12852 = vmatpush1.bf16.msra.mxu0 %v8541
    %12853 = vmatprep.subr.bf16.mxu0 %v8558
    %12854 = vmatpush1.bf16.msra.mxu0 %v8557
    %12855 = vmatprep.subr.bf16.mxu0 %v8574
    %12856 = vmatpush1.bf16.msra.mxu0 %v8573
    %12857 = vmatprep.subr.bf16.mxu0 %v8590
    %12858 = vmatpush1.bf16.msra.mxu0 %v8589
    %12859 = vmatprep.subr.bf16.mxu0 %v8606
    %12860 = vmatpush1.bf16.msra.mxu0 %v8605
    %12861 = vmatprep.subr.bf16.mxu0 %v8622
    %12862 = vmatpush1.bf16.msra.mxu0 %v8621
    %12863 = vmatprep.subr.bf16.mxu0 %v8638
    %12864 = vmatpush1.bf16.msra.mxu0 %v8637
    %12865 = vmatprep.subr.bf16.mxu0 %v8654
    %12866 = vmatpush1.bf16.msra.mxu0 %v8653
    %12867 = vmatprep.mubr.bf16.mxu0 %v2236
    %12868 = vmatmul.mubr.bf16.gmra.mrb[0].mxu0 %v2235
    %v12869 = vpop.f32.mrb[0].mxu0
    %v12870 = vadd.f32 %v2142, %v12869
    %v12871 = vpop.f32.mrb[0].mxu0
    %v12872 = vadd.f32 %v2146, %v12871
    %v12873 = vpop.f32.mrb[0].mxu0
    %v12874 = vpop.f32.mrb[0].mxu0
    %12875 = vdwg.mxu0
    %12876 = vmatprep.subr.bf16.mxu0 %v8670
    %12877 = vmatpush1.bf16.msra.mxu0 %v8669
    %12878 = vmatprep.subr.bf16.mxu0 %v8686
    %12879 = vmatpush1.bf16.msra.mxu0 %v8685
    %12880 = vmatprep.subr.bf16.mxu0 %v8702
    %12881 = vmatpush1.bf16.msra.mxu0 %v8701
    %12882 = vmatprep.subr.bf16.mxu0 %v8718
    %12883 = vmatpush1.bf16.msra.mxu0 %v8717
    %12884 = vmatprep.subr.bf16.mxu0 %v8734
    %12885 = vmatpush1.bf16.msra.mxu0 %v8733
    %12886 = vmatprep.subr.bf16.mxu0 %v8750
    %12887 = vmatpush1.bf16.msra.mxu0 %v8749
    %12888 = vmatprep.subr.bf16.mxu0 %v8766
    %12889 = vmatpush1.bf16.msra.mxu0 %v8765
    %12890 = vmatprep.subr.bf16.mxu0 %v8782
    %12891 = vmatpush1.bf16.msra.mxu0 %v8781
    %12892 = vmatprep.subr.bf16.mxu0 %v8798
    %12893 = vmatpush1.bf16.msra.mxu0 %v8797
    %12894 = vmatprep.subr.bf16.mxu0 %v8814
    %12895 = vmatpush1.bf16.msra.mxu0 %v8813
    %12896 = vmatprep.subr.bf16.mxu0 %v8830
    %12897 = vmatpush1.bf16.msra.mxu0 %v8829
    %12898 = vmatprep.subr.bf16.mxu0 %v8846
    %12899 = vmatpush1.bf16.msra.mxu0 %v8845
    %12900 = vmatprep.subr.bf16.mxu0 %v8862
    %12901 = vmatpush1.bf16.msra.mxu0 %v8861
    %12902 = vmatprep.subr.bf16.mxu0 %v8878
    %12903 = vmatpush1.bf16.msra.mxu0 %v8877
    %12904 = vmatprep.subr.bf16.mxu0 %v8894
    %12905 = vmatpush1.bf16.msra.mxu0 %v8893
    %12906 = vmatprep.subr.bf16.mxu0 %v8910
    %12907 = vmatpush1.bf16.msra.mxu0 %v8909
    %12908 = vmatprep.mubr.bf16.mxu0 %v2238
    %12909 = vmatmul.mubr.bf16.gmra.mrb[0].mxu0 %v2237
    %v12910 = vpop.f32.mrb[0].mxu0
    %v12911 = vadd.f32 %v12870, %v12910
    %v12912 = vpop.f32.mrb[0].mxu0
    %v12913 = vadd.f32 %v12872, %v12912
    %v12914 = vpop.f32.mrb[0].mxu0
    %v12915 = vpop.f32.mrb[0].mxu0
    %12916 = vdwg.mxu0
    %12917 = vmatprep.subr.bf16.mxu0 %v8926
    %12918 = vmatpush1.bf16.msra.mxu0 %v8925
    %12919 = vmatprep.subr.bf16.mxu0 %v8942
    %12920 = vmatpush1.bf16.msra.mxu0 %v8941
    %12921 = vmatprep.subr.bf16.mxu0 %v8958
    %12922 = vmatpush1.bf16.msra.mxu0 %v8957
    %12923 = vmatprep.subr.bf16.mxu0 %v8974
    %12924 = vmatpush1.bf16.msra.mxu0 %v8973
    %12925 = vmatprep.subr.bf16.mxu0 %v8990
    %12926 = vmatpush1.bf16.msra.mxu0 %v8989
    %12927 = vmatprep.subr.bf16.mxu0 %v9006
    %12928 = vmatpush1.bf16.msra.mxu0 %v9005
    %12929 = vmatprep.subr.bf16.mxu0 %v9022
    %12930 = vmatpush1.bf16.msra.mxu0 %v9021
    %12931 = vmatprep.subr.bf16.mxu0 %v9038
    %12932 = vmatpush1.bf16.msra.mxu0 %v9037
    %12933 = vmatprep.subr.bf16.mxu0 %v9054
    %12934 = vmatpush1.bf16.msra.mxu0 %v9053
    %12935 = vmatprep.subr.bf16.mxu0 %v9070
    %12936 = vmatpush1.bf16.msra.mxu0 %v9069
    %12937 = vmatprep.subr.bf16.mxu0 %v9086
    %12938 = vmatpush1.bf16.msra.mxu0 %v9085
    %12939 = vmatprep.subr.bf16.mxu0 %v9102
    %12940 = vmatpush1.bf16.msra.mxu0 %v9101
    %12941 = vmatprep.subr.bf16.mxu0 %v9118
    %12942 = vmatpush1.bf16.msra.mxu0 %v9117
    %12943 = vmatprep.subr.bf16.mxu0 %v9134
    %12944 = vmatpush1.bf16.msra.mxu0 %v9133
    %12945 = vmatprep.subr.bf16.mxu0 %v9150
    %12946 = vmatpush1.bf16.msra.mxu0 %v9149
    %12947 = vmatprep.subr.bf16.mxu0 %v9166
    %12948 = vmatpush1.bf16.msra.mxu0 %v9165
    %12949 = vmatprep.mubr.bf16.mxu0 %v2240
    %12950 = vmatmul.mubr.bf16.gmra.mrb[0].mxu0 %v2239
    %v12951 = vpop.f32.mrb[0].mxu0
    %v12952 = vadd.f32 %v12911, %v12951
    %v12953 = vpop.f32.mrb[0].mxu0
    %v12954 = vadd.f32 %v12913, %v12953
    %v12955 = vpop.f32.mrb[0].mxu0
    %v12956 = vpop.f32.mrb[0].mxu0
    %12957 = vdwg.mxu0
    %12958 = vmatprep.subr.bf16.mxu0 %v9182
    %12959 = vmatpush1.bf16.msra.mxu0 %v9181
    %12960 = vmatprep.subr.bf16.mxu0 %v9198
    %12961 = vmatpush1.bf16.msra.mxu0 %v9197
    %12962 = vmatprep.subr.bf16.mxu0 %v9214
    %12963 = vmatpush1.bf16.msra.mxu0 %v9213
    %12964 = vmatprep.subr.bf16.mxu0 %v9230
    %12965 = vmatpush1.bf16.msra.mxu0 %v9229
    %12966 = vmatprep.subr.bf16.mxu0 %v9246
    %12967 = vmatpush1.bf16.msra.mxu0 %v9245
    %12968 = vmatprep.subr.bf16.mxu0 %v9262
    %12969 = vmatpush1.bf16.msra.mxu0 %v9261
    %12970 = vmatprep.subr.bf16.mxu0 %v9278
    %12971 = vmatpush1.bf16.msra.mxu0 %v9277
    %12972 = vmatprep.subr.bf16.mxu0 %v9294
    %12973 = vmatpush1.bf16.msra.mxu0 %v9293
    %12974 = vmatprep.subr.bf16.mxu0 %v9310
    %12975 = vmatpush1.bf16.msra.mxu0 %v9309
    %12976 = vmatprep.subr.bf16.mxu0 %v9326
    %12977 = vmatpush1.bf16.msra.mxu0 %v9325
    %12978 = vmatprep.subr.bf16.mxu0 %v9342
    %12979 = vmatpush1.bf16.msra.mxu0 %v9341
    %12980 = vmatprep.subr.bf16.mxu0 %v9358
    %12981 = vmatpush1.bf16.msra.mxu0 %v9357
    %12982 = vmatprep.subr.bf16.mxu0 %v9374
    %12983 = vmatpush1.bf16.msra.mxu0 %v9373
    %12984 = vmatprep.subr.bf16.mxu0 %v9390
    %12985 = vmatpush1.bf16.msra.mxu0 %v9389
    %12986 = vmatprep.subr.bf16.mxu0 %v9406
    %12987 = vmatpush1.bf16.msra.mxu0 %v9405
    %12988 = vmatprep.subr.bf16.mxu0 %v9422
    %12989 = vmatpush1.bf16.msra.mxu0 %v9421
    %12990 = vmatprep.mubr.bf16.mxu0 %v2242
    %12991 = vmatmul.mubr.bf16.gmra.mrb[0].mxu0 %v2241
    %v12992 = vpop.f32.mrb[0].mxu0
    %v12993 = vadd.f32 %v12952, %v12992
    %v12994 = vpop.f32.mrb[0].mxu0
    %v12995 = vadd.f32 %v12954, %v12994
    %v12996 = vpop.f32.mrb[0].mxu0
    %v12997 = vpop.f32.mrb[0].mxu0
    %12998 = vdwg.mxu0
    %12999 = vmatprep.subr.bf16.mxu0 %v9438
    %13000 = vmatpush1.bf16.msra.mxu0 %v9437
    %13001 = vmatprep.subr.bf16.mxu0 %v9454
    %13002 = vmatpush1.bf16.msra.mxu0 %v9453
    %13003 = vmatprep.subr.bf16.mxu0 %v9470
    %13004 = vmatpush1.bf16.msra.mxu0 %v9469
    %13005 = vmatprep.subr.bf16.mxu0 %v9486
    %13006 = vmatpush1.bf16.msra.mxu0 %v9485
    %13007 = vmatprep.subr.bf16.mxu0 %v9502
    %13008 = vmatpush1.bf16.msra.mxu0 %v9501
    %13009 = vmatprep.subr.bf16.mxu0 %v9518
    %13010 = vmatpush1.bf16.msra.mxu0 %v9517
    %13011 = vmatprep.subr.bf16.mxu0 %v9534
    %13012 = vmatpush1.bf16.msra.mxu0 %v9533
    %13013 = vmatprep.subr.bf16.mxu0 %v9550
    %13014 = vmatpush1.bf16.msra.mxu0 %v9549
    %13015 = vmatprep.subr.bf16.mxu0 %v9566
    %13016 = vmatpush1.bf16.msra.mxu0 %v9565
    %13017 = vmatprep.subr.bf16.mxu0 %v9582
    %13018 = vmatpush1.bf16.msra.mxu0 %v9581
    %13019 = vmatprep.subr.bf16.mxu0 %v9598
    %13020 = vmatpush1.bf16.msra.mxu0 %v9597
    %13021 = vmatprep.subr.bf16.mxu0 %v9614
    %13022 = vmatpush1.bf16.msra.mxu0 %v9613
    %13023 = vmatprep.subr.bf16.mxu0 %v9630
    %13024 = vmatpush1.bf16.msra.mxu0 %v9629
    %13025 = vmatprep.subr.bf16.mxu0 %v9646
    %13026 = vmatpush1.bf16.msra.mxu0 %v9645
    %13027 = vmatprep.subr.bf16.mxu0 %v9662
    %13028 = vmatpush1.bf16.msra.mxu0 %v9661
    %13029 = vmatprep.subr.bf16.mxu0 %v9678
    %13030 = vmatpush1.bf16.msra.mxu0 %v9677
    %13031 = vmatprep.mubr.bf16.mxu0 %v2244
    %13032 = vmatmul.mubr.bf16.gmra.mrb[0].mxu0 %v2243
    %v13033 = vpop.f32.mrb[0].mxu0
    %v13034 = vadd.f32 %v12993, %v13033
    %v13035 = vpop.f32.mrb[0].mxu0
    %v13036 = vadd.f32 %v12995, %v13035
    %v13037 = vpop.f32.mrb[0].mxu0
    %v13038 = vpop.f32.mrb[0].mxu0
    %13039 = vdwg.mxu0
    %13040 = vmatprep.subr.bf16.mxu0 %v9694
    %13041 = vmatpush1.bf16.msra.mxu0 %v9693
    %13042 = vmatprep.subr.bf16.mxu0 %v9710
    %13043 = vmatpush1.bf16.msra.mxu0 %v9709
    %13044 = vmatprep.subr.bf16.mxu0 %v9726
    %13045 = vmatpush1.bf16.msra.mxu0 %v9725
    %13046 = vmatprep.subr.bf16.mxu0 %v9742
    %13047 = vmatpush1.bf16.msra.mxu0 %v9741
    %13048 = vmatprep.subr.bf16.mxu0 %v9758
    %13049 = vmatpush1.bf16.msra.mxu0 %v9757
    %13050 = vmatprep.subr.bf16.mxu0 %v9774
    %13051 = vmatpush1.bf16.msra.mxu0 %v9773
    %13052 = vmatprep.subr.bf16.mxu0 %v9790
    %13053 = vmatpush1.bf16.msra.mxu0 %v9789
    %13054 = vmatprep.subr.bf16.mxu0 %v9806
    %13055 = vmatpush1.bf16.msra.mxu0 %v9805
    %13056 = vmatprep.subr.bf16.mxu0 %v9822
    %13057 = vmatpush1.bf16.msra.mxu0 %v9821
    %13058 = vmatprep.subr.bf16.mxu0 %v9838
    %13059 = vmatpush1.bf16.msra.mxu0 %v9837
    %13060 = vmatprep.subr.bf16.mxu0 %v9854
    %13061 = vmatpush1.bf16.msra.mxu0 %v9853
    %13062 = vmatprep.subr.bf16.mxu0 %v9870
    %13063 = vmatpush1.bf16.msra.mxu0 %v9869
    %13064 = vmatprep.subr.bf16.mxu0 %v9886
    %13065 = vmatpush1.bf16.msra.mxu0 %v9885
    %13066 = vmatprep.subr.bf16.mxu0 %v9902
    %13067 = vmatpush1.bf16.msra.mxu0 %v9901
    %13068 = vmatprep.subr.bf16.mxu0 %v9918
    %13069 = vmatpush1.bf16.msra.mxu0 %v9917
    %13070 = vmatprep.subr.bf16.mxu0 %v9934
    %13071 = vmatpush1.bf16.msra.mxu0 %v9933
    %13072 = vmatprep.mubr.bf16.mxu0 %v2246
    %13073 = vmatmul.mubr.bf16.gmra.mrb[0].mxu0 %v2245
    %v13074 = vpop.f32.mrb[0].mxu0
    %v13075 = vadd.f32 %v13034, %v13074
    %v13076 = vpop.f32.mrb[0].mxu0
    %v13077 = vadd.f32 %v13036, %v13076
    %v13078 = vpop.f32.mrb[0].mxu0
    %v13079 = vpop.f32.mrb[0].mxu0
    %13080 = vdwg.mxu0
    %13081 = vmatprep.subr.bf16.mxu0 %v9950
    %13082 = vmatpush1.bf16.msra.mxu0 %v9949
    %13083 = vmatprep.subr.bf16.mxu0 %v9966
    %13084 = vmatpush1.bf16.msra.mxu0 %v9965
    %13085 = vmatprep.subr.bf16.mxu0 %v9982
    %13086 = vmatpush1.bf16.msra.mxu0 %v9981
    %13087 = vmatprep.subr.bf16.mxu0 %v9998
    %13088 = vmatpush1.bf16.msra.mxu0 %v9997
    %13089 = vmatprep.subr.bf16.mxu0 %v10014
    %13090 = vmatpush1.bf16.msra.mxu0 %v10013
    %13091 = vmatprep.subr.bf16.mxu0 %v10030
    %13092 = vmatpush1.bf16.msra.mxu0 %v10029
    %13093 = vmatprep.subr.bf16.mxu0 %v10046
    %13094 = vmatpush1.bf16.msra.mxu0 %v10045
    %13095 = vmatprep.subr.bf16.mxu0 %v10062
    %13096 = vmatpush1.bf16.msra.mxu0 %v10061
    %13097 = vmatprep.subr.bf16.mxu0 %v10078
    %13098 = vmatpush1.bf16.msra.mxu0 %v10077
    %13099 = vmatprep.subr.bf16.mxu0 %v10094
    %13100 = vmatpush1.bf16.msra.mxu0 %v10093
    %13101 = vmatprep.subr.bf16.mxu0 %v10110
    %13102 = vmatpush1.bf16.msra.mxu0 %v10109
    %13103 = vmatprep.subr.bf16.mxu0 %v10126
    %13104 = vmatpush1.bf16.msra.mxu0 %v10125
    %13105 = vmatprep.subr.bf16.mxu0 %v10142
    %13106 = vmatpush1.bf16.msra.mxu0 %v10141
    %13107 = vmatprep.subr.bf16.mxu0 %v10158
    %13108 = vmatpush1.bf16.msra.mxu0 %v10157
    %13109 = vmatprep.subr.bf16.mxu0 %v10174
    %13110 = vmatpush1.bf16.msra.mxu0 %v10173
    %13111 = vmatprep.subr.bf16.mxu0 %v10190
    %13112 = vmatpush1.bf16.msra.mxu0 %v10189
    %13113 = vmatprep.mubr.bf16.mxu0 %v2248
    %13114 = vmatmul.mubr.bf16.gmra.mrb[0].mxu0 %v2247
    %v13115 = vpop.f32.mrb[0].mxu0
    %v13116 = vadd.f32 %v13075, %v13115
    %v13117 = vpop.f32.mrb[0].mxu0
    %v13118 = vadd.f32 %v13077, %v13117
    %v13119 = vpop.f32.mrb[0].mxu0
    %v13120 = vpop.f32.mrb[0].mxu0
    %13121 = vdwg.mxu0
    %13122 = vmatprep.subr.bf16.mxu0 %v10206
    %13123 = vmatpush1.bf16.msra.mxu0 %v10205
    %13124 = vmatprep.subr.bf16.mxu0 %v10222
    %13125 = vmatpush1.bf16.msra.mxu0 %v10221
    %13126 = vmatprep.subr.bf16.mxu0 %v10238
    %13127 = vmatpush1.bf16.msra.mxu0 %v10237
    %13128 = vmatprep.subr.bf16.mxu0 %v10254
    %13129 = vmatpush1.bf16.msra.mxu0 %v10253
    %13130 = vmatprep.subr.bf16.mxu0 %v10270
    %13131 = vmatpush1.bf16.msra.mxu0 %v10269
    %13132 = vmatprep.subr.bf16.mxu0 %v10286
    %13133 = vmatpush1.bf16.msra.mxu0 %v10285
    %13134 = vmatprep.subr.bf16.mxu0 %v10302
    %13135 = vmatpush1.bf16.msra.mxu0 %v10301
    %13136 = vmatprep.subr.bf16.mxu0 %v10318
    %13137 = vmatpush1.bf16.msra.mxu0 %v10317
    %13138 = vmatprep.subr.bf16.mxu0 %v10334
    %13139 = vmatpush1.bf16.msra.mxu0 %v10333
    %13140 = vmatprep.subr.bf16.mxu0 %v10350
    %13141 = vmatpush1.bf16.msra.mxu0 %v10349
    %13142 = vmatprep.subr.bf16.mxu0 %v10366
    %13143 = vmatpush1.bf16.msra.mxu0 %v10365
    %13144 = vmatprep.subr.bf16.mxu0 %v10382
    %13145 = vmatpush1.bf16.msra.mxu0 %v10381
    %13146 = vmatprep.subr.bf16.mxu0 %v10398
    %13147 = vmatpush1.bf16.msra.mxu0 %v10397
    %13148 = vmatprep.subr.bf16.mxu0 %v10414
    %13149 = vmatpush1.bf16.msra.mxu0 %v10413
    %13150 = vmatprep.subr.bf16.mxu0 %v10430
    %13151 = vmatpush1.bf16.msra.mxu0 %v10429
    %13152 = vmatprep.subr.bf16.mxu0 %v10446
    %13153 = vmatpush1.bf16.msra.mxu0 %v10445
    %13154 = vmatprep.mubr.bf16.mxu0 %v2250
    %13155 = vmatmul.mubr.bf16.gmra.mrb[0].mxu0 %v2249
    %v13156 = vpop.f32.mrb[0].mxu0
    %v13157 = vadd.f32 %v13116, %v13156
    %v13158 = vpop.f32.mrb[0].mxu0
    %v13159 = vadd.f32 %v13118, %v13158
    %v13160 = vpop.f32.mrb[0].mxu0
    %v13161 = vpop.f32.mrb[0].mxu0
    %13162 = vdwg.mxu0
    %13163 = vmatprep.subr.bf16.mxu0 %v8416
    %13164 = vmatpush1.bf16.msra.mxu0 %v8415
    %13165 = vmatprep.subr.bf16.mxu0 %v8432
    %13166 = vmatpush1.bf16.msra.mxu0 %v8431
    %13167 = vmatprep.subr.bf16.mxu0 %v8448
    %13168 = vmatpush1.bf16.msra.mxu0 %v8447
    %13169 = vmatprep.subr.bf16.mxu0 %v8464
    %13170 = vmatpush1.bf16.msra.mxu0 %v8463
    %13171 = vmatprep.subr.bf16.mxu0 %v8480
    %13172 = vmatpush1.bf16.msra.mxu0 %v8479
    %13173 = vmatprep.subr.bf16.mxu0 %v8496
    %13174 = vmatpush1.bf16.msra.mxu0 %v8495
    %13175 = vmatprep.subr.bf16.mxu0 %v8512
    %13176 = vmatpush1.bf16.msra.mxu0 %v8511
    %13177 = vmatprep.subr.bf16.mxu0 %v8528
    %13178 = vmatpush1.bf16.msra.mxu0 %v8527
    %13179 = vmatprep.subr.bf16.mxu0 %v8544
    %13180 = vmatpush1.bf16.msra.mxu0 %v8543
    %13181 = vmatprep.subr.bf16.mxu0 %v8560
    %13182 = vmatpush1.bf16.msra.mxu0 %v8559
    %13183 = vmatprep.subr.bf16.mxu0 %v8576
    %13184 = vmatpush1.bf16.msra.mxu0 %v8575
    %13185 = vmatprep.subr.bf16.mxu0 %v8592
    %13186 = vmatpush1.bf16.msra.mxu0 %v8591
    %13187 = vmatprep.subr.bf16.mxu0 %v8608
    %13188 = vmatpush1.bf16.msra.mxu0 %v8607
    %13189 = vmatprep.subr.bf16.mxu0 %v8624
    %13190 = vmatpush1.bf16.msra.mxu0 %v8623
    %13191 = vmatprep.subr.bf16.mxu0 %v8640
    %13192 = vmatpush1.bf16.msra.mxu0 %v8639
    %13193 = vmatprep.subr.bf16.mxu0 %v8656
    %13194 = vmatpush1.bf16.msra.mxu0 %v8655
    %13195 = vmatprep.mubr.bf16.mxu0 %v2236
    %13196 = vmatmul.mubr.bf16.gmra.mrb[0].mxu0 %v2235
    %v13197 = vpop.f32.mrb[0].mxu0
    %v13198 = vadd.f32 %v2150, %v13197
    %v13199 = vpop.f32.mrb[0].mxu0
    %v13200 = vadd.f32 %v2154, %v13199
    %v13201 = vpop.f32.mrb[0].mxu0
    %v13202 = vpop.f32.mrb[0].mxu0
    %13203 = vdwg.mxu0
    %13204 = vmatprep.subr.bf16.mxu0 %v8672
    %13205 = vmatpush1.bf16.msra.mxu0 %v8671
    %13206 = vmatprep.subr.bf16.mxu0 %v8688
    %13207 = vmatpush1.bf16.msra.mxu0 %v8687
    %13208 = vmatprep.subr.bf16.mxu0 %v8704
    %13209 = vmatpush1.bf16.msra.mxu0 %v8703
    %13210 = vmatprep.subr.bf16.mxu0 %v8720
    %13211 = vmatpush1.bf16.msra.mxu0 %v8719
    %13212 = vmatprep.subr.bf16.mxu0 %v8736
    %13213 = vmatpush1.bf16.msra.mxu0 %v8735
    %13214 = vmatprep.subr.bf16.mxu0 %v8752
    %13215 = vmatpush1.bf16.msra.mxu0 %v8751
    %13216 = vmatprep.subr.bf16.mxu0 %v8768
    %13217 = vmatpush1.bf16.msra.mxu0 %v8767
    %13218 = vmatprep.subr.bf16.mxu0 %v8784
    %13219 = vmatpush1.bf16.msra.mxu0 %v8783
    %13220 = vmatprep.subr.bf16.mxu0 %v8800
    %13221 = vmatpush1.bf16.msra.mxu0 %v8799
    %13222 = vmatprep.subr.bf16.mxu0 %v8816
    %13223 = vmatpush1.bf16.msra.mxu0 %v8815
    %13224 = vmatprep.subr.bf16.mxu0 %v8832
    %13225 = vmatpush1.bf16.msra.mxu0 %v8831
    %13226 = vmatprep.subr.bf16.mxu0 %v8848
    %13227 = vmatpush1.bf16.msra.mxu0 %v8847
    %13228 = vmatprep.subr.bf16.mxu0 %v8864
    %13229 = vmatpush1.bf16.msra.mxu0 %v8863
    %13230 = vmatprep.subr.bf16.mxu0 %v8880
    %13231 = vmatpush1.bf16.msra.mxu0 %v8879
    %13232 = vmatprep.subr.bf16.mxu0 %v8896
    %13233 = vmatpush1.bf16.msra.mxu0 %v8895
    %13234 = vmatprep.subr.bf16.mxu0 %v8912
    %13235 = vmatpush1.bf16.msra.mxu0 %v8911
    %13236 = vmatprep.mubr.bf16.mxu0 %v2238
    %13237 = vmatmul.mubr.bf16.gmra.mrb[0].mxu0 %v2237
    %v13238 = vpop.f32.mrb[0].mxu0
    %v13239 = vadd.f32 %v13198, %v13238
    %v13240 = vpop.f32.mrb[0].mxu0
    %v13241 = vadd.f32 %v13200, %v13240
    %v13242 = vpop.f32.mrb[0].mxu0
    %v13243 = vpop.f32.mrb[0].mxu0
    %13244 = vdwg.mxu0
    %13245 = vmatprep.subr.bf16.mxu0 %v8928
    %13246 = vmatpush1.bf16.msra.mxu0 %v8927
    %13247 = vmatprep.subr.bf16.mxu0 %v8944
    %13248 = vmatpush1.bf16.msra.mxu0 %v8943
    %13249 = vmatprep.subr.bf16.mxu0 %v8960
    %13250 = vmatpush1.bf16.msra.mxu0 %v8959
    %13251 = vmatprep.subr.bf16.mxu0 %v8976
    %13252 = vmatpush1.bf16.msra.mxu0 %v8975
    %13253 = vmatprep.subr.bf16.mxu0 %v8992
    %13254 = vmatpush1.bf16.msra.mxu0 %v8991
    %13255 = vmatprep.subr.bf16.mxu0 %v9008
    %13256 = vmatpush1.bf16.msra.mxu0 %v9007
    %13257 = vmatprep.subr.bf16.mxu0 %v9024
    %13258 = vmatpush1.bf16.msra.mxu0 %v9023
    %13259 = vmatprep.subr.bf16.mxu0 %v9040
    %13260 = vmatpush1.bf16.msra.mxu0 %v9039
    %13261 = vmatprep.subr.bf16.mxu0 %v9056
    %13262 = vmatpush1.bf16.msra.mxu0 %v9055
    %13263 = vmatprep.subr.bf16.mxu0 %v9072
    %13264 = vmatpush1.bf16.msra.mxu0 %v9071
    %13265 = vmatprep.subr.bf16.mxu0 %v9088
    %13266 = vmatpush1.bf16.msra.mxu0 %v9087
    %13267 = vmatprep.subr.bf16.mxu0 %v9104
    %13268 = vmatpush1.bf16.msra.mxu0 %v9103
    %13269 = vmatprep.subr.bf16.mxu0 %v9120
    %13270 = vmatpush1.bf16.msra.mxu0 %v9119
    %13271 = vmatprep.subr.bf16.mxu0 %v9136
    %13272 = vmatpush1.bf16.msra.mxu0 %v9135
    %13273 = vmatprep.subr.bf16.mxu0 %v9152
    %13274 = vmatpush1.bf16.msra.mxu0 %v9151
    %13275 = vmatprep.subr.bf16.mxu0 %v9168
    %13276 = vmatpush1.bf16.msra.mxu0 %v9167
    %13277 = vmatprep.mubr.bf16.mxu0 %v2240
    %13278 = vmatmul.mubr.bf16.gmra.mrb[0].mxu0 %v2239
    %v13279 = vpop.f32.mrb[0].mxu0
    %v13280 = vadd.f32 %v13239, %v13279
    %v13281 = vpop.f32.mrb[0].mxu0
    %v13282 = vadd.f32 %v13241, %v13281
    %v13283 = vpop.f32.mrb[0].mxu0
    %v13284 = vpop.f32.mrb[0].mxu0
    %13285 = vdwg.mxu0
    %13286 = vmatprep.subr.bf16.mxu0 %v9184
    %13287 = vmatpush1.bf16.msra.mxu0 %v9183
    %13288 = vmatprep.subr.bf16.mxu0 %v9200
    %13289 = vmatpush1.bf16.msra.mxu0 %v9199
    %13290 = vmatprep.subr.bf16.mxu0 %v9216
    %13291 = vmatpush1.bf16.msra.mxu0 %v9215
    %13292 = vmatprep.subr.bf16.mxu0 %v9232
    %13293 = vmatpush1.bf16.msra.mxu0 %v9231
    %13294 = vmatprep.subr.bf16.mxu0 %v9248
    %13295 = vmatpush1.bf16.msra.mxu0 %v9247
    %13296 = vmatprep.subr.bf16.mxu0 %v9264
    %13297 = vmatpush1.bf16.msra.mxu0 %v9263
    %13298 = vmatprep.subr.bf16.mxu0 %v9280
    %13299 = vmatpush1.bf16.msra.mxu0 %v9279
    %13300 = vmatprep.subr.bf16.mxu0 %v9296
    %13301 = vmatpush1.bf16.msra.mxu0 %v9295
    %13302 = vmatprep.subr.bf16.mxu0 %v9312
    %13303 = vmatpush1.bf16.msra.mxu0 %v9311
    %13304 = vmatprep.subr.bf16.mxu0 %v9328
    %13305 = vmatpush1.bf16.msra.mxu0 %v9327
    %13306 = vmatprep.subr.bf16.mxu0 %v9344
    %13307 = vmatpush1.bf16.msra.mxu0 %v9343
    %13308 = vmatprep.subr.bf16.mxu0 %v9360
    %13309 = vmatpush1.bf16.msra.mxu0 %v9359
    %13310 = vmatprep.subr.bf16.mxu0 %v9376
    %13311 = vmatpush1.bf16.msra.mxu0 %v9375
    %13312 = vmatprep.subr.bf16.mxu0 %v9392
    %13313 = vmatpush1.bf16.msra.mxu0 %v9391
    %13314 = vmatprep.subr.bf16.mxu0 %v9408
    %13315 = vmatpush1.bf16.msra.mxu0 %v9407
    %13316 = vmatprep.subr.bf16.mxu0 %v9424
    %13317 = vmatpush1.bf16.msra.mxu0 %v9423
    %13318 = vmatprep.mubr.bf16.mxu0 %v2242
    %13319 = vmatmul.mubr.bf16.gmra.mrb[0].mxu0 %v2241
    %v13320 = vpop.f32.mrb[0].mxu0
    %v13321 = vadd.f32 %v13280, %v13320
    %v13322 = vpop.f32.mrb[0].mxu0
    %v13323 = vadd.f32 %v13282, %v13322
    %v13324 = vpop.f32.mrb[0].mxu0
    %v13325 = vpop.f32.mrb[0].mxu0
    %13326 = vdwg.mxu0
    %13327 = vmatprep.subr.bf16.mxu0 %v9440
    %13328 = vmatpush1.bf16.msra.mxu0 %v9439
    %13329 = vmatprep.subr.bf16.mxu0 %v9456
    %13330 = vmatpush1.bf16.msra.mxu0 %v9455
    %13331 = vmatprep.subr.bf16.mxu0 %v9472
    %13332 = vmatpush1.bf16.msra.mxu0 %v9471
    %13333 = vmatprep.subr.bf16.mxu0 %v9488
    %13334 = vmatpush1.bf16.msra.mxu0 %v9487
    %13335 = vmatprep.subr.bf16.mxu0 %v9504
    %13336 = vmatpush1.bf16.msra.mxu0 %v9503
    %13337 = vmatprep.subr.bf16.mxu0 %v9520
    %13338 = vmatpush1.bf16.msra.mxu0 %v9519
    %13339 = vmatprep.subr.bf16.mxu0 %v9536
    %13340 = vmatpush1.bf16.msra.mxu0 %v9535
    %13341 = vmatprep.subr.bf16.mxu0 %v9552
    %13342 = vmatpush1.bf16.msra.mxu0 %v9551
    %13343 = vmatprep.subr.bf16.mxu0 %v9568
    %13344 = vmatpush1.bf16.msra.mxu0 %v9567
    %13345 = vmatprep.subr.bf16.mxu0 %v9584
    %13346 = vmatpush1.bf16.msra.mxu0 %v9583
    %13347 = vmatprep.subr.bf16.mxu0 %v9600
    %13348 = vmatpush1.bf16.msra.mxu0 %v9599
    %13349 = vmatprep.subr.bf16.mxu0 %v9616
    %13350 = vmatpush1.bf16.msra.mxu0 %v9615
    %13351 = vmatprep.subr.bf16.mxu0 %v9632
    %13352 = vmatpush1.bf16.msra.mxu0 %v9631
    %13353 = vmatprep.subr.bf16.mxu0 %v9648
    %13354 = vmatpush1.bf16.msra.mxu0 %v9647
    %13355 = vmatprep.subr.bf16.mxu0 %v9664
    %13356 = vmatpush1.bf16.msra.mxu0 %v9663
    %13357 = vmatprep.subr.bf16.mxu0 %v9680
    %13358 = vmatpush1.bf16.msra.mxu0 %v9679
    %13359 = vmatprep.mubr.bf16.mxu0 %v2244
    %13360 = vmatmul.mubr.bf16.gmra.mrb[0].mxu0 %v2243
    %v13361 = vpop.f32.mrb[0].mxu0
    %v13362 = vadd.f32 %v13321, %v13361
    %v13363 = vpop.f32.mrb[0].mxu0
    %v13364 = vadd.f32 %v13323, %v13363
    %v13365 = vpop.f32.mrb[0].mxu0
    %v13366 = vpop.f32.mrb[0].mxu0
    %13367 = vdwg.mxu0
    %13368 = vmatprep.subr.bf16.mxu0 %v9696
    %13369 = vmatpush1.bf16.msra.mxu0 %v9695
    %13370 = vmatprep.subr.bf16.mxu0 %v9712
    %13371 = vmatpush1.bf16.msra.mxu0 %v9711
    %13372 = vmatprep.subr.bf16.mxu0 %v9728
    %13373 = vmatpush1.bf16.msra.mxu0 %v9727
    %13374 = vmatprep.subr.bf16.mxu0 %v9744
    %13375 = vmatpush1.bf16.msra.mxu0 %v9743
    %13376 = vmatprep.subr.bf16.mxu0 %v9760
    %13377 = vmatpush1.bf16.msra.mxu0 %v9759
    %13378 = vmatprep.subr.bf16.mxu0 %v9776
    %13379 = vmatpush1.bf16.msra.mxu0 %v9775
    %13380 = vmatprep.subr.bf16.mxu0 %v9792
    %13381 = vmatpush1.bf16.msra.mxu0 %v9791
    %13382 = vmatprep.subr.bf16.mxu0 %v9808
    %13383 = vmatpush1.bf16.msra.mxu0 %v9807
    %13384 = vmatprep.subr.bf16.mxu0 %v9824
    %13385 = vmatpush1.bf16.msra.mxu0 %v9823
    %13386 = vmatprep.subr.bf16.mxu0 %v9840
    %13387 = vmatpush1.bf16.msra.mxu0 %v9839
    %13388 = vmatprep.subr.bf16.mxu0 %v9856
    %13389 = vmatpush1.bf16.msra.mxu0 %v9855
    %13390 = vmatprep.subr.bf16.mxu0 %v9872
    %13391 = vmatpush1.bf16.msra.mxu0 %v9871
    %13392 = vmatprep.subr.bf16.mxu0 %v9888
    %13393 = vmatpush1.bf16.msra.mxu0 %v9887
    %13394 = vmatprep.subr.bf16.mxu0 %v9904
    %13395 = vmatpush1.bf16.msra.mxu0 %v9903
    %13396 = vmatprep.subr.bf16.mxu0 %v9920
    %13397 = vmatpush1.bf16.msra.mxu0 %v9919
    %13398 = vmatprep.subr.bf16.mxu0 %v9936
    %13399 = vmatpush1.bf16.msra.mxu0 %v9935
    %13400 = vmatprep.mubr.bf16.mxu0 %v2246
    %13401 = vmatmul.mubr.bf16.gmra.mrb[0].mxu0 %v2245
    %v13402 = vpop.f32.mrb[0].mxu0
    %v13403 = vadd.f32 %v13362, %v13402
    %v13404 = vpop.f32.mrb[0].mxu0
    %v13405 = vadd.f32 %v13364, %v13404
    %v13406 = vpop.f32.mrb[0].mxu0
    %v13407 = vpop.f32.mrb[0].mxu0
    %13408 = vdwg.mxu0
    %13409 = vmatprep.subr.bf16.mxu0 %v9952
    %13410 = vmatpush1.bf16.msra.mxu0 %v9951
    %13411 = vmatprep.subr.bf16.mxu0 %v9968
    %13412 = vmatpush1.bf16.msra.mxu0 %v9967
    %13413 = vmatprep.subr.bf16.mxu0 %v9984
    %13414 = vmatpush1.bf16.msra.mxu0 %v9983
    %13415 = vmatprep.subr.bf16.mxu0 %v10000
    %13416 = vmatpush1.bf16.msra.mxu0 %v9999
    %13417 = vmatprep.subr.bf16.mxu0 %v10016
    %13418 = vmatpush1.bf16.msra.mxu0 %v10015
    %13419 = vmatprep.subr.bf16.mxu0 %v10032
    %13420 = vmatpush1.bf16.msra.mxu0 %v10031
    %13421 = vmatprep.subr.bf16.mxu0 %v10048
    %13422 = vmatpush1.bf16.msra.mxu0 %v10047
    %13423 = vmatprep.subr.bf16.mxu0 %v10064
    %13424 = vmatpush1.bf16.msra.mxu0 %v10063
    %13425 = vmatprep.subr.bf16.mxu0 %v10080
    %13426 = vmatpush1.bf16.msra.mxu0 %v10079
    %13427 = vmatprep.subr.bf16.mxu0 %v10096
    %13428 = vmatpush1.bf16.msra.mxu0 %v10095
    %13429 = vmatprep.subr.bf16.mxu0 %v10112
    %13430 = vmatpush1.bf16.msra.mxu0 %v10111
    %13431 = vmatprep.subr.bf16.mxu0 %v10128
    %13432 = vmatpush1.bf16.msra.mxu0 %v10127
    %13433 = vmatprep.subr.bf16.mxu0 %v10144
    %13434 = vmatpush1.bf16.msra.mxu0 %v10143
    %13435 = vmatprep.subr.bf16.mxu0 %v10160
    %13436 = vmatpush1.bf16.msra.mxu0 %v10159
    %13437 = vmatprep.subr.bf16.mxu0 %v10176
    %13438 = vmatpush1.bf16.msra.mxu0 %v10175
    %13439 = vmatprep.subr.bf16.mxu0 %v10192
    %13440 = vmatpush1.bf16.msra.mxu0 %v10191
    %13441 = vmatprep.mubr.bf16.mxu0 %v2248
    %13442 = vmatmul.mubr.bf16.gmra.mrb[0].mxu0 %v2247
    %v13443 = vpop.f32.mrb[0].mxu0
    %v13444 = vadd.f32 %v13403, %v13443
    %v13445 = vpop.f32.mrb[0].mxu0
    %v13446 = vadd.f32 %v13405, %v13445
    %v13447 = vpop.f32.mrb[0].mxu0
    %v13448 = vpop.f32.mrb[0].mxu0
    %13449 = vdwg.mxu0
    %13450 = vmatprep.subr.bf16.mxu0 %v10208
    %13451 = vmatpush1.bf16.msra.mxu0 %v10207
    %13452 = vmatprep.subr.bf16.mxu0 %v10224
    %13453 = vmatpush1.bf16.msra.mxu0 %v10223
    %13454 = vmatprep.subr.bf16.mxu0 %v10240
    %13455 = vmatpush1.bf16.msra.mxu0 %v10239
    %13456 = vmatprep.subr.bf16.mxu0 %v10256
    %13457 = vmatpush1.bf16.msra.mxu0 %v10255
    %13458 = vmatprep.subr.bf16.mxu0 %v10272
    %13459 = vmatpush1.bf16.msra.mxu0 %v10271
    %13460 = vmatprep.subr.bf16.mxu0 %v10288
    %13461 = vmatpush1.bf16.msra.mxu0 %v10287
    %13462 = vmatprep.subr.bf16.mxu0 %v10304
    %13463 = vmatpush1.bf16.msra.mxu0 %v10303
    %13464 = vmatprep.subr.bf16.mxu0 %v10320
    %13465 = vmatpush1.bf16.msra.mxu0 %v10319
    %13466 = vmatprep.subr.bf16.mxu0 %v10336
    %13467 = vmatpush1.bf16.msra.mxu0 %v10335
    %13468 = vmatprep.subr.bf16.mxu0 %v10352
    %13469 = vmatpush1.bf16.msra.mxu0 %v10351
    %13470 = vmatprep.subr.bf16.mxu0 %v10368
    %13471 = vmatpush1.bf16.msra.mxu0 %v10367
    %13472 = vmatprep.subr.bf16.mxu0 %v10384
    %13473 = vmatpush1.bf16.msra.mxu0 %v10383
    %13474 = vmatprep.subr.bf16.mxu0 %v10400
    %13475 = vmatpush1.bf16.msra.mxu0 %v10399
    %13476 = vmatprep.subr.bf16.mxu0 %v10416
    %13477 = vmatpush1.bf16.msra.mxu0 %v10415
    %13478 = vmatprep.subr.bf16.mxu0 %v10432
    %13479 = vmatpush1.bf16.msra.mxu0 %v10431
    %13480 = vmatprep.subr.bf16.mxu0 %v10448
    %13481 = vmatpush1.bf16.msra.mxu0 %v10447
    %13482 = vmatprep.mubr.bf16.mxu0 %v2250
    %13483 = vmatmul.mubr.bf16.gmra.mrb[0].mxu0 %v2249
    %v13484 = vpop.f32.mrb[0].mxu0
    %v13485 = vadd.f32 %v13444, %v13484
    %v13486 = vpop.f32.mrb[0].mxu0
    %v13487 = vadd.f32 %v13446, %v13486
    %v13488 = vpop.f32.mrb[0].mxu0
    %v13489 = vpop.f32.mrb[0].mxu0
    %13490 = vdwg.mxu0
    %13491 = vmatprep.subr.bf16.mxu0 %v8418
    %13492 = vmatpush1.bf16.msra.mxu0 %v8417
    %13493 = vmatprep.subr.bf16.mxu0 %v8434
    %13494 = vmatpush1.bf16.msra.mxu0 %v8433
    %13495 = vmatprep.subr.bf16.mxu0 %v8450
    %13496 = vmatpush1.bf16.msra.mxu0 %v8449
    %13497 = vmatprep.subr.bf16.mxu0 %v8466
    %13498 = vmatpush1.bf16.msra.mxu0 %v8465
    %13499 = vmatprep.subr.bf16.mxu0 %v8482
    %13500 = vmatpush1.bf16.msra.mxu0 %v8481
    %13501 = vmatprep.subr.bf16.mxu0 %v8498
    %13502 = vmatpush1.bf16.msra.mxu0 %v8497
    %13503 = vmatprep.subr.bf16.mxu0 %v8514
    %13504 = vmatpush1.bf16.msra.mxu0 %v8513
    %13505 = vmatprep.subr.bf16.mxu0 %v8530
    %13506 = vmatpush1.bf16.msra.mxu0 %v8529
    %13507 = vmatprep.subr.bf16.mxu0 %v8546
    %13508 = vmatpush1.bf16.msra.mxu0 %v8545
    %13509 = vmatprep.subr.bf16.mxu0 %v8562
    %13510 = vmatpush1.bf16.msra.mxu0 %v8561
    %13511 = vmatprep.subr.bf16.mxu0 %v8578
    %13512 = vmatpush1.bf16.msra.mxu0 %v8577
    %13513 = vmatprep.subr.bf16.mxu0 %v8594
    %13514 = vmatpush1.bf16.msra.mxu0 %v8593
    %13515 = vmatprep.subr.bf16.mxu0 %v8610
    %13516 = vmatpush1.bf16.msra.mxu0 %v8609
    %13517 = vmatprep.subr.bf16.mxu0 %v8626
    %13518 = vmatpush1.bf16.msra.mxu0 %v8625
    %13519 = vmatprep.subr.bf16.mxu0 %v8642
    %13520 = vmatpush1.bf16.msra.mxu0 %v8641
    %13521 = vmatprep.subr.bf16.mxu0 %v8658
    %13522 = vmatpush1.bf16.msra.mxu0 %v8657
    %13523 = vmatprep.mubr.bf16.mxu0 %v2236
    %13524 = vmatmul.mubr.bf16.gmra.mrb[0].mxu0 %v2235
    %v13525 = vpop.f32.mrb[0].mxu0
    %v13526 = vadd.f32 %v2158, %v13525
    %v13527 = vpop.f32.mrb[0].mxu0
    %v13528 = vadd.f32 %v2162, %v13527
    %v13529 = vpop.f32.mrb[0].mxu0
    %v13530 = vpop.f32.mrb[0].mxu0
    %13531 = vdwg.mxu0
    %13532 = vmatprep.subr.bf16.mxu0 %v8674
    %13533 = vmatpush1.bf16.msra.mxu0 %v8673
    %13534 = vmatprep.subr.bf16.mxu0 %v8690
    %13535 = vmatpush1.bf16.msra.mxu0 %v8689
    %13536 = vmatprep.subr.bf16.mxu0 %v8706
    %13537 = vmatpush1.bf16.msra.mxu0 %v8705
    %13538 = vmatprep.subr.bf16.mxu0 %v8722
    %13539 = vmatpush1.bf16.msra.mxu0 %v8721
    %13540 = vmatprep.subr.bf16.mxu0 %v8738
    %13541 = vmatpush1.bf16.msra.mxu0 %v8737
    %13542 = vmatprep.subr.bf16.mxu0 %v8754
    %13543 = vmatpush1.bf16.msra.mxu0 %v8753
    %13544 = vmatprep.subr.bf16.mxu0 %v8770
    %13545 = vmatpush1.bf16.msra.mxu0 %v8769
    %13546 = vmatprep.subr.bf16.mxu0 %v8786
    %13547 = vmatpush1.bf16.msra.mxu0 %v8785
    %13548 = vmatprep.subr.bf16.mxu0 %v8802
    %13549 = vmatpush1.bf16.msra.mxu0 %v8801
    %13550 = vmatprep.subr.bf16.mxu0 %v8818
    %13551 = vmatpush1.bf16.msra.mxu0 %v8817
    %13552 = vmatprep.subr.bf16.mxu0 %v8834
    %13553 = vmatpush1.bf16.msra.mxu0 %v8833
    %13554 = vmatprep.subr.bf16.mxu0 %v8850
    %13555 = vmatpush1.bf16.msra.mxu0 %v8849
    %13556 = vmatprep.subr.bf16.mxu0 %v8866
    %13557 = vmatpush1.bf16.msra.mxu0 %v8865
    %13558 = vmatprep.subr.bf16.mxu0 %v8882
    %13559 = vmatpush1.bf16.msra.mxu0 %v8881
    %13560 = vmatprep.subr.bf16.mxu0 %v8898
    %13561 = vmatpush1.bf16.msra.mxu0 %v8897
    %13562 = vmatprep.subr.bf16.mxu0 %v8914
    %13563 = vmatpush1.bf16.msra.mxu0 %v8913
    %13564 = vmatprep.mubr.bf16.mxu0 %v2238
    %13565 = vmatmul.mubr.bf16.gmra.mrb[0].mxu0 %v2237
    %v13566 = vpop.f32.mrb[0].mxu0
    %v13567 = vadd.f32 %v13526, %v13566
    %v13568 = vpop.f32.mrb[0].mxu0
    %v13569 = vadd.f32 %v13528, %v13568
    %v13570 = vpop.f32.mrb[0].mxu0
    %v13571 = vpop.f32.mrb[0].mxu0
    %13572 = vdwg.mxu0
    %13573 = vmatprep.subr.bf16.mxu0 %v8930
    %13574 = vmatpush1.bf16.msra.mxu0 %v8929
    %13575 = vmatprep.subr.bf16.mxu0 %v8946
    %13576 = vmatpush1.bf16.msra.mxu0 %v8945
    %13577 = vmatprep.subr.bf16.mxu0 %v8962
    %13578 = vmatpush1.bf16.msra.mxu0 %v8961
    %13579 = vmatprep.subr.bf16.mxu0 %v8978
    %13580 = vmatpush1.bf16.msra.mxu0 %v8977
    %13581 = vmatprep.subr.bf16.mxu0 %v8994
    %13582 = vmatpush1.bf16.msra.mxu0 %v8993
    %13583 = vmatprep.subr.bf16.mxu0 %v9010
    %13584 = vmatpush1.bf16.msra.mxu0 %v9009
    %13585 = vmatprep.subr.bf16.mxu0 %v9026
    %13586 = vmatpush1.bf16.msra.mxu0 %v9025
    %13587 = vmatprep.subr.bf16.mxu0 %v9042
    %13588 = vmatpush1.bf16.msra.mxu0 %v9041
    %13589 = vmatprep.subr.bf16.mxu0 %v9058
    %13590 = vmatpush1.bf16.msra.mxu0 %v9057
    %13591 = vmatprep.subr.bf16.mxu0 %v9074
    %13592 = vmatpush1.bf16.msra.mxu0 %v9073
    %13593 = vmatprep.subr.bf16.mxu0 %v9090
    %13594 = vmatpush1.bf16.msra.mxu0 %v9089
    %13595 = vmatprep.subr.bf16.mxu0 %v9106
    %13596 = vmatpush1.bf16.msra.mxu0 %v9105
    %13597 = vmatprep.subr.bf16.mxu0 %v9122
    %13598 = vmatpush1.bf16.msra.mxu0 %v9121
    %13599 = vmatprep.subr.bf16.mxu0 %v9138
    %13600 = vmatpush1.bf16.msra.mxu0 %v9137
    %13601 = vmatprep.subr.bf16.mxu0 %v9154
    %13602 = vmatpush1.bf16.msra.mxu0 %v9153
    %13603 = vmatprep.subr.bf16.mxu0 %v9170
    %13604 = vmatpush1.bf16.msra.mxu0 %v9169
    %13605 = vmatprep.mubr.bf16.mxu0 %v2240
    %13606 = vmatmul.mubr.bf16.gmra.mrb[0].mxu0 %v2239
    %v13607 = vpop.f32.mrb[0].mxu0
    %v13608 = vadd.f32 %v13567, %v13607
    %v13609 = vpop.f32.mrb[0].mxu0
    %v13610 = vadd.f32 %v13569, %v13609
    %v13611 = vpop.f32.mrb[0].mxu0
    %v13612 = vpop.f32.mrb[0].mxu0
    %13613 = vdwg.mxu0
    %13614 = vmatprep.subr.bf16.mxu0 %v9186
    %13615 = vmatpush1.bf16.msra.mxu0 %v9185
    %13616 = vmatprep.subr.bf16.mxu0 %v9202
    %13617 = vmatpush1.bf16.msra.mxu0 %v9201
    %13618 = vmatprep.subr.bf16.mxu0 %v9218
    %13619 = vmatpush1.bf16.msra.mxu0 %v9217
    %13620 = vmatprep.subr.bf16.mxu0 %v9234
    %13621 = vmatpush1.bf16.msra.mxu0 %v9233
    %13622 = vmatprep.subr.bf16.mxu0 %v9250
    %13623 = vmatpush1.bf16.msra.mxu0 %v9249
    %13624 = vmatprep.subr.bf16.mxu0 %v9266
    %13625 = vmatpush1.bf16.msra.mxu0 %v9265
    %13626 = vmatprep.subr.bf16.mxu0 %v9282
    %13627 = vmatpush1.bf16.msra.mxu0 %v9281
    %13628 = vmatprep.subr.bf16.mxu0 %v9298
    %13629 = vmatpush1.bf16.msra.mxu0 %v9297
    %13630 = vmatprep.subr.bf16.mxu0 %v9314
    %13631 = vmatpush1.bf16.msra.mxu0 %v9313
    %13632 = vmatprep.subr.bf16.mxu0 %v9330
    %13633 = vmatpush1.bf16.msra.mxu0 %v9329
    %13634 = vmatprep.subr.bf16.mxu0 %v9346
    %13635 = vmatpush1.bf16.msra.mxu0 %v9345
    %13636 = vmatprep.subr.bf16.mxu0 %v9362
    %13637 = vmatpush1.bf16.msra.mxu0 %v9361
    %13638 = vmatprep.subr.bf16.mxu0 %v9378
    %13639 = vmatpush1.bf16.msra.mxu0 %v9377
    %13640 = vmatprep.subr.bf16.mxu0 %v9394
    %13641 = vmatpush1.bf16.msra.mxu0 %v9393
    %13642 = vmatprep.subr.bf16.mxu0 %v9410
    %13643 = vmatpush1.bf16.msra.mxu0 %v9409
    %13644 = vmatprep.subr.bf16.mxu0 %v9426
    %13645 = vmatpush1.bf16.msra.mxu0 %v9425
    %13646 = vmatprep.mubr.bf16.mxu0 %v2242
    %13647 = vmatmul.mubr.bf16.gmra.mrb[0].mxu0 %v2241
    %v13648 = vpop.f32.mrb[0].mxu0
    %v13649 = vadd.f32 %v13608, %v13648
    %v13650 = vpop.f32.mrb[0].mxu0
    %v13651 = vadd.f32 %v13610, %v13650
    %v13652 = vpop.f32.mrb[0].mxu0
    %v13653 = vpop.f32.mrb[0].mxu0
    %13654 = vdwg.mxu0
    %13655 = vmatprep.subr.bf16.mxu0 %v9442
    %13656 = vmatpush1.bf16.msra.mxu0 %v9441
    %13657 = vmatprep.subr.bf16.mxu0 %v9458
    %13658 = vmatpush1.bf16.msra.mxu0 %v9457
    %13659 = vmatprep.subr.bf16.mxu0 %v9474
    %13660 = vmatpush1.bf16.msra.mxu0 %v9473
    %13661 = vmatprep.subr.bf16.mxu0 %v9490
    %13662 = vmatpush1.bf16.msra.mxu0 %v9489
    %13663 = vmatprep.subr.bf16.mxu0 %v9506
    %13664 = vmatpush1.bf16.msra.mxu0 %v9505
    %13665 = vmatprep.subr.bf16.mxu0 %v9522
    %13666 = vmatpush1.bf16.msra.mxu0 %v9521
    %13667 = vmatprep.subr.bf16.mxu0 %v9538
    %13668 = vmatpush1.bf16.msra.mxu0 %v9537
    %13669 = vmatprep.subr.bf16.mxu0 %v9554
    %13670 = vmatpush1.bf16.msra.mxu0 %v9553
    %13671 = vmatprep.subr.bf16.mxu0 %v9570
    %13672 = vmatpush1.bf16.msra.mxu0 %v9569
    %13673 = vmatprep.subr.bf16.mxu0 %v9586
    %13674 = vmatpush1.bf16.msra.mxu0 %v9585
    %13675 = vmatprep.subr.bf16.mxu0 %v9602
    %13676 = vmatpush1.bf16.msra.mxu0 %v9601
    %13677 = vmatprep.subr.bf16.mxu0 %v9618
    %13678 = vmatpush1.bf16.msra.mxu0 %v9617
    %13679 = vmatprep.subr.bf16.mxu0 %v9634
    %13680 = vmatpush1.bf16.msra.mxu0 %v9633
    %13681 = vmatprep.subr.bf16.mxu0 %v9650
    %13682 = vmatpush1.bf16.msra.mxu0 %v9649
    %13683 = vmatprep.subr.bf16.mxu0 %v9666
    %13684 = vmatpush1.bf16.msra.mxu0 %v9665
    %13685 = vmatprep.subr.bf16.mxu0 %v9682
    %13686 = vmatpush1.bf16.msra.mxu0 %v9681
    %13687 = vmatprep.mubr.bf16.mxu0 %v2244
    %13688 = vmatmul.mubr.bf16.gmra.mrb[0].mxu0 %v2243
    %v13689 = vpop.f32.mrb[0].mxu0
    %v13690 = vadd.f32 %v13649, %v13689
    %v13691 = vpop.f32.mrb[0].mxu0
    %v13692 = vadd.f32 %v13651, %v13691
    %v13693 = vpop.f32.mrb[0].mxu0
    %v13694 = vpop.f32.mrb[0].mxu0
    %13695 = vdwg.mxu0
    %13696 = vmatprep.subr.bf16.mxu0 %v9698
    %13697 = vmatpush1.bf16.msra.mxu0 %v9697
    %13698 = vmatprep.subr.bf16.mxu0 %v9714
    %13699 = vmatpush1.bf16.msra.mxu0 %v9713
    %13700 = vmatprep.subr.bf16.mxu0 %v9730
    %13701 = vmatpush1.bf16.msra.mxu0 %v9729
    %13702 = vmatprep.subr.bf16.mxu0 %v9746
    %13703 = vmatpush1.bf16.msra.mxu0 %v9745
    %13704 = vmatprep.subr.bf16.mxu0 %v9762
    %13705 = vmatpush1.bf16.msra.mxu0 %v9761
    %13706 = vmatprep.subr.bf16.mxu0 %v9778
    %13707 = vmatpush1.bf16.msra.mxu0 %v9777
    %13708 = vmatprep.subr.bf16.mxu0 %v9794
    %13709 = vmatpush1.bf16.msra.mxu0 %v9793
    %13710 = vmatprep.subr.bf16.mxu0 %v9810
    %13711 = vmatpush1.bf16.msra.mxu0 %v9809
    %13712 = vmatprep.subr.bf16.mxu0 %v9826
    %13713 = vmatpush1.bf16.msra.mxu0 %v9825
    %13714 = vmatprep.subr.bf16.mxu0 %v9842
    %13715 = vmatpush1.bf16.msra.mxu0 %v9841
    %13716 = vmatprep.subr.bf16.mxu0 %v9858
    %13717 = vmatpush1.bf16.msra.mxu0 %v9857
    %13718 = vmatprep.subr.bf16.mxu0 %v9874
    %13719 = vmatpush1.bf16.msra.mxu0 %v9873
    %13720 = vmatprep.subr.bf16.mxu0 %v9890
    %13721 = vmatpush1.bf16.msra.mxu0 %v9889
    %13722 = vmatprep.subr.bf16.mxu0 %v9906
    %13723 = vmatpush1.bf16.msra.mxu0 %v9905
    %13724 = vmatprep.subr.bf16.mxu0 %v9922
    %13725 = vmatpush1.bf16.msra.mxu0 %v9921
    %13726 = vmatprep.subr.bf16.mxu0 %v9938
    %13727 = vmatpush1.bf16.msra.mxu0 %v9937
    %13728 = vmatprep.mubr.bf16.mxu0 %v2246
    %13729 = vmatmul.mubr.bf16.gmra.mrb[0].mxu0 %v2245
    %v13730 = vpop.f32.mrb[0].mxu0
    %v13731 = vadd.f32 %v13690, %v13730
    %v13732 = vpop.f32.mrb[0].mxu0
    %v13733 = vadd.f32 %v13692, %v13732
    %v13734 = vpop.f32.mrb[0].mxu0
    %v13735 = vpop.f32.mrb[0].mxu0
    %13736 = vdwg.mxu0
    %13737 = vmatprep.subr.bf16.mxu0 %v9954
    %13738 = vmatpush1.bf16.msra.mxu0 %v9953
    %13739 = vmatprep.subr.bf16.mxu0 %v9970
    %13740 = vmatpush1.bf16.msra.mxu0 %v9969
    %13741 = vmatprep.subr.bf16.mxu0 %v9986
    %13742 = vmatpush1.bf16.msra.mxu0 %v9985
    %13743 = vmatprep.subr.bf16.mxu0 %v10002
    %13744 = vmatpush1.bf16.msra.mxu0 %v10001
    %13745 = vmatprep.subr.bf16.mxu0 %v10018
    %13746 = vmatpush1.bf16.msra.mxu0 %v10017
    %13747 = vmatprep.subr.bf16.mxu0 %v10034
    %13748 = vmatpush1.bf16.msra.mxu0 %v10033
    %13749 = vmatprep.subr.bf16.mxu0 %v10050
    %13750 = vmatpush1.bf16.msra.mxu0 %v10049
    %13751 = vmatprep.subr.bf16.mxu0 %v10066
    %13752 = vmatpush1.bf16.msra.mxu0 %v10065
    %13753 = vmatprep.subr.bf16.mxu0 %v10082
    %13754 = vmatpush1.bf16.msra.mxu0 %v10081
    %13755 = vmatprep.subr.bf16.mxu0 %v10098
    %13756 = vmatpush1.bf16.msra.mxu0 %v10097
    %13757 = vmatprep.subr.bf16.mxu0 %v10114
    %13758 = vmatpush1.bf16.msra.mxu0 %v10113
    %13759 = vmatprep.subr.bf16.mxu0 %v10130
    %13760 = vmatpush1.bf16.msra.mxu0 %v10129
    %13761 = vmatprep.subr.bf16.mxu0 %v10146
    %13762 = vmatpush1.bf16.msra.mxu0 %v10145
    %13763 = vmatprep.subr.bf16.mxu0 %v10162
    %13764 = vmatpush1.bf16.msra.mxu0 %v10161
    %13765 = vmatprep.subr.bf16.mxu0 %v10178
    %13766 = vmatpush1.bf16.msra.mxu0 %v10177
    %13767 = vmatprep.subr.bf16.mxu0 %v10194
    %13768 = vmatpush1.bf16.msra.mxu0 %v10193
    %13769 = vmatprep.mubr.bf16.mxu0 %v2248
    %13770 = vmatmul.mubr.bf16.gmra.mrb[0].mxu0 %v2247
    %v13771 = vpop.f32.mrb[0].mxu0
    %v13772 = vadd.f32 %v13731, %v13771
    %v13773 = vpop.f32.mrb[0].mxu0
    %v13774 = vadd.f32 %v13733, %v13773
    %v13775 = vpop.f32.mrb[0].mxu0
    %v13776 = vpop.f32.mrb[0].mxu0
    %13777 = vdwg.mxu0
    %13778 = vmatprep.subr.bf16.mxu0 %v10210
    %13779 = vmatpush1.bf16.msra.mxu0 %v10209
    %13780 = vmatprep.subr.bf16.mxu0 %v10226
    %13781 = vmatpush1.bf16.msra.mxu0 %v10225
    %13782 = vmatprep.subr.bf16.mxu0 %v10242
    %13783 = vmatpush1.bf16.msra.mxu0 %v10241
    %13784 = vmatprep.subr.bf16.mxu0 %v10258
    %13785 = vmatpush1.bf16.msra.mxu0 %v10257
    %13786 = vmatprep.subr.bf16.mxu0 %v10274
    %13787 = vmatpush1.bf16.msra.mxu0 %v10273
    %13788 = vmatprep.subr.bf16.mxu0 %v10290
    %13789 = vmatpush1.bf16.msra.mxu0 %v10289
    %13790 = vmatprep.subr.bf16.mxu0 %v10306
    %13791 = vmatpush1.bf16.msra.mxu0 %v10305
    %13792 = vmatprep.subr.bf16.mxu0 %v10322
    %13793 = vmatpush1.bf16.msra.mxu0 %v10321
    %13794 = vmatprep.subr.bf16.mxu0 %v10338
    %13795 = vmatpush1.bf16.msra.mxu0 %v10337
    %13796 = vmatprep.subr.bf16.mxu0 %v10354
    %13797 = vmatpush1.bf16.msra.mxu0 %v10353
    %13798 = vmatprep.subr.bf16.mxu0 %v10370
    %13799 = vmatpush1.bf16.msra.mxu0 %v10369
    %13800 = vmatprep.subr.bf16.mxu0 %v10386
    %13801 = vmatpush1.bf16.msra.mxu0 %v10385
    %13802 = vmatprep.subr.bf16.mxu0 %v10402
    %13803 = vmatpush1.bf16.msra.mxu0 %v10401
    %13804 = vmatprep.subr.bf16.mxu0 %v10418
    %13805 = vmatpush1.bf16.msra.mxu0 %v10417
    %13806 = vmatprep.subr.bf16.mxu0 %v10434
    %13807 = vmatpush1.bf16.msra.mxu0 %v10433
    %13808 = vmatprep.subr.bf16.mxu0 %v10450
    %13809 = vmatpush1.bf16.msra.mxu0 %v10449
    %13810 = vmatprep.mubr.bf16.mxu0 %v2250
    %13811 = vmatmul.mubr.bf16.gmra.mrb[0].mxu0 %v2249
    %v13812 = vpop.f32.mrb[0].mxu0
    %v13813 = vadd.f32 %v13772, %v13812
    %v13814 = vpop.f32.mrb[0].mxu0
    %v13815 = vadd.f32 %v13774, %v13814
    %v13816 = vpop.f32.mrb[0].mxu0
    %v13817 = vpop.f32.mrb[0].mxu0
    %13818 = vdwg.mxu0
    %13819 = vmatprep.subr.bf16.mxu0 %v8420
    %13820 = vmatpush1.bf16.msra.mxu0 %v8419
    %13821 = vmatprep.subr.bf16.mxu0 %v8436
    %13822 = vmatpush1.bf16.msra.mxu0 %v8435
    %13823 = vmatprep.subr.bf16.mxu0 %v8452
    %13824 = vmatpush1.bf16.msra.mxu0 %v8451
    %13825 = vmatprep.subr.bf16.mxu0 %v8468
    %13826 = vmatpush1.bf16.msra.mxu0 %v8467
    %13827 = vmatprep.subr.bf16.mxu0 %v8484
    %13828 = vmatpush1.bf16.msra.mxu0 %v8483
    %13829 = vmatprep.subr.bf16.mxu0 %v8500
    %13830 = vmatpush1.bf16.msra.mxu0 %v8499
    %13831 = vmatprep.subr.bf16.mxu0 %v8516
    %13832 = vmatpush1.bf16.msra.mxu0 %v8515
    %13833 = vmatprep.subr.bf16.mxu0 %v8532
    %13834 = vmatpush1.bf16.msra.mxu0 %v8531
    %13835 = vmatprep.subr.bf16.mxu0 %v8548
    %13836 = vmatpush1.bf16.msra.mxu0 %v8547
    %13837 = vmatprep.subr.bf16.mxu0 %v8564
    %13838 = vmatpush1.bf16.msra.mxu0 %v8563
    %13839 = vmatprep.subr.bf16.mxu0 %v8580
    %13840 = vmatpush1.bf16.msra.mxu0 %v8579
    %13841 = vmatprep.subr.bf16.mxu0 %v8596
    %13842 = vmatpush1.bf16.msra.mxu0 %v8595
    %13843 = vmatprep.subr.bf16.mxu0 %v8612
    %13844 = vmatpush1.bf16.msra.mxu0 %v8611
    %13845 = vmatprep.subr.bf16.mxu0 %v8628
    %13846 = vmatpush1.bf16.msra.mxu0 %v8627
    %13847 = vmatprep.subr.bf16.mxu0 %v8644
    %13848 = vmatpush1.bf16.msra.mxu0 %v8643
    %13849 = vmatprep.subr.bf16.mxu0 %v8660
    %13850 = vmatpush1.bf16.msra.mxu0 %v8659
    %13851 = vmatprep.mubr.bf16.mxu0 %v2236
    %13852 = vmatmul.mubr.bf16.gmra.mrb[0].mxu0 %v2235
    %v13853 = vpop.f32.mrb[0].mxu0
    %v13854 = vadd.f32 %v2166, %v13853
    %v13855 = vpop.f32.mrb[0].mxu0
    %v13856 = vadd.f32 %v2170, %v13855
    %v13857 = vpop.f32.mrb[0].mxu0
    %v13858 = vpop.f32.mrb[0].mxu0
    %13859 = vdwg.mxu0
    %13860 = vmatprep.subr.bf16.mxu0 %v8676
    %13861 = vmatpush1.bf16.msra.mxu0 %v8675
    %13862 = vmatprep.subr.bf16.mxu0 %v8692
    %13863 = vmatpush1.bf16.msra.mxu0 %v8691
    %13864 = vmatprep.subr.bf16.mxu0 %v8708
    %13865 = vmatpush1.bf16.msra.mxu0 %v8707
    %13866 = vmatprep.subr.bf16.mxu0 %v8724
    %13867 = vmatpush1.bf16.msra.mxu0 %v8723
    %13868 = vmatprep.subr.bf16.mxu0 %v8740
    %13869 = vmatpush1.bf16.msra.mxu0 %v8739
    %13870 = vmatprep.subr.bf16.mxu0 %v8756
    %13871 = vmatpush1.bf16.msra.mxu0 %v8755
    %13872 = vmatprep.subr.bf16.mxu0 %v8772
    %13873 = vmatpush1.bf16.msra.mxu0 %v8771
    %13874 = vmatprep.subr.bf16.mxu0 %v8788
    %13875 = vmatpush1.bf16.msra.mxu0 %v8787
    %13876 = vmatprep.subr.bf16.mxu0 %v8804
    %13877 = vmatpush1.bf16.msra.mxu0 %v8803
    %13878 = vmatprep.subr.bf16.mxu0 %v8820
    %13879 = vmatpush1.bf16.msra.mxu0 %v8819
    %13880 = vmatprep.subr.bf16.mxu0 %v8836
    %13881 = vmatpush1.bf16.msra.mxu0 %v8835
    %13882 = vmatprep.subr.bf16.mxu0 %v8852
    %13883 = vmatpush1.bf16.msra.mxu0 %v8851
    %13884 = vmatprep.subr.bf16.mxu0 %v8868
    %13885 = vmatpush1.bf16.msra.mxu0 %v8867
    %13886 = vmatprep.subr.bf16.mxu0 %v8884
    %13887 = vmatpush1.bf16.msra.mxu0 %v8883
    %13888 = vmatprep.subr.bf16.mxu0 %v8900
    %13889 = vmatpush1.bf16.msra.mxu0 %v8899
    %13890 = vmatprep.subr.bf16.mxu0 %v8916
    %13891 = vmatpush1.bf16.msra.mxu0 %v8915
    %13892 = vmatprep.mubr.bf16.mxu0 %v2238
    %13893 = vmatmul.mubr.bf16.gmra.mrb[0].mxu0 %v2237
    %v13894 = vpop.f32.mrb[0].mxu0
    %v13895 = vadd.f32 %v13854, %v13894
    %v13896 = vpop.f32.mrb[0].mxu0
    %v13897 = vadd.f32 %v13856, %v13896
    %v13898 = vpop.f32.mrb[0].mxu0
    %v13899 = vpop.f32.mrb[0].mxu0
    %13900 = vdwg.mxu0
    %13901 = vmatprep.subr.bf16.mxu0 %v8932
    %13902 = vmatpush1.bf16.msra.mxu0 %v8931
    %13903 = vmatprep.subr.bf16.mxu0 %v8948
    %13904 = vmatpush1.bf16.msra.mxu0 %v8947
    %13905 = vmatprep.subr.bf16.mxu0 %v8964
    %13906 = vmatpush1.bf16.msra.mxu0 %v8963
    %13907 = vmatprep.subr.bf16.mxu0 %v8980
    %13908 = vmatpush1.bf16.msra.mxu0 %v8979
    %13909 = vmatprep.subr.bf16.mxu0 %v8996
    %13910 = vmatpush1.bf16.msra.mxu0 %v8995
    %13911 = vmatprep.subr.bf16.mxu0 %v9012
    %13912 = vmatpush1.bf16.msra.mxu0 %v9011
    %13913 = vmatprep.subr.bf16.mxu0 %v9028
    %13914 = vmatpush1.bf16.msra.mxu0 %v9027
    %13915 = vmatprep.subr.bf16.mxu0 %v9044
    %13916 = vmatpush1.bf16.msra.mxu0 %v9043
    %13917 = vmatprep.subr.bf16.mxu0 %v9060
    %13918 = vmatpush1.bf16.msra.mxu0 %v9059
    %13919 = vmatprep.subr.bf16.mxu0 %v9076
    %13920 = vmatpush1.bf16.msra.mxu0 %v9075
    %13921 = vmatprep.subr.bf16.mxu0 %v9092
    %13922 = vmatpush1.bf16.msra.mxu0 %v9091
    %13923 = vmatprep.subr.bf16.mxu0 %v9108
    %13924 = vmatpush1.bf16.msra.mxu0 %v9107
    %13925 = vmatprep.subr.bf16.mxu0 %v9124
    %13926 = vmatpush1.bf16.msra.mxu0 %v9123
    %13927 = vmatprep.subr.bf16.mxu0 %v9140
    %13928 = vmatpush1.bf16.msra.mxu0 %v9139
    %13929 = vmatprep.subr.bf16.mxu0 %v9156
    %13930 = vmatpush1.bf16.msra.mxu0 %v9155
    %13931 = vmatprep.subr.bf16.mxu0 %v9172
    %13932 = vmatpush1.bf16.msra.mxu0 %v9171
    %13933 = vmatprep.mubr.bf16.mxu0 %v2240
    %13934 = vmatmul.mubr.bf16.gmra.mrb[0].mxu0 %v2239
    %v13935 = vpop.f32.mrb[0].mxu0
    %v13936 = vadd.f32 %v13895, %v13935
    %v13937 = vpop.f32.mrb[0].mxu0
    %v13938 = vadd.f32 %v13897, %v13937
    %v13939 = vpop.f32.mrb[0].mxu0
    %v13940 = vpop.f32.mrb[0].mxu0
    %13941 = vdwg.mxu0
    %13942 = vmatprep.subr.bf16.mxu0 %v9188
    %13943 = vmatpush1.bf16.msra.mxu0 %v9187
    %13944 = vmatprep.subr.bf16.mxu0 %v9204
    %13945 = vmatpush1.bf16.msra.mxu0 %v9203
    %13946 = vmatprep.subr.bf16.mxu0 %v9220
    %13947 = vmatpush1.bf16.msra.mxu0 %v9219
    %13948 = vmatprep.subr.bf16.mxu0 %v9236
    %13949 = vmatpush1.bf16.msra.mxu0 %v9235
    %13950 = vmatprep.subr.bf16.mxu0 %v9252
    %13951 = vmatpush1.bf16.msra.mxu0 %v9251
    %13952 = vmatprep.subr.bf16.mxu0 %v9268
    %13953 = vmatpush1.bf16.msra.mxu0 %v9267
    %13954 = vmatprep.subr.bf16.mxu0 %v9284
    %13955 = vmatpush1.bf16.msra.mxu0 %v9283
    %13956 = vmatprep.subr.bf16.mxu0 %v9300
    %13957 = vmatpush1.bf16.msra.mxu0 %v9299
    %13958 = vmatprep.subr.bf16.mxu0 %v9316
    %13959 = vmatpush1.bf16.msra.mxu0 %v9315
    %13960 = vmatprep.subr.bf16.mxu0 %v9332
    %13961 = vmatpush1.bf16.msra.mxu0 %v9331
    %13962 = vmatprep.subr.bf16.mxu0 %v9348
    %13963 = vmatpush1.bf16.msra.mxu0 %v9347
    %13964 = vmatprep.subr.bf16.mxu0 %v9364
    %13965 = vmatpush1.bf16.msra.mxu0 %v9363
    %13966 = vmatprep.subr.bf16.mxu0 %v9380
    %13967 = vmatpush1.bf16.msra.mxu0 %v9379
    %13968 = vmatprep.subr.bf16.mxu0 %v9396
    %13969 = vmatpush1.bf16.msra.mxu0 %v9395
    %13970 = vmatprep.subr.bf16.mxu0 %v9412
    %13971 = vmatpush1.bf16.msra.mxu0 %v9411
    %13972 = vmatprep.subr.bf16.mxu0 %v9428
    %13973 = vmatpush1.bf16.msra.mxu0 %v9427
    %13974 = vmatprep.mubr.bf16.mxu0 %v2242
    %13975 = vmatmul.mubr.bf16.gmra.mrb[0].mxu0 %v2241
    %v13976 = vpop.f32.mrb[0].mxu0
    %v13977 = vadd.f32 %v13936, %v13976
    %v13978 = vpop.f32.mrb[0].mxu0
    %v13979 = vadd.f32 %v13938, %v13978
    %v13980 = vpop.f32.mrb[0].mxu0
    %v13981 = vpop.f32.mrb[0].mxu0
    %13982 = vdwg.mxu0
    %13983 = vmatprep.subr.bf16.mxu0 %v9444
    %13984 = vmatpush1.bf16.msra.mxu0 %v9443
    %13985 = vmatprep.subr.bf16.mxu0 %v9460
    %13986 = vmatpush1.bf16.msra.mxu0 %v9459
    %13987 = vmatprep.subr.bf16.mxu0 %v9476
    %13988 = vmatpush1.bf16.msra.mxu0 %v9475
    %13989 = vmatprep.subr.bf16.mxu0 %v9492
    %13990 = vmatpush1.bf16.msra.mxu0 %v9491
    %13991 = vmatprep.subr.bf16.mxu0 %v9508
    %13992 = vmatpush1.bf16.msra.mxu0 %v9507
    %13993 = vmatprep.subr.bf16.mxu0 %v9524
    %13994 = vmatpush1.bf16.msra.mxu0 %v9523
    %13995 = vmatprep.subr.bf16.mxu0 %v9540
    %13996 = vmatpush1.bf16.msra.mxu0 %v9539
    %13997 = vmatprep.subr.bf16.mxu0 %v9556
    %13998 = vmatpush1.bf16.msra.mxu0 %v9555
    %13999 = vmatprep.subr.bf16.mxu0 %v9572
    %14000 = vmatpush1.bf16.msra.mxu0 %v9571
    %14001 = vmatprep.subr.bf16.mxu0 %v9588
    %14002 = vmatpush1.bf16.msra.mxu0 %v9587
    %14003 = vmatprep.subr.bf16.mxu0 %v9604
    %14004 = vmatpush1.bf16.msra.mxu0 %v9603
    %14005 = vmatprep.subr.bf16.mxu0 %v9620
    %14006 = vmatpush1.bf16.msra.mxu0 %v9619
    %14007 = vmatprep.subr.bf16.mxu0 %v9636
    %14008 = vmatpush1.bf16.msra.mxu0 %v9635
    %14009 = vmatprep.subr.bf16.mxu0 %v9652
    %14010 = vmatpush1.bf16.msra.mxu0 %v9651
    %14011 = vmatprep.subr.bf16.mxu0 %v9668
    %14012 = vmatpush1.bf16.msra.mxu0 %v9667
    %14013 = vmatprep.subr.bf16.mxu0 %v9684
    %14014 = vmatpush1.bf16.msra.mxu0 %v9683
    %14015 = vmatprep.mubr.bf16.mxu0 %v2244
    %14016 = vmatmul.mubr.bf16.gmra.mrb[0].mxu0 %v2243
    %v14017 = vpop.f32.mrb[0].mxu0
    %v14018 = vadd.f32 %v13977, %v14017
    %v14019 = vpop.f32.mrb[0].mxu0
    %v14020 = vadd.f32 %v13979, %v14019
    %v14021 = vpop.f32.mrb[0].mxu0
    %v14022 = vpop.f32.mrb[0].mxu0
    %14023 = vdwg.mxu0
    %14024 = vmatprep.subr.bf16.mxu0 %v9700
    %14025 = vmatpush1.bf16.msra.mxu0 %v9699
    %14026 = vmatprep.subr.bf16.mxu0 %v9716
    %14027 = vmatpush1.bf16.msra.mxu0 %v9715
    %14028 = vmatprep.subr.bf16.mxu0 %v9732
    %14029 = vmatpush1.bf16.msra.mxu0 %v9731
    %14030 = vmatprep.subr.bf16.mxu0 %v9748
    %14031 = vmatpush1.bf16.msra.mxu0 %v9747
    %14032 = vmatprep.subr.bf16.mxu0 %v9764
    %14033 = vmatpush1.bf16.msra.mxu0 %v9763
    %14034 = vmatprep.subr.bf16.mxu0 %v9780
    %14035 = vmatpush1.bf16.msra.mxu0 %v9779
    %14036 = vmatprep.subr.bf16.mxu0 %v9796
    %14037 = vmatpush1.bf16.msra.mxu0 %v9795
    %14038 = vmatprep.subr.bf16.mxu0 %v9812
    %14039 = vmatpush1.bf16.msra.mxu0 %v9811
    %14040 = vmatprep.subr.bf16.mxu0 %v9828
    %14041 = vmatpush1.bf16.msra.mxu0 %v9827
    %14042 = vmatprep.subr.bf16.mxu0 %v9844
    %14043 = vmatpush1.bf16.msra.mxu0 %v9843
    %14044 = vmatprep.subr.bf16.mxu0 %v9860
    %14045 = vmatpush1.bf16.msra.mxu0 %v9859
    %14046 = vmatprep.subr.bf16.mxu0 %v9876
    %14047 = vmatpush1.bf16.msra.mxu0 %v9875
    %14048 = vmatprep.subr.bf16.mxu0 %v9892
    %14049 = vmatpush1.bf16.msra.mxu0 %v9891
    %14050 = vmatprep.subr.bf16.mxu0 %v9908
    %14051 = vmatpush1.bf16.msra.mxu0 %v9907
    %14052 = vmatprep.subr.bf16.mxu0 %v9924
    %14053 = vmatpush1.bf16.msra.mxu0 %v9923
    %14054 = vmatprep.subr.bf16.mxu0 %v9940
    %14055 = vmatpush1.bf16.msra.mxu0 %v9939
    %14056 = vmatprep.mubr.bf16.mxu0 %v2246
    %14057 = vmatmul.mubr.bf16.gmra.mrb[0].mxu0 %v2245
    %v14058 = vpop.f32.mrb[0].mxu0
    %v14059 = vadd.f32 %v14018, %v14058
    %v14060 = vpop.f32.mrb[0].mxu0
    %v14061 = vadd.f32 %v14020, %v14060
    %v14062 = vpop.f32.mrb[0].mxu0
    %v14063 = vpop.f32.mrb[0].mxu0
    %14064 = vdwg.mxu0
    %14065 = vmatprep.subr.bf16.mxu0 %v9956
    %14066 = vmatpush1.bf16.msra.mxu0 %v9955
    %14067 = vmatprep.subr.bf16.mxu0 %v9972
    %14068 = vmatpush1.bf16.msra.mxu0 %v9971
    %14069 = vmatprep.subr.bf16.mxu0 %v9988
    %14070 = vmatpush1.bf16.msra.mxu0 %v9987
    %14071 = vmatprep.subr.bf16.mxu0 %v10004
    %14072 = vmatpush1.bf16.msra.mxu0 %v10003
    %14073 = vmatprep.subr.bf16.mxu0 %v10020
    %14074 = vmatpush1.bf16.msra.mxu0 %v10019
    %14075 = vmatprep.subr.bf16.mxu0 %v10036
    %14076 = vmatpush1.bf16.msra.mxu0 %v10035
    %14077 = vmatprep.subr.bf16.mxu0 %v10052
    %14078 = vmatpush1.bf16.msra.mxu0 %v10051
    %14079 = vmatprep.subr.bf16.mxu0 %v10068
    %14080 = vmatpush1.bf16.msra.mxu0 %v10067
    %14081 = vmatprep.subr.bf16.mxu0 %v10084
    %14082 = vmatpush1.bf16.msra.mxu0 %v10083
    %14083 = vmatprep.subr.bf16.mxu0 %v10100
    %14084 = vmatpush1.bf16.msra.mxu0 %v10099
    %14085 = vmatprep.subr.bf16.mxu0 %v10116
    %14086 = vmatpush1.bf16.msra.mxu0 %v10115
    %14087 = vmatprep.subr.bf16.mxu0 %v10132
    %14088 = vmatpush1.bf16.msra.mxu0 %v10131
    %14089 = vmatprep.subr.bf16.mxu0 %v10148
    %14090 = vmatpush1.bf16.msra.mxu0 %v10147
    %14091 = vmatprep.subr.bf16.mxu0 %v10164
    %14092 = vmatpush1.bf16.msra.mxu0 %v10163
    %14093 = vmatprep.subr.bf16.mxu0 %v10180
    %14094 = vmatpush1.bf16.msra.mxu0 %v10179
    %14095 = vmatprep.subr.bf16.mxu0 %v10196
    %14096 = vmatpush1.bf16.msra.mxu0 %v10195
    %14097 = vmatprep.mubr.bf16.mxu0 %v2248
    %14098 = vmatmul.mubr.bf16.gmra.mrb[0].mxu0 %v2247
    %v14099 = vpop.f32.mrb[0].mxu0
    %v14100 = vadd.f32 %v14059, %v14099
    %v14101 = vpop.f32.mrb[0].mxu0
    %v14102 = vadd.f32 %v14061, %v14101
    %v14103 = vpop.f32.mrb[0].mxu0
    %v14104 = vpop.f32.mrb[0].mxu0
    %14105 = vdwg.mxu0
    %14106 = vmatprep.subr.bf16.mxu0 %v10212
    %14107 = vmatpush1.bf16.msra.mxu0 %v10211
    %14108 = vmatprep.subr.bf16.mxu0 %v10228
    %14109 = vmatpush1.bf16.msra.mxu0 %v10227
    %14110 = vmatprep.subr.bf16.mxu0 %v10244
    %14111 = vmatpush1.bf16.msra.mxu0 %v10243
    %14112 = vmatprep.subr.bf16.mxu0 %v10260
    %14113 = vmatpush1.bf16.msra.mxu0 %v10259
    %14114 = vmatprep.subr.bf16.mxu0 %v10276
    %14115 = vmatpush1.bf16.msra.mxu0 %v10275
    %14116 = vmatprep.subr.bf16.mxu0 %v10292
    %14117 = vmatpush1.bf16.msra.mxu0 %v10291
    %14118 = vmatprep.subr.bf16.mxu0 %v10308
    %14119 = vmatpush1.bf16.msra.mxu0 %v10307
    %14120 = vmatprep.subr.bf16.mxu0 %v10324
    %14121 = vmatpush1.bf16.msra.mxu0 %v10323
    %14122 = vmatprep.subr.bf16.mxu0 %v10340
    %14123 = vmatpush1.bf16.msra.mxu0 %v10339
    %14124 = vmatprep.subr.bf16.mxu0 %v10356
    %14125 = vmatpush1.bf16.msra.mxu0 %v10355
    %14126 = vmatprep.subr.bf16.mxu0 %v10372
    %14127 = vmatpush1.bf16.msra.mxu0 %v10371
    %14128 = vmatprep.subr.bf16.mxu0 %v10388
    %14129 = vmatpush1.bf16.msra.mxu0 %v10387
    %14130 = vmatprep.subr.bf16.mxu0 %v10404
    %14131 = vmatpush1.bf16.msra.mxu0 %v10403
    %14132 = vmatprep.subr.bf16.mxu0 %v10420
    %14133 = vmatpush1.bf16.msra.mxu0 %v10419
    %14134 = vmatprep.subr.bf16.mxu0 %v10436
    %14135 = vmatpush1.bf16.msra.mxu0 %v10435
    %14136 = vmatprep.subr.bf16.mxu0 %v10452
    %14137 = vmatpush1.bf16.msra.mxu0 %v10451
    %14138 = vmatprep.mubr.bf16.mxu0 %v2250
    %14139 = vmatmul.mubr.bf16.gmra.mrb[0].mxu0 %v2249
    %v14140 = vpop.f32.mrb[0].mxu0
    %v14141 = vadd.f32 %v14100, %v14140
    %v14142 = vpop.f32.mrb[0].mxu0
    %v14143 = vadd.f32 %v14102, %v14142
    %v14144 = vpop.f32.mrb[0].mxu0
    %v14145 = vpop.f32.mrb[0].mxu0
    %14146 = vdwg.mxu0
    %14147 = vmatprep.subr.bf16.mxu0 %v8422
    %14148 = vmatpush1.bf16.msra.mxu0 %v8421
    %14149 = vmatprep.subr.bf16.mxu0 %v8438
    %14150 = vmatpush1.bf16.msra.mxu0 %v8437
    %14151 = vmatprep.subr.bf16.mxu0 %v8454
    %14152 = vmatpush1.bf16.msra.mxu0 %v8453
    %14153 = vmatprep.subr.bf16.mxu0 %v8470
    %14154 = vmatpush1.bf16.msra.mxu0 %v8469
    %14155 = vmatprep.subr.bf16.mxu0 %v8486
    %14156 = vmatpush1.bf16.msra.mxu0 %v8485
    %14157 = vmatprep.subr.bf16.mxu0 %v8502
    %14158 = vmatpush1.bf16.msra.mxu0 %v8501
    %14159 = vmatprep.subr.bf16.mxu0 %v8518
    %14160 = vmatpush1.bf16.msra.mxu0 %v8517
    %14161 = vmatprep.subr.bf16.mxu0 %v8534
    %14162 = vmatpush1.bf16.msra.mxu0 %v8533
    %14163 = vmatprep.subr.bf16.mxu0 %v8550
    %14164 = vmatpush1.bf16.msra.mxu0 %v8549
    %14165 = vmatprep.subr.bf16.mxu0 %v8566
    %14166 = vmatpush1.bf16.msra.mxu0 %v8565
    %14167 = vmatprep.subr.bf16.mxu0 %v8582
    %14168 = vmatpush1.bf16.msra.mxu0 %v8581
    %14169 = vmatprep.subr.bf16.mxu0 %v8598
    %14170 = vmatpush1.bf16.msra.mxu0 %v8597
    %14171 = vmatprep.subr.bf16.mxu0 %v8614
    %14172 = vmatpush1.bf16.msra.mxu0 %v8613
    %14173 = vmatprep.subr.bf16.mxu0 %v8630
    %14174 = vmatpush1.bf16.msra.mxu0 %v8629
    %14175 = vmatprep.subr.bf16.mxu0 %v8646
    %14176 = vmatpush1.bf16.msra.mxu0 %v8645
    %14177 = vmatprep.subr.bf16.mxu0 %v8662
    %14178 = vmatpush1.bf16.msra.mxu0 %v8661
    %14179 = vmatprep.mubr.bf16.mxu0 %v2236
    %14180 = vmatmul.mubr.bf16.gmra.mrb[0].mxu0 %v2235
    %v14181 = vpop.f32.mrb[0].mxu0
    %v14182 = vadd.f32 %v2174, %v14181
    %v14183 = vpop.f32.mrb[0].mxu0
    %v14184 = vadd.f32 %v2178, %v14183
    %v14185 = vpop.f32.mrb[0].mxu0
    %v14186 = vpop.f32.mrb[0].mxu0
    %14187 = vdwg.mxu0
    %14188 = vmatprep.subr.bf16.mxu0 %v8678
    %14189 = vmatpush1.bf16.msra.mxu0 %v8677
    %14190 = vmatprep.subr.bf16.mxu0 %v8694
    %14191 = vmatpush1.bf16.msra.mxu0 %v8693
    %14192 = vmatprep.subr.bf16.mxu0 %v8710
    %14193 = vmatpush1.bf16.msra.mxu0 %v8709
    %14194 = vmatprep.subr.bf16.mxu0 %v8726
    %14195 = vmatpush1.bf16.msra.mxu0 %v8725
    %14196 = vmatprep.subr.bf16.mxu0 %v8742
    %14197 = vmatpush1.bf16.msra.mxu0 %v8741
    %14198 = vmatprep.subr.bf16.mxu0 %v8758
    %14199 = vmatpush1.bf16.msra.mxu0 %v8757
    %14200 = vmatprep.subr.bf16.mxu0 %v8774
    %14201 = vmatpush1.bf16.msra.mxu0 %v8773
    %14202 = vmatprep.subr.bf16.mxu0 %v8790
    %14203 = vmatpush1.bf16.msra.mxu0 %v8789
    %14204 = vmatprep.subr.bf16.mxu0 %v8806
    %14205 = vmatpush1.bf16.msra.mxu0 %v8805
    %14206 = vmatprep.subr.bf16.mxu0 %v8822
    %14207 = vmatpush1.bf16.msra.mxu0 %v8821
    %14208 = vmatprep.subr.bf16.mxu0 %v8838
    %14209 = vmatpush1.bf16.msra.mxu0 %v8837
    %14210 = vmatprep.subr.bf16.mxu0 %v8854
    %14211 = vmatpush1.bf16.msra.mxu0 %v8853
    %14212 = vmatprep.subr.bf16.mxu0 %v8870
    %14213 = vmatpush1.bf16.msra.mxu0 %v8869
    %14214 = vmatprep.subr.bf16.mxu0 %v8886
    %14215 = vmatpush1.bf16.msra.mxu0 %v8885
    %14216 = vmatprep.subr.bf16.mxu0 %v8902
    %14217 = vmatpush1.bf16.msra.mxu0 %v8901
    %14218 = vmatprep.subr.bf16.mxu0 %v8918
    %14219 = vmatpush1.bf16.msra.mxu0 %v8917
    %14220 = vmatprep.mubr.bf16.mxu0 %v2238
    %14221 = vmatmul.mubr.bf16.gmra.mrb[0].mxu0 %v2237
    %v14222 = vpop.f32.mrb[0].mxu0
    %v14223 = vadd.f32 %v14182, %v14222
    %v14224 = vpop.f32.mrb[0].mxu0
    %v14225 = vadd.f32 %v14184, %v14224
    %v14226 = vpop.f32.mrb[0].mxu0
    %v14227 = vpop.f32.mrb[0].mxu0
    %14228 = vdwg.mxu0
    %14229 = vmatprep.subr.bf16.mxu0 %v8934
    %14230 = vmatpush1.bf16.msra.mxu0 %v8933
    %14231 = vmatprep.subr.bf16.mxu0 %v8950
    %14232 = vmatpush1.bf16.msra.mxu0 %v8949
    %14233 = vmatprep.subr.bf16.mxu0 %v8966
    %14234 = vmatpush1.bf16.msra.mxu0 %v8965
    %14235 = vmatprep.subr.bf16.mxu0 %v8982
    %14236 = vmatpush1.bf16.msra.mxu0 %v8981
    %14237 = vmatprep.subr.bf16.mxu0 %v8998
    %14238 = vmatpush1.bf16.msra.mxu0 %v8997
    %14239 = vmatprep.subr.bf16.mxu0 %v9014
    %14240 = vmatpush1.bf16.msra.mxu0 %v9013
    %14241 = vmatprep.subr.bf16.mxu0 %v9030
    %14242 = vmatpush1.bf16.msra.mxu0 %v9029
    %14243 = vmatprep.subr.bf16.mxu0 %v9046
    %14244 = vmatpush1.bf16.msra.mxu0 %v9045
    %14245 = vmatprep.subr.bf16.mxu0 %v9062
    %14246 = vmatpush1.bf16.msra.mxu0 %v9061
    %14247 = vmatprep.subr.bf16.mxu0 %v9078
    %14248 = vmatpush1.bf16.msra.mxu0 %v9077
    %14249 = vmatprep.subr.bf16.mxu0 %v9094
    %14250 = vmatpush1.bf16.msra.mxu0 %v9093
    %14251 = vmatprep.subr.bf16.mxu0 %v9110
    %14252 = vmatpush1.bf16.msra.mxu0 %v9109
    %14253 = vmatprep.subr.bf16.mxu0 %v9126
    %14254 = vmatpush1.bf16.msra.mxu0 %v9125
    %14255 = vmatprep.subr.bf16.mxu0 %v9142
    %14256 = vmatpush1.bf16.msra.mxu0 %v9141
    %14257 = vmatprep.subr.bf16.mxu0 %v9158
    %14258 = vmatpush1.bf16.msra.mxu0 %v9157
    %14259 = vmatprep.subr.bf16.mxu0 %v9174
    %14260 = vmatpush1.bf16.msra.mxu0 %v9173
    %14261 = vmatprep.mubr.bf16.mxu0 %v2240
    %14262 = vmatmul.mubr.bf16.gmra.mrb[0].mxu0 %v2239
    %v14263 = vpop.f32.mrb[0].mxu0
    %v14264 = vadd.f32 %v14223, %v14263
    %v14265 = vpop.f32.mrb[0].mxu0
    %v14266 = vadd.f32 %v14225, %v14265
    %v14267 = vpop.f32.mrb[0].mxu0
    %v14268 = vpop.f32.mrb[0].mxu0
    %14269 = vdwg.mxu0
    %14270 = vmatprep.subr.bf16.mxu0 %v9190
    %14271 = vmatpush1.bf16.msra.mxu0 %v9189
    %14272 = vmatprep.subr.bf16.mxu0 %v9206
    %14273 = vmatpush1.bf16.msra.mxu0 %v9205
    %14274 = vmatprep.subr.bf16.mxu0 %v9222
    %14275 = vmatpush1.bf16.msra.mxu0 %v9221
    %14276 = vmatprep.subr.bf16.mxu0 %v9238
    %14277 = vmatpush1.bf16.msra.mxu0 %v9237
    %14278 = vmatprep.subr.bf16.mxu0 %v9254
    %14279 = vmatpush1.bf16.msra.mxu0 %v9253
    %14280 = vmatprep.subr.bf16.mxu0 %v9270
    %14281 = vmatpush1.bf16.msra.mxu0 %v9269
    %14282 = vmatprep.subr.bf16.mxu0 %v9286
    %14283 = vmatpush1.bf16.msra.mxu0 %v9285
    %14284 = vmatprep.subr.bf16.mxu0 %v9302
    %14285 = vmatpush1.bf16.msra.mxu0 %v9301
    %14286 = vmatprep.subr.bf16.mxu0 %v9318
    %14287 = vmatpush1.bf16.msra.mxu0 %v9317
    %14288 = vmatprep.subr.bf16.mxu0 %v9334
    %14289 = vmatpush1.bf16.msra.mxu0 %v9333
    %14290 = vmatprep.subr.bf16.mxu0 %v9350
    %14291 = vmatpush1.bf16.msra.mxu0 %v9349
    %14292 = vmatprep.subr.bf16.mxu0 %v9366
    %14293 = vmatpush1.bf16.msra.mxu0 %v9365
    %14294 = vmatprep.subr.bf16.mxu0 %v9382
    %14295 = vmatpush1.bf16.msra.mxu0 %v9381
    %14296 = vmatprep.subr.bf16.mxu0 %v9398
    %14297 = vmatpush1.bf16.msra.mxu0 %v9397
    %14298 = vmatprep.subr.bf16.mxu0 %v9414
    %14299 = vmatpush1.bf16.msra.mxu0 %v9413
    %14300 = vmatprep.subr.bf16.mxu0 %v9430
    %14301 = vmatpush1.bf16.msra.mxu0 %v9429
    %14302 = vmatprep.mubr.bf16.mxu0 %v2242
    %14303 = vmatmul.mubr.bf16.gmra.mrb[0].mxu0 %v2241
    %v14304 = vpop.f32.mrb[0].mxu0
    %v14305 = vadd.f32 %v14264, %v14304
    %v14306 = vpop.f32.mrb[0].mxu0
    %v14307 = vadd.f32 %v14266, %v14306
    %v14308 = vpop.f32.mrb[0].mxu0
    %v14309 = vpop.f32.mrb[0].mxu0
    %14310 = vdwg.mxu0
    %14311 = vmatprep.subr.bf16.mxu0 %v9446
    %14312 = vmatpush1.bf16.msra.mxu0 %v9445
    %14313 = vmatprep.subr.bf16.mxu0 %v9462
    %14314 = vmatpush1.bf16.msra.mxu0 %v9461
    %14315 = vmatprep.subr.bf16.mxu0 %v9478
    %14316 = vmatpush1.bf16.msra.mxu0 %v9477
    %14317 = vmatprep.subr.bf16.mxu0 %v9494
    %14318 = vmatpush1.bf16.msra.mxu0 %v9493
    %14319 = vmatprep.subr.bf16.mxu0 %v9510
    %14320 = vmatpush1.bf16.msra.mxu0 %v9509
    %14321 = vmatprep.subr.bf16.mxu0 %v9526
    %14322 = vmatpush1.bf16.msra.mxu0 %v9525
    %14323 = vmatprep.subr.bf16.mxu0 %v9542
    %14324 = vmatpush1.bf16.msra.mxu0 %v9541
    %14325 = vmatprep.subr.bf16.mxu0 %v9558
    %14326 = vmatpush1.bf16.msra.mxu0 %v9557
    %14327 = vmatprep.subr.bf16.mxu0 %v9574
    %14328 = vmatpush1.bf16.msra.mxu0 %v9573
    %14329 = vmatprep.subr.bf16.mxu0 %v9590
    %14330 = vmatpush1.bf16.msra.mxu0 %v9589
    %14331 = vmatprep.subr.bf16.mxu0 %v9606
    %14332 = vmatpush1.bf16.msra.mxu0 %v9605
    %14333 = vmatprep.subr.bf16.mxu0 %v9622
    %14334 = vmatpush1.bf16.msra.mxu0 %v9621
    %14335 = vmatprep.subr.bf16.mxu0 %v9638
    %14336 = vmatpush1.bf16.msra.mxu0 %v9637
    %14337 = vmatprep.subr.bf16.mxu0 %v9654
    %14338 = vmatpush1.bf16.msra.mxu0 %v9653
    %14339 = vmatprep.subr.bf16.mxu0 %v9670
    %14340 = vmatpush1.bf16.msra.mxu0 %v9669
    %14341 = vmatprep.subr.bf16.mxu0 %v9686
    %14342 = vmatpush1.bf16.msra.mxu0 %v9685
    %14343 = vmatprep.mubr.bf16.mxu0 %v2244
    %14344 = vmatmul.mubr.bf16.gmra.mrb[0].mxu0 %v2243
    %v14345 = vpop.f32.mrb[0].mxu0
    %v14346 = vadd.f32 %v14305, %v14345
    %v14347 = vpop.f32.mrb[0].mxu0
    %v14348 = vadd.f32 %v14307, %v14347
    %v14349 = vpop.f32.mrb[0].mxu0
    %v14350 = vpop.f32.mrb[0].mxu0
    %14351 = vdwg.mxu0
    %14352 = vmatprep.subr.bf16.mxu0 %v9702
    %14353 = vmatpush1.bf16.msra.mxu0 %v9701
    %14354 = vmatprep.subr.bf16.mxu0 %v9718
    %14355 = vmatpush1.bf16.msra.mxu0 %v9717
    %14356 = vmatprep.subr.bf16.mxu0 %v9734
    %14357 = vmatpush1.bf16.msra.mxu0 %v9733
    %14358 = vmatprep.subr.bf16.mxu0 %v9750
    %14359 = vmatpush1.bf16.msra.mxu0 %v9749
    %14360 = vmatprep.subr.bf16.mxu0 %v9766
    %14361 = vmatpush1.bf16.msra.mxu0 %v9765
    %14362 = vmatprep.subr.bf16.mxu0 %v9782
    %14363 = vmatpush1.bf16.msra.mxu0 %v9781
    %14364 = vmatprep.subr.bf16.mxu0 %v9798
    %14365 = vmatpush1.bf16.msra.mxu0 %v9797
    %14366 = vmatprep.subr.bf16.mxu0 %v9814
    %14367 = vmatpush1.bf16.msra.mxu0 %v9813
    %14368 = vmatprep.subr.bf16.mxu0 %v9830
    %14369 = vmatpush1.bf16.msra.mxu0 %v9829
    %14370 = vmatprep.subr.bf16.mxu0 %v9846
    %14371 = vmatpush1.bf16.msra.mxu0 %v9845
    %14372 = vmatprep.subr.bf16.mxu0 %v9862
    %14373 = vmatpush1.bf16.msra.mxu0 %v9861
    %14374 = vmatprep.subr.bf16.mxu0 %v9878
    %14375 = vmatpush1.bf16.msra.mxu0 %v9877
    %14376 = vmatprep.subr.bf16.mxu0 %v9894
    %14377 = vmatpush1.bf16.msra.mxu0 %v9893
    %14378 = vmatprep.subr.bf16.mxu0 %v9910
    %14379 = vmatpush1.bf16.msra.mxu0 %v9909
    %14380 = vmatprep.subr.bf16.mxu0 %v9926
    %14381 = vmatpush1.bf16.msra.mxu0 %v9925
    %14382 = vmatprep.subr.bf16.mxu0 %v9942
    %14383 = vmatpush1.bf16.msra.mxu0 %v9941
    %14384 = vmatprep.mubr.bf16.mxu0 %v2246
    %14385 = vmatmul.mubr.bf16.gmra.mrb[0].mxu0 %v2245
    %v14386 = vpop.f32.mrb[0].mxu0
    %v14387 = vadd.f32 %v14346, %v14386
    %v14388 = vpop.f32.mrb[0].mxu0
    %v14389 = vadd.f32 %v14348, %v14388
    %v14390 = vpop.f32.mrb[0].mxu0
    %v14391 = vpop.f32.mrb[0].mxu0
    %14392 = vdwg.mxu0
    %14393 = vmatprep.subr.bf16.mxu0 %v9958
    %14394 = vmatpush1.bf16.msra.mxu0 %v9957
    %14395 = vmatprep.subr.bf16.mxu0 %v9974
    %14396 = vmatpush1.bf16.msra.mxu0 %v9973
    %14397 = vmatprep.subr.bf16.mxu0 %v9990
    %14398 = vmatpush1.bf16.msra.mxu0 %v9989
    %14399 = vmatprep.subr.bf16.mxu0 %v10006
    %14400 = vmatpush1.bf16.msra.mxu0 %v10005
    %14401 = vmatprep.subr.bf16.mxu0 %v10022
    %14402 = vmatpush1.bf16.msra.mxu0 %v10021
    %14403 = vmatprep.subr.bf16.mxu0 %v10038
    %14404 = vmatpush1.bf16.msra.mxu0 %v10037
    %14405 = vmatprep.subr.bf16.mxu0 %v10054
    %14406 = vmatpush1.bf16.msra.mxu0 %v10053
    %14407 = vmatprep.subr.bf16.mxu0 %v10070
    %14408 = vmatpush1.bf16.msra.mxu0 %v10069
    %14409 = vmatprep.subr.bf16.mxu0 %v10086
    %14410 = vmatpush1.bf16.msra.mxu0 %v10085
    %14411 = vmatprep.subr.bf16.mxu0 %v10102
    %14412 = vmatpush1.bf16.msra.mxu0 %v10101
    %14413 = vmatprep.subr.bf16.mxu0 %v10118
    %14414 = vmatpush1.bf16.msra.mxu0 %v10117
    %14415 = vmatprep.subr.bf16.mxu0 %v10134
    %14416 = vmatpush1.bf16.msra.mxu0 %v10133
    %14417 = vmatprep.subr.bf16.mxu0 %v10150
    %14418 = vmatpush1.bf16.msra.mxu0 %v10149
    %14419 = vmatprep.subr.bf16.mxu0 %v10166
    %14420 = vmatpush1.bf16.msra.mxu0 %v10165
    %14421 = vmatprep.subr.bf16.mxu0 %v10182
    %14422 = vmatpush1.bf16.msra.mxu0 %v10181
    %14423 = vmatprep.subr.bf16.mxu0 %v10198
    %14424 = vmatpush1.bf16.msra.mxu0 %v10197
    %14425 = vmatprep.mubr.bf16.mxu0 %v2248
    %14426 = vmatmul.mubr.bf16.gmra.mrb[0].mxu0 %v2247
    %v14427 = vpop.f32.mrb[0].mxu0
    %v14428 = vadd.f32 %v14387, %v14427
    %v14429 = vpop.f32.mrb[0].mxu0
    %v14430 = vadd.f32 %v14389, %v14429
    %v14431 = vpop.f32.mrb[0].mxu0
    %v14432 = vpop.f32.mrb[0].mxu0
    %14433 = vdwg.mxu0
    %14434 = vmatprep.subr.bf16.mxu0 %v10214
    %14435 = vmatpush1.bf16.msra.mxu0 %v10213
    %14436 = vmatprep.subr.bf16.mxu0 %v10230
    %14437 = vmatpush1.bf16.msra.mxu0 %v10229
    %14438 = vmatprep.subr.bf16.mxu0 %v10246
    %14439 = vmatpush1.bf16.msra.mxu0 %v10245
    %14440 = vmatprep.subr.bf16.mxu0 %v10262
    %14441 = vmatpush1.bf16.msra.mxu0 %v10261
    %14442 = vmatprep.subr.bf16.mxu0 %v10278
    %14443 = vmatpush1.bf16.msra.mxu0 %v10277
    %14444 = vmatprep.subr.bf16.mxu0 %v10294
    %14445 = vmatpush1.bf16.msra.mxu0 %v10293
    %14446 = vmatprep.subr.bf16.mxu0 %v10310
    %14447 = vmatpush1.bf16.msra.mxu0 %v10309
    %14448 = vmatprep.subr.bf16.mxu0 %v10326
    %14449 = vmatpush1.bf16.msra.mxu0 %v10325
    %14450 = vmatprep.subr.bf16.mxu0 %v10342
    %14451 = vmatpush1.bf16.msra.mxu0 %v10341
    %14452 = vmatprep.subr.bf16.mxu0 %v10358
    %14453 = vmatpush1.bf16.msra.mxu0 %v10357
    %14454 = vmatprep.subr.bf16.mxu0 %v10374
    %14455 = vmatpush1.bf16.msra.mxu0 %v10373
    %14456 = vmatprep.subr.bf16.mxu0 %v10390
    %14457 = vmatpush1.bf16.msra.mxu0 %v10389
    %14458 = vmatprep.subr.bf16.mxu0 %v10406
    %14459 = vmatpush1.bf16.msra.mxu0 %v10405
    %14460 = vmatprep.subr.bf16.mxu0 %v10422
    %14461 = vmatpush1.bf16.msra.mxu0 %v10421
    %14462 = vmatprep.subr.bf16.mxu0 %v10438
    %14463 = vmatpush1.bf16.msra.mxu0 %v10437
    %14464 = vmatprep.subr.bf16.mxu0 %v10454
    %14465 = vmatpush1.bf16.msra.mxu0 %v10453
    %14466 = vmatprep.mubr.bf16.mxu0 %v2250
    %14467 = vmatmul.mubr.bf16.gmra.mrb[0].mxu0 %v2249
    %v14468 = vpop.f32.mrb[0].mxu0
    %v14469 = vadd.f32 %v14428, %v14468
    %v14470 = vpop.f32.mrb[0].mxu0
    %v14471 = vadd.f32 %v14430, %v14470
    %v14472 = vpop.f32.mrb[0].mxu0
    %v14473 = vpop.f32.mrb[0].mxu0
    %14474 = vdwg.mxu0
    %14475 = vmatprep.subr.bf16.mxu0 %v8424
    %14476 = vmatpush1.bf16.msra.mxu0 %v8423
    %14477 = vmatprep.subr.bf16.mxu0 %v8440
    %14478 = vmatpush1.bf16.msra.mxu0 %v8439
    %14479 = vmatprep.subr.bf16.mxu0 %v8456
    %14480 = vmatpush1.bf16.msra.mxu0 %v8455
    %14481 = vmatprep.subr.bf16.mxu0 %v8472
    %14482 = vmatpush1.bf16.msra.mxu0 %v8471
    %14483 = vmatprep.subr.bf16.mxu0 %v8488
    %14484 = vmatpush1.bf16.msra.mxu0 %v8487
    %14485 = vmatprep.subr.bf16.mxu0 %v8504
    %14486 = vmatpush1.bf16.msra.mxu0 %v8503
    %14487 = vmatprep.subr.bf16.mxu0 %v8520
    %14488 = vmatpush1.bf16.msra.mxu0 %v8519
    %14489 = vmatprep.subr.bf16.mxu0 %v8536
    %14490 = vmatpush1.bf16.msra.mxu0 %v8535
    %14491 = vmatprep.subr.bf16.mxu0 %v8552
    %14492 = vmatpush1.bf16.msra.mxu0 %v8551
    %14493 = vmatprep.subr.bf16.mxu0 %v8568
    %14494 = vmatpush1.bf16.msra.mxu0 %v8567
    %14495 = vmatprep.subr.bf16.mxu0 %v8584
    %14496 = vmatpush1.bf16.msra.mxu0 %v8583
    %14497 = vmatprep.subr.bf16.mxu0 %v8600
    %14498 = vmatpush1.bf16.msra.mxu0 %v8599
    %14499 = vmatprep.subr.bf16.mxu0 %v8616
    %14500 = vmatpush1.bf16.msra.mxu0 %v8615
    %14501 = vmatprep.subr.bf16.mxu0 %v8632
    %14502 = vmatpush1.bf16.msra.mxu0 %v8631
    %14503 = vmatprep.subr.bf16.mxu0 %v8648
    %14504 = vmatpush1.bf16.msra.mxu0 %v8647
    %14505 = vmatprep.subr.bf16.mxu0 %v8664
    %14506 = vmatpush1.bf16.msra.mxu0 %v8663
    %14507 = vmatprep.mubr.bf16.mxu0 %v2236
    %14508 = vmatmul.mubr.bf16.gmra.mrb[0].mxu0 %v2235
    %v14509 = vpop.f32.mrb[0].mxu0
    %v14510 = vadd.f32 %v2182, %v14509
    %v14511 = vpop.f32.mrb[0].mxu0
    %v14512 = vadd.f32 %v2186, %v14511
    %v14513 = vpop.f32.mrb[0].mxu0
    %v14514 = vpop.f32.mrb[0].mxu0
    %14515 = vdwg.mxu0
    %14516 = vmatprep.subr.bf16.mxu0 %v8680
    %14517 = vmatpush1.bf16.msra.mxu0 %v8679
    %14518 = vmatprep.subr.bf16.mxu0 %v8696
    %14519 = vmatpush1.bf16.msra.mxu0 %v8695
    %14520 = vmatprep.subr.bf16.mxu0 %v8712
    %14521 = vmatpush1.bf16.msra.mxu0 %v8711
    %14522 = vmatprep.subr.bf16.mxu0 %v8728
    %14523 = vmatpush1.bf16.msra.mxu0 %v8727
    %14524 = vmatprep.subr.bf16.mxu0 %v8744
    %14525 = vmatpush1.bf16.msra.mxu0 %v8743
    %14526 = vmatprep.subr.bf16.mxu0 %v8760
    %14527 = vmatpush1.bf16.msra.mxu0 %v8759
    %14528 = vmatprep.subr.bf16.mxu0 %v8776
    %14529 = vmatpush1.bf16.msra.mxu0 %v8775
    %14530 = vmatprep.subr.bf16.mxu0 %v8792
    %14531 = vmatpush1.bf16.msra.mxu0 %v8791
    %14532 = vmatprep.subr.bf16.mxu0 %v8808
    %14533 = vmatpush1.bf16.msra.mxu0 %v8807
    %14534 = vmatprep.subr.bf16.mxu0 %v8824
    %14535 = vmatpush1.bf16.msra.mxu0 %v8823
    %14536 = vmatprep.subr.bf16.mxu0 %v8840
    %14537 = vmatpush1.bf16.msra.mxu0 %v8839
    %14538 = vmatprep.subr.bf16.mxu0 %v8856
    %14539 = vmatpush1.bf16.msra.mxu0 %v8855
    %14540 = vmatprep.subr.bf16.mxu0 %v8872
    %14541 = vmatpush1.bf16.msra.mxu0 %v8871
    %14542 = vmatprep.subr.bf16.mxu0 %v8888
    %14543 = vmatpush1.bf16.msra.mxu0 %v8887
    %14544 = vmatprep.subr.bf16.mxu0 %v8904
    %14545 = vmatpush1.bf16.msra.mxu0 %v8903
    %14546 = vmatprep.subr.bf16.mxu0 %v8920
    %14547 = vmatpush1.bf16.msra.mxu0 %v8919
    %14548 = vmatprep.mubr.bf16.mxu0 %v2238
    %14549 = vmatmul.mubr.bf16.gmra.mrb[0].mxu0 %v2237
    %v14550 = vpop.f32.mrb[0].mxu0
    %v14551 = vadd.f32 %v14510, %v14550
    %v14552 = vpop.f32.mrb[0].mxu0
    %v14553 = vadd.f32 %v14512, %v14552
    %v14554 = vpop.f32.mrb[0].mxu0
    %v14555 = vpop.f32.mrb[0].mxu0
    %14556 = vdwg.mxu0
    %14557 = vmatprep.subr.bf16.mxu0 %v8936
    %14558 = vmatpush1.bf16.msra.mxu0 %v8935
    %14559 = vmatprep.subr.bf16.mxu0 %v8952
    %14560 = vmatpush1.bf16.msra.mxu0 %v8951
    %14561 = vmatprep.subr.bf16.mxu0 %v8968
    %14562 = vmatpush1.bf16.msra.mxu0 %v8967
    %14563 = vmatprep.subr.bf16.mxu0 %v8984
    %14564 = vmatpush1.bf16.msra.mxu0 %v8983
    %14565 = vmatprep.subr.bf16.mxu0 %v9000
    %14566 = vmatpush1.bf16.msra.mxu0 %v8999
    %14567 = vmatprep.subr.bf16.mxu0 %v9016
    %14568 = vmatpush1.bf16.msra.mxu0 %v9015
    %14569 = vmatprep.subr.bf16.mxu0 %v9032
    %14570 = vmatpush1.bf16.msra.mxu0 %v9031
    %14571 = vmatprep.subr.bf16.mxu0 %v9048
    %14572 = vmatpush1.bf16.msra.mxu0 %v9047
    %14573 = vmatprep.subr.bf16.mxu0 %v9064
    %14574 = vmatpush1.bf16.msra.mxu0 %v9063
    %14575 = vmatprep.subr.bf16.mxu0 %v9080
    %14576 = vmatpush1.bf16.msra.mxu0 %v9079
    %14577 = vmatprep.subr.bf16.mxu0 %v9096
    %14578 = vmatpush1.bf16.msra.mxu0 %v9095
    %14579 = vmatprep.subr.bf16.mxu0 %v9112
    %14580 = vmatpush1.bf16.msra.mxu0 %v9111
    %14581 = vmatprep.subr.bf16.mxu0 %v9128
    %14582 = vmatpush1.bf16.msra.mxu0 %v9127
    %14583 = vmatprep.subr.bf16.mxu0 %v9144
    %14584 = vmatpush1.bf16.msra.mxu0 %v9143
    %14585 = vmatprep.subr.bf16.mxu0 %v9160
    %14586 = vmatpush1.bf16.msra.mxu0 %v9159
    %14587 = vmatprep.subr.bf16.mxu0 %v9176
    %14588 = vmatpush1.bf16.msra.mxu0 %v9175
    %14589 = vmatprep.mubr.bf16.mxu0 %v2240
    %14590 = vmatmul.mubr.bf16.gmra.mrb[0].mxu0 %v2239
    %v14591 = vpop.f32.mrb[0].mxu0
    %v14592 = vadd.f32 %v14551, %v14591
    %v14593 = vpop.f32.mrb[0].mxu0
    %v14594 = vadd.f32 %v14553, %v14593
    %v14595 = vpop.f32.mrb[0].mxu0
    %v14596 = vpop.f32.mrb[0].mxu0
    %14597 = vdwg.mxu0
    %14598 = vmatprep.subr.bf16.mxu0 %v9192
    %14599 = vmatpush1.bf16.msra.mxu0 %v9191
    %14600 = vmatprep.subr.bf16.mxu0 %v9208
    %14601 = vmatpush1.bf16.msra.mxu0 %v9207
    %14602 = vmatprep.subr.bf16.mxu0 %v9224
    %14603 = vmatpush1.bf16.msra.mxu0 %v9223
    %14604 = vmatprep.subr.bf16.mxu0 %v9240
    %14605 = vmatpush1.bf16.msra.mxu0 %v9239
    %14606 = vmatprep.subr.bf16.mxu0 %v9256
    %14607 = vmatpush1.bf16.msra.mxu0 %v9255
    %14608 = vmatprep.subr.bf16.mxu0 %v9272
    %14609 = vmatpush1.bf16.msra.mxu0 %v9271
    %14610 = vmatprep.subr.bf16.mxu0 %v9288
    %14611 = vmatpush1.bf16.msra.mxu0 %v9287
    %14612 = vmatprep.subr.bf16.mxu0 %v9304
    %14613 = vmatpush1.bf16.msra.mxu0 %v9303
    %14614 = vmatprep.subr.bf16.mxu0 %v9320
    %14615 = vmatpush1.bf16.msra.mxu0 %v9319
    %14616 = vmatprep.subr.bf16.mxu0 %v9336
    %14617 = vmatpush1.bf16.msra.mxu0 %v9335
    %14618 = vmatprep.subr.bf16.mxu0 %v9352
    %14619 = vmatpush1.bf16.msra.mxu0 %v9351
    %14620 = vmatprep.subr.bf16.mxu0 %v9368
    %14621 = vmatpush1.bf16.msra.mxu0 %v9367
    %14622 = vmatprep.subr.bf16.mxu0 %v9384
    %14623 = vmatpush1.bf16.msra.mxu0 %v9383
    %14624 = vmatprep.subr.bf16.mxu0 %v9400
    %14625 = vmatpush1.bf16.msra.mxu0 %v9399
    %14626 = vmatprep.subr.bf16.mxu0 %v9416
    %14627 = vmatpush1.bf16.msra.mxu0 %v9415
    %14628 = vmatprep.subr.bf16.mxu0 %v9432
    %14629 = vmatpush1.bf16.msra.mxu0 %v9431
    %14630 = vmatprep.mubr.bf16.mxu0 %v2242
    %14631 = vmatmul.mubr.bf16.gmra.mrb[0].mxu0 %v2241
    %v14632 = vpop.f32.mrb[0].mxu0
    %v14633 = vadd.f32 %v14592, %v14632
    %v14634 = vpop.f32.mrb[0].mxu0
    %v14635 = vadd.f32 %v14594, %v14634
    %v14636 = vpop.f32.mrb[0].mxu0
    %v14637 = vpop.f32.mrb[0].mxu0
    %14638 = vdwg.mxu0
    %14639 = vmatprep.subr.bf16.mxu0 %v9448
    %14640 = vmatpush1.bf16.msra.mxu0 %v9447
    %14641 = vmatprep.subr.bf16.mxu0 %v9464
    %14642 = vmatpush1.bf16.msra.mxu0 %v9463
    %14643 = vmatprep.subr.bf16.mxu0 %v9480
    %14644 = vmatpush1.bf16.msra.mxu0 %v9479
    %14645 = vmatprep.subr.bf16.mxu0 %v9496
    %14646 = vmatpush1.bf16.msra.mxu0 %v9495
    %14647 = vmatprep.subr.bf16.mxu0 %v9512
    %14648 = vmatpush1.bf16.msra.mxu0 %v9511
    %14649 = vmatprep.subr.bf16.mxu0 %v9528
    %14650 = vmatpush1.bf16.msra.mxu0 %v9527
    %14651 = vmatprep.subr.bf16.mxu0 %v9544
    %14652 = vmatpush1.bf16.msra.mxu0 %v9543
    %14653 = vmatprep.subr.bf16.mxu0 %v9560
    %14654 = vmatpush1.bf16.msra.mxu0 %v9559
    %14655 = vmatprep.subr.bf16.mxu0 %v9576
    %14656 = vmatpush1.bf16.msra.mxu0 %v9575
    %14657 = vmatprep.subr.bf16.mxu0 %v9592
    %14658 = vmatpush1.bf16.msra.mxu0 %v9591
    %14659 = vmatprep.subr.bf16.mxu0 %v9608
    %14660 = vmatpush1.bf16.msra.mxu0 %v9607
    %14661 = vmatprep.subr.bf16.mxu0 %v9624
    %14662 = vmatpush1.bf16.msra.mxu0 %v9623
    %14663 = vmatprep.subr.bf16.mxu0 %v9640
    %14664 = vmatpush1.bf16.msra.mxu0 %v9639
    %14665 = vmatprep.subr.bf16.mxu0 %v9656
    %14666 = vmatpush1.bf16.msra.mxu0 %v9655
    %14667 = vmatprep.subr.bf16.mxu0 %v9672
    %14668 = vmatpush1.bf16.msra.mxu0 %v9671
    %14669 = vmatprep.subr.bf16.mxu0 %v9688
    %14670 = vmatpush1.bf16.msra.mxu0 %v9687
    %14671 = vmatprep.mubr.bf16.mxu0 %v2244
    %14672 = vmatmul.mubr.bf16.gmra.mrb[0].mxu0 %v2243
    %v14673 = vpop.f32.mrb[0].mxu0
    %v14674 = vadd.f32 %v14633, %v14673
    %v14675 = vpop.f32.mrb[0].mxu0
    %v14676 = vadd.f32 %v14635, %v14675
    %v14677 = vpop.f32.mrb[0].mxu0
    %v14678 = vpop.f32.mrb[0].mxu0
    %14679 = vdwg.mxu0
    %14680 = vmatprep.subr.bf16.mxu0 %v9704
    %14681 = vmatpush1.bf16.msra.mxu0 %v9703
    %14682 = vmatprep.subr.bf16.mxu0 %v9720
    %14683 = vmatpush1.bf16.msra.mxu0 %v9719
    %14684 = vmatprep.subr.bf16.mxu0 %v9736
    %14685 = vmatpush1.bf16.msra.mxu0 %v9735
    %14686 = vmatprep.subr.bf16.mxu0 %v9752
    %14687 = vmatpush1.bf16.msra.mxu0 %v9751
    %14688 = vmatprep.subr.bf16.mxu0 %v9768
    %14689 = vmatpush1.bf16.msra.mxu0 %v9767
    %14690 = vmatprep.subr.bf16.mxu0 %v9784
    %14691 = vmatpush1.bf16.msra.mxu0 %v9783
    %14692 = vmatprep.subr.bf16.mxu0 %v9800
    %14693 = vmatpush1.bf16.msra.mxu0 %v9799
    %14694 = vmatprep.subr.bf16.mxu0 %v9816
    %14695 = vmatpush1.bf16.msra.mxu0 %v9815
    %14696 = vmatprep.subr.bf16.mxu0 %v9832
    %14697 = vmatpush1.bf16.msra.mxu0 %v9831
    %14698 = vmatprep.subr.bf16.mxu0 %v9848
    %14699 = vmatpush1.bf16.msra.mxu0 %v9847
    %14700 = vmatprep.subr.bf16.mxu0 %v9864
    %14701 = vmatpush1.bf16.msra.mxu0 %v9863
    %14702 = vmatprep.subr.bf16.mxu0 %v9880
    %14703 = vmatpush1.bf16.msra.mxu0 %v9879
    %14704 = vmatprep.subr.bf16.mxu0 %v9896
    %14705 = vmatpush1.bf16.msra.mxu0 %v9895
    %14706 = vmatprep.subr.bf16.mxu0 %v9912
    %14707 = vmatpush1.bf16.msra.mxu0 %v9911
    %14708 = vmatprep.subr.bf16.mxu0 %v9928
    %14709 = vmatpush1.bf16.msra.mxu0 %v9927
    %14710 = vmatprep.subr.bf16.mxu0 %v9944
    %14711 = vmatpush1.bf16.msra.mxu0 %v9943
    %14712 = vmatprep.mubr.bf16.mxu0 %v2246
    %14713 = vmatmul.mubr.bf16.gmra.mrb[0].mxu0 %v2245
    %v14714 = vpop.f32.mrb[0].mxu0
    %v14715 = vadd.f32 %v14674, %v14714
    %v14716 = vpop.f32.mrb[0].mxu0
    %v14717 = vadd.f32 %v14676, %v14716
    %v14718 = vpop.f32.mrb[0].mxu0
    %v14719 = vpop.f32.mrb[0].mxu0
    %14720 = vdwg.mxu0
    %14721 = vmatprep.subr.bf16.mxu0 %v9960
    %14722 = vmatpush1.bf16.msra.mxu0 %v9959
    %14723 = vmatprep.subr.bf16.mxu0 %v9976
    %14724 = vmatpush1.bf16.msra.mxu0 %v9975
    %14725 = vmatprep.subr.bf16.mxu0 %v9992
    %14726 = vmatpush1.bf16.msra.mxu0 %v9991
    %14727 = vmatprep.subr.bf16.mxu0 %v10008
    %14728 = vmatpush1.bf16.msra.mxu0 %v10007
    %14729 = vmatprep.subr.bf16.mxu0 %v10024
    %14730 = vmatpush1.bf16.msra.mxu0 %v10023
    %14731 = vmatprep.subr.bf16.mxu0 %v10040
    %14732 = vmatpush1.bf16.msra.mxu0 %v10039
    %14733 = vmatprep.subr.bf16.mxu0 %v10056
    %14734 = vmatpush1.bf16.msra.mxu0 %v10055
    %14735 = vmatprep.subr.bf16.mxu0 %v10072
    %14736 = vmatpush1.bf16.msra.mxu0 %v10071
    %14737 = vmatprep.subr.bf16.mxu0 %v10088
    %14738 = vmatpush1.bf16.msra.mxu0 %v10087
    %14739 = vmatprep.subr.bf16.mxu0 %v10104
    %14740 = vmatpush1.bf16.msra.mxu0 %v10103
    %14741 = vmatprep.subr.bf16.mxu0 %v10120
    %14742 = vmatpush1.bf16.msra.mxu0 %v10119
    %14743 = vmatprep.subr.bf16.mxu0 %v10136
    %14744 = vmatpush1.bf16.msra.mxu0 %v10135
    %14745 = vmatprep.subr.bf16.mxu0 %v10152
    %14746 = vmatpush1.bf16.msra.mxu0 %v10151
    %14747 = vmatprep.subr.bf16.mxu0 %v10168
    %14748 = vmatpush1.bf16.msra.mxu0 %v10167
    %14749 = vmatprep.subr.bf16.mxu0 %v10184
    %14750 = vmatpush1.bf16.msra.mxu0 %v10183
    %14751 = vmatprep.subr.bf16.mxu0 %v10200
    %14752 = vmatpush1.bf16.msra.mxu0 %v10199
    %14753 = vmatprep.mubr.bf16.mxu0 %v2248
    %14754 = vmatmul.mubr.bf16.gmra.mrb[0].mxu0 %v2247
    %v14755 = vpop.f32.mrb[0].mxu0
    %v14756 = vadd.f32 %v14715, %v14755
    %v14757 = vpop.f32.mrb[0].mxu0
    %v14758 = vadd.f32 %v14717, %v14757
    %v14759 = vpop.f32.mrb[0].mxu0
    %v14760 = vpop.f32.mrb[0].mxu0
    %14761 = vdwg.mxu0
    %14762 = vmatprep.subr.bf16.mxu0 %v10216
    %14763 = vmatpush1.bf16.msra.mxu0 %v10215
    %14764 = vmatprep.subr.bf16.mxu0 %v10232
    %14765 = vmatpush1.bf16.msra.mxu0 %v10231
    %14766 = vmatprep.subr.bf16.mxu0 %v10248
    %14767 = vmatpush1.bf16.msra.mxu0 %v10247
    %14768 = vmatprep.subr.bf16.mxu0 %v10264
    %14769 = vmatpush1.bf16.msra.mxu0 %v10263
    %14770 = vmatprep.subr.bf16.mxu0 %v10280
    %14771 = vmatpush1.bf16.msra.mxu0 %v10279
    %14772 = vmatprep.subr.bf16.mxu0 %v10296
    %14773 = vmatpush1.bf16.msra.mxu0 %v10295
    %14774 = vmatprep.subr.bf16.mxu0 %v10312
    %14775 = vmatpush1.bf16.msra.mxu0 %v10311
    %14776 = vmatprep.subr.bf16.mxu0 %v10328
    %14777 = vmatpush1.bf16.msra.mxu0 %v10327
    %14778 = vmatprep.subr.bf16.mxu0 %v10344
    %14779 = vmatpush1.bf16.msra.mxu0 %v10343
    %14780 = vmatprep.subr.bf16.mxu0 %v10360
    %14781 = vmatpush1.bf16.msra.mxu0 %v10359
    %14782 = vmatprep.subr.bf16.mxu0 %v10376
    %14783 = vmatpush1.bf16.msra.mxu0 %v10375
    %14784 = vmatprep.subr.bf16.mxu0 %v10392
    %14785 = vmatpush1.bf16.msra.mxu0 %v10391
    %14786 = vmatprep.subr.bf16.mxu0 %v10408
    %14787 = vmatpush1.bf16.msra.mxu0 %v10407
    %14788 = vmatprep.subr.bf16.mxu0 %v10424
    %14789 = vmatpush1.bf16.msra.mxu0 %v10423
    %14790 = vmatprep.subr.bf16.mxu0 %v10440
    %14791 = vmatpush1.bf16.msra.mxu0 %v10439
    %14792 = vmatprep.subr.bf16.mxu0 %v10456
    %14793 = vmatpush1.bf16.msra.mxu0 %v10455
    %14794 = vmatprep.mubr.bf16.mxu0 %v2250
    %14795 = vmatmul.mubr.bf16.gmra.mrb[0].mxu0 %v2249
    %v14796 = vpop.f32.mrb[0].mxu0
    %v14797 = vadd.f32 %v14756, %v14796
    %v14798 = vpop.f32.mrb[0].mxu0
    %v14799 = vadd.f32 %v14758, %v14798
    %v14800 = vpop.f32.mrb[0].mxu0
    %v14801 = vpop.f32.mrb[0].mxu0
    %14802 = vdwg.mxu0
    %14803 = vmatprep.subr.bf16.mxu0 %v8426
    %14804 = vmatpush1.bf16.msra.mxu0 %v8425
    %14805 = vmatprep.subr.bf16.mxu0 %v8442
    %14806 = vmatpush1.bf16.msra.mxu0 %v8441
    %14807 = vmatprep.subr.bf16.mxu0 %v8458
    %14808 = vmatpush1.bf16.msra.mxu0 %v8457
    %14809 = vmatprep.subr.bf16.mxu0 %v8474
    %14810 = vmatpush1.bf16.msra.mxu0 %v8473
    %14811 = vmatprep.subr.bf16.mxu0 %v8490
    %14812 = vmatpush1.bf16.msra.mxu0 %v8489
    %14813 = vmatprep.subr.bf16.mxu0 %v8506
    %14814 = vmatpush1.bf16.msra.mxu0 %v8505
    %14815 = vmatprep.subr.bf16.mxu0 %v8522
    %14816 = vmatpush1.bf16.msra.mxu0 %v8521
    %14817 = vmatprep.subr.bf16.mxu0 %v8538
    %14818 = vmatpush1.bf16.msra.mxu0 %v8537
    %14819 = vmatprep.subr.bf16.mxu0 %v8554
    %14820 = vmatpush1.bf16.msra.mxu0 %v8553
    %14821 = vmatprep.subr.bf16.mxu0 %v8570
    %14822 = vmatpush1.bf16.msra.mxu0 %v8569
    %14823 = vmatprep.subr.bf16.mxu0 %v8586
    %14824 = vmatpush1.bf16.msra.mxu0 %v8585
    %14825 = vmatprep.subr.bf16.mxu0 %v8602
    %14826 = vmatpush1.bf16.msra.mxu0 %v8601
    %14827 = vmatprep.subr.bf16.mxu0 %v8618
    %14828 = vmatpush1.bf16.msra.mxu0 %v8617
    %14829 = vmatprep.subr.bf16.mxu0 %v8634
    %14830 = vmatpush1.bf16.msra.mxu0 %v8633
    %14831 = vmatprep.subr.bf16.mxu0 %v8650
    %14832 = vmatpush1.bf16.msra.mxu0 %v8649
    %14833 = vmatprep.subr.bf16.mxu0 %v8666
    %14834 = vmatpush1.bf16.msra.mxu0 %v8665
    %14835 = vmatprep.mubr.bf16.mxu0 %v2236
    %14836 = vmatmul.mubr.bf16.gmra.mrb[0].mxu0 %v2235
    %v14837 = vpop.f32.mrb[0].mxu0
    %v14838 = vadd.f32 %v2190, %v14837
    %v14839 = vpop.f32.mrb[0].mxu0
    %v14840 = vadd.f32 %v2194, %v14839
    %v14841 = vpop.f32.mrb[0].mxu0
    %v14842 = vpop.f32.mrb[0].mxu0
    %14843 = vdwg.mxu0
    %14844 = vmatprep.subr.bf16.mxu0 %v8682
    %14845 = vmatpush1.bf16.msra.mxu0 %v8681
    %14846 = vmatprep.subr.bf16.mxu0 %v8698
    %14847 = vmatpush1.bf16.msra.mxu0 %v8697
    %14848 = vmatprep.subr.bf16.mxu0 %v8714
    %14849 = vmatpush1.bf16.msra.mxu0 %v8713
    %14850 = vmatprep.subr.bf16.mxu0 %v8730
    %14851 = vmatpush1.bf16.msra.mxu0 %v8729
    %14852 = vmatprep.subr.bf16.mxu0 %v8746
    %14853 = vmatpush1.bf16.msra.mxu0 %v8745
    %14854 = vmatprep.subr.bf16.mxu0 %v8762
    %14855 = vmatpush1.bf16.msra.mxu0 %v8761
    %14856 = vmatprep.subr.bf16.mxu0 %v8778
    %14857 = vmatpush1.bf16.msra.mxu0 %v8777
    %14858 = vmatprep.subr.bf16.mxu0 %v8794
    %14859 = vmatpush1.bf16.msra.mxu0 %v8793
    %14860 = vmatprep.subr.bf16.mxu0 %v8810
    %14861 = vmatpush1.bf16.msra.mxu0 %v8809
    %14862 = vmatprep.subr.bf16.mxu0 %v8826
    %14863 = vmatpush1.bf16.msra.mxu0 %v8825
    %14864 = vmatprep.subr.bf16.mxu0 %v8842
    %14865 = vmatpush1.bf16.msra.mxu0 %v8841
    %14866 = vmatprep.subr.bf16.mxu0 %v8858
    %14867 = vmatpush1.bf16.msra.mxu0 %v8857
    %14868 = vmatprep.subr.bf16.mxu0 %v8874
    %14869 = vmatpush1.bf16.msra.mxu0 %v8873
    %14870 = vmatprep.subr.bf16.mxu0 %v8890
    %14871 = vmatpush1.bf16.msra.mxu0 %v8889
    %14872 = vmatprep.subr.bf16.mxu0 %v8906
    %14873 = vmatpush1.bf16.msra.mxu0 %v8905
    %14874 = vmatprep.subr.bf16.mxu0 %v8922
    %14875 = vmatpush1.bf16.msra.mxu0 %v8921
    %14876 = vmatprep.mubr.bf16.mxu0 %v2238
    %14877 = vmatmul.mubr.bf16.gmra.mrb[0].mxu0 %v2237
    %v14878 = vpop.f32.mrb[0].mxu0
    %v14879 = vadd.f32 %v14838, %v14878
    %v14880 = vpop.f32.mrb[0].mxu0
    %v14881 = vadd.f32 %v14840, %v14880
    %v14882 = vpop.f32.mrb[0].mxu0
    %v14883 = vpop.f32.mrb[0].mxu0
    %14884 = vdwg.mxu0
    %14885 = vmatprep.subr.bf16.mxu0 %v8938
    %14886 = vmatpush1.bf16.msra.mxu0 %v8937
    %14887 = vmatprep.subr.bf16.mxu0 %v8954
    %14888 = vmatpush1.bf16.msra.mxu0 %v8953
    %14889 = vmatprep.subr.bf16.mxu0 %v8970
    %14890 = vmatpush1.bf16.msra.mxu0 %v8969
    %14891 = vmatprep.subr.bf16.mxu0 %v8986
    %14892 = vmatpush1.bf16.msra.mxu0 %v8985
    %14893 = vmatprep.subr.bf16.mxu0 %v9002
    %14894 = vmatpush1.bf16.msra.mxu0 %v9001
    %14895 = vmatprep.subr.bf16.mxu0 %v9018
    %14896 = vmatpush1.bf16.msra.mxu0 %v9017
    %14897 = vmatprep.subr.bf16.mxu0 %v9034
    %14898 = vmatpush1.bf16.msra.mxu0 %v9033
    %14899 = vmatprep.subr.bf16.mxu0 %v9050
    %14900 = vmatpush1.bf16.msra.mxu0 %v9049
    %14901 = vmatprep.subr.bf16.mxu0 %v9066
    %14902 = vmatpush1.bf16.msra.mxu0 %v9065
    %14903 = vmatprep.subr.bf16.mxu0 %v9082
    %14904 = vmatpush1.bf16.msra.mxu0 %v9081
    %14905 = vmatprep.subr.bf16.mxu0 %v9098
    %14906 = vmatpush1.bf16.msra.mxu0 %v9097
    %14907 = vmatprep.subr.bf16.mxu0 %v9114
    %14908 = vmatpush1.bf16.msra.mxu0 %v9113
    %14909 = vmatprep.subr.bf16.mxu0 %v9130
    %14910 = vmatpush1.bf16.msra.mxu0 %v9129
    %14911 = vmatprep.subr.bf16.mxu0 %v9146
    %14912 = vmatpush1.bf16.msra.mxu0 %v9145
    %14913 = vmatprep.subr.bf16.mxu0 %v9162
    %14914 = vmatpush1.bf16.msra.mxu0 %v9161
    %14915 = vmatprep.subr.bf16.mxu0 %v9178
    %14916 = vmatpush1.bf16.msra.mxu0 %v9177
    %14917 = vmatprep.mubr.bf16.mxu0 %v2240
    %14918 = vmatmul.mubr.bf16.gmra.mrb[0].mxu0 %v2239
    %v14919 = vpop.f32.mrb[0].mxu0
    %v14920 = vadd.f32 %v14879, %v14919
    %v14921 = vpop.f32.mrb[0].mxu0
    %v14922 = vadd.f32 %v14881, %v14921
    %v14923 = vpop.f32.mrb[0].mxu0
    %v14924 = vpop.f32.mrb[0].mxu0
    %14925 = vdwg.mxu0
    %14926 = vmatprep.subr.bf16.mxu0 %v9194
    %14927 = vmatpush1.bf16.msra.mxu0 %v9193
    %14928 = vmatprep.subr.bf16.mxu0 %v9210
    %14929 = vmatpush1.bf16.msra.mxu0 %v9209
    %14930 = vmatprep.subr.bf16.mxu0 %v9226
    %14931 = vmatpush1.bf16.msra.mxu0 %v9225
    %14932 = vmatprep.subr.bf16.mxu0 %v9242
    %14933 = vmatpush1.bf16.msra.mxu0 %v9241
    %14934 = vmatprep.subr.bf16.mxu0 %v9258
    %14935 = vmatpush1.bf16.msra.mxu0 %v9257
    %14936 = vmatprep.subr.bf16.mxu0 %v9274
    %14937 = vmatpush1.bf16.msra.mxu0 %v9273
    %14938 = vmatprep.subr.bf16.mxu0 %v9290
    %14939 = vmatpush1.bf16.msra.mxu0 %v9289
    %14940 = vmatprep.subr.bf16.mxu0 %v9306
    %14941 = vmatpush1.bf16.msra.mxu0 %v9305
    %14942 = vmatprep.subr.bf16.mxu0 %v9322
    %14943 = vmatpush1.bf16.msra.mxu0 %v9321
    %14944 = vmatprep.subr.bf16.mxu0 %v9338
    %14945 = vmatpush1.bf16.msra.mxu0 %v9337
    %14946 = vmatprep.subr.bf16.mxu0 %v9354
    %14947 = vmatpush1.bf16.msra.mxu0 %v9353
    %14948 = vmatprep.subr.bf16.mxu0 %v9370
    %14949 = vmatpush1.bf16.msra.mxu0 %v9369
    %14950 = vmatprep.subr.bf16.mxu0 %v9386
    %14951 = vmatpush1.bf16.msra.mxu0 %v9385
    %14952 = vmatprep.subr.bf16.mxu0 %v9402
    %14953 = vmatpush1.bf16.msra.mxu0 %v9401
    %14954 = vmatprep.subr.bf16.mxu0 %v9418
    %14955 = vmatpush1.bf16.msra.mxu0 %v9417
    %14956 = vmatprep.subr.bf16.mxu0 %v9434
    %14957 = vmatpush1.bf16.msra.mxu0 %v9433
    %14958 = vmatprep.mubr.bf16.mxu0 %v2242
    %14959 = vmatmul.mubr.bf16.gmra.mrb[0].mxu0 %v2241
    %v14960 = vpop.f32.mrb[0].mxu0
    %v14961 = vadd.f32 %v14920, %v14960
    %v14962 = vpop.f32.mrb[0].mxu0
    %v14963 = vadd.f32 %v14922, %v14962
    %v14964 = vpop.f32.mrb[0].mxu0
    %v14965 = vpop.f32.mrb[0].mxu0
    %14966 = vdwg.mxu0
    %14967 = vmatprep.subr.bf16.mxu0 %v9450
    %14968 = vmatpush1.bf16.msra.mxu0 %v9449
    %14969 = vmatprep.subr.bf16.mxu0 %v9466
    %14970 = vmatpush1.bf16.msra.mxu0 %v9465
    %14971 = vmatprep.subr.bf16.mxu0 %v9482
    %14972 = vmatpush1.bf16.msra.mxu0 %v9481
    %14973 = vmatprep.subr.bf16.mxu0 %v9498
    %14974 = vmatpush1.bf16.msra.mxu0 %v9497
    %14975 = vmatprep.subr.bf16.mxu0 %v9514
    %14976 = vmatpush1.bf16.msra.mxu0 %v9513
    %14977 = vmatprep.subr.bf16.mxu0 %v9530
    %14978 = vmatpush1.bf16.msra.mxu0 %v9529
    %14979 = vmatprep.subr.bf16.mxu0 %v9546
    %14980 = vmatpush1.bf16.msra.mxu0 %v9545
    %14981 = vmatprep.subr.bf16.mxu0 %v9562
    %14982 = vmatpush1.bf16.msra.mxu0 %v9561
    %14983 = vmatprep.subr.bf16.mxu0 %v9578
    %14984 = vmatpush1.bf16.msra.mxu0 %v9577
    %14985 = vmatprep.subr.bf16.mxu0 %v9594
    %14986 = vmatpush1.bf16.msra.mxu0 %v9593
    %14987 = vmatprep.subr.bf16.mxu0 %v9610
    %14988 = vmatpush1.bf16.msra.mxu0 %v9609
    %14989 = vmatprep.subr.bf16.mxu0 %v9626
    %14990 = vmatpush1.bf16.msra.mxu0 %v9625
    %14991 = vmatprep.subr.bf16.mxu0 %v9642
    %14992 = vmatpush1.bf16.msra.mxu0 %v9641
    %14993 = vmatprep.subr.bf16.mxu0 %v9658
    %14994 = vmatpush1.bf16.msra.mxu0 %v9657
    %14995 = vmatprep.subr.bf16.mxu0 %v9674
    %14996 = vmatpush1.bf16.msra.mxu0 %v9673
    %14997 = vmatprep.subr.bf16.mxu0 %v9690
    %14998 = vmatpush1.bf16.msra.mxu0 %v9689
    %14999 = vmatprep.mubr.bf16.mxu0 %v2244
    %15000 = vmatmul.mubr.bf16.gmra.mrb[0].mxu0 %v2243
    %v15001 = vpop.f32.mrb[0].mxu0
    %v15002 = vadd.f32 %v14961, %v15001
    %v15003 = vpop.f32.mrb[0].mxu0
    %v15004 = vadd.f32 %v14963, %v15003
    %v15005 = vpop.f32.mrb[0].mxu0
    %v15006 = vpop.f32.mrb[0].mxu0
    %15007 = vdwg.mxu0
    %15008 = vmatprep.subr.bf16.mxu0 %v9706
    %15009 = vmatpush1.bf16.msra.mxu0 %v9705
    %15010 = vmatprep.subr.bf16.mxu0 %v9722
    %15011 = vmatpush1.bf16.msra.mxu0 %v9721
    %15012 = vmatprep.subr.bf16.mxu0 %v9738
    %15013 = vmatpush1.bf16.msra.mxu0 %v9737
    %15014 = vmatprep.subr.bf16.mxu0 %v9754
    %15015 = vmatpush1.bf16.msra.mxu0 %v9753
    %15016 = vmatprep.subr.bf16.mxu0 %v9770
    %15017 = vmatpush1.bf16.msra.mxu0 %v9769
    %15018 = vmatprep.subr.bf16.mxu0 %v9786
    %15019 = vmatpush1.bf16.msra.mxu0 %v9785
    %15020 = vmatprep.subr.bf16.mxu0 %v9802
    %15021 = vmatpush1.bf16.msra.mxu0 %v9801
    %15022 = vmatprep.subr.bf16.mxu0 %v9818
    %15023 = vmatpush1.bf16.msra.mxu0 %v9817
    %15024 = vmatprep.subr.bf16.mxu0 %v9834
    %15025 = vmatpush1.bf16.msra.mxu0 %v9833
    %15026 = vmatprep.subr.bf16.mxu0 %v9850
    %15027 = vmatpush1.bf16.msra.mxu0 %v9849
    %15028 = vmatprep.subr.bf16.mxu0 %v9866
    %15029 = vmatpush1.bf16.msra.mxu0 %v9865
    %15030 = vmatprep.subr.bf16.mxu0 %v9882
    %15031 = vmatpush1.bf16.msra.mxu0 %v9881
    %15032 = vmatprep.subr.bf16.mxu0 %v9898
    %15033 = vmatpush1.bf16.msra.mxu0 %v9897
    %15034 = vmatprep.subr.bf16.mxu0 %v9914
    %15035 = vmatpush1.bf16.msra.mxu0 %v9913
    %15036 = vmatprep.subr.bf16.mxu0 %v9930
    %15037 = vmatpush1.bf16.msra.mxu0 %v9929
    %15038 = vmatprep.subr.bf16.mxu0 %v9946
    %15039 = vmatpush1.bf16.msra.mxu0 %v9945
    %15040 = vmatprep.mubr.bf16.mxu0 %v2246
    %15041 = vmatmul.mubr.bf16.gmra.mrb[0].mxu0 %v2245
    %v15042 = vpop.f32.mrb[0].mxu0
    %v15043 = vadd.f32 %v15002, %v15042
    %v15044 = vpop.f32.mrb[0].mxu0
    %v15045 = vadd.f32 %v15004, %v15044
    %v15046 = vpop.f32.mrb[0].mxu0
    %v15047 = vpop.f32.mrb[0].mxu0
    %15048 = vdwg.mxu0
    %15049 = vmatprep.subr.bf16.mxu0 %v9962
    %15050 = vmatpush1.bf16.msra.mxu0 %v9961
    %15051 = vmatprep.subr.bf16.mxu0 %v9978
    %15052 = vmatpush1.bf16.msra.mxu0 %v9977
    %15053 = vmatprep.subr.bf16.mxu0 %v9994
    %15054 = vmatpush1.bf16.msra.mxu0 %v9993
    %15055 = vmatprep.subr.bf16.mxu0 %v10010
    %15056 = vmatpush1.bf16.msra.mxu0 %v10009
    %15057 = vmatprep.subr.bf16.mxu0 %v10026
    %15058 = vmatpush1.bf16.msra.mxu0 %v10025
    %15059 = vmatprep.subr.bf16.mxu0 %v10042
    %15060 = vmatpush1.bf16.msra.mxu0 %v10041
    %15061 = vmatprep.subr.bf16.mxu0 %v10058
    %15062 = vmatpush1.bf16.msra.mxu0 %v10057
    %15063 = vmatprep.subr.bf16.mxu0 %v10074
    %15064 = vmatpush1.bf16.msra.mxu0 %v10073
    %15065 = vmatprep.subr.bf16.mxu0 %v10090
    %15066 = vmatpush1.bf16.msra.mxu0 %v10089
    %15067 = vmatprep.subr.bf16.mxu0 %v10106
    %15068 = vmatpush1.bf16.msra.mxu0 %v10105
    %15069 = vmatprep.subr.bf16.mxu0 %v10122
    %15070 = vmatpush1.bf16.msra.mxu0 %v10121
    %15071 = vmatprep.subr.bf16.mxu0 %v10138
    %15072 = vmatpush1.bf16.msra.mxu0 %v10137
    %15073 = vmatprep.subr.bf16.mxu0 %v10154
    %15074 = vmatpush1.bf16.msra.mxu0 %v10153
    %15075 = vmatprep.subr.bf16.mxu0 %v10170
    %15076 = vmatpush1.bf16.msra.mxu0 %v10169
    %15077 = vmatprep.subr.bf16.mxu0 %v10186
    %15078 = vmatpush1.bf16.msra.mxu0 %v10185
    %15079 = vmatprep.subr.bf16.mxu0 %v10202
    %15080 = vmatpush1.bf16.msra.mxu0 %v10201
    %15081 = vmatprep.mubr.bf16.mxu0 %v2248
    %15082 = vmatmul.mubr.bf16.gmra.mrb[0].mxu0 %v2247
    %v15083 = vpop.f32.mrb[0].mxu0
    %v15084 = vadd.f32 %v15043, %v15083
    %v15085 = vpop.f32.mrb[0].mxu0
    %v15086 = vadd.f32 %v15045, %v15085
    %v15087 = vpop.f32.mrb[0].mxu0
    %v15088 = vpop.f32.mrb[0].mxu0
    %15089 = vdwg.mxu0
    %15090 = vmatprep.subr.bf16.mxu0 %v10218
    %15091 = vmatpush1.bf16.msra.mxu0 %v10217
    %15092 = vmatprep.subr.bf16.mxu0 %v10234
    %15093 = vmatpush1.bf16.msra.mxu0 %v10233
    %15094 = vmatprep.subr.bf16.mxu0 %v10250
    %15095 = vmatpush1.bf16.msra.mxu0 %v10249
    %15096 = vmatprep.subr.bf16.mxu0 %v10266
    %15097 = vmatpush1.bf16.msra.mxu0 %v10265
    %15098 = vmatprep.subr.bf16.mxu0 %v10282
    %15099 = vmatpush1.bf16.msra.mxu0 %v10281
    %15100 = vmatprep.subr.bf16.mxu0 %v10298
    %15101 = vmatpush1.bf16.msra.mxu0 %v10297
    %15102 = vmatprep.subr.bf16.mxu0 %v10314
    %15103 = vmatpush1.bf16.msra.mxu0 %v10313
    %15104 = vmatprep.subr.bf16.mxu0 %v10330
    %15105 = vmatpush1.bf16.msra.mxu0 %v10329
    %15106 = vmatprep.subr.bf16.mxu0 %v10346
    %15107 = vmatpush1.bf16.msra.mxu0 %v10345
    %15108 = vmatprep.subr.bf16.mxu0 %v10362
    %15109 = vmatpush1.bf16.msra.mxu0 %v10361
    %15110 = vmatprep.subr.bf16.mxu0 %v10378
    %15111 = vmatpush1.bf16.msra.mxu0 %v10377
    %15112 = vmatprep.subr.bf16.mxu0 %v10394
    %15113 = vmatpush1.bf16.msra.mxu0 %v10393
    %15114 = vmatprep.subr.bf16.mxu0 %v10410
    %15115 = vmatpush1.bf16.msra.mxu0 %v10409
    %15116 = vmatprep.subr.bf16.mxu0 %v10426
    %15117 = vmatpush1.bf16.msra.mxu0 %v10425
    %15118 = vmatprep.subr.bf16.mxu0 %v10442
    %15119 = vmatpush1.bf16.msra.mxu0 %v10441
    %15120 = vmatprep.subr.bf16.mxu0 %v10458
    %15121 = vmatpush1.bf16.msra.mxu0 %v10457
    %15122 = vmatprep.mubr.bf16.mxu0 %v2250
    %15123 = vmatmul.mubr.bf16.gmra.mrb[0].mxu0 %v2249
    %v15124 = vpop.f32.mrb[0].mxu0
    %v15125 = vadd.f32 %v15084, %v15124
    %v15126 = vpop.f32.mrb[0].mxu0
    %v15127 = vadd.f32 %v15086, %v15126
    %v15128 = vpop.f32.mrb[0].mxu0
    %v15129 = vpop.f32.mrb[0].mxu0
    %15130 = vdwg.mxu0
    %v15131 = vmax.f32 %v12829, 0.0
    %v15132 = vmax.f32 %v12831, 0.0
    %v15133 = vmax.f32 %v13157, 0.0
    %v15134 = vmax.f32 %v13159, 0.0
    %v15135 = vmax.f32 %v13485, 0.0
    %v15136 = vmax.f32 %v13487, 0.0
    %v15137 = vmax.f32 %v13813, 0.0
    %v15138 = vmax.f32 %v13815, 0.0
    %v15139 = vmax.f32 %v14141, 0.0
    %v15140 = vmax.f32 %v14143, 0.0
    %v15141 = vmax.f32 %v14469, 0.0
    %v15142 = vmax.f32 %v14471, 0.0
    %v15143 = vmax.f32 %v14797, 0.0
    %v15144 = vmax.f32 %v14799, 0.0
    %v15145 = vmax.f32 %v15125, 0.0
    %v15146 = vmax.f32 %v15127, 0.0
    %v15147 = vld [vmem:[#allocation8] sm:$0xff]
    %v15148 = vld [vmem:[#allocation8 + $0x8] sm:$0xff]
    %v15151 = vlaneseq
    %v15152 = vshrl.u32 %v15151, 7
    %v15153 = vsub.s32 0, %v15152
    %v15154 = vrot.slane %v15147, %v15153
    %v15155 = vlaneseq
    %v15156 = vshrl.u32 %v15155, 7
    %v15157 = vsub.s32 1, %v15156
    %v15158 = vrot.slane %v15147, %v15157
    %v15159 = vlaneseq
    %v15160 = vshrl.u32 %v15159, 7
    %v15161 = vsub.s32 2, %v15160
    %v15162 = vrot.slane %v15147, %v15161
    %v15163 = vlaneseq
    %v15164 = vshrl.u32 %v15163, 7
    %v15165 = vsub.s32 3, %v15164
    %v15166 = vrot.slane %v15147, %v15165
    %v15167 = vlaneseq
    %v15168 = vshrl.u32 %v15167, 7
    %v15169 = vsub.s32 4, %v15168
    %v15170 = vrot.slane %v15147, %v15169
    %v15171 = vlaneseq
    %v15172 = vshrl.u32 %v15171, 7
    %v15173 = vsub.s32 5, %v15172
    %v15174 = vrot.slane %v15147, %v15173
    %v15175 = vlaneseq
    %v15176 = vshrl.u32 %v15175, 7
    %v15177 = vsub.s32 6, %v15176
    %v15178 = vrot.slane %v15147, %v15177
    %v15179 = vlaneseq
    %v15180 = vshrl.u32 %v15179, 7
    %v15181 = vsub.s32 7, %v15180
    %v15182 = vrot.slane %v15147, %v15181
    %v15183 = vlaneseq
    %v15184 = vshrl.u32 %v15183, 7
    %v15185 = vsub.s32 0, %v15184
    %v15186 = vrot.slane %v15148, %v15185
    %v15187 = vlaneseq
    %v15188 = vshrl.u32 %v15187, 7
    %v15189 = vsub.s32 1, %v15188
    %v15190 = vrot.slane %v15148, %v15189
    %v15191 = vlaneseq
    %v15192 = vshrl.u32 %v15191, 7
    %v15193 = vsub.s32 2, %v15192
    %v15194 = vrot.slane %v15148, %v15193
    %v15195 = vlaneseq
    %v15196 = vshrl.u32 %v15195, 7
    %v15197 = vsub.s32 3, %v15196
    %v15198 = vrot.slane %v15148, %v15197
    %v15199 = vlaneseq
    %v15200 = vshrl.u32 %v15199, 7
    %v15201 = vsub.s32 4, %v15200
    %v15202 = vrot.slane %v15148, %v15201
    %v15203 = vlaneseq
    %v15204 = vshrl.u32 %v15203, 7
    %v15205 = vsub.s32 5, %v15204
    %v15206 = vrot.slane %v15148, %v15205
    %v15207 = vlaneseq
    %v15208 = vshrl.u32 %v15207, 7
    %v15209 = vsub.s32 6, %v15208
    %v15210 = vrot.slane %v15148, %v15209
    %v15211 = vlaneseq
    %v15212 = vshrl.u32 %v15211, 7
    %v15213 = vsub.s32 7, %v15212
    %v15214 = vrot.slane %v15148, %v15213
    %v15231 = vmul.f32 %v15131, %v15154
    %v15232 = vmul.f32 %v15132, %v15158
    %v15233 = vmul.f32 %v15133, %v15162
    %v15234 = vmul.f32 %v15134, %v15166
    %v15235 = vmul.f32 %v15135, %v15170
    %v15236 = vmul.f32 %v15136, %v15174
    %v15237 = vmul.f32 %v15137, %v15178
    %v15238 = vmul.f32 %v15138, %v15182
    %v15239 = vmul.f32 %v15139, %v15186
    %v15240 = vmul.f32 %v15140, %v15190
    %v15241 = vmul.f32 %v15141, %v15194
    %v15242 = vmul.f32 %v15142, %v15198
    %v15243 = vmul.f32 %v15143, %v15202
    %v15244 = vmul.f32 %v15144, %v15206
    %v15245 = vmul.f32 %v15145, %v15210
    %v15246 = vmul.f32 %v15146, %v15214
    %v15247 = vadd.f32 %v15231, %v15232
    %v15248 = vadd.f32 %v15247, %v15233
    %v15249 = vadd.f32 %v15248, %v15234
    %v15250 = vadd.f32 %v15249, %v15235
    %v15251 = vadd.f32 %v15250, %v15236
    %v15252 = vadd.f32 %v15251, %v15237
    %v15253 = vadd.f32 %v15252, %v15238
    %v15254 = vadd.f32 %v15253, %v15239
    %v15255 = vadd.f32 %v15254, %v15240
    %v15256 = vadd.f32 %v15255, %v15241
    %v15257 = vadd.f32 %v15256, %v15242
    %v15258 = vadd.f32 %v15257, %v15243
    %v15259 = vadd.f32 %v15258, %v15244
    %v15260 = vadd.f32 %v15259, %v15245
    %v15261 = vadd.f32 %v15260, %v15246
    %15262 = vadd.xlane.f32.xlu0 %v15261
    %v15263 = vpop.xlane.xlu0 %15262
    %p15264 = scmp.eq.s32.totalorder 0, 0
    %v15265 = vld [vmem:[#allocation2] sm:$0x1]
    %s15266 = scalar_select %p15264, 1, 0
    %v15267 = vstv %s15266
    %vm15268 = vcmp.eq.s32.totalorder %v15267, 1
    %v15269 = vsel %vm15268, %v15265, 0.0
    %v15271 = vlaneseq
    %v15272 = vshrl.u32 %v15271, 7
    %v15273 = vsub.s32 0, %v15272
    %v15274 = vrot.slane %v15269, %v15273
    %v15276 = vadd.f32 %v15263, %v15274
    %vm15277 = vcmask 7168
    %15278 = vst.msk [vmem:[%s5] sm:$0xff] %vm15277, %v15276
    // Predicated region
    $region38: #{binary_classifier_forward.1} parent=1 // pred_check
      _
    $region39: #{binary_classifier_forward.1} parent=1 // pred_check_branch
      %15280 = sbr.rel (0) target = $region41
    $region40: #{binary_classifier_forward.1} parent=1 // pred_region
      _
    $region41: #{binary_classifier_forward.1} parent=1 // pred_fallthru
      _
    // Predicated region
    $region42: #{binary_classifier_forward.1} parent=1 // pred_check
      _
    $region43: #{binary_classifier_forward.1} parent=1 // pred_check_branch
      %15282 = sbr.rel (0) target = $region45
    $region44: #{binary_classifier_forward.1} parent=1 // pred_region
      _
    $region45: #{binary_classifier_forward.1} parent=1 // pred_fallthru
      _
    %15283 = vsyncpa [#allocation4], 1
    %15284 = vsyncpa [#allocation6], 1
    %15285 = vsyncpa [#allocation9], 1

</llo_original>
